<compile_context>
chip_gen: v6e
topology: v6e:2x2x1
jax: 0.10.0
libtpu: 0.0.40
codegen_flags: <defaults>
</compile_context>

<pallas_src>
import jax
import jax.numpy as jnp
from jax.experimental import pallas as pl
from jax.experimental.pallas import tpu as pltpu


LANE = 128
SUBLANE = 16                     # bf16 sublane packing -> round M tiles to 16
_TM_CAP = 2048                   # hard cap on the M tile
_TILE_BUDGET = 8 * 1024 * 1024   # bytes for the double-buffered streamed tile
_VMEM_LIMIT = 48 * 1024 * 1024   # sized against v7x's 64 MiB physical VMEM


def _round_up(x, m):
    return (x + m - 1) // m * m


def _pick_tm(M, row_bytes):
    """M-tile size: as large as the VMEM budget allows, multiple of SUBLANE."""
    tm = _TILE_BUDGET // (2 * max(row_bytes, 1))   # x2 for double buffering
    tm = max(SUBLANE, min(_TM_CAP, tm))
    tm = (tm // SUBLANE) * SUBLANE
    return min(tm, _round_up(M, SUBLANE))


# ----------------------------------------------------------------------------
# Pallas kernels
# ----------------------------------------------------------------------------
def _matmul_bias_relu_kernel(p_ref, w_ref, b_ref, o_ref):
    # p_ref: (tm, Kp) bf16 im2col tile (streamed / pipelined over the grid)
    # w_ref: (Kp, Cp) bf16 weights (resident), b_ref: (1, Cp) f32 bias (resident)
    # o_ref: (tm, Cp) bf16 output tile
    acc = jnp.dot(p_ref[...], w_ref[...], preferred_element_type=jnp.float32)
    acc = acc + b_ref[...]
    o_ref[...] = jnp.maximum(acc, 0.0).astype(o_ref.dtype)


def _maxpool_kernel(p_ref, o_ref):
    # p_ref: (k*k, tm, C) stacked pooling windows -> elementwise max over axis 0
    o_ref[...] = jnp.max(p_ref[...], axis=0)


def _compiler_params():
    return pltpu.CompilerParams(
        dimension_semantics=("parallel",),
        vmem_limit_bytes=_VMEM_LIMIT,
    )


# ----------------------------------------------------------------------------
# Layer wrappers (window extraction staged in XLA, compute in Pallas)
# ----------------------------------------------------------------------------
def _extract_windows(x, kh, kw, stride):
    """x: (N, Hp, Wp, C) already padded -> list of kh*kw (N, Ho, Wo, C) slices."""
    N, Hp, Wp, C = x.shape
    Ho = (Hp - kh) // stride + 1
    Wo = (Wp - kw) // stride + 1
    wins = []
    for i in range(kh):
        for j in range(kw):
            wins.append(
                jax.lax.slice(
                    x,
                    (0, i, j, 0),
                    (N, i + stride * (Ho - 1) + 1, j + stride * (Wo - 1) + 1, C),
                    (1, stride, stride, 1),
                )
            )
    return wins, Ho, Wo


def conv2d_relu(x, w2d, b2d, cout, k, stride, padding):
    """x: (N,H,W,C) bf16; w2d: (Kp,Cp) bf16 pre-transposed/padded; b2d: (1,Cp) f32."""
    N, H, W, C = x.shape
    Kp, Cp = w2d.shape
    xp = jnp.pad(x, ((0, 0), (padding, padding), (padding, padding), (0, 0)))
    wins, Ho, Wo = _extract_windows(xp, k, k, stride)
    M = N * Ho * Wo
    K = k * k * C
    patches = jnp.stack(wins, axis=3).reshape(M, K)   # row layout = (kh, kw, cin)

    tm = _pick_tm(M, Kp * 2)
    m_pad = _round_up(M, tm)
    patches = jnp.pad(patches, ((0, m_pad - M), (0, Kp - K)))

    cost = pl.CostEstimate(
        flops=2 * m_pad * Kp * Cp,
        transcendentals=0,
        bytes_accessed=patches.size * 2 + w2d.size * 2 + b2d.size * 4 + m_pad * Cp * 2,
    )
    out = pl.pallas_call(
        _matmul_bias_relu_kernel,
        out_shape=jax.ShapeDtypeStruct((m_pad, Cp), jnp.bfloat16),
        grid=(m_pad // tm,),
        in_specs=[
            pl.BlockSpec((tm, Kp), lambda i: (i, 0)),   # streamed patch tiles
            pl.BlockSpec((Kp, Cp), lambda i: (0, 0)),   # resident weights
            pl.BlockSpec((1, Cp), lambda i: (0, 0)),    # resident bias
        ],
        out_specs=pl.BlockSpec((tm, Cp), lambda i: (i, 0)),
        compiler_params=_compiler_params(),
        cost_estimate=cost,
    )(patches, w2d, b2d)
    return out[:M, :cout].reshape(N, Ho, Wo, cout)


def maxpool2d(x, k, stride):
    """x: (N,H,W,C) bf16; PyTorch MaxPool2d(kernel=k, stride=stride), no padding."""
    N, H, W, C = x.shape
    wins, Ho, Wo = _extract_windows(x, k, k, stride)
    M = N * Ho * Wo
    p = jnp.stack(wins, axis=0).reshape(k * k, M, C)

    tm = _pick_tm(M, k * k * C * 2)
    m_pad = _round_up(M, tm)
    p = jnp.pad(p, ((0, 0), (0, m_pad - M), (0, 0)))

    out = pl.pallas_call(
        _maxpool_kernel,
        out_shape=jax.ShapeDtypeStruct((m_pad, C), x.dtype),
        grid=(m_pad // tm,),
        in_specs=[pl.BlockSpec((k * k, tm, C), lambda i: (0, i, 0))],
        out_specs=pl.BlockSpec((tm, C), lambda i: (i, 0)),
        compiler_params=_compiler_params(),
    )(p)
    # TODO(synk): fuse this pool into the preceding conv epilogue to drop one
    # activation HBM round-trip and the k*k window stacking.
    return out[:M].reshape(N, Ho, Wo, C)


# ----------------------------------------------------------------------------
# AlexNet `features` definition and deterministic parameter init.
# ----------------------------------------------------------------------------
_CONV_CFGS = [
    # (cin, cout, k, stride, pad) — each conv is followed by ReLU
    (3, 64, 11, 4, 2),
    (64, 192, 5, 1, 2),
    (192, 384, 3, 1, 1),
    (384, 256, 3, 1, 1),
    (256, 256, 3, 1, 1),
]
_LAYERS = [
    ("conv", 0), ("pool", 3, 2),
    ("conv", 1), ("pool", 3, 2),
    ("conv", 2), ("conv", 3), ("conv", 4), ("pool", 3, 2),
]


def init_raw_params(key):
    """Deterministic He-style init; PyTorch-layout weights (Cout,Cin,kh,kw) f32."""
    raw = []
    for cin, cout, k, _s, _p in _CONV_CFGS:
        key, wk, bk = jax.random.split(key, 3)
        fan_in = cin * k * k
        w = jax.random.normal(wk, (cout, cin, k, k), jnp.float32) * (2.0 / fan_in) ** 0.5
        b = jax.random.normal(bk, (cout,), jnp.float32) * 0.01
        raw.append((w, b))
    return raw


def prepare_params(raw):
    """Pre-transpose / reshape / pad once for the kernels.

    (Cout,Cin,kh,kw) -> (kh,kw,Cin,Cout) -> (kh*kw*Cin, Cout); K padded to a
    multiple of 128 and Cout padded to a multiple of 128 lanes so both the MXU
    operand and the output stores are lane-dense. Pad channels are zero-weight,
    zero-bias and sliced off after the kernel.
    """
    params = []
    for (w, b), (cin, cout, k, _s, _p) in zip(raw, _CONV_CFGS):
        k_raw = k * k * cin
        kp = _round_up(k_raw, LANE)
        cp = _round_up(cout, LANE)
        w2d = jnp.transpose(w, (2, 3, 1, 0)).reshape(k_raw, cout)
        w2d = jnp.pad(w2d, ((0, kp - k_raw), (0, cp - cout))).astype(jnp.bfloat16)
        b2d = jnp.pad(b, (0, cp - cout)).reshape(1, cp).astype(jnp.float32)
        params.append((w2d, b2d))
    return params


@jax.jit
def alexnet_features(x_nchw, params):
    """Forward pass of AlexNet.features. Input NCHW f32, output NCHW f32."""
    x = jnp.transpose(x_nchw, (0, 2, 3, 1)).astype(jnp.bfloat16)  # NHWC, bf16 acts
    for layer in _LAYERS:
        if layer[0] == "conv":
            idx = layer[1]
            _cin, cout, k, s, p = _CONV_CFGS[idx]
            w2d, b2d = params[idx]
            x = conv2d_relu(x, w2d, b2d, cout, k, s, p)
        else:
            _, k, s = layer
            x = maxpool2d(x, k, s)
    return jnp.transpose(x, (0, 3, 1, 2)).astype(jnp.float32)  # -> NCHW f32


def reference_features(x_nchw, raw):
    """Pure-XLA reference with the same bf16 activation pipeline."""
    x = jnp.transpose(x_nchw, (0, 2, 3, 1)).astype(jnp.bfloat16)
    for layer in _LAYERS:
        if layer[0] == "conv":
            idx = layer[1]
            _cin, _cout, k, s, p = _CONV_CFGS[idx]
            w, b = raw[idx]
            w_hwio = jnp.transpose(w, (2, 3, 1, 0)).astype(jnp.bfloat16)
            y = jax.lax.conv_general_dilated(
                x, w_hwio, window_strides=(s, s), padding=[(p, p), (p, p)],
                dimension_numbers=("NHWC", "HWIO", "NHWC"),
                preferred_element_type=jnp.float32)
            y = y + b[None, None, None, :]
            x = jnp.maximum(y, 0.0).astype(jnp.bfloat16)
        else:
            _, k, s = layer
            init = jnp.array(-jnp.inf, dtype=x.dtype)
            x = jax.lax.reduce_window(
                x, init, jax.lax.max, (1, k, k, 1), (1, s, s, 1), "VALID")
    return jnp.transpose(x, (0, 3, 1, 2)).astype(jnp.float32)


if __name__ == "__main__":
    key = jax.random.PRNGKey(0)
    pkey, xkey = jax.random.split(key)
    raw = init_raw_params(pkey)
    params = prepare_params(raw)
    # Smallest spatial size that survives AlexNet's stride schedule: 64x64.
    x = jax.random.normal(xkey, (2, 3, 64, 64), jnp.float32)

    out = jax.block_until_ready(alexnet_features(x, params))

    # AlexNet features on 64x64 input -> (N, 256, 1, 1)
    assert out.shape == (2, 256, 1, 1), out.shape
    assert out.dtype == jnp.float32
    assert bool(jnp.all(jnp.isfinite(out)))

    ref = jax.block_until_ready(reference_features(x, raw))
    assert bool(jnp.allclose(out, ref, atol=0.1, rtol=0.1)), (
        float(jnp.max(jnp.abs(out - ref))))
    print("KERNEL_OK")
</pallas_src>

<mosaic_0001>
module attributes {stable_mosaic.version = 11 : i64} {
  func.func @_matmul_bias_relu_kernel(%arg0: i32, %arg1: memref<464x384xbf16, #tpu.memory_space<vmem>>, %arg2: memref<384x128xbf16, #tpu.memory_space<vmem>>, %arg3: memref<1x128xf32, #tpu.memory_space<vmem>>, %arg4: memref<464x128xbf16, #tpu.memory_space<vmem>>) attributes {dimension_semantics = [#tpu.dimension_semantics<parallel>], iteration_bounds = array<i64: 1>, scalar_prefetch = 0 : i64, scratch_operands = 0 : i64, tpu.core_type = #tpu.core_type<tc>, window_params = [{transform_indices = @transform_0, window_bounds = array<i64: 464, 384>}, {pipeline_mode = #tpu.pipeline_mode<synchronous>, transform_indices = @transform_1, window_bounds = array<i64: 384, 128>}, {pipeline_mode = #tpu.pipeline_mode<synchronous>, transform_indices = @transform_2, window_bounds = array<i64: 1, 128>}, {transform_indices = @transform_3, window_bounds = array<i64: 464, 128>}]} {
    %c0 = arith.constant 0 : index
    %c0_0 = arith.constant 0 : index
    %0 = vector.load %arg1[%c0, %c0_0] : memref<464x384xbf16, #tpu.memory_space<vmem>>, vector<464x384xbf16>
    %c0_1 = arith.constant 0 : index
    %c0_2 = arith.constant 0 : index
    %1 = vector.load %arg2[%c0_1, %c0_2] : memref<384x128xbf16, #tpu.memory_space<vmem>>, vector<384x128xbf16>
    %cst = arith.constant dense<0.000000e+00> : vector<464x128xf32>
    %2 = tpu.matmul %0, %1, %cst {dimension_numbers = #tpu.dot_dimension_numbers<[1], [0], [0], [1], [0, 0, 1, 1], [], []>} : vector<464x384xbf16>, vector<384x128xbf16>, vector<464x128xf32> -> vector<464x128xf32>
    %c0_3 = arith.constant 0 : index
    %c0_4 = arith.constant 0 : index
    %3 = vector.load %arg3[%c0_3, %c0_4] : memref<1x128xf32, #tpu.memory_space<vmem>>, vector<1x128xf32>
    %4 = vector.broadcast %3 : vector<1x128xf32> to vector<464x128xf32>
    %5 = arith.addf %2, %4 : vector<464x128xf32>
    %cst_5 = arith.constant 0.000000e+00 : f32
    %6 = vector.broadcast %cst_5 : f32 to vector<464x128xf32>
    %7 = arith.maximumf %5, %6 : vector<464x128xf32>
    %8 = arith.truncf %7 : vector<464x128xf32> to vector<464x128xbf16>
    %c0_6 = arith.constant 0 : index
    %c0_7 = arith.constant 0 : index
    %9 = vector.load %arg4[%c0_6, %c0_7] : memref<464x128xbf16, #tpu.memory_space<vmem>>, vector<464x128xbf16>
    tpu.vector_store %arg4[%c0_6, %c0_7], %8 {strides = array<i32>} : memref<464x128xbf16, #tpu.memory_space<vmem>>, vector<464x128xbf16>,
    return
  }
  func.func @transform_0(%arg0: i32) -> (i32, i32) {
    %c0_i32 = arith.constant 0 : i32
    %c0_i32_0 = arith.constant 0 : i32
    return %arg0, %c0_i32 : i32, i32
  }
  func.func @transform_1(%arg0: i32) -> (i32, i32) {
    %c0_i32 = arith.constant 0 : i32
    %c0_i32_0 = arith.constant 0 : i32
    %c0_i32_1 = arith.constant 0 : i32
    return %c0_i32, %c0_i32_0 : i32, i32
  }
  func.func @transform_2(%arg0: i32) -> (i32, i32) {
    %c0_i32 = arith.constant 0 : i32
    %c0_i32_0 = arith.constant 0 : i32
    %c0_i32_1 = arith.constant 0 : i32
    return %c0_i32, %c0_i32_0 : i32, i32
  }
  func.func @transform_3(%arg0: i32) -> (i32, i32) {
    %c0_i32 = arith.constant 0 : i32
    %c0_i32_0 = arith.constant 0 : i32
    return %arg0, %c0_i32 : i32, i32
  }
}

module attributes {stable_mosaic.version = 11 : i64} {
  func.func @_maxpool_kernel(%arg0: i32, %arg1: memref<9x112x64xbf16, #tpu.memory_space<vmem>>, %arg2: memref<112x64xbf16, #tpu.memory_space<vmem>>) attributes {dimension_semantics = [#tpu.dimension_semantics<parallel>], iteration_bounds = array<i64: 1>, scalar_prefetch = 0 : i64, scratch_operands = 0 : i64, tpu.core_type = #tpu.core_type<tc>, window_params = [{transform_indices = @transform_0, window_bounds = array<i64: 9, 112, 64>}, {transform_indices = @transform_1, window_bounds = array<i64: 112, 64>}]} {
    %c0 = arith.constant 0 : index
    %c0_0 = arith.constant 0 : index
    %c0_1 = arith.constant 0 : index
    %0 = vector.load %arg1[%c0, %c0_0, %c0_1] : memref<9x112x64xbf16, #tpu.memory_space<vmem>>, vector<9x112x64xbf16>
    %cst = arith.constant dense<0xFF80> : vector<112x64xbf16>
    %1 = vector.multi_reduction <maximumf>, %0, %cst [0] : vector<9x112x64xbf16> to vector<112x64xbf16>
    %c0_2 = arith.constant 0 : index
    %c0_3 = arith.constant 0 : index
    %2 = vector.load %arg2[%c0_2, %c0_3] : memref<112x64xbf16, #tpu.memory_space<vmem>>, vector<112x64xbf16>
    tpu.vector_store %arg2[%c0_2, %c0_3], %1 {strides = array<i32>} : memref<112x64xbf16, #tpu.memory_space<vmem>>, vector<112x64xbf16>,
    return
  }
  func.func @transform_0(%arg0: i32) -> (i32, i32, i32) {
    %c0_i32 = arith.constant 0 : i32
    %c0_i32_0 = arith.constant 0 : i32
    %c0_i32_1 = arith.constant 0 : i32
    return %c0_i32, %arg0, %c0_i32_0 : i32, i32, i32
  }
  func.func @transform_1(%arg0: i32) -> (i32, i32) {
    %c0_i32 = arith.constant 0 : i32
    %c0_i32_0 = arith.constant 0 : i32
    return %arg0, %c0_i32 : i32, i32
  }
}

module attributes {stable_mosaic.version = 11 : i64} {
  func.func @_matmul_bias_relu_kernel(%arg0: i32, %arg1: memref<112x1664xbf16, #tpu.memory_space<vmem>>, %arg2: memref<1664x256xbf16, #tpu.memory_space<vmem>>, %arg3: memref<1x256xf32, #tpu.memory_space<vmem>>, %arg4: memref<112x256xbf16, #tpu.memory_space<vmem>>) attributes {dimension_semantics = [#tpu.dimension_semantics<parallel>], iteration_bounds = array<i64: 1>, scalar_prefetch = 0 : i64, scratch_operands = 0 : i64, tpu.core_type = #tpu.core_type<tc>, window_params = [{transform_indices = @transform_0, window_bounds = array<i64: 112, 1664>}, {pipeline_mode = #tpu.pipeline_mode<synchronous>, transform_indices = @transform_1, window_bounds = array<i64: 1664, 256>}, {pipeline_mode = #tpu.pipeline_mode<synchronous>, transform_indices = @transform_2, window_bounds = array<i64: 1, 256>}, {transform_indices = @transform_3, window_bounds = array<i64: 112, 256>}]} {
    %c0 = arith.constant 0 : index
    %c0_0 = arith.constant 0 : index
    %0 = vector.load %arg1[%c0, %c0_0] : memref<112x1664xbf16, #tpu.memory_space<vmem>>, vector<112x1664xbf16>
    %c0_1 = arith.constant 0 : index
    %c0_2 = arith.constant 0 : index
    %1 = vector.load %arg2[%c0_1, %c0_2] : memref<1664x256xbf16, #tpu.memory_space<vmem>>, vector<1664x256xbf16>
    %cst = arith.constant dense<0.000000e+00> : vector<112x256xf32>
    %2 = tpu.matmul %0, %1, %cst {dimension_numbers = #tpu.dot_dimension_numbers<[1], [0], [0], [1], [0, 0, 1, 1], [], []>} : vector<112x1664xbf16>, vector<1664x256xbf16>, vector<112x256xf32> -> vector<112x256xf32>
    %c0_3 = arith.constant 0 : index
    %c0_4 = arith.constant 0 : index
    %3 = vector.load %arg3[%c0_3, %c0_4] : memref<1x256xf32, #tpu.memory_space<vmem>>, vector<1x256xf32>
    %4 = vector.broadcast %3 : vector<1x256xf32> to vector<112x256xf32>
    %5 = arith.addf %2, %4 : vector<112x256xf32>
    %cst_5 = arith.constant 0.000000e+00 : f32
    %6 = vector.broadcast %cst_5 : f32 to vector<112x256xf32>
    %7 = arith.maximumf %5, %6 : vector<112x256xf32>
    %8 = arith.truncf %7 : vector<112x256xf32> to vector<112x256xbf16>
    %c0_6 = arith.constant 0 : index
    %c0_7 = arith.constant 0 : index
    %9 = vector.load %arg4[%c0_6, %c0_7] : memref<112x256xbf16, #tpu.memory_space<vmem>>, vector<112x256xbf16>
    tpu.vector_store %arg4[%c0_6, %c0_7], %8 {strides = array<i32>} : memref<112x256xbf16, #tpu.memory_space<vmem>>, vector<112x256xbf16>,
    return
  }
  func.func @transform_0(%arg0: i32) -> (i32, i32) {
    %c0_i32 = arith.constant 0 : i32
    %c0_i32_0 = arith.constant 0 : i32
    return %arg0, %c0_i32 : i32, i32
  }
  func.func @transform_1(%arg0: i32) -> (i32, i32) {
    %c0_i32 = arith.constant 0 : i32
    %c0_i32_0 = arith.constant 0 : i32
    %c0_i32_1 = arith.constant 0 : i32
    return %c0_i32, %c0_i32_0 : i32, i32
  }
  func.func @transform_2(%arg0: i32) -> (i32, i32) {
    %c0_i32 = arith.constant 0 : i32
    %c0_i32_0 = arith.constant 0 : i32
    %c0_i32_1 = arith.constant 0 : i32
    return %c0_i32, %c0_i32_0 : i32, i32
  }
  func.func @transform_3(%arg0: i32) -> (i32, i32) {
    %c0_i32 = arith.constant 0 : i32
    %c0_i32_0 = arith.constant 0 : i32
    return %arg0, %c0_i32 : i32, i32
  }
}

module attributes {stable_mosaic.version = 11 : i64} {
  func.func @_matmul_bias_relu_kernel(%arg0: i32, %arg1: memref<32x1792xbf16, #tpu.memory_space<vmem>>, %arg2: memref<1792x384xbf16, #tpu.memory_space<vmem>>, %arg3: memref<1x384xf32, #tpu.memory_space<vmem>>, %arg4: memref<32x384xbf16, #tpu.memory_space<vmem>>) attributes {dimension_semantics = [#tpu.dimension_semantics<parallel>], iteration_bounds = array<i64: 1>, scalar_prefetch = 0 : i64, scratch_operands = 0 : i64, tpu.core_type = #tpu.core_type<tc>, window_params = [{transform_indices = @transform_0, window_bounds = array<i64: 32, 1792>}, {pipeline_mode = #tpu.pipeline_mode<synchronous>, transform_indices = @transform_1, window_bounds = array<i64: 1792, 384>}, {pipeline_mode = #tpu.pipeline_mode<synchronous>, transform_indices = @transform_2, window_bounds = array<i64: 1, 384>}, {transform_indices = @transform_3, window_bounds = array<i64: 32, 384>}]} {
    %c0 = arith.constant 0 : index
    %c0_0 = arith.constant 0 : index
    %0 = vector.load %arg1[%c0, %c0_0] : memref<32x1792xbf16, #tpu.memory_space<vmem>>, vector<32x1792xbf16>
    %c0_1 = arith.constant 0 : index
    %c0_2 = arith.constant 0 : index
    %1 = vector.load %arg2[%c0_1, %c0_2] : memref<1792x384xbf16, #tpu.memory_space<vmem>>, vector<1792x384xbf16>
    %cst = arith.constant dense<0.000000e+00> : vector<32x384xf32>
    %2 = tpu.matmul %0, %1, %cst {dimension_numbers = #tpu.dot_dimension_numbers<[1], [0], [0], [1], [0, 0, 1, 1], [], []>} : vector<32x1792xbf16>, vector<1792x384xbf16>, vector<32x384xf32> -> vector<32x384xf32>
    %c0_3 = arith.constant 0 : index
    %c0_4 = arith.constant 0 : index
    %3 = vector.load %arg3[%c0_3, %c0_4] : memref<1x384xf32, #tpu.memory_space<vmem>>, vector<1x384xf32>
    %4 = vector.broadcast %3 : vector<1x384xf32> to vector<32x384xf32>
    %5 = arith.addf %2, %4 : vector<32x384xf32>
    %cst_5 = arith.constant 0.000000e+00 : f32
    %6 = vector.broadcast %cst_5 : f32 to vector<32x384xf32>
    %7 = arith.maximumf %5, %6 : vector<32x384xf32>
    %8 = arith.truncf %7 : vector<32x384xf32> to vector<32x384xbf16>
    %c0_6 = arith.constant 0 : index
    %c0_7 = arith.constant 0 : index
    %9 = vector.load %arg4[%c0_6, %c0_7] : memref<32x384xbf16, #tpu.memory_space<vmem>>, vector<32x384xbf16>
    tpu.vector_store %arg4[%c0_6, %c0_7], %8 {strides = array<i32>} : memref<32x384xbf16, #tpu.memory_space<vmem>>, vector<32x384xbf16>,
    return
  }
  func.func @transform_0(%arg0: i32) -> (i32, i32) {
    %c0_i32 = arith.constant 0 : i32
    %c0_i32_0 = arith.constant 0 : i32
    return %arg0, %c0_i32 : i32, i32
  }
  func.func @transform_1(%arg0: i32) -> (i32, i32) {
    %c0_i32 = arith.constant 0 : i32
    %c0_i32_0 = arith.constant 0 : i32
    %c0_i32_1 = arith.constant 0 : i32
    return %c0_i32, %c0_i32_0 : i32, i32
  }
  func.func @transform_2(%arg0: i32) -> (i32, i32) {
    %c0_i32 = arith.constant 0 : i32
    %c0_i32_0 = arith.constant 0 : i32
    %c0_i32_1 = arith.constant 0 : i32
    return %c0_i32, %c0_i32_0 : i32, i32
  }
  func.func @transform_3(%arg0: i32) -> (i32, i32) {
    %c0_i32 = arith.constant 0 : i32
    %c0_i32_0 = arith.constant 0 : i32
    return %arg0, %c0_i32 : i32, i32
  }
}

module attributes {stable_mosaic.version = 11 : i64} {
  func.func @_maxpool_kernel(%arg0: i32, %arg1: memref<9x32x192xbf16, #tpu.memory_space<vmem>>, %arg2: memref<32x192xbf16, #tpu.memory_space<vmem>>) attributes {dimension_semantics = [#tpu.dimension_semantics<parallel>], iteration_bounds = array<i64: 1>, scalar_prefetch = 0 : i64, scratch_operands = 0 : i64, tpu.core_type = #tpu.core_type<tc>, window_params = [{transform_indices = @transform_0, window_bounds = array<i64: 9, 32, 192>}, {transform_indices = @transform_1, window_bounds = array<i64: 32, 192>}]} {
    %c0 = arith.constant 0 : index
    %c0_0 = arith.constant 0 : index
    %c0_1 = arith.constant 0 : index
    %0 = vector.load %arg1[%c0, %c0_0, %c0_1] : memref<9x32x192xbf16, #tpu.memory_space<vmem>>, vector<9x32x192xbf16>
    %cst = arith.constant dense<0xFF80> : vector<32x192xbf16>
    %1 = vector.multi_reduction <maximumf>, %0, %cst [0] : vector<9x32x192xbf16> to vector<32x192xbf16>
    %c0_2 = arith.constant 0 : index
    %c0_3 = arith.constant 0 : index
    %2 = vector.load %arg2[%c0_2, %c0_3] : memref<32x192xbf16, #tpu.memory_space<vmem>>, vector<32x192xbf16>
    tpu.vector_store %arg2[%c0_2, %c0_3], %1 {strides = array<i32>} : memref<32x192xbf16, #tpu.memory_space<vmem>>, vector<32x192xbf16>,
    return
  }
  func.func @transform_0(%arg0: i32) -> (i32, i32, i32) {
    %c0_i32 = arith.constant 0 : i32
    %c0_i32_0 = arith.constant 0 : i32
    %c0_i32_1 = arith.constant 0 : i32
    return %c0_i32, %arg0, %c0_i32_0 : i32, i32, i32
  }
  func.func @transform_1(%arg0: i32) -> (i32, i32) {
    %c0_i32 = arith.constant 0 : i32
    %c0_i32_0 = arith.constant 0 : i32
    return %arg0, %c0_i32 : i32, i32
  }
}

module attributes {stable_mosaic.version = 11 : i64} {
  func.func @_matmul_bias_relu_kernel(%arg0: i32, %arg1: memref<32x3456xbf16, #tpu.memory_space<vmem>>, %arg2: memref<3456x256xbf16, #tpu.memory_space<vmem>>, %arg3: memref<1x256xf32, #tpu.memory_space<vmem>>, %arg4: memref<32x256xbf16, #tpu.memory_space<vmem>>) attributes {dimension_semantics = [#tpu.dimension_semantics<parallel>], iteration_bounds = array<i64: 1>, scalar_prefetch = 0 : i64, scratch_operands = 0 : i64, tpu.core_type = #tpu.core_type<tc>, window_params = [{transform_indices = @transform_0, window_bounds = array<i64: 32, 3456>}, {pipeline_mode = #tpu.pipeline_mode<synchronous>, transform_indices = @transform_1, window_bounds = array<i64: 3456, 256>}, {pipeline_mode = #tpu.pipeline_mode<synchronous>, transform_indices = @transform_2, window_bounds = array<i64: 1, 256>}, {transform_indices = @transform_3, window_bounds = array<i64: 32, 256>}]} {
    %c0 = arith.constant 0 : index
    %c0_0 = arith.constant 0 : index
    %0 = vector.load %arg1[%c0, %c0_0] : memref<32x3456xbf16, #tpu.memory_space<vmem>>, vector<32x3456xbf16>
    %c0_1 = arith.constant 0 : index
    %c0_2 = arith.constant 0 : index
    %1 = vector.load %arg2[%c0_1, %c0_2] : memref<3456x256xbf16, #tpu.memory_space<vmem>>, vector<3456x256xbf16>
    %cst = arith.constant dense<0.000000e+00> : vector<32x256xf32>
    %2 = tpu.matmul %0, %1, %cst {dimension_numbers = #tpu.dot_dimension_numbers<[1], [0], [0], [1], [0, 0, 1, 1], [], []>} : vector<32x3456xbf16>, vector<3456x256xbf16>, vector<32x256xf32> -> vector<32x256xf32>
    %c0_3 = arith.constant 0 : index
    %c0_4 = arith.constant 0 : index
    %3 = vector.load %arg3[%c0_3, %c0_4] : memref<1x256xf32, #tpu.memory_space<vmem>>, vector<1x256xf32>
    %4 = vector.broadcast %3 : vector<1x256xf32> to vector<32x256xf32>
    %5 = arith.addf %2, %4 : vector<32x256xf32>
    %cst_5 = arith.constant 0.000000e+00 : f32
    %6 = vector.broadcast %cst_5 : f32 to vector<32x256xf32>
    %7 = arith.maximumf %5, %6 : vector<32x256xf32>
    %8 = arith.truncf %7 : vector<32x256xf32> to vector<32x256xbf16>
    %c0_6 = arith.constant 0 : index
    %c0_7 = arith.constant 0 : index
    %9 = vector.load %arg4[%c0_6, %c0_7] : memref<32x256xbf16, #tpu.memory_space<vmem>>, vector<32x256xbf16>
    tpu.vector_store %arg4[%c0_6, %c0_7], %8 {strides = array<i32>} : memref<32x256xbf16, #tpu.memory_space<vmem>>, vector<32x256xbf16>,
    return
  }
  func.func @transform_0(%arg0: i32) -> (i32, i32) {
    %c0_i32 = arith.constant 0 : i32
    %c0_i32_0 = arith.constant 0 : i32
    return %arg0, %c0_i32 : i32, i32
  }
  func.func @transform_1(%arg0: i32) -> (i32, i32) {
    %c0_i32 = arith.constant 0 : i32
    %c0_i32_0 = arith.constant 0 : i32
    %c0_i32_1 = arith.constant 0 : i32
    return %c0_i32, %c0_i32_0 : i32, i32
  }
  func.func @transform_2(%arg0: i32) -> (i32, i32) {
    %c0_i32 = arith.constant 0 : i32
    %c0_i32_0 = arith.constant 0 : i32
    %c0_i32_1 = arith.constant 0 : i32
    return %c0_i32, %c0_i32_0 : i32, i32
  }
  func.func @transform_3(%arg0: i32) -> (i32, i32) {
    %c0_i32 = arith.constant 0 : i32
    %c0_i32_0 = arith.constant 0 : i32
    return %arg0, %c0_i32 : i32, i32
  }
}

module attributes {stable_mosaic.version = 11 : i64} {
  func.func @_matmul_bias_relu_kernel(%arg0: i32, %arg1: memref<32x2304xbf16, #tpu.memory_space<vmem>>, %arg2: memref<2304x256xbf16, #tpu.memory_space<vmem>>, %arg3: memref<1x256xf32, #tpu.memory_space<vmem>>, %arg4: memref<32x256xbf16, #tpu.memory_space<vmem>>) attributes {dimension_semantics = [#tpu.dimension_semantics<parallel>], iteration_bounds = array<i64: 1>, scalar_prefetch = 0 : i64, scratch_operands = 0 : i64, tpu.core_type = #tpu.core_type<tc>, window_params = [{transform_indices = @transform_0, window_bounds = array<i64: 32, 2304>}, {pipeline_mode = #tpu.pipeline_mode<synchronous>, transform_indices = @transform_1, window_bounds = array<i64: 2304, 256>}, {pipeline_mode = #tpu.pipeline_mode<synchronous>, transform_indices = @transform_2, window_bounds = array<i64: 1, 256>}, {transform_indices = @transform_3, window_bounds = array<i64: 32, 256>}]} {
    %c0 = arith.constant 0 : index
    %c0_0 = arith.constant 0 : index
    %0 = vector.load %arg1[%c0, %c0_0] : memref<32x2304xbf16, #tpu.memory_space<vmem>>, vector<32x2304xbf16>
    %c0_1 = arith.constant 0 : index
    %c0_2 = arith.constant 0 : index
    %1 = vector.load %arg2[%c0_1, %c0_2] : memref<2304x256xbf16, #tpu.memory_space<vmem>>, vector<2304x256xbf16>
    %cst = arith.constant dense<0.000000e+00> : vector<32x256xf32>
    %2 = tpu.matmul %0, %1, %cst {dimension_numbers = #tpu.dot_dimension_numbers<[1], [0], [0], [1], [0, 0, 1, 1], [], []>} : vector<32x2304xbf16>, vector<2304x256xbf16>, vector<32x256xf32> -> vector<32x256xf32>
    %c0_3 = arith.constant 0 : index
    %c0_4 = arith.constant 0 : index
    %3 = vector.load %arg3[%c0_3, %c0_4] : memref<1x256xf32, #tpu.memory_space<vmem>>, vector<1x256xf32>
    %4 = vector.broadcast %3 : vector<1x256xf32> to vector<32x256xf32>
    %5 = arith.addf %2, %4 : vector<32x256xf32>
    %cst_5 = arith.constant 0.000000e+00 : f32
    %6 = vector.broadcast %cst_5 : f32 to vector<32x256xf32>
    %7 = arith.maximumf %5, %6 : vector<32x256xf32>
    %8 = arith.truncf %7 : vector<32x256xf32> to vector<32x256xbf16>
    %c0_6 = arith.constant 0 : index
    %c0_7 = arith.constant 0 : index
    %9 = vector.load %arg4[%c0_6, %c0_7] : memref<32x256xbf16, #tpu.memory_space<vmem>>, vector<32x256xbf16>
    tpu.vector_store %arg4[%c0_6, %c0_7], %8 {strides = array<i32>} : memref<32x256xbf16, #tpu.memory_space<vmem>>, vector<32x256xbf16>,
    return
  }
  func.func @transform_0(%arg0: i32) -> (i32, i32) {
    %c0_i32 = arith.constant 0 : i32
    %c0_i32_0 = arith.constant 0 : i32
    return %arg0, %c0_i32 : i32, i32
  }
  func.func @transform_1(%arg0: i32) -> (i32, i32) {
    %c0_i32 = arith.constant 0 : i32
    %c0_i32_0 = arith.constant 0 : i32
    %c0_i32_1 = arith.constant 0 : i32
    return %c0_i32, %c0_i32_0 : i32, i32
  }
  func.func @transform_2(%arg0: i32) -> (i32, i32) {
    %c0_i32 = arith.constant 0 : i32
    %c0_i32_0 = arith.constant 0 : i32
    %c0_i32_1 = arith.constant 0 : i32
    return %c0_i32, %c0_i32_0 : i32, i32
  }
  func.func @transform_3(%arg0: i32) -> (i32, i32) {
    %c0_i32 = arith.constant 0 : i32
    %c0_i32_0 = arith.constant 0 : i32
    return %arg0, %c0_i32 : i32, i32
  }
}

module attributes {stable_mosaic.version = 11 : i64} {
  func.func @_maxpool_kernel(%arg0: i32, %arg1: memref<9x16x256xbf16, #tpu.memory_space<vmem>>, %arg2: memref<16x256xbf16, #tpu.memory_space<vmem>>) attributes {dimension_semantics = [#tpu.dimension_semantics<parallel>], iteration_bounds = array<i64: 1>, scalar_prefetch = 0 : i64, scratch_operands = 0 : i64, tpu.core_type = #tpu.core_type<tc>, window_params = [{transform_indices = @transform_0, window_bounds = array<i64: 9, 16, 256>}, {transform_indices = @transform_1, window_bounds = array<i64: 16, 256>}]} {
    %c0 = arith.constant 0 : index
    %c0_0 = arith.constant 0 : index
    %c0_1 = arith.constant 0 : index
    %0 = vector.load %arg1[%c0, %c0_0, %c0_1] : memref<9x16x256xbf16, #tpu.memory_space<vmem>>, vector<9x16x256xbf16>
    %cst = arith.constant dense<0xFF80> : vector<16x256xbf16>
    %1 = vector.multi_reduction <maximumf>, %0, %cst [0] : vector<9x16x256xbf16> to vector<16x256xbf16>
    %c0_2 = arith.constant 0 : index
    %c0_3 = arith.constant 0 : index
    %2 = vector.load %arg2[%c0_2, %c0_3] : memref<16x256xbf16, #tpu.memory_space<vmem>>, vector<16x256xbf16>
    tpu.vector_store %arg2[%c0_2, %c0_3], %1 {strides = array<i32>} : memref<16x256xbf16, #tpu.memory_space<vmem>>, vector<16x256xbf16>,
    return
  }
  func.func @transform_0(%arg0: i32) -> (i32, i32, i32) {
    %c0_i32 = arith.constant 0 : i32
    %c0_i32_0 = arith.constant 0 : i32
    %c0_i32_1 = arith.constant 0 : i32
    return %c0_i32, %arg0, %c0_i32_0 : i32, i32, i32
  }
  func.func @transform_1(%arg0: i32) -> (i32, i32) {
    %c0_i32 = arith.constant 0 : i32
    %c0_i32_0 = arith.constant 0 : i32
    return %arg0, %c0_i32 : i32, i32
  }
}

</mosaic_0001>

<llo_original>
// kernel: alexnet_features.8
$region0: #{alexnet_features.8}
  #allocation0 [shape = 'u32[]', space=smem, size = 0x4, offset = 0x4, fixed_abs, tag = 'smem constant byte address 0x4 - core index']
  #allocation1 [shape = 'u32[144,128]{1,0:T(1,128)}', space=vmem, size = 0x12000, scoped, tag = 'internal scratch']
  %s0 = inlined_call_operand.vmem [shape: bf16[464,384], index: 0, kind: input, shape index: {}]
  %s1 = inlined_call_operand.vmem [shape: bf16[384,128], index: 1, kind: input, shape index: {}]
  %s2 = inlined_call_operand.vmem [shape: f32[1,128], index: 2, kind: input, shape index: {}]
  %s3 = inlined_call_operand.vmem [shape: bf16[464,128], index: 3, kind: output, shape index: {}]
  %s4 = sld [smem:[#allocation0]]
  $region22: #{alexnet_features.8} parent=0
    _
  %s6 = ssub.s32 1, %s4
  %s7 = scalar_select 0, %s6, %s4
  // Predicated region
  $region2: #{alexnet_features.8} parent=0 // pred_check
    _
  $region3: #{alexnet_features.8} parent=0 // pred_check_branch
    %9 = sbr.rel (0) target = $region5
  $region4: #{alexnet_features.8} parent=0 // pred_region
    _
  $region5: #{alexnet_features.8} parent=0 // pred_fallthru
    _
  // Predicated region
  $region6: #{alexnet_features.8} parent=0 // pred_check
    _
  $region7: #{alexnet_features.8} parent=0 // pred_check_branch
    %11 = sbr.rel (0) target = $region9
  $region8: #{alexnet_features.8} parent=0 // pred_region
    _
  $region9: #{alexnet_features.8} parent=0 // pred_fallthru
    _
  // Predicated region
  $region10: #{alexnet_features.8} parent=0 // pred_check
    _
  $region11: #{alexnet_features.8} parent=0 // pred_check_branch
    %13 = sbr.rel (0) target = $region13
  $region12: #{alexnet_features.8} parent=0 // pred_region
    _
  $region13: #{alexnet_features.8} parent=0 // pred_fallthru
    _
  %v15 = vld [vmem:[%s0] sm:$0xff]
  %v16 = vld [vmem:[%s0 + $0x8] sm:$0xf]
  %v17 = vld [vmem:[%s0 + $0xc] sm:$0xff]
  %v18 = vld [vmem:[%s0 + $0x14] sm:$0xf]
  %v19 = vld [vmem:[%s0 + $0x18] sm:$0xff]
  %v20 = vld [vmem:[%s0 + $0x20] sm:$0xf]
  %v21 = vld [vmem:[%s0 + $0x24] sm:$0xff]
  %v22 = vld [vmem:[%s0 + $0x2c] sm:$0xf]
  %v23 = vld [vmem:[%s0 + $0x30] sm:$0xff]
  %v24 = vld [vmem:[%s0 + $0x38] sm:$0xf]
  %v25 = vld [vmem:[%s0 + $0x3c] sm:$0xff]
  %v26 = vld [vmem:[%s0 + $0x44] sm:$0xf]
  %v27 = vld [vmem:[%s0 + $0x48] sm:$0xff]
  %v28 = vld [vmem:[%s0 + $0x50] sm:$0xf]
  %v29 = vld [vmem:[%s0 + $0x54] sm:$0xff]
  %v30 = vld [vmem:[%s0 + $0x5c] sm:$0xf]
  %v31 = vld [vmem:[%s0 + $0x60] sm:$0xff]
  %v32 = vld [vmem:[%s0 + $0x68] sm:$0xf]
  %v33 = vld [vmem:[%s0 + $0x6c] sm:$0xff]
  %v34 = vld [vmem:[%s0 + $0x74] sm:$0xf]
  %v35 = vld [vmem:[%s0 + $0x78] sm:$0xff]
  %v36 = vld [vmem:[%s0 + $0x80] sm:$0xf]
  %v37 = vld [vmem:[%s0 + $0x84] sm:$0xff]
  %v38 = vld [vmem:[%s0 + $0x8c] sm:$0xf]
  %v39 = vld [vmem:[%s0 + $0x90] sm:$0xff]
  %v40 = vld [vmem:[%s0 + $0x98] sm:$0xf]
  %v41 = vld [vmem:[%s0 + $0x9c] sm:$0xff]
  %v42 = vld [vmem:[%s0 + $0xa4] sm:$0xf]
  %v43 = vld [vmem:[%s0 + $0xa8] sm:$0xff]
  %v44 = vld [vmem:[%s0 + $0xb0] sm:$0xf]
  %v45 = vld [vmem:[%s0 + $0xb4] sm:$0xff]
  %v46 = vld [vmem:[%s0 + $0xbc] sm:$0xf]
  %v47 = vld [vmem:[%s0 + $0xc0] sm:$0xff]
  %v48 = vld [vmem:[%s0 + $0xc8] sm:$0xf]
  %v49 = vld [vmem:[%s0 + $0xcc] sm:$0xff]
  %v50 = vld [vmem:[%s0 + $0xd4] sm:$0xf]
  %v51 = vld [vmem:[%s0 + $0xd8] sm:$0xff]
  %v52 = vld [vmem:[%s0 + $0xe0] sm:$0xf]
  %v53 = vld [vmem:[%s0 + $0xe4] sm:$0xff]
  %v54 = vld [vmem:[%s0 + $0xec] sm:$0xf]
  %v55 = vld [vmem:[%s0 + $0xf0] sm:$0xff]
  %v56 = vld [vmem:[%s0 + $0xf8] sm:$0xf]
  %v57 = vld [vmem:[%s0 + $0xfc] sm:$0xff]
  %v58 = vld [vmem:[%s0 + $0x104] sm:$0xf]
  %v59 = vld [vmem:[%s0 + $0x108] sm:$0xff]
  %v60 = vld [vmem:[%s0 + $0x110] sm:$0xf]
  %v61 = vld [vmem:[%s0 + $0x114] sm:$0xff]
  %v62 = vld [vmem:[%s0 + $0x11c] sm:$0xf]
  %v63 = vld [vmem:[%s0 + $0x120] sm:$0xff]
  %v64 = vld [vmem:[%s0 + $0x128] sm:$0xf]
  %v65 = vld [vmem:[%s0 + $0x12c] sm:$0xff]
  %v66 = vld [vmem:[%s0 + $0x134] sm:$0xf]
  %v67 = vld [vmem:[%s0 + $0x138] sm:$0xff]
  %v68 = vld [vmem:[%s0 + $0x140] sm:$0xf]
  %v69 = vld [vmem:[%s0 + $0x144] sm:$0xff]
  %v70 = vld [vmem:[%s0 + $0x14c] sm:$0xf]
  %v71 = vld [vmem:[%s0 + $0x150] sm:$0xff]
  %v72 = vld [vmem:[%s0 + $0x158] sm:$0xf]
  %v73 = vld [vmem:[%s0 + $0x15c] sm:$0xff]
  %v74 = vld [vmem:[%s0 + $0x164] sm:$0xf]
  %v75 = vld [vmem:[%s0 + $0x168] sm:$0xff]
  %v76 = vld [vmem:[%s0 + $0x170] sm:$0xf]
  %v77 = vld [vmem:[%s0 + $0x174] sm:$0xff]
  %v78 = vld [vmem:[%s0 + $0x17c] sm:$0xf]
  %v79 = vld [vmem:[%s0 + $0x180] sm:$0xff]
  %v80 = vld [vmem:[%s0 + $0x188] sm:$0xf]
  %v81 = vld [vmem:[%s0 + $0x18c] sm:$0xff]
  %v82 = vld [vmem:[%s0 + $0x194] sm:$0xf]
  %v83 = vld [vmem:[%s0 + $0x198] sm:$0xff]
  %v84 = vld [vmem:[%s0 + $0x1a0] sm:$0xf]
  %v85 = vld [vmem:[%s0 + $0x1a4] sm:$0xff]
  %v86 = vld [vmem:[%s0 + $0x1ac] sm:$0xf]
  %v87 = vld [vmem:[%s0 + $0x1b0] sm:$0xff]
  %v88 = vld [vmem:[%s0 + $0x1b8] sm:$0xf]
  %v89 = vld [vmem:[%s0 + $0x1bc] sm:$0xff]
  %v90 = vld [vmem:[%s0 + $0x1c4] sm:$0xf]
  %v91 = vld [vmem:[%s0 + $0x1c8] sm:$0xff]
  %v92 = vld [vmem:[%s0 + $0x1d0] sm:$0xf]
  %v93 = vld [vmem:[%s0 + $0x1d4] sm:$0xff]
  %v94 = vld [vmem:[%s0 + $0x1dc] sm:$0xf]
  %v95 = vld [vmem:[%s0 + $0x1e0] sm:$0xff]
  %v96 = vld [vmem:[%s0 + $0x1e8] sm:$0xf]
  %v97 = vld [vmem:[%s0 + $0x1ec] sm:$0xff]
  %v98 = vld [vmem:[%s0 + $0x1f4] sm:$0xf]
  %v99 = vld [vmem:[%s0 + $0x1f8] sm:$0xff]
  %v100 = vld [vmem:[%s0 + $0x200] sm:$0xf]
  %v101 = vld [vmem:[%s0 + $0x204] sm:$0xff]
  %v102 = vld [vmem:[%s0 + $0x20c] sm:$0xf]
  %v103 = vld [vmem:[%s0 + $0x210] sm:$0xff]
  %v104 = vld [vmem:[%s0 + $0x218] sm:$0xf]
  %v105 = vld [vmem:[%s0 + $0x21c] sm:$0xff]
  %v106 = vld [vmem:[%s0 + $0x224] sm:$0xf]
  %v107 = vld [vmem:[%s0 + $0x228] sm:$0xff]
  %v108 = vld [vmem:[%s0 + $0x230] sm:$0xf]
  %v109 = vld [vmem:[%s0 + $0x234] sm:$0xff]
  %v110 = vld [vmem:[%s0 + $0x23c] sm:$0xf]
  %v111 = vld [vmem:[%s0 + $0x240] sm:$0xff]
  %v112 = vld [vmem:[%s0 + $0x248] sm:$0xf]
  %v113 = vld [vmem:[%s0 + $0x24c] sm:$0xff]
  %v114 = vld [vmem:[%s0 + $0x254] sm:$0xf]
  %v115 = vld [vmem:[%s0 + $0x258] sm:$0xff]
  %v116 = vld [vmem:[%s0 + $0x260] sm:$0xf]
  %v117 = vld [vmem:[%s0 + $0x264] sm:$0xff]
  %v118 = vld [vmem:[%s0 + $0x26c] sm:$0xf]
  %v119 = vld [vmem:[%s0 + $0x270] sm:$0xff]
  %v120 = vld [vmem:[%s0 + $0x278] sm:$0xf]
  %v121 = vld [vmem:[%s0 + $0x27c] sm:$0xff]
  %v122 = vld [vmem:[%s0 + $0x284] sm:$0xf]
  %v123 = vld [vmem:[%s0 + $0x288] sm:$0xff]
  %v124 = vld [vmem:[%s0 + $0x290] sm:$0xf]
  %v125 = vld [vmem:[%s0 + $0x294] sm:$0xff]
  %v126 = vld [vmem:[%s0 + $0x29c] sm:$0xf]
  %v127 = vld [vmem:[%s0 + $0x2a0] sm:$0xff]
  %v128 = vld [vmem:[%s0 + $0x2a8] sm:$0xf]
  %v129 = vld [vmem:[%s0 + $0x2ac] sm:$0xff]
  %v130 = vld [vmem:[%s0 + $0x2b4] sm:$0xf]
  %v131 = vld [vmem:[%s1] sm:$0xf]
  %v132 = vld [vmem:[%s1 + $0x4] sm:$0xf]
  %v133 = vld [vmem:[%s1 + $0x8] sm:$0xf]
  %v134 = vld [vmem:[%s1 + $0xc] sm:$0xf]
  %v135 = vld [vmem:[%s1 + $0x10] sm:$0xf]
  %v136 = vld [vmem:[%s1 + $0x14] sm:$0xf]
  %v137 = vld [vmem:[%s1 + $0x18] sm:$0xf]
  %v138 = vld [vmem:[%s1 + $0x1c] sm:$0xf]
  %v139 = vld [vmem:[%s1 + $0x20] sm:$0xf]
  %v140 = vld [vmem:[%s1 + $0x24] sm:$0xf]
  %v141 = vld [vmem:[%s1 + $0x28] sm:$0xf]
  %v142 = vld [vmem:[%s1 + $0x2c] sm:$0xf]
  %v143 = vld [vmem:[%s1 + $0x30] sm:$0xf]
  %v144 = vld [vmem:[%s1 + $0x34] sm:$0xf]
  %v145 = vld [vmem:[%s1 + $0x38] sm:$0xf]
  %v146 = vld [vmem:[%s1 + $0x3c] sm:$0xf]
  %v147 = vld [vmem:[%s1 + $0x40] sm:$0xf]
  %v148 = vld [vmem:[%s1 + $0x44] sm:$0xf]
  %v149 = vld [vmem:[%s1 + $0x48] sm:$0xf]
  %v150 = vld [vmem:[%s1 + $0x4c] sm:$0xf]
  %v151 = vld [vmem:[%s1 + $0x50] sm:$0xf]
  %v152 = vld [vmem:[%s1 + $0x54] sm:$0xf]
  %v153 = vld [vmem:[%s1 + $0x58] sm:$0xf]
  %v154 = vld [vmem:[%s1 + $0x5c] sm:$0xf]
  %v155 = vld [vmem:[%s1 + $0x60] sm:$0xf]
  %v156 = vld [vmem:[%s1 + $0x64] sm:$0xf]
  %v157 = vld [vmem:[%s1 + $0x68] sm:$0xf]
  %v158 = vld [vmem:[%s1 + $0x6c] sm:$0xf]
  %v159 = vld [vmem:[%s1 + $0x70] sm:$0xf]
  %v160 = vld [vmem:[%s1 + $0x74] sm:$0xf]
  %v161 = vld [vmem:[%s1 + $0x78] sm:$0xf]
  %v162 = vld [vmem:[%s1 + $0x7c] sm:$0xf]
  %v163 = vld [vmem:[%s1 + $0x80] sm:$0xf]
  %v164 = vld [vmem:[%s1 + $0x84] sm:$0xf]
  %v165 = vld [vmem:[%s1 + $0x88] sm:$0xf]
  %v166 = vld [vmem:[%s1 + $0x8c] sm:$0xf]
  %v167 = vld [vmem:[%s1 + $0x90] sm:$0xf]
  %v168 = vld [vmem:[%s1 + $0x94] sm:$0xf]
  %v169 = vld [vmem:[%s1 + $0x98] sm:$0xf]
  %v170 = vld [vmem:[%s1 + $0x9c] sm:$0xf]
  %v171 = vld [vmem:[%s1 + $0xa0] sm:$0xf]
  %v172 = vld [vmem:[%s1 + $0xa4] sm:$0xf]
  %v173 = vld [vmem:[%s1 + $0xa8] sm:$0xf]
  %v174 = vld [vmem:[%s1 + $0xac] sm:$0xf]
  %v175 = vld [vmem:[%s1 + $0xb0] sm:$0xf]
  %v176 = vld [vmem:[%s1 + $0xb4] sm:$0xf]
  %v177 = vld [vmem:[%s1 + $0xb8] sm:$0xf]
  %v178 = vld [vmem:[%s1 + $0xbc] sm:$0xf]
  %v179 = vld [vmem:[%s2] sm:$0x1]
  %v181 = vlaneseq
  %v182 = vshrl.u32 %v181, 7
  %v183 = vsub.s32 0, %v182
  %v184 = vrot.slane %v179, %v183
  %v302 = vunpack.c.l.b16 %v15
  %v303 = vunpack.c.h.b16 %v15
  %v304 = vunpack.c.l.b16 %v16
  %v305 = vunpack.c.l.b16 %v17
  %v306 = vunpack.c.h.b16 %v17
  %v307 = vunpack.c.l.b16 %v18
  %v308 = vunpack.c.l.b16 %v19
  %v309 = vunpack.c.h.b16 %v19
  %v310 = vunpack.c.l.b16 %v20
  %v311 = vunpack.c.l.b16 %v21
  %v312 = vunpack.c.h.b16 %v21
  %v313 = vunpack.c.l.b16 %v22
  %v314 = vunpack.c.l.b16 %v23
  %v315 = vunpack.c.h.b16 %v23
  %v316 = vunpack.c.l.b16 %v24
  %v317 = vunpack.c.l.b16 %v25
  %v318 = vunpack.c.h.b16 %v25
  %v319 = vunpack.c.l.b16 %v26
  %v320 = vunpack.c.l.b16 %v27
  %v321 = vunpack.c.h.b16 %v27
  %v322 = vunpack.c.l.b16 %v28
  %v323 = vunpack.c.l.b16 %v29
  %v324 = vunpack.c.h.b16 %v29
  %v325 = vunpack.c.l.b16 %v30
  %v326 = vunpack.c.l.b16 %v31
  %v327 = vunpack.c.h.b16 %v31
  %v328 = vunpack.c.l.b16 %v32
  %v329 = vunpack.c.l.b16 %v33
  %v330 = vunpack.c.h.b16 %v33
  %v331 = vunpack.c.l.b16 %v34
  %v332 = vunpack.c.l.b16 %v35
  %v333 = vunpack.c.h.b16 %v35
  %v334 = vunpack.c.l.b16 %v36
  %v335 = vunpack.c.l.b16 %v37
  %v336 = vunpack.c.h.b16 %v37
  %v337 = vunpack.c.l.b16 %v38
  %v338 = vunpack.c.l.b16 %v39
  %v339 = vunpack.c.h.b16 %v39
  %v340 = vunpack.c.l.b16 %v40
  %v341 = vunpack.c.l.b16 %v41
  %v342 = vunpack.c.h.b16 %v41
  %v343 = vunpack.c.l.b16 %v42
  %v344 = vunpack.c.l.b16 %v43
  %v345 = vunpack.c.h.b16 %v43
  %v346 = vunpack.c.l.b16 %v44
  %v347 = vunpack.c.l.b16 %v45
  %v348 = vunpack.c.h.b16 %v45
  %v349 = vunpack.c.l.b16 %v46
  %v350 = vunpack.c.l.b16 %v47
  %v351 = vunpack.c.h.b16 %v47
  %v352 = vunpack.c.l.b16 %v48
  %v353 = vunpack.c.l.b16 %v49
  %v354 = vunpack.c.h.b16 %v49
  %v355 = vunpack.c.l.b16 %v50
  %v356 = vunpack.c.l.b16 %v51
  %v357 = vunpack.c.h.b16 %v51
  %v358 = vunpack.c.l.b16 %v52
  %v359 = vunpack.c.l.b16 %v53
  %v360 = vunpack.c.h.b16 %v53
  %v361 = vunpack.c.l.b16 %v54
  %v362 = vunpack.c.l.b16 %v55
  %v363 = vunpack.c.h.b16 %v55
  %v364 = vunpack.c.l.b16 %v56
  %v365 = vunpack.c.l.b16 %v57
  %v366 = vunpack.c.h.b16 %v57
  %v367 = vunpack.c.l.b16 %v58
  %v368 = vunpack.c.l.b16 %v59
  %v369 = vunpack.c.h.b16 %v59
  %v370 = vunpack.c.l.b16 %v60
  %v371 = vunpack.c.l.b16 %v61
  %v372 = vunpack.c.h.b16 %v61
  %v373 = vunpack.c.l.b16 %v62
  %v374 = vunpack.c.l.b16 %v63
  %v375 = vunpack.c.h.b16 %v63
  %v376 = vunpack.c.l.b16 %v64
  %v377 = vunpack.c.l.b16 %v65
  %v378 = vunpack.c.h.b16 %v65
  %v379 = vunpack.c.l.b16 %v66
  %v380 = vunpack.c.l.b16 %v67
  %v381 = vunpack.c.h.b16 %v67
  %v382 = vunpack.c.l.b16 %v68
  %v383 = vunpack.c.l.b16 %v69
  %v384 = vunpack.c.h.b16 %v69
  %v385 = vunpack.c.l.b16 %v70
  %v386 = vunpack.c.l.b16 %v71
  %v387 = vunpack.c.h.b16 %v71
  %v388 = vunpack.c.l.b16 %v72
  %v389 = vunpack.c.l.b16 %v73
  %v390 = vunpack.c.h.b16 %v73
  %v391 = vunpack.c.l.b16 %v74
  %v392 = vunpack.c.l.b16 %v75
  %v393 = vunpack.c.h.b16 %v75
  %v394 = vunpack.c.l.b16 %v76
  %v395 = vunpack.c.l.b16 %v77
  %v396 = vunpack.c.h.b16 %v77
  %v397 = vunpack.c.l.b16 %v78
  %v398 = vunpack.c.l.b16 %v79
  %v399 = vunpack.c.h.b16 %v79
  %v400 = vunpack.c.l.b16 %v80
  %v401 = vunpack.c.l.b16 %v81
  %v402 = vunpack.c.h.b16 %v81
  %v403 = vunpack.c.l.b16 %v82
  %v404 = vunpack.c.l.b16 %v83
  %v405 = vunpack.c.h.b16 %v83
  %v406 = vunpack.c.l.b16 %v84
  %v407 = vunpack.c.l.b16 %v85
  %v408 = vunpack.c.h.b16 %v85
  %v409 = vunpack.c.l.b16 %v86
  %v410 = vunpack.c.l.b16 %v87
  %v411 = vunpack.c.h.b16 %v87
  %v412 = vunpack.c.l.b16 %v88
  %v413 = vunpack.c.l.b16 %v89
  %v414 = vunpack.c.h.b16 %v89
  %v415 = vunpack.c.l.b16 %v90
  %v416 = vunpack.c.l.b16 %v91
  %v417 = vunpack.c.h.b16 %v91
  %v418 = vunpack.c.l.b16 %v92
  %v419 = vunpack.c.l.b16 %v93
  %v420 = vunpack.c.h.b16 %v93
  %v421 = vunpack.c.l.b16 %v94
  %v422 = vunpack.c.l.b16 %v95
  %v423 = vunpack.c.h.b16 %v95
  %v424 = vunpack.c.l.b16 %v96
  %v425 = vunpack.c.l.b16 %v97
  %v426 = vunpack.c.h.b16 %v97
  %v427 = vunpack.c.l.b16 %v98
  %v428 = vunpack.c.l.b16 %v99
  %v429 = vunpack.c.h.b16 %v99
  %v430 = vunpack.c.l.b16 %v100
  %v431 = vunpack.c.l.b16 %v101
  %v432 = vunpack.c.h.b16 %v101
  %v433 = vunpack.c.l.b16 %v102
  %v434 = vunpack.c.l.b16 %v103
  %v435 = vunpack.c.h.b16 %v103
  %v436 = vunpack.c.l.b16 %v104
  %v437 = vunpack.c.l.b16 %v105
  %v438 = vunpack.c.h.b16 %v105
  %v439 = vunpack.c.l.b16 %v106
  %v440 = vunpack.c.l.b16 %v107
  %v441 = vunpack.c.h.b16 %v107
  %v442 = vunpack.c.l.b16 %v108
  %v443 = vunpack.c.l.b16 %v109
  %v444 = vunpack.c.h.b16 %v109
  %v445 = vunpack.c.l.b16 %v110
  %v446 = vunpack.c.l.b16 %v111
  %v447 = vunpack.c.h.b16 %v111
  %v448 = vunpack.c.l.b16 %v112
  %v449 = vunpack.c.l.b16 %v113
  %v450 = vunpack.c.h.b16 %v113
  %v451 = vunpack.c.l.b16 %v114
  %v452 = vunpack.c.l.b16 %v115
  %v453 = vunpack.c.h.b16 %v115
  %v454 = vunpack.c.l.b16 %v116
  %v455 = vunpack.c.l.b16 %v117
  %v456 = vunpack.c.h.b16 %v117
  %v457 = vunpack.c.l.b16 %v118
  %v458 = vunpack.c.l.b16 %v119
  %v459 = vunpack.c.h.b16 %v119
  %v460 = vunpack.c.l.b16 %v120
  %v461 = vunpack.c.l.b16 %v121
  %v462 = vunpack.c.h.b16 %v121
  %v463 = vunpack.c.l.b16 %v122
  %v464 = vunpack.c.l.b16 %v123
  %v465 = vunpack.c.h.b16 %v123
  %v466 = vunpack.c.l.b16 %v124
  %v467 = vunpack.c.l.b16 %v125
  %v468 = vunpack.c.h.b16 %v125
  %v469 = vunpack.c.l.b16 %v126
  %v470 = vunpack.c.l.b16 %v127
  %v471 = vunpack.c.h.b16 %v127
  %v472 = vunpack.c.l.b16 %v128
  %v473 = vunpack.c.l.b16 %v129
  %v474 = vunpack.c.h.b16 %v129
  %v475 = vunpack.c.l.b16 %v130
  %v476 = vpack.c.b16 %v305, %v302
  %v477 = vpack.c.b16 %v306, %v303
  %v478 = vpack.c.b16 %v307, %v304
  %v479 = vpack.c.b16 %v311, %v308
  %v480 = vpack.c.b16 %v312, %v309
  %v481 = vpack.c.b16 %v313, %v310
  %v482 = vpack.c.b16 %v317, %v314
  %v483 = vpack.c.b16 %v318, %v315
  %v484 = vpack.c.b16 %v319, %v316
  %v485 = vpack.c.b16 %v323, %v320
  %v486 = vpack.c.b16 %v324, %v321
  %v487 = vpack.c.b16 %v325, %v322
  %v488 = vpack.c.b16 %v329, %v326
  %v489 = vpack.c.b16 %v330, %v327
  %v490 = vpack.c.b16 %v331, %v328
  %v491 = vpack.c.b16 %v335, %v332
  %v492 = vpack.c.b16 %v336, %v333
  %v493 = vpack.c.b16 %v337, %v334
  %v494 = vpack.c.b16 %v341, %v338
  %v495 = vpack.c.b16 %v342, %v339
  %v496 = vpack.c.b16 %v343, %v340
  %v497 = vpack.c.b16 %v347, %v344
  %v498 = vpack.c.b16 %v348, %v345
  %v499 = vpack.c.b16 %v349, %v346
  %v500 = vpack.c.b16 %v353, %v350
  %v501 = vpack.c.b16 %v354, %v351
  %v502 = vpack.c.b16 %v355, %v352
  %v503 = vpack.c.b16 %v359, %v356
  %v504 = vpack.c.b16 %v360, %v357
  %v505 = vpack.c.b16 %v361, %v358
  %v506 = vpack.c.b16 %v365, %v362
  %v507 = vpack.c.b16 %v366, %v363
  %v508 = vpack.c.b16 %v367, %v364
  %v509 = vpack.c.b16 %v371, %v368
  %v510 = vpack.c.b16 %v372, %v369
  %v511 = vpack.c.b16 %v373, %v370
  %v512 = vpack.c.b16 %v377, %v374
  %v513 = vpack.c.b16 %v378, %v375
  %v514 = vpack.c.b16 %v379, %v376
  %v515 = vpack.c.b16 %v383, %v380
  %v516 = vpack.c.b16 %v384, %v381
  %v517 = vpack.c.b16 %v385, %v382
  %v518 = vpack.c.b16 %v389, %v386
  %v519 = vpack.c.b16 %v390, %v387
  %v520 = vpack.c.b16 %v391, %v388
  %v521 = vpack.c.b16 %v395, %v392
  %v522 = vpack.c.b16 %v396, %v393
  %v523 = vpack.c.b16 %v397, %v394
  %v524 = vpack.c.b16 %v401, %v398
  %v525 = vpack.c.b16 %v402, %v399
  %v526 = vpack.c.b16 %v403, %v400
  %v527 = vpack.c.b16 %v407, %v404
  %v528 = vpack.c.b16 %v408, %v405
  %v529 = vpack.c.b16 %v409, %v406
  %v530 = vpack.c.b16 %v413, %v410
  %v531 = vpack.c.b16 %v414, %v411
  %v532 = vpack.c.b16 %v415, %v412
  %v533 = vpack.c.b16 %v419, %v416
  %v534 = vpack.c.b16 %v420, %v417
  %v535 = vpack.c.b16 %v421, %v418
  %v536 = vpack.c.b16 %v425, %v422
  %v537 = vpack.c.b16 %v426, %v423
  %v538 = vpack.c.b16 %v427, %v424
  %v539 = vpack.c.b16 %v431, %v428
  %v540 = vpack.c.b16 %v432, %v429
  %v541 = vpack.c.b16 %v433, %v430
  %v542 = vpack.c.b16 %v437, %v434
  %v543 = vpack.c.b16 %v438, %v435
  %v544 = vpack.c.b16 %v439, %v436
  %v545 = vpack.c.b16 %v443, %v440
  %v546 = vpack.c.b16 %v444, %v441
  %v547 = vpack.c.b16 %v445, %v442
  %v548 = vpack.c.b16 %v449, %v446
  %v549 = vpack.c.b16 %v450, %v447
  %v550 = vpack.c.b16 %v451, %v448
  %v551 = vpack.c.b16 %v455, %v452
  %v552 = vpack.c.b16 %v456, %v453
  %v553 = vpack.c.b16 %v457, %v454
  %v554 = vpack.c.b16 %v461, %v458
  %v555 = vpack.c.b16 %v462, %v459
  %v556 = vpack.c.b16 %v463, %v460
  %v557 = vpack.c.b16 %v467, %v464
  %v558 = vpack.c.b16 %v468, %v465
  %v559 = vpack.c.b16 %v469, %v466
  %v560 = vpack.c.b16 %v473, %v470
  %v561 = vpack.c.b16 %v474, %v471
  %v562 = vpack.c.b16 %v475, %v472
  %v698 = vunpack.c.l.b16 %v131
  %v699 = vunpack.c.l.b16 %v132
  %v700 = vunpack.c.l.b16 %v133
  %v701 = vunpack.c.l.b16 %v134
  %v702 = vunpack.c.l.b16 %v135
  %v703 = vunpack.c.l.b16 %v136
  %v704 = vunpack.c.l.b16 %v137
  %v705 = vunpack.c.l.b16 %v138
  %v706 = vunpack.c.l.b16 %v139
  %v707 = vunpack.c.l.b16 %v140
  %v708 = vunpack.c.l.b16 %v141
  %v709 = vunpack.c.l.b16 %v142
  %v710 = vunpack.c.l.b16 %v143
  %v711 = vunpack.c.l.b16 %v144
  %v712 = vunpack.c.l.b16 %v145
  %v713 = vunpack.c.l.b16 %v146
  %v714 = vunpack.c.l.b16 %v147
  %v715 = vunpack.c.l.b16 %v148
  %v716 = vunpack.c.l.b16 %v149
  %v717 = vunpack.c.l.b16 %v150
  %v718 = vunpack.c.l.b16 %v151
  %v719 = vunpack.c.l.b16 %v152
  %v720 = vunpack.c.l.b16 %v153
  %v721 = vunpack.c.l.b16 %v154
  %v722 = vunpack.c.l.b16 %v155
  %v723 = vunpack.c.l.b16 %v156
  %v724 = vunpack.c.l.b16 %v157
  %v725 = vunpack.c.l.b16 %v158
  %v726 = vunpack.c.l.b16 %v159
  %v727 = vunpack.c.l.b16 %v160
  %v728 = vunpack.c.l.b16 %v161
  %v729 = vunpack.c.l.b16 %v162
  %v730 = vunpack.c.l.b16 %v163
  %v731 = vunpack.c.l.b16 %v164
  %v732 = vunpack.c.l.b16 %v165
  %v733 = vunpack.c.l.b16 %v166
  %v734 = vunpack.c.l.b16 %v167
  %v735 = vunpack.c.l.b16 %v168
  %v736 = vunpack.c.l.b16 %v169
  %v737 = vunpack.c.l.b16 %v170
  %v738 = vunpack.c.l.b16 %v171
  %v739 = vunpack.c.l.b16 %v172
  %v740 = vunpack.c.l.b16 %v173
  %v741 = vunpack.c.l.b16 %v174
  %v742 = vunpack.c.l.b16 %v175
  %v743 = vunpack.c.l.b16 %v176
  %v744 = vunpack.c.l.b16 %v177
  %v745 = vunpack.c.l.b16 %v178
  %v746 = vpack.c.b16 %v699, %v698
  %v747 = vpack.c.b16 %v701, %v700
  %v748 = vpack.c.b16 %v703, %v702
  %v749 = vpack.c.b16 %v705, %v704
  %v750 = vpack.c.b16 %v707, %v706
  %v751 = vpack.c.b16 %v709, %v708
  %v752 = vpack.c.b16 %v711, %v710
  %v753 = vpack.c.b16 %v713, %v712
  %v754 = vpack.c.b16 %v715, %v714
  %v755 = vpack.c.b16 %v717, %v716
  %v756 = vpack.c.b16 %v719, %v718
  %v757 = vpack.c.b16 %v721, %v720
  %v758 = vpack.c.b16 %v723, %v722
  %v759 = vpack.c.b16 %v725, %v724
  %v760 = vpack.c.b16 %v727, %v726
  %v761 = vpack.c.b16 %v729, %v728
  %v762 = vpack.c.b16 %v731, %v730
  %v763 = vpack.c.b16 %v733, %v732
  %v764 = vpack.c.b16 %v735, %v734
  %v765 = vpack.c.b16 %v737, %v736
  %v766 = vpack.c.b16 %v739, %v738
  %v767 = vpack.c.b16 %v741, %v740
  %v768 = vpack.c.b16 %v743, %v742
  %v769 = vpack.c.b16 %v745, %v744
  %794 = vmatprep.subr.bf16.mxu0 0
  %795 = vmatpush1.bf16.msra.mxu0 %v753
  %796 = vmatprep.subr.bf16.mxu0 0
  %797 = vmatpush1.bf16.msra.mxu0 %v752
  %798 = vmatprep.subr.bf16.mxu0 0
  %799 = vmatpush1.bf16.msra.mxu0 %v751
  %800 = vmatprep.subr.bf16.mxu0 0
  %801 = vmatpush1.bf16.msra.mxu0 %v750
  %802 = vmatprep.subr.bf16.mxu0 0
  %803 = vmatpush1.bf16.msra.mxu0 %v749
  %804 = vmatprep.subr.bf16.mxu0 0
  %805 = vmatpush1.bf16.msra.mxu0 %v748
  %806 = vmatprep.subr.bf16.mxu0 0
  %807 = vmatpush1.bf16.msra.mxu0 %v747
  %808 = vmatprep.subr.bf16.mxu0 0
  %809 = vmatpush1.bf16.msra.mxu0 %v746
  %810 = vmatprep.subr.bf16.mxu0 0
  %811 = vmatpush2.bf16.msra.mxu0 %v761
  %812 = vmatprep.subr.bf16.mxu0 0
  %813 = vmatpush2.bf16.msra.mxu0 %v760
  %814 = vmatprep.subr.bf16.mxu0 0
  %815 = vmatpush2.bf16.msra.mxu0 %v759
  %816 = vmatprep.subr.bf16.mxu0 0
  %817 = vmatpush2.bf16.msra.mxu0 %v758
  %818 = vmatprep.subr.bf16.mxu0 0
  %819 = vmatpush2.bf16.msra.mxu0 %v757
  %820 = vmatprep.subr.bf16.mxu0 0
  %821 = vmatpush2.bf16.msra.mxu0 %v756
  %822 = vmatprep.subr.bf16.mxu0 0
  %823 = vmatpush2.bf16.msra.mxu0 %v755
  %824 = vmatprep.subr.bf16.mxu0 0
  %825 = vmatpush2.bf16.msra.mxu0 %v754
  %826 = vmatprep.mubr.bf16.mxu0 %v477
  %827 = vmatmul.mubr.bf16.gmra.mxu0 %v476
  %v828 = vpop.f32.mrf.mxu0
  %v829 = vadd.f32 %v184, %v828
  %v830 = vpop.f32.mrf.mxu0
  %v831 = vpop.f32.mrf.mxu0
  %v832 = vadd.f32 %v184, %v831
  %v833 = vpop.f32.mrf.mxu0
  %834 = vmatprep.mubr.bf16.mxu0 %v480
  %835 = vmatmul.mubr.bf16.gmra.mxu0 %v479
  %v836 = vpop.f32.mrf.mxu0
  %v837 = vadd.f32 %v184, %v836
  %v838 = vpop.f32.mrf.mxu0
  %v839 = vpop.f32.mrf.mxu0
  %v840 = vadd.f32 %v184, %v839
  %v841 = vpop.f32.mrf.mxu0
  %842 = vmatprep.mubr.bf16.mxu0 %v483
  %843 = vmatmul.mubr.bf16.gmra.mxu0 %v482
  %v844 = vpop.f32.mrf.mxu0
  %v845 = vadd.f32 %v184, %v844
  %v846 = vpop.f32.mrf.mxu0
  %v847 = vpop.f32.mrf.mxu0
  %v848 = vadd.f32 %v184, %v847
  %v849 = vpop.f32.mrf.mxu0
  %850 = vmatprep.mubr.bf16.mxu0 %v486
  %851 = vmatmul.mubr.bf16.gmra.mxu0 %v485
  %v852 = vpop.f32.mrf.mxu0
  %v853 = vadd.f32 %v184, %v852
  %v854 = vpop.f32.mrf.mxu0
  %v855 = vpop.f32.mrf.mxu0
  %v856 = vadd.f32 %v184, %v855
  %v857 = vpop.f32.mrf.mxu0
  %858 = vmatprep.mubr.bf16.mxu0 %v489
  %859 = vmatmul.mubr.bf16.gmra.mxu0 %v488
  %v860 = vpop.f32.mrf.mxu0
  %v861 = vadd.f32 %v184, %v860
  %v862 = vpop.f32.mrf.mxu0
  %v863 = vpop.f32.mrf.mxu0
  %v864 = vadd.f32 %v184, %v863
  %v865 = vpop.f32.mrf.mxu0
  %866 = vmatprep.mubr.bf16.mxu0 %v492
  %867 = vmatmul.mubr.bf16.gmra.mxu0 %v491
  %v868 = vpop.f32.mrf.mxu0
  %v869 = vadd.f32 %v184, %v868
  %v870 = vpop.f32.mrf.mxu0
  %v871 = vpop.f32.mrf.mxu0
  %v872 = vadd.f32 %v184, %v871
  %v873 = vpop.f32.mrf.mxu0
  %874 = vmatprep.mubr.bf16.mxu0 %v495
  %875 = vmatmul.mubr.bf16.gmra.mxu0 %v494
  %v876 = vpop.f32.mrf.mxu0
  %v877 = vadd.f32 %v184, %v876
  %v878 = vpop.f32.mrf.mxu0
  %v879 = vpop.f32.mrf.mxu0
  %v880 = vadd.f32 %v184, %v879
  %v881 = vpop.f32.mrf.mxu0
  %882 = vmatprep.mubr.bf16.mxu0 %v498
  %883 = vmatmul.mubr.bf16.gmra.mxu0 %v497
  %v884 = vpop.f32.mrf.mxu0
  %v885 = vadd.f32 %v184, %v884
  %v886 = vpop.f32.mrf.mxu0
  %v887 = vpop.f32.mrf.mxu0
  %v888 = vadd.f32 %v184, %v887
  %v889 = vpop.f32.mrf.mxu0
  %890 = vmatprep.mubr.bf16.mxu0 %v501
  %891 = vmatmul.mubr.bf16.gmra.mxu0 %v500
  %v892 = vpop.f32.mrf.mxu0
  %v893 = vadd.f32 %v184, %v892
  %v894 = vpop.f32.mrf.mxu0
  %v895 = vpop.f32.mrf.mxu0
  %v896 = vadd.f32 %v184, %v895
  %v897 = vpop.f32.mrf.mxu0
  %898 = vmatprep.mubr.bf16.mxu0 %v504
  %899 = vmatmul.mubr.bf16.gmra.mxu0 %v503
  %v900 = vpop.f32.mrf.mxu0
  %v901 = vadd.f32 %v184, %v900
  %v902 = vpop.f32.mrf.mxu0
  %v903 = vpop.f32.mrf.mxu0
  %v904 = vadd.f32 %v184, %v903
  %v905 = vpop.f32.mrf.mxu0
  %906 = vmatprep.mubr.bf16.mxu0 %v507
  %907 = vmatmul.mubr.bf16.gmra.mxu0 %v506
  %v908 = vpop.f32.mrf.mxu0
  %v909 = vadd.f32 %v184, %v908
  %v910 = vpop.f32.mrf.mxu0
  %v911 = vpop.f32.mrf.mxu0
  %v912 = vadd.f32 %v184, %v911
  %v913 = vpop.f32.mrf.mxu0
  %914 = vmatprep.mubr.bf16.mxu0 %v510
  %915 = vmatmul.mubr.bf16.gmra.mxu0 %v509
  %v916 = vpop.f32.mrf.mxu0
  %v917 = vadd.f32 %v184, %v916
  %v918 = vpop.f32.mrf.mxu0
  %v919 = vpop.f32.mrf.mxu0
  %v920 = vadd.f32 %v184, %v919
  %v921 = vpop.f32.mrf.mxu0
  %922 = vmatprep.mubr.bf16.mxu0 %v513
  %923 = vmatmul.mubr.bf16.gmra.mxu0 %v512
  %v924 = vpop.f32.mrf.mxu0
  %v925 = vadd.f32 %v184, %v924
  %v926 = vpop.f32.mrf.mxu0
  %v927 = vpop.f32.mrf.mxu0
  %v928 = vadd.f32 %v184, %v927
  %v929 = vpop.f32.mrf.mxu0
  %930 = vmatprep.mubr.bf16.mxu0 %v516
  %931 = vmatmul.mubr.bf16.gmra.mxu0 %v515
  %v932 = vpop.f32.mrf.mxu0
  %v933 = vadd.f32 %v184, %v932
  %v934 = vpop.f32.mrf.mxu0
  %v935 = vpop.f32.mrf.mxu0
  %v936 = vadd.f32 %v184, %v935
  %v937 = vpop.f32.mrf.mxu0
  %938 = vmatprep.mubr.bf16.mxu0 %v519
  %939 = vmatmul.mubr.bf16.gmra.mxu0 %v518
  %v940 = vpop.f32.mrf.mxu0
  %v941 = vadd.f32 %v184, %v940
  %v942 = vpop.f32.mrf.mxu0
  %v943 = vpop.f32.mrf.mxu0
  %v944 = vadd.f32 %v184, %v943
  %v945 = vpop.f32.mrf.mxu0
  %946 = vmatprep.mubr.bf16.mxu0 %v522
  %947 = vmatmul.mubr.bf16.gmra.mxu0 %v521
  %v948 = vpop.f32.mrf.mxu0
  %v949 = vadd.f32 %v184, %v948
  %v950 = vpop.f32.mrf.mxu0
  %v951 = vpop.f32.mrf.mxu0
  %v952 = vadd.f32 %v184, %v951
  %v953 = vpop.f32.mrf.mxu0
  %954 = vmatprep.mubr.bf16.mxu0 %v525
  %955 = vmatmul.mubr.bf16.gmra.mxu0 %v524
  %v956 = vpop.f32.mrf.mxu0
  %v957 = vadd.f32 %v184, %v956
  %v958 = vpop.f32.mrf.mxu0
  %v959 = vpop.f32.mrf.mxu0
  %v960 = vadd.f32 %v184, %v959
  %v961 = vpop.f32.mrf.mxu0
  %962 = vmatprep.mubr.bf16.mxu0 %v528
  %963 = vmatmul.mubr.bf16.gmra.mxu0 %v527
  %v964 = vpop.f32.mrf.mxu0
  %v965 = vadd.f32 %v184, %v964
  %v966 = vpop.f32.mrf.mxu0
  %v967 = vpop.f32.mrf.mxu0
  %v968 = vadd.f32 %v184, %v967
  %v969 = vpop.f32.mrf.mxu0
  %970 = vmatprep.mubr.bf16.mxu0 %v531
  %971 = vmatmul.mubr.bf16.gmra.mxu0 %v530
  %v972 = vpop.f32.mrf.mxu0
  %v973 = vadd.f32 %v184, %v972
  %v974 = vpop.f32.mrf.mxu0
  %v975 = vpop.f32.mrf.mxu0
  %v976 = vadd.f32 %v184, %v975
  %v977 = vpop.f32.mrf.mxu0
  %978 = vmatprep.mubr.bf16.mxu0 %v534
  %979 = vmatmul.mubr.bf16.gmra.mxu0 %v533
  %v980 = vpop.f32.mrf.mxu0
  %v981 = vadd.f32 %v184, %v980
  %v982 = vpop.f32.mrf.mxu0
  %v983 = vpop.f32.mrf.mxu0
  %v984 = vadd.f32 %v184, %v983
  %v985 = vpop.f32.mrf.mxu0
  %986 = vmatprep.mubr.bf16.mxu0 %v537
  %987 = vmatmul.mubr.bf16.gmra.mxu0 %v536
  %v988 = vpop.f32.mrf.mxu0
  %v989 = vadd.f32 %v184, %v988
  %v990 = vpop.f32.mrf.mxu0
  %v991 = vpop.f32.mrf.mxu0
  %v992 = vadd.f32 %v184, %v991
  %v993 = vpop.f32.mrf.mxu0
  %994 = vmatprep.mubr.bf16.mxu0 %v540
  %995 = vmatmul.mubr.bf16.gmra.mxu0 %v539
  %v996 = vpop.f32.mrf.mxu0
  %v997 = vadd.f32 %v184, %v996
  %v998 = vpop.f32.mrf.mxu0
  %v999 = vpop.f32.mrf.mxu0
  %v1000 = vadd.f32 %v184, %v999
  %v1001 = vpop.f32.mrf.mxu0
  %1002 = vmatprep.mubr.bf16.mxu0 %v543
  %1003 = vmatmul.mubr.bf16.gmra.mxu0 %v542
  %v1004 = vpop.f32.mrf.mxu0
  %v1005 = vadd.f32 %v184, %v1004
  %v1006 = vpop.f32.mrf.mxu0
  %v1007 = vpop.f32.mrf.mxu0
  %v1008 = vadd.f32 %v184, %v1007
  %v1009 = vpop.f32.mrf.mxu0
  %1010 = vmatprep.mubr.bf16.mxu0 %v546
  %1011 = vmatmul.mubr.bf16.gmra.mxu0 %v545
  %v1012 = vpop.f32.mrf.mxu0
  %v1013 = vadd.f32 %v184, %v1012
  %v1014 = vpop.f32.mrf.mxu0
  %v1015 = vpop.f32.mrf.mxu0
  %v1016 = vadd.f32 %v184, %v1015
  %v1017 = vpop.f32.mrf.mxu0
  %1018 = vmatprep.mubr.bf16.mxu0 %v549
  %1019 = vmatmul.mubr.bf16.gmra.mxu0 %v548
  %v1020 = vpop.f32.mrf.mxu0
  %v1021 = vadd.f32 %v184, %v1020
  %v1022 = vpop.f32.mrf.mxu0
  %v1023 = vpop.f32.mrf.mxu0
  %v1024 = vadd.f32 %v184, %v1023
  %v1025 = vpop.f32.mrf.mxu0
  %1026 = vmatprep.mubr.bf16.mxu0 %v552
  %1027 = vmatmul.mubr.bf16.gmra.mxu0 %v551
  %v1028 = vpop.f32.mrf.mxu0
  %v1029 = vadd.f32 %v184, %v1028
  %v1030 = vpop.f32.mrf.mxu0
  %v1031 = vpop.f32.mrf.mxu0
  %v1032 = vadd.f32 %v184, %v1031
  %v1033 = vpop.f32.mrf.mxu0
  %1034 = vmatprep.mubr.bf16.mxu0 %v555
  %1035 = vmatmul.mubr.bf16.gmra.mxu0 %v554
  %v1036 = vpop.f32.mrf.mxu0
  %v1037 = vadd.f32 %v184, %v1036
  %v1038 = vpop.f32.mrf.mxu0
  %v1039 = vpop.f32.mrf.mxu0
  %v1040 = vadd.f32 %v184, %v1039
  %v1041 = vpop.f32.mrf.mxu0
  %1042 = vmatprep.mubr.bf16.mxu0 %v558
  %1043 = vmatmul.mubr.bf16.gmra.mxu0 %v557
  %v1044 = vpop.f32.mrf.mxu0
  %v1045 = vadd.f32 %v184, %v1044
  %v1046 = vpop.f32.mrf.mxu0
  %v1047 = vpop.f32.mrf.mxu0
  %v1048 = vadd.f32 %v184, %v1047
  %v1049 = vpop.f32.mrf.mxu0
  %1050 = vmatprep.mubr.bf16.mxu0 %v561
  %1051 = vmatmul.mubr.bf16.gmra.mxu0 %v560
  %v1052 = vpop.f32.mrf.mxu0
  %v1053 = vadd.f32 %v184, %v1052
  %v1054 = vpop.f32.mrf.mxu0
  %v1055 = vpop.f32.mrf.mxu0
  %v1056 = vadd.f32 %v184, %v1055
  %v1057 = vpop.f32.mrf.mxu0
  %1058 = vdwg.mxu0
  %1059 = vmatprep.subr.bf16.mxu0 0
  %1060 = vmatpush1.bf16.msra.mxu0 %v769
  %1061 = vmatprep.subr.bf16.mxu0 0
  %1062 = vmatpush1.bf16.msra.mxu0 %v768
  %1063 = vmatprep.subr.bf16.mxu0 0
  %1064 = vmatpush1.bf16.msra.mxu0 %v767
  %1065 = vmatprep.subr.bf16.mxu0 0
  %1066 = vmatpush1.bf16.msra.mxu0 %v766
  %1067 = vmatprep.subr.bf16.mxu0 0
  %1068 = vmatpush1.bf16.msra.mxu0 %v765
  %1069 = vmatprep.subr.bf16.mxu0 0
  %1070 = vmatpush1.bf16.msra.mxu0 %v764
  %1071 = vmatprep.subr.bf16.mxu0 0
  %1072 = vmatpush1.bf16.msra.mxu0 %v763
  %1073 = vmatprep.subr.bf16.mxu0 0
  %1074 = vmatpush1.bf16.msra.mxu0 %v762
  %1075 = vmatprep.subr.bf16.mxu0 0
  %1076 = vmatpush2.bf16.msra.mxu0 0
  %1077 = vmatprep.subr.bf16.mxu0 0
  %1078 = vmatpush2.bf16.msra.mxu0 0
  %1079 = vmatprep.subr.bf16.mxu0 0
  %1080 = vmatpush2.bf16.msra.mxu0 0
  %1081 = vmatprep.subr.bf16.mxu0 0
  %1082 = vmatpush2.bf16.msra.mxu0 0
  %1083 = vmatprep.subr.bf16.mxu0 0
  %1084 = vmatpush2.bf16.msra.mxu0 0
  %1085 = vmatprep.subr.bf16.mxu0 0
  %1086 = vmatpush2.bf16.msra.mxu0 0
  %1087 = vmatprep.subr.bf16.mxu0 0
  %1088 = vmatpush2.bf16.msra.mxu0 0
  %1089 = vmatprep.subr.bf16.mxu0 0
  %1090 = vmatpush2.bf16.msra.mxu0 0
  %1091 = vmatprep.mubr.bf16.mxu0 0
  %1092 = vmatmul.mubr.bf16.gmra.mxu0 %v478
  %v1093 = vpop.f32.mrf.mxu0
  %v1094 = vadd.f32 %v829, %v1093
  %v1095 = vpop.f32.mrf.mxu0
  %v1096 = vpop.f32.mrf.mxu0
  %v1097 = vadd.f32 %v832, %v1096
  %v1098 = vpop.f32.mrf.mxu0
  %1099 = vmatprep.mubr.bf16.mxu0 0
  %1100 = vmatmul.mubr.bf16.gmra.mxu0 %v481
  %v1101 = vpop.f32.mrf.mxu0
  %v1102 = vadd.f32 %v837, %v1101
  %v1103 = vpop.f32.mrf.mxu0
  %v1104 = vpop.f32.mrf.mxu0
  %v1105 = vadd.f32 %v840, %v1104
  %v1106 = vpop.f32.mrf.mxu0
  %1107 = vmatprep.mubr.bf16.mxu0 0
  %1108 = vmatmul.mubr.bf16.gmra.mxu0 %v484
  %v1109 = vpop.f32.mrf.mxu0
  %v1110 = vadd.f32 %v845, %v1109
  %v1111 = vpop.f32.mrf.mxu0
  %v1112 = vpop.f32.mrf.mxu0
  %v1113 = vadd.f32 %v848, %v1112
  %v1114 = vpop.f32.mrf.mxu0
  %1115 = vmatprep.mubr.bf16.mxu0 0
  %1116 = vmatmul.mubr.bf16.gmra.mxu0 %v487
  %v1117 = vpop.f32.mrf.mxu0
  %v1118 = vadd.f32 %v853, %v1117
  %v1119 = vpop.f32.mrf.mxu0
  %v1120 = vpop.f32.mrf.mxu0
  %v1121 = vadd.f32 %v856, %v1120
  %v1122 = vpop.f32.mrf.mxu0
  %1123 = vmatprep.mubr.bf16.mxu0 0
  %1124 = vmatmul.mubr.bf16.gmra.mxu0 %v490
  %v1125 = vpop.f32.mrf.mxu0
  %v1126 = vadd.f32 %v861, %v1125
  %v1127 = vpop.f32.mrf.mxu0
  %v1128 = vpop.f32.mrf.mxu0
  %v1129 = vadd.f32 %v864, %v1128
  %v1130 = vpop.f32.mrf.mxu0
  %1131 = vmatprep.mubr.bf16.mxu0 0
  %1132 = vmatmul.mubr.bf16.gmra.mxu0 %v493
  %v1133 = vpop.f32.mrf.mxu0
  %v1134 = vadd.f32 %v869, %v1133
  %v1135 = vpop.f32.mrf.mxu0
  %v1136 = vpop.f32.mrf.mxu0
  %v1137 = vadd.f32 %v872, %v1136
  %v1138 = vpop.f32.mrf.mxu0
  %1139 = vmatprep.mubr.bf16.mxu0 0
  %1140 = vmatmul.mubr.bf16.gmra.mxu0 %v496
  %v1141 = vpop.f32.mrf.mxu0
  %v1142 = vadd.f32 %v877, %v1141
  %v1143 = vpop.f32.mrf.mxu0
  %v1144 = vpop.f32.mrf.mxu0
  %v1145 = vadd.f32 %v880, %v1144
  %v1146 = vpop.f32.mrf.mxu0
  %1147 = vmatprep.mubr.bf16.mxu0 0
  %1148 = vmatmul.mubr.bf16.gmra.mxu0 %v499
  %v1149 = vpop.f32.mrf.mxu0
  %v1150 = vadd.f32 %v885, %v1149
  %v1151 = vpop.f32.mrf.mxu0
  %v1152 = vpop.f32.mrf.mxu0
  %v1153 = vadd.f32 %v888, %v1152
  %v1154 = vpop.f32.mrf.mxu0
  %1155 = vmatprep.mubr.bf16.mxu0 0
  %1156 = vmatmul.mubr.bf16.gmra.mxu0 %v502
  %v1157 = vpop.f32.mrf.mxu0
  %v1158 = vadd.f32 %v893, %v1157
  %v1159 = vpop.f32.mrf.mxu0
  %v1160 = vpop.f32.mrf.mxu0
  %v1161 = vadd.f32 %v896, %v1160
  %v1162 = vpop.f32.mrf.mxu0
  %1163 = vmatprep.mubr.bf16.mxu0 0
  %1164 = vmatmul.mubr.bf16.gmra.mxu0 %v505
  %v1165 = vpop.f32.mrf.mxu0
  %v1166 = vadd.f32 %v901, %v1165
  %v1167 = vpop.f32.mrf.mxu0
  %v1168 = vpop.f32.mrf.mxu0
  %v1169 = vadd.f32 %v904, %v1168
  %v1170 = vpop.f32.mrf.mxu0
  %1171 = vmatprep.mubr.bf16.mxu0 0
  %1172 = vmatmul.mubr.bf16.gmra.mxu0 %v508
  %v1173 = vpop.f32.mrf.mxu0
  %v1174 = vadd.f32 %v909, %v1173
  %v1175 = vpop.f32.mrf.mxu0
  %v1176 = vpop.f32.mrf.mxu0
  %v1177 = vadd.f32 %v912, %v1176
  %v1178 = vpop.f32.mrf.mxu0
  %1179 = vmatprep.mubr.bf16.mxu0 0
  %1180 = vmatmul.mubr.bf16.gmra.mxu0 %v511
  %v1181 = vpop.f32.mrf.mxu0
  %v1182 = vadd.f32 %v917, %v1181
  %v1183 = vpop.f32.mrf.mxu0
  %v1184 = vpop.f32.mrf.mxu0
  %v1185 = vadd.f32 %v920, %v1184
  %v1186 = vpop.f32.mrf.mxu0
  %1187 = vmatprep.mubr.bf16.mxu0 0
  %1188 = vmatmul.mubr.bf16.gmra.mxu0 %v514
  %v1189 = vpop.f32.mrf.mxu0
  %v1190 = vadd.f32 %v925, %v1189
  %v1191 = vpop.f32.mrf.mxu0
  %v1192 = vpop.f32.mrf.mxu0
  %v1193 = vadd.f32 %v928, %v1192
  %v1194 = vpop.f32.mrf.mxu0
  %1195 = vmatprep.mubr.bf16.mxu0 0
  %1196 = vmatmul.mubr.bf16.gmra.mxu0 %v517
  %v1197 = vpop.f32.mrf.mxu0
  %v1198 = vadd.f32 %v933, %v1197
  %v1199 = vpop.f32.mrf.mxu0
  %v1200 = vpop.f32.mrf.mxu0
  %v1201 = vadd.f32 %v936, %v1200
  %v1202 = vpop.f32.mrf.mxu0
  %1203 = vmatprep.mubr.bf16.mxu0 0
  %1204 = vmatmul.mubr.bf16.gmra.mxu0 %v520
  %v1205 = vpop.f32.mrf.mxu0
  %v1206 = vadd.f32 %v941, %v1205
  %v1207 = vpop.f32.mrf.mxu0
  %v1208 = vpop.f32.mrf.mxu0
  %v1209 = vadd.f32 %v944, %v1208
  %v1210 = vpop.f32.mrf.mxu0
  %1211 = vmatprep.mubr.bf16.mxu0 0
  %1212 = vmatmul.mubr.bf16.gmra.mxu0 %v523
  %v1213 = vpop.f32.mrf.mxu0
  %v1214 = vadd.f32 %v949, %v1213
  %v1215 = vpop.f32.mrf.mxu0
  %v1216 = vpop.f32.mrf.mxu0
  %v1217 = vadd.f32 %v952, %v1216
  %v1218 = vpop.f32.mrf.mxu0
  %1219 = vmatprep.mubr.bf16.mxu0 0
  %1220 = vmatmul.mubr.bf16.gmra.mxu0 %v526
  %v1221 = vpop.f32.mrf.mxu0
  %v1222 = vadd.f32 %v957, %v1221
  %v1223 = vpop.f32.mrf.mxu0
  %v1224 = vpop.f32.mrf.mxu0
  %v1225 = vadd.f32 %v960, %v1224
  %v1226 = vpop.f32.mrf.mxu0
  %1227 = vmatprep.mubr.bf16.mxu0 0
  %1228 = vmatmul.mubr.bf16.gmra.mxu0 %v529
  %v1229 = vpop.f32.mrf.mxu0
  %v1230 = vadd.f32 %v965, %v1229
  %v1231 = vpop.f32.mrf.mxu0
  %v1232 = vpop.f32.mrf.mxu0
  %v1233 = vadd.f32 %v968, %v1232
  %v1234 = vpop.f32.mrf.mxu0
  %1235 = vmatprep.mubr.bf16.mxu0 0
  %1236 = vmatmul.mubr.bf16.gmra.mxu0 %v532
  %v1237 = vpop.f32.mrf.mxu0
  %v1238 = vadd.f32 %v973, %v1237
  %v1239 = vpop.f32.mrf.mxu0
  %v1240 = vpop.f32.mrf.mxu0
  %v1241 = vadd.f32 %v976, %v1240
  %v1242 = vpop.f32.mrf.mxu0
  %1243 = vmatprep.mubr.bf16.mxu0 0
  %1244 = vmatmul.mubr.bf16.gmra.mxu0 %v535
  %v1245 = vpop.f32.mrf.mxu0
  %v1246 = vadd.f32 %v981, %v1245
  %v1247 = vpop.f32.mrf.mxu0
  %v1248 = vpop.f32.mrf.mxu0
  %v1249 = vadd.f32 %v984, %v1248
  %v1250 = vpop.f32.mrf.mxu0
  %1251 = vmatprep.mubr.bf16.mxu0 0
  %1252 = vmatmul.mubr.bf16.gmra.mxu0 %v538
  %v1253 = vpop.f32.mrf.mxu0
  %v1254 = vadd.f32 %v989, %v1253
  %v1255 = vpop.f32.mrf.mxu0
  %v1256 = vpop.f32.mrf.mxu0
  %v1257 = vadd.f32 %v992, %v1256
  %v1258 = vpop.f32.mrf.mxu0
  %1259 = vmatprep.mubr.bf16.mxu0 0
  %1260 = vmatmul.mubr.bf16.gmra.mxu0 %v541
  %v1261 = vpop.f32.mrf.mxu0
  %v1262 = vadd.f32 %v997, %v1261
  %v1263 = vpop.f32.mrf.mxu0
  %v1264 = vpop.f32.mrf.mxu0
  %v1265 = vadd.f32 %v1000, %v1264
  %v1266 = vpop.f32.mrf.mxu0
  %1267 = vmatprep.mubr.bf16.mxu0 0
  %1268 = vmatmul.mubr.bf16.gmra.mxu0 %v544
  %v1269 = vpop.f32.mrf.mxu0
  %v1270 = vadd.f32 %v1005, %v1269
  %v1271 = vpop.f32.mrf.mxu0
  %v1272 = vpop.f32.mrf.mxu0
  %v1273 = vadd.f32 %v1008, %v1272
  %v1274 = vpop.f32.mrf.mxu0
  %1275 = vmatprep.mubr.bf16.mxu0 0
  %1276 = vmatmul.mubr.bf16.gmra.mxu0 %v547
  %v1277 = vpop.f32.mrf.mxu0
  %v1278 = vadd.f32 %v1013, %v1277
  %v1279 = vpop.f32.mrf.mxu0
  %v1280 = vpop.f32.mrf.mxu0
  %v1281 = vadd.f32 %v1016, %v1280
  %v1282 = vpop.f32.mrf.mxu0
  %1283 = vmatprep.mubr.bf16.mxu0 0
  %1284 = vmatmul.mubr.bf16.gmra.mxu0 %v550
  %v1285 = vpop.f32.mrf.mxu0
  %v1286 = vadd.f32 %v1021, %v1285
  %v1287 = vpop.f32.mrf.mxu0
  %v1288 = vpop.f32.mrf.mxu0
  %v1289 = vadd.f32 %v1024, %v1288
  %v1290 = vpop.f32.mrf.mxu0
  %1291 = vmatprep.mubr.bf16.mxu0 0
  %1292 = vmatmul.mubr.bf16.gmra.mxu0 %v553
  %v1293 = vpop.f32.mrf.mxu0
  %v1294 = vadd.f32 %v1029, %v1293
  %v1295 = vpop.f32.mrf.mxu0
  %v1296 = vpop.f32.mrf.mxu0
  %v1297 = vadd.f32 %v1032, %v1296
  %v1298 = vpop.f32.mrf.mxu0
  %1299 = vmatprep.mubr.bf16.mxu0 0
  %1300 = vmatmul.mubr.bf16.gmra.mxu0 %v556
  %v1301 = vpop.f32.mrf.mxu0
  %v1302 = vadd.f32 %v1037, %v1301
  %v1303 = vpop.f32.mrf.mxu0
  %v1304 = vpop.f32.mrf.mxu0
  %v1305 = vadd.f32 %v1040, %v1304
  %v1306 = vpop.f32.mrf.mxu0
  %1307 = vmatprep.mubr.bf16.mxu0 0
  %1308 = vmatmul.mubr.bf16.gmra.mxu0 %v559
  %v1309 = vpop.f32.mrf.mxu0
  %v1310 = vadd.f32 %v1045, %v1309
  %v1311 = vpop.f32.mrf.mxu0
  %v1312 = vpop.f32.mrf.mxu0
  %v1313 = vadd.f32 %v1048, %v1312
  %v1314 = vpop.f32.mrf.mxu0
  %1315 = vmatprep.mubr.bf16.mxu0 0
  %1316 = vmatmul.mubr.bf16.gmra.mxu0 %v562
  %v1317 = vpop.f32.mrf.mxu0
  %v1318 = vadd.f32 %v1053, %v1317
  %v1319 = vpop.f32.mrf.mxu0
  %v1320 = vpop.f32.mrf.mxu0
  %v1321 = vadd.f32 %v1056, %v1320
  %v1322 = vpop.f32.mrf.mxu0
  %1323 = vdwg.mxu0
  %v1324 = vmax.f32 %v1094, 0.0
  %v1325 = vmax.f32 %v1097, 0.0
  %v1326 = vmax.f32 %v1102, 0.0
  %v1327 = vmax.f32 %v1105, 0.0
  %v1328 = vmax.f32 %v1110, 0.0
  %v1329 = vmax.f32 %v1113, 0.0
  %v1330 = vmax.f32 %v1118, 0.0
  %v1331 = vmax.f32 %v1121, 0.0
  %v1332 = vmax.f32 %v1126, 0.0
  %v1333 = vmax.f32 %v1129, 0.0
  %v1334 = vmax.f32 %v1134, 0.0
  %v1335 = vmax.f32 %v1137, 0.0
  %v1336 = vmax.f32 %v1142, 0.0
  %v1337 = vmax.f32 %v1145, 0.0
  %v1338 = vmax.f32 %v1150, 0.0
  %v1339 = vmax.f32 %v1153, 0.0
  %v1340 = vmax.f32 %v1158, 0.0
  %v1341 = vmax.f32 %v1161, 0.0
  %v1342 = vmax.f32 %v1166, 0.0
  %v1343 = vmax.f32 %v1169, 0.0
  %v1344 = vmax.f32 %v1174, 0.0
  %v1345 = vmax.f32 %v1177, 0.0
  %v1346 = vmax.f32 %v1182, 0.0
  %v1347 = vmax.f32 %v1185, 0.0
  %v1348 = vmax.f32 %v1190, 0.0
  %v1349 = vmax.f32 %v1193, 0.0
  %v1350 = vmax.f32 %v1198, 0.0
  %v1351 = vmax.f32 %v1201, 0.0
  %v1352 = vmax.f32 %v1206, 0.0
  %v1353 = vmax.f32 %v1209, 0.0
  %v1354 = vmax.f32 %v1214, 0.0
  %v1355 = vmax.f32 %v1217, 0.0
  %v1356 = vmax.f32 %v1222, 0.0
  %v1357 = vmax.f32 %v1225, 0.0
  %v1358 = vmax.f32 %v1230, 0.0
  %v1359 = vmax.f32 %v1233, 0.0
  %v1360 = vmax.f32 %v1238, 0.0
  %v1361 = vmax.f32 %v1241, 0.0
  %v1362 = vmax.f32 %v1246, 0.0
  %v1363 = vmax.f32 %v1249, 0.0
  %v1364 = vmax.f32 %v1254, 0.0
  %v1365 = vmax.f32 %v1257, 0.0
  %v1366 = vmax.f32 %v1262, 0.0
  %v1367 = vmax.f32 %v1265, 0.0
  %v1368 = vmax.f32 %v1270, 0.0
  %v1369 = vmax.f32 %v1273, 0.0
  %v1370 = vmax.f32 %v1278, 0.0
  %v1371 = vmax.f32 %v1281, 0.0
  %v1372 = vmax.f32 %v1286, 0.0
  %v1373 = vmax.f32 %v1289, 0.0
  %v1374 = vmax.f32 %v1294, 0.0
  %v1375 = vmax.f32 %v1297, 0.0
  %v1376 = vmax.f32 %v1302, 0.0
  %v1377 = vmax.f32 %v1305, 0.0
  %v1378 = vmax.f32 %v1310, 0.0
  %v1379 = vmax.f32 %v1313, 0.0
  %v1380 = vmax.f32 %v1318, 0.0
  %v1381 = vmax.f32 %v1321, 0.0
  %v1382 = vpack.c.bf16 %v1325, %v1324
  %v1383 = vpack.c.bf16 %v1327, %v1326
  %v1384 = vpack.c.bf16 %v1329, %v1328
  %v1385 = vpack.c.bf16 %v1331, %v1330
  %v1386 = vpack.c.bf16 %v1333, %v1332
  %v1387 = vpack.c.bf16 %v1335, %v1334
  %v1388 = vpack.c.bf16 %v1337, %v1336
  %v1389 = vpack.c.bf16 %v1339, %v1338
  %v1390 = vpack.c.bf16 %v1341, %v1340
  %v1391 = vpack.c.bf16 %v1343, %v1342
  %v1392 = vpack.c.bf16 %v1345, %v1344
  %v1393 = vpack.c.bf16 %v1347, %v1346
  %v1394 = vpack.c.bf16 %v1349, %v1348
  %v1395 = vpack.c.bf16 %v1351, %v1350
  %v1396 = vpack.c.bf16 %v1353, %v1352
  %v1397 = vpack.c.bf16 %v1355, %v1354
  %v1398 = vpack.c.bf16 %v1357, %v1356
  %v1399 = vpack.c.bf16 %v1359, %v1358
  %v1400 = vpack.c.bf16 %v1361, %v1360
  %v1401 = vpack.c.bf16 %v1363, %v1362
  %v1402 = vpack.c.bf16 %v1365, %v1364
  %v1403 = vpack.c.bf16 %v1367, %v1366
  %v1404 = vpack.c.bf16 %v1369, %v1368
  %v1405 = vpack.c.bf16 %v1371, %v1370
  %v1406 = vpack.c.bf16 %v1373, %v1372
  %v1407 = vpack.c.bf16 %v1375, %v1374
  %v1408 = vpack.c.bf16 %v1377, %v1376
  %v1409 = vpack.c.bf16 %v1379, %v1378
  %v1410 = vpack.c.bf16 %v1381, %v1380
  %v1440 = vunpack.c.l.b16 %v1382
  %v1441 = vunpack.c.h.b16 %v1382
  %v1442 = vunpack.c.l.b16 %v1383
  %v1443 = vunpack.c.h.b16 %v1383
  %v1444 = vunpack.c.l.b16 %v1384
  %v1445 = vunpack.c.h.b16 %v1384
  %v1446 = vunpack.c.l.b16 %v1385
  %v1447 = vunpack.c.h.b16 %v1385
  %v1448 = vunpack.c.l.b16 %v1386
  %v1449 = vunpack.c.h.b16 %v1386
  %v1450 = vunpack.c.l.b16 %v1387
  %v1451 = vunpack.c.h.b16 %v1387
  %v1452 = vunpack.c.l.b16 %v1388
  %v1453 = vunpack.c.h.b16 %v1388
  %v1454 = vunpack.c.l.b16 %v1389
  %v1455 = vunpack.c.h.b16 %v1389
  %v1456 = vunpack.c.l.b16 %v1390
  %v1457 = vunpack.c.h.b16 %v1390
  %v1458 = vunpack.c.l.b16 %v1391
  %v1459 = vunpack.c.h.b16 %v1391
  %v1460 = vunpack.c.l.b16 %v1392
  %v1461 = vunpack.c.h.b16 %v1392
  %v1462 = vunpack.c.l.b16 %v1393
  %v1463 = vunpack.c.h.b16 %v1393
  %v1464 = vunpack.c.l.b16 %v1394
  %v1465 = vunpack.c.h.b16 %v1394
  %v1466 = vunpack.c.l.b16 %v1395
  %v1467 = vunpack.c.h.b16 %v1395
  %v1468 = vunpack.c.l.b16 %v1396
  %v1469 = vunpack.c.h.b16 %v1396
  %v1470 = vunpack.c.l.b16 %v1397
  %v1471 = vunpack.c.h.b16 %v1397
  %v1472 = vunpack.c.l.b16 %v1398
  %v1473 = vunpack.c.h.b16 %v1398
  %v1474 = vunpack.c.l.b16 %v1399
  %v1475 = vunpack.c.h.b16 %v1399
  %v1476 = vunpack.c.l.b16 %v1400
  %v1477 = vunpack.c.h.b16 %v1400
  %v1478 = vunpack.c.l.b16 %v1401
  %v1479 = vunpack.c.h.b16 %v1401
  %v1480 = vunpack.c.l.b16 %v1402
  %v1481 = vunpack.c.h.b16 %v1402
  %v1482 = vunpack.c.l.b16 %v1403
  %v1483 = vunpack.c.h.b16 %v1403
  %v1484 = vunpack.c.l.b16 %v1404
  %v1485 = vunpack.c.h.b16 %v1404
  %v1486 = vunpack.c.l.b16 %v1405
  %v1487 = vunpack.c.h.b16 %v1405
  %v1488 = vunpack.c.l.b16 %v1406
  %v1489 = vunpack.c.h.b16 %v1406
  %v1490 = vunpack.c.l.b16 %v1407
  %v1491 = vunpack.c.h.b16 %v1407
  %v1492 = vunpack.c.l.b16 %v1408
  %v1493 = vunpack.c.h.b16 %v1408
  %v1494 = vunpack.c.l.b16 %v1409
  %v1495 = vunpack.c.h.b16 %v1409
  %v1496 = vunpack.c.l.b16 %v1410
  %v1497 = vunpack.c.h.b16 %v1410
  %v1498 = vpack.c.b16 %v1440, %v1440
  %v1499 = vpack.c.b16 %v1441, %v1441
  %v1500 = vpack.c.b16 %v1442, %v1442
  %v1501 = vpack.c.b16 %v1443, %v1443
  %v1502 = vpack.c.b16 %v1444, %v1444
  %v1503 = vpack.c.b16 %v1445, %v1445
  %v1504 = vpack.c.b16 %v1446, %v1446
  %v1505 = vpack.c.b16 %v1447, %v1447
  %v1506 = vpack.c.b16 %v1448, %v1448
  %v1507 = vpack.c.b16 %v1449, %v1449
  %v1508 = vpack.c.b16 %v1450, %v1450
  %v1509 = vpack.c.b16 %v1451, %v1451
  %v1510 = vpack.c.b16 %v1452, %v1452
  %v1511 = vpack.c.b16 %v1453, %v1453
  %v1512 = vpack.c.b16 %v1454, %v1454
  %v1513 = vpack.c.b16 %v1455, %v1455
  %v1514 = vpack.c.b16 %v1456, %v1456
  %v1515 = vpack.c.b16 %v1457, %v1457
  %v1516 = vpack.c.b16 %v1458, %v1458
  %v1517 = vpack.c.b16 %v1459, %v1459
  %v1518 = vpack.c.b16 %v1460, %v1460
  %v1519 = vpack.c.b16 %v1461, %v1461
  %v1520 = vpack.c.b16 %v1462, %v1462
  %v1521 = vpack.c.b16 %v1463, %v1463
  %v1522 = vpack.c.b16 %v1464, %v1464
  %v1523 = vpack.c.b16 %v1465, %v1465
  %v1524 = vpack.c.b16 %v1466, %v1466
  %v1525 = vpack.c.b16 %v1467, %v1467
  %v1526 = vpack.c.b16 %v1468, %v1468
  %v1527 = vpack.c.b16 %v1469, %v1469
  %v1528 = vpack.c.b16 %v1470, %v1470
  %v1529 = vpack.c.b16 %v1471, %v1471
  %v1530 = vpack.c.b16 %v1472, %v1472
  %v1531 = vpack.c.b16 %v1473, %v1473
  %v1532 = vpack.c.b16 %v1474, %v1474
  %v1533 = vpack.c.b16 %v1475, %v1475
  %v1534 = vpack.c.b16 %v1476, %v1476
  %v1535 = vpack.c.b16 %v1477, %v1477
  %v1536 = vpack.c.b16 %v1478, %v1478
  %v1537 = vpack.c.b16 %v1479, %v1479
  %v1538 = vpack.c.b16 %v1480, %v1480
  %v1539 = vpack.c.b16 %v1481, %v1481
  %v1540 = vpack.c.b16 %v1482, %v1482
  %v1541 = vpack.c.b16 %v1483, %v1483
  %v1542 = vpack.c.b16 %v1484, %v1484
  %v1543 = vpack.c.b16 %v1485, %v1485
  %v1544 = vpack.c.b16 %v1486, %v1486
  %v1545 = vpack.c.b16 %v1487, %v1487
  %v1546 = vpack.c.b16 %v1488, %v1488
  %v1547 = vpack.c.b16 %v1489, %v1489
  %v1548 = vpack.c.b16 %v1490, %v1490
  %v1549 = vpack.c.b16 %v1491, %v1491
  %v1550 = vpack.c.b16 %v1492, %v1492
  %v1551 = vpack.c.b16 %v1493, %v1493
  %v1552 = vpack.c.b16 %v1494, %v1494
  %v1553 = vpack.c.b16 %v1495, %v1495
  %v1554 = vpack.c.b16 %v1496, %v1496
  %v1555 = vpack.c.b16 %v1497, %v1497
  %1614 = vst [vmem:[%s3] sm:$0xf] %v1498
  %1615 = vst [vmem:[%s3 + $0x4] sm:$0xf] %v1499
  %1616 = vst [vmem:[%s3 + $0x8] sm:$0xf] %v1500
  %1617 = vst [vmem:[%s3 + $0xc] sm:$0xf] %v1501
  %1618 = vst [vmem:[%s3 + $0x10] sm:$0xf] %v1502
  %1619 = vst [vmem:[%s3 + $0x14] sm:$0xf] %v1503
  %1620 = vst [vmem:[%s3 + $0x18] sm:$0xf] %v1504
  %1621 = vst [vmem:[%s3 + $0x1c] sm:$0xf] %v1505
  %1622 = vst [vmem:[%s3 + $0x20] sm:$0xf] %v1506
  %1623 = vst [vmem:[%s3 + $0x24] sm:$0xf] %v1507
  %1624 = vst [vmem:[%s3 + $0x28] sm:$0xf] %v1508
  %1625 = vst [vmem:[%s3 + $0x2c] sm:$0xf] %v1509
  %1626 = vst [vmem:[%s3 + $0x30] sm:$0xf] %v1510
  %1627 = vst [vmem:[%s3 + $0x34] sm:$0xf] %v1511
  %1628 = vst [vmem:[%s3 + $0x38] sm:$0xf] %v1512
  %1629 = vst [vmem:[%s3 + $0x3c] sm:$0xf] %v1513
  %1630 = vst [vmem:[%s3 + $0x40] sm:$0xf] %v1514
  %1631 = vst [vmem:[%s3 + $0x44] sm:$0xf] %v1515
  %1632 = vst [vmem:[%s3 + $0x48] sm:$0xf] %v1516
  %1633 = vst [vmem:[%s3 + $0x4c] sm:$0xf] %v1517
  %1634 = vst [vmem:[%s3 + $0x50] sm:$0xf] %v1518
  %1635 = vst [vmem:[%s3 + $0x54] sm:$0xf] %v1519
  %1636 = vst [vmem:[%s3 + $0x58] sm:$0xf] %v1520
  %1637 = vst [vmem:[%s3 + $0x5c] sm:$0xf] %v1521
  %1638 = vst [vmem:[%s3 + $0x60] sm:$0xf] %v1522
  %1639 = vst [vmem:[%s3 + $0x64] sm:$0xf] %v1523
  %1640 = vst [vmem:[%s3 + $0x68] sm:$0xf] %v1524
  %1641 = vst [vmem:[%s3 + $0x6c] sm:$0xf] %v1525
  %1642 = vst [vmem:[%s3 + $0x70] sm:$0xf] %v1526
  %1643 = vst [vmem:[%s3 + $0x74] sm:$0xf] %v1527
  %1644 = vst [vmem:[%s3 + $0x78] sm:$0xf] %v1528
  %1645 = vst [vmem:[%s3 + $0x7c] sm:$0xf] %v1529
  %1646 = vst [vmem:[%s3 + $0x80] sm:$0xf] %v1530
  %1647 = vst [vmem:[%s3 + $0x84] sm:$0xf] %v1531
  %1648 = vst [vmem:[%s3 + $0x88] sm:$0xf] %v1532
  %1649 = vst [vmem:[%s3 + $0x8c] sm:$0xf] %v1533
  %1650 = vst [vmem:[%s3 + $0x90] sm:$0xf] %v1534
  %1651 = vst [vmem:[%s3 + $0x94] sm:$0xf] %v1535
  %1652 = vst [vmem:[%s3 + $0x98] sm:$0xf] %v1536
  %1653 = vst [vmem:[%s3 + $0x9c] sm:$0xf] %v1537
  %1654 = vst [vmem:[%s3 + $0xa0] sm:$0xf] %v1538
  %1655 = vst [vmem:[%s3 + $0xa4] sm:$0xf] %v1539
  %1656 = vst [vmem:[%s3 + $0xa8] sm:$0xf] %v1540
  %1657 = vst [vmem:[%s3 + $0xac] sm:$0xf] %v1541
  %1658 = vst [vmem:[%s3 + $0xb0] sm:$0xf] %v1542
  %1659 = vst [vmem:[%s3 + $0xb4] sm:$0xf] %v1543
  %1660 = vst [vmem:[%s3 + $0xb8] sm:$0xf] %v1544
  %1661 = vst [vmem:[%s3 + $0xbc] sm:$0xf] %v1545
  %1662 = vst [vmem:[%s3 + $0xc0] sm:$0xf] %v1546
  %1663 = vst [vmem:[%s3 + $0xc4] sm:$0xf] %v1547
  %1664 = vst [vmem:[%s3 + $0xc8] sm:$0xf] %v1548
  %1665 = vst [vmem:[%s3 + $0xcc] sm:$0xf] %v1549
  %1666 = vst [vmem:[%s3 + $0xd0] sm:$0xf] %v1550
  %1667 = vst [vmem:[%s3 + $0xd4] sm:$0xf] %v1551
  %1668 = vst [vmem:[%s3 + $0xd8] sm:$0xf] %v1552
  %1669 = vst [vmem:[%s3 + $0xdc] sm:$0xf] %v1553
  %1670 = vst [vmem:[%s3 + $0xe0] sm:$0xf] %v1554
  %1671 = vst [vmem:[%s3 + $0xe4] sm:$0xf] %v1555
  // Predicated region
  $region14: #{alexnet_features.8} parent=0 // pred_check
    _
  $region15: #{alexnet_features.8} parent=0 // pred_check_branch
    %1673 = sbr.rel (0) target = $region17
  $region16: #{alexnet_features.8} parent=0 // pred_region
    _
  $region17: #{alexnet_features.8} parent=0 // pred_fallthru
    _
  // Predicated region
  $region18: #{alexnet_features.8} parent=0 // pred_check
    _
  $region19: #{alexnet_features.8} parent=0 // pred_check_branch
    %1675 = sbr.rel (0) target = $region21
  $region20: #{alexnet_features.8} parent=0 // pred_region
    _
  $region21: #{alexnet_features.8} parent=0 // pred_fallthru
    _

// kernel: alexnet_features.9
$region0: #{alexnet_features.9}
  #allocation0 [shape = 'u32[]', space=smem, size = 0x4, offset = 0x4, fixed_abs, tag = 'smem constant byte address 0x4 - core index']
  #allocation1 [shape = 'u32[144,128]{1,0:T(1,128)}', space=vmem, size = 0x12000, scoped, tag = 'internal scratch']
  %s0 = inlined_call_operand.vmem [shape: bf16[9,112,64], index: 0, kind: input, shape index: {}]
  %s1 = inlined_call_operand.vmem [shape: bf16[112,64], index: 1, kind: output, shape index: {}]
  %s2 = sld [smem:[#allocation0]]
  $region14: #{alexnet_features.9} parent=0
    _
  %s4 = ssub.s32 1, %s2
  %s5 = scalar_select 0, %s4, %s2
  // Predicated region
  $region2: #{alexnet_features.9} parent=0 // pred_check
    _
  $region3: #{alexnet_features.9} parent=0 // pred_check_branch
    %7 = sbr.rel (0) target = $region5
  $region4: #{alexnet_features.9} parent=0 // pred_region
    _
  $region5: #{alexnet_features.9} parent=0 // pred_fallthru
    _
  %v9 = vld [vmem:[%s0] sm:$0xf]
  %v10 = vld [vmem:[%s0 + $0x4] sm:$0xf]
  %v11 = vld [vmem:[%s0 + $0x8] sm:$0xf]
  %v12 = vld [vmem:[%s0 + $0xc] sm:$0xf]
  %v13 = vld [vmem:[%s0 + $0x10] sm:$0xf]
  %v14 = vld [vmem:[%s0 + $0x14] sm:$0xf]
  %v15 = vld [vmem:[%s0 + $0x18] sm:$0xf]
  %v16 = vld [vmem:[%s0 + $0x1c] sm:$0xf]
  %v17 = vld [vmem:[%s0 + $0x20] sm:$0xf]
  %v18 = vld [vmem:[%s0 + $0x24] sm:$0xf]
  %v19 = vld [vmem:[%s0 + $0x28] sm:$0xf]
  %v20 = vld [vmem:[%s0 + $0x2c] sm:$0xf]
  %v21 = vld [vmem:[%s0 + $0x30] sm:$0xf]
  %v22 = vld [vmem:[%s0 + $0x34] sm:$0xf]
  %v23 = vld [vmem:[%s0 + $0x38] sm:$0xf]
  %v24 = vld [vmem:[%s0 + $0x3c] sm:$0xf]
  %v25 = vld [vmem:[%s0 + $0x40] sm:$0xf]
  %v26 = vld [vmem:[%s0 + $0x44] sm:$0xf]
  %v27 = vld [vmem:[%s0 + $0x48] sm:$0xf]
  %v28 = vld [vmem:[%s0 + $0x4c] sm:$0xf]
  %v29 = vld [vmem:[%s0 + $0x50] sm:$0xf]
  %v30 = vld [vmem:[%s0 + $0x54] sm:$0xf]
  %v31 = vld [vmem:[%s0 + $0x58] sm:$0xf]
  %v32 = vld [vmem:[%s0 + $0x5c] sm:$0xf]
  %v33 = vld [vmem:[%s0 + $0x60] sm:$0xf]
  %v34 = vld [vmem:[%s0 + $0x64] sm:$0xf]
  %v35 = vld [vmem:[%s0 + $0x68] sm:$0xf]
  %v36 = vld [vmem:[%s0 + $0x6c] sm:$0xf]
  %v37 = vld [vmem:[%s0 + $0x70] sm:$0xf]
  %v38 = vld [vmem:[%s0 + $0x74] sm:$0xf]
  %v39 = vld [vmem:[%s0 + $0x78] sm:$0xf]
  %v40 = vld [vmem:[%s0 + $0x7c] sm:$0xf]
  %v41 = vld [vmem:[%s0 + $0x80] sm:$0xf]
  %v42 = vld [vmem:[%s0 + $0x84] sm:$0xf]
  %v43 = vld [vmem:[%s0 + $0x88] sm:$0xf]
  %v44 = vld [vmem:[%s0 + $0x8c] sm:$0xf]
  %v45 = vld [vmem:[%s0 + $0x90] sm:$0xf]
  %v46 = vld [vmem:[%s0 + $0x94] sm:$0xf]
  %v47 = vld [vmem:[%s0 + $0x98] sm:$0xf]
  %v48 = vld [vmem:[%s0 + $0x9c] sm:$0xf]
  %v49 = vld [vmem:[%s0 + $0xa0] sm:$0xf]
  %v50 = vld [vmem:[%s0 + $0xa4] sm:$0xf]
  %v51 = vld [vmem:[%s0 + $0xa8] sm:$0xf]
  %v52 = vld [vmem:[%s0 + $0xac] sm:$0xf]
  %v53 = vld [vmem:[%s0 + $0xb0] sm:$0xf]
  %v54 = vld [vmem:[%s0 + $0xb4] sm:$0xf]
  %v55 = vld [vmem:[%s0 + $0xb8] sm:$0xf]
  %v56 = vld [vmem:[%s0 + $0xbc] sm:$0xf]
  %v57 = vld [vmem:[%s0 + $0xc0] sm:$0xf]
  %v58 = vld [vmem:[%s0 + $0xc4] sm:$0xf]
  %v59 = vld [vmem:[%s0 + $0xc8] sm:$0xf]
  %v60 = vld [vmem:[%s0 + $0xcc] sm:$0xf]
  %v61 = vld [vmem:[%s0 + $0xd0] sm:$0xf]
  %v62 = vld [vmem:[%s0 + $0xd4] sm:$0xf]
  %v63 = vld [vmem:[%s0 + $0xd8] sm:$0xf]
  %v64 = vld [vmem:[%s0 + $0xdc] sm:$0xf]
  %v65 = vld [vmem:[%s0 + $0xe0] sm:$0xf]
  %v66 = vld [vmem:[%s0 + $0xe4] sm:$0xf]
  %v67 = vld [vmem:[%s0 + $0xe8] sm:$0xf]
  %v68 = vld [vmem:[%s0 + $0xec] sm:$0xf]
  %v69 = vld [vmem:[%s0 + $0xf0] sm:$0xf]
  %v70 = vld [vmem:[%s0 + $0xf4] sm:$0xf]
  %v71 = vld [vmem:[%s0 + $0xf8] sm:$0xf]
  %v72 = vld [vmem:[%s0 + $0xfc] sm:$0xf]
  %v73 = vld [vmem:[%s0 + $0x100] sm:$0xf]
  %v74 = vld [vmem:[%s0 + $0x104] sm:$0xf]
  %v75 = vld [vmem:[%s0 + $0x108] sm:$0xf]
  %v76 = vld [vmem:[%s0 + $0x10c] sm:$0xf]
  %v77 = vld [vmem:[%s0 + $0x110] sm:$0xf]
  %v78 = vld [vmem:[%s0 + $0x114] sm:$0xf]
  %v79 = vld [vmem:[%s0 + $0x118] sm:$0xf]
  %v80 = vld [vmem:[%s0 + $0x11c] sm:$0xf]
  %v81 = vld [vmem:[%s0 + $0x120] sm:$0xf]
  %v82 = vld [vmem:[%s0 + $0x124] sm:$0xf]
  %v83 = vld [vmem:[%s0 + $0x128] sm:$0xf]
  %v84 = vld [vmem:[%s0 + $0x12c] sm:$0xf]
  %v85 = vld [vmem:[%s0 + $0x130] sm:$0xf]
  %v86 = vld [vmem:[%s0 + $0x134] sm:$0xf]
  %v87 = vld [vmem:[%s0 + $0x138] sm:$0xf]
  %v88 = vld [vmem:[%s0 + $0x13c] sm:$0xf]
  %v89 = vld [vmem:[%s0 + $0x140] sm:$0xf]
  %v90 = vld [vmem:[%s0 + $0x144] sm:$0xf]
  %v91 = vld [vmem:[%s0 + $0x148] sm:$0xf]
  %v92 = vld [vmem:[%s0 + $0x14c] sm:$0xf]
  %v93 = vld [vmem:[%s0 + $0x150] sm:$0xf]
  %v94 = vld [vmem:[%s0 + $0x154] sm:$0xf]
  %v95 = vld [vmem:[%s0 + $0x158] sm:$0xf]
  %v96 = vld [vmem:[%s0 + $0x15c] sm:$0xf]
  %v97 = vld [vmem:[%s0 + $0x160] sm:$0xf]
  %v98 = vld [vmem:[%s0 + $0x164] sm:$0xf]
  %v99 = vld [vmem:[%s0 + $0x168] sm:$0xf]
  %v100 = vld [vmem:[%s0 + $0x16c] sm:$0xf]
  %v101 = vld [vmem:[%s0 + $0x170] sm:$0xf]
  %v102 = vld [vmem:[%s0 + $0x174] sm:$0xf]
  %v103 = vld [vmem:[%s0 + $0x178] sm:$0xf]
  %v104 = vld [vmem:[%s0 + $0x17c] sm:$0xf]
  %v105 = vld [vmem:[%s0 + $0x180] sm:$0xf]
  %v106 = vld [vmem:[%s0 + $0x184] sm:$0xf]
  %v107 = vld [vmem:[%s0 + $0x188] sm:$0xf]
  %v108 = vld [vmem:[%s0 + $0x18c] sm:$0xf]
  %v109 = vld [vmem:[%s0 + $0x190] sm:$0xf]
  %v110 = vld [vmem:[%s0 + $0x194] sm:$0xf]
  %v111 = vld [vmem:[%s0 + $0x198] sm:$0xf]
  %v112 = vld [vmem:[%s0 + $0x19c] sm:$0xf]
  %v113 = vld [vmem:[%s0 + $0x1a0] sm:$0xf]
  %v114 = vld [vmem:[%s0 + $0x1a4] sm:$0xf]
  %v115 = vld [vmem:[%s0 + $0x1a8] sm:$0xf]
  %v116 = vld [vmem:[%s0 + $0x1ac] sm:$0xf]
  %v117 = vld [vmem:[%s0 + $0x1b0] sm:$0xf]
  %v118 = vld [vmem:[%s0 + $0x1b4] sm:$0xf]
  %v119 = vld [vmem:[%s0 + $0x1b8] sm:$0xf]
  %v120 = vld [vmem:[%s0 + $0x1bc] sm:$0xf]
  %v121 = vld [vmem:[%s0 + $0x1c0] sm:$0xf]
  %v122 = vld [vmem:[%s0 + $0x1c4] sm:$0xf]
  %v123 = vld [vmem:[%s0 + $0x1c8] sm:$0xf]
  %v124 = vld [vmem:[%s0 + $0x1cc] sm:$0xf]
  %v125 = vld [vmem:[%s0 + $0x1d0] sm:$0xf]
  %v126 = vld [vmem:[%s0 + $0x1d4] sm:$0xf]
  %v127 = vld [vmem:[%s0 + $0x1d8] sm:$0xf]
  %v128 = vld [vmem:[%s0 + $0x1dc] sm:$0xf]
  %v129 = vld [vmem:[%s0 + $0x1e0] sm:$0xf]
  %v130 = vld [vmem:[%s0 + $0x1e4] sm:$0xf]
  %v131 = vld [vmem:[%s0 + $0x1e8] sm:$0xf]
  %v132 = vld [vmem:[%s0 + $0x1ec] sm:$0xf]
  %v133 = vld [vmem:[%s0 + $0x1f0] sm:$0xf]
  %v134 = vld [vmem:[%s0 + $0x1f4] sm:$0xf]
  %vm135 = vcmask 519168
  %v138 = vsel %vm135, %v9, 4286644096
  %v141 = vsel %vm135, %v23, 4286644096
  %v143 = vmax.bf16 %v138, %v141
  %v145 = vsel %vm135, %v37, 4286644096
  %v147 = vmax.bf16 %v143, %v145
  %v149 = vsel %vm135, %v51, 4286644096
  %v151 = vmax.bf16 %v147, %v149
  %v153 = vsel %vm135, %v65, 4286644096
  %v155 = vmax.bf16 %v151, %v153
  %v157 = vsel %vm135, %v79, 4286644096
  %v159 = vmax.bf16 %v155, %v157
  %v161 = vsel %vm135, %v93, 4286644096
  %v163 = vmax.bf16 %v159, %v161
  %v165 = vsel %vm135, %v107, 4286644096
  %v167 = vmax.bf16 %v163, %v165
  %v169 = vsel %vm135, %v121, 4286644096
  %v171 = vmax.bf16 %v167, %v169
  %v173 = vsel %vm135, %v10, 4286644096
  %v176 = vsel %vm135, %v24, 4286644096
  %v178 = vmax.bf16 %v173, %v176
  %v180 = vsel %vm135, %v38, 4286644096
  %v182 = vmax.bf16 %v178, %v180
  %v184 = vsel %vm135, %v52, 4286644096
  %v186 = vmax.bf16 %v182, %v184
  %v188 = vsel %vm135, %v66, 4286644096
  %v190 = vmax.bf16 %v186, %v188
  %v192 = vsel %vm135, %v80, 4286644096
  %v194 = vmax.bf16 %v190, %v192
  %v196 = vsel %vm135, %v94, 4286644096
  %v198 = vmax.bf16 %v194, %v196
  %v200 = vsel %vm135, %v108, 4286644096
  %v202 = vmax.bf16 %v198, %v200
  %v204 = vsel %vm135, %v122, 4286644096
  %v206 = vmax.bf16 %v202, %v204
  %v208 = vsel %vm135, %v11, 4286644096
  %v211 = vsel %vm135, %v25, 4286644096
  %v213 = vmax.bf16 %v208, %v211
  %v215 = vsel %vm135, %v39, 4286644096
  %v217 = vmax.bf16 %v213, %v215
  %v219 = vsel %vm135, %v53, 4286644096
  %v221 = vmax.bf16 %v217, %v219
  %v223 = vsel %vm135, %v67, 4286644096
  %v225 = vmax.bf16 %v221, %v223
  %v227 = vsel %vm135, %v81, 4286644096
  %v229 = vmax.bf16 %v225, %v227
  %v231 = vsel %vm135, %v95, 4286644096
  %v233 = vmax.bf16 %v229, %v231
  %v235 = vsel %vm135, %v109, 4286644096
  %v237 = vmax.bf16 %v233, %v235
  %v239 = vsel %vm135, %v123, 4286644096
  %v241 = vmax.bf16 %v237, %v239
  %v243 = vsel %vm135, %v12, 4286644096
  %v246 = vsel %vm135, %v26, 4286644096
  %v248 = vmax.bf16 %v243, %v246
  %v250 = vsel %vm135, %v40, 4286644096
  %v252 = vmax.bf16 %v248, %v250
  %v254 = vsel %vm135, %v54, 4286644096
  %v256 = vmax.bf16 %v252, %v254
  %v258 = vsel %vm135, %v68, 4286644096
  %v260 = vmax.bf16 %v256, %v258
  %v262 = vsel %vm135, %v82, 4286644096
  %v264 = vmax.bf16 %v260, %v262
  %v266 = vsel %vm135, %v96, 4286644096
  %v268 = vmax.bf16 %v264, %v266
  %v270 = vsel %vm135, %v110, 4286644096
  %v272 = vmax.bf16 %v268, %v270
  %v274 = vsel %vm135, %v124, 4286644096
  %v276 = vmax.bf16 %v272, %v274
  %v278 = vsel %vm135, %v13, 4286644096
  %v281 = vsel %vm135, %v27, 4286644096
  %v283 = vmax.bf16 %v278, %v281
  %v285 = vsel %vm135, %v41, 4286644096
  %v287 = vmax.bf16 %v283, %v285
  %v289 = vsel %vm135, %v55, 4286644096
  %v291 = vmax.bf16 %v287, %v289
  %v293 = vsel %vm135, %v69, 4286644096
  %v295 = vmax.bf16 %v291, %v293
  %v297 = vsel %vm135, %v83, 4286644096
  %v299 = vmax.bf16 %v295, %v297
  %v301 = vsel %vm135, %v97, 4286644096
  %v303 = vmax.bf16 %v299, %v301
  %v305 = vsel %vm135, %v111, 4286644096
  %v307 = vmax.bf16 %v303, %v305
  %v309 = vsel %vm135, %v125, 4286644096
  %v311 = vmax.bf16 %v307, %v309
  %v313 = vsel %vm135, %v14, 4286644096
  %v316 = vsel %vm135, %v28, 4286644096
  %v318 = vmax.bf16 %v313, %v316
  %v320 = vsel %vm135, %v42, 4286644096
  %v322 = vmax.bf16 %v318, %v320
  %v324 = vsel %vm135, %v56, 4286644096
  %v326 = vmax.bf16 %v322, %v324
  %v328 = vsel %vm135, %v70, 4286644096
  %v330 = vmax.bf16 %v326, %v328
  %v332 = vsel %vm135, %v84, 4286644096
  %v334 = vmax.bf16 %v330, %v332
  %v336 = vsel %vm135, %v98, 4286644096
  %v338 = vmax.bf16 %v334, %v336
  %v340 = vsel %vm135, %v112, 4286644096
  %v342 = vmax.bf16 %v338, %v340
  %v344 = vsel %vm135, %v126, 4286644096
  %v346 = vmax.bf16 %v342, %v344
  %v348 = vsel %vm135, %v15, 4286644096
  %v351 = vsel %vm135, %v29, 4286644096
  %v353 = vmax.bf16 %v348, %v351
  %v355 = vsel %vm135, %v43, 4286644096
  %v357 = vmax.bf16 %v353, %v355
  %v359 = vsel %vm135, %v57, 4286644096
  %v361 = vmax.bf16 %v357, %v359
  %v363 = vsel %vm135, %v71, 4286644096
  %v365 = vmax.bf16 %v361, %v363
  %v367 = vsel %vm135, %v85, 4286644096
  %v369 = vmax.bf16 %v365, %v367
  %v371 = vsel %vm135, %v99, 4286644096
  %v373 = vmax.bf16 %v369, %v371
  %v375 = vsel %vm135, %v113, 4286644096
  %v377 = vmax.bf16 %v373, %v375
  %v379 = vsel %vm135, %v127, 4286644096
  %v381 = vmax.bf16 %v377, %v379
  %v383 = vsel %vm135, %v16, 4286644096
  %v386 = vsel %vm135, %v30, 4286644096
  %v388 = vmax.bf16 %v383, %v386
  %v390 = vsel %vm135, %v44, 4286644096
  %v392 = vmax.bf16 %v388, %v390
  %v394 = vsel %vm135, %v58, 4286644096
  %v396 = vmax.bf16 %v392, %v394
  %v398 = vsel %vm135, %v72, 4286644096
  %v400 = vmax.bf16 %v396, %v398
  %v402 = vsel %vm135, %v86, 4286644096
  %v404 = vmax.bf16 %v400, %v402
  %v406 = vsel %vm135, %v100, 4286644096
  %v408 = vmax.bf16 %v404, %v406
  %v410 = vsel %vm135, %v114, 4286644096
  %v412 = vmax.bf16 %v408, %v410
  %v414 = vsel %vm135, %v128, 4286644096
  %v416 = vmax.bf16 %v412, %v414
  %v418 = vsel %vm135, %v17, 4286644096
  %v421 = vsel %vm135, %v31, 4286644096
  %v423 = vmax.bf16 %v418, %v421
  %v425 = vsel %vm135, %v45, 4286644096
  %v427 = vmax.bf16 %v423, %v425
  %v429 = vsel %vm135, %v59, 4286644096
  %v431 = vmax.bf16 %v427, %v429
  %v433 = vsel %vm135, %v73, 4286644096
  %v435 = vmax.bf16 %v431, %v433
  %v437 = vsel %vm135, %v87, 4286644096
  %v439 = vmax.bf16 %v435, %v437
  %v441 = vsel %vm135, %v101, 4286644096
  %v443 = vmax.bf16 %v439, %v441
  %v445 = vsel %vm135, %v115, 4286644096
  %v447 = vmax.bf16 %v443, %v445
  %v449 = vsel %vm135, %v129, 4286644096
  %v451 = vmax.bf16 %v447, %v449
  %v453 = vsel %vm135, %v18, 4286644096
  %v456 = vsel %vm135, %v32, 4286644096
  %v458 = vmax.bf16 %v453, %v456
  %v460 = vsel %vm135, %v46, 4286644096
  %v462 = vmax.bf16 %v458, %v460
  %v464 = vsel %vm135, %v60, 4286644096
  %v466 = vmax.bf16 %v462, %v464
  %v468 = vsel %vm135, %v74, 4286644096
  %v470 = vmax.bf16 %v466, %v468
  %v472 = vsel %vm135, %v88, 4286644096
  %v474 = vmax.bf16 %v470, %v472
  %v476 = vsel %vm135, %v102, 4286644096
  %v478 = vmax.bf16 %v474, %v476
  %v480 = vsel %vm135, %v116, 4286644096
  %v482 = vmax.bf16 %v478, %v480
  %v484 = vsel %vm135, %v130, 4286644096
  %v486 = vmax.bf16 %v482, %v484
  %v488 = vsel %vm135, %v19, 4286644096
  %v491 = vsel %vm135, %v33, 4286644096
  %v493 = vmax.bf16 %v488, %v491
  %v495 = vsel %vm135, %v47, 4286644096
  %v497 = vmax.bf16 %v493, %v495
  %v499 = vsel %vm135, %v61, 4286644096
  %v501 = vmax.bf16 %v497, %v499
  %v503 = vsel %vm135, %v75, 4286644096
  %v505 = vmax.bf16 %v501, %v503
  %v507 = vsel %vm135, %v89, 4286644096
  %v509 = vmax.bf16 %v505, %v507
  %v511 = vsel %vm135, %v103, 4286644096
  %v513 = vmax.bf16 %v509, %v511
  %v515 = vsel %vm135, %v117, 4286644096
  %v517 = vmax.bf16 %v513, %v515
  %v519 = vsel %vm135, %v131, 4286644096
  %v521 = vmax.bf16 %v517, %v519
  %v523 = vsel %vm135, %v20, 4286644096
  %v526 = vsel %vm135, %v34, 4286644096
  %v528 = vmax.bf16 %v523, %v526
  %v530 = vsel %vm135, %v48, 4286644096
  %v532 = vmax.bf16 %v528, %v530
  %v534 = vsel %vm135, %v62, 4286644096
  %v536 = vmax.bf16 %v532, %v534
  %v538 = vsel %vm135, %v76, 4286644096
  %v540 = vmax.bf16 %v536, %v538
  %v542 = vsel %vm135, %v90, 4286644096
  %v544 = vmax.bf16 %v540, %v542
  %v546 = vsel %vm135, %v104, 4286644096
  %v548 = vmax.bf16 %v544, %v546
  %v550 = vsel %vm135, %v118, 4286644096
  %v552 = vmax.bf16 %v548, %v550
  %v554 = vsel %vm135, %v132, 4286644096
  %v556 = vmax.bf16 %v552, %v554
  %v558 = vsel %vm135, %v21, 4286644096
  %v561 = vsel %vm135, %v35, 4286644096
  %v563 = vmax.bf16 %v558, %v561
  %v565 = vsel %vm135, %v49, 4286644096
  %v567 = vmax.bf16 %v563, %v565
  %v569 = vsel %vm135, %v63, 4286644096
  %v571 = vmax.bf16 %v567, %v569
  %v573 = vsel %vm135, %v77, 4286644096
  %v575 = vmax.bf16 %v571, %v573
  %v577 = vsel %vm135, %v91, 4286644096
  %v579 = vmax.bf16 %v575, %v577
  %v581 = vsel %vm135, %v105, 4286644096
  %v583 = vmax.bf16 %v579, %v581
  %v585 = vsel %vm135, %v119, 4286644096
  %v587 = vmax.bf16 %v583, %v585
  %v589 = vsel %vm135, %v133, 4286644096
  %v591 = vmax.bf16 %v587, %v589
  %v593 = vsel %vm135, %v22, 4286644096
  %v596 = vsel %vm135, %v36, 4286644096
  %v598 = vmax.bf16 %v593, %v596
  %v600 = vsel %vm135, %v50, 4286644096
  %v602 = vmax.bf16 %v598, %v600
  %v604 = vsel %vm135, %v64, 4286644096
  %v606 = vmax.bf16 %v602, %v604
  %v608 = vsel %vm135, %v78, 4286644096
  %v610 = vmax.bf16 %v606, %v608
  %v612 = vsel %vm135, %v92, 4286644096
  %v614 = vmax.bf16 %v610, %v612
  %v616 = vsel %vm135, %v106, 4286644096
  %v618 = vmax.bf16 %v614, %v616
  %v620 = vsel %vm135, %v120, 4286644096
  %v622 = vmax.bf16 %v618, %v620
  %v624 = vsel %vm135, %v134, 4286644096
  %v626 = vmax.bf16 %v622, %v624
  %627 = vst.msk [vmem:[%s1] sm:$0xf] %vm135, %v171
  %628 = vst.msk [vmem:[%s1 + $0x4] sm:$0xf] %vm135, %v206
  %629 = vst.msk [vmem:[%s1 + $0x8] sm:$0xf] %vm135, %v241
  %630 = vst.msk [vmem:[%s1 + $0xc] sm:$0xf] %vm135, %v276
  %631 = vst.msk [vmem:[%s1 + $0x10] sm:$0xf] %vm135, %v311
  %632 = vst.msk [vmem:[%s1 + $0x14] sm:$0xf] %vm135, %v346
  %633 = vst.msk [vmem:[%s1 + $0x18] sm:$0xf] %vm135, %v381
  %634 = vst.msk [vmem:[%s1 + $0x1c] sm:$0xf] %vm135, %v416
  %635 = vst.msk [vmem:[%s1 + $0x20] sm:$0xf] %vm135, %v451
  %636 = vst.msk [vmem:[%s1 + $0x24] sm:$0xf] %vm135, %v486
  %637 = vst.msk [vmem:[%s1 + $0x28] sm:$0xf] %vm135, %v521
  %638 = vst.msk [vmem:[%s1 + $0x2c] sm:$0xf] %vm135, %v556
  %639 = vst.msk [vmem:[%s1 + $0x30] sm:$0xf] %vm135, %v591
  %640 = vst.msk [vmem:[%s1 + $0x34] sm:$0xf] %vm135, %v626
  // Predicated region
  $region6: #{alexnet_features.9} parent=0 // pred_check
    _
  $region7: #{alexnet_features.9} parent=0 // pred_check_branch
    %642 = sbr.rel (0) target = $region9
  $region8: #{alexnet_features.9} parent=0 // pred_region
    _
  $region9: #{alexnet_features.9} parent=0 // pred_fallthru
    _
  // Predicated region
  $region10: #{alexnet_features.9} parent=0 // pred_check
    _
  $region11: #{alexnet_features.9} parent=0 // pred_check_branch
    %644 = sbr.rel (0) target = $region13
  $region12: #{alexnet_features.9} parent=0 // pred_region
    _
  $region13: #{alexnet_features.9} parent=0 // pred_fallthru
    _

// kernel: alexnet_features.10
$region0: #{alexnet_features.10}
  #allocation0 [shape = 'u32[]', space=smem, size = 0x4, offset = 0x4, fixed_abs, tag = 'smem constant byte address 0x4 - core index']
  #allocation1 [shape = 'u32[144,128]{1,0:T(1,128)}', space=vmem, size = 0x12000, scoped, tag = 'internal scratch']
  %s0 = inlined_call_operand.vmem [shape: bf16[112,1664], index: 0, kind: input, shape index: {}]
  %s1 = inlined_call_operand.vmem [shape: bf16[1664,256], index: 1, kind: input, shape index: {}]
  %s2 = inlined_call_operand.vmem [shape: f32[1,256], index: 2, kind: input, shape index: {}]
  %s3 = inlined_call_operand.vmem [shape: bf16[112,256], index: 3, kind: output, shape index: {}]
  %s4 = sld [smem:[#allocation0]]
  $region22: #{alexnet_features.10} parent=0
    _
  %s6 = ssub.s32 1, %s4
  %s7 = scalar_select 0, %s6, %s4
  // Predicated region
  $region2: #{alexnet_features.10} parent=0 // pred_check
    _
  $region3: #{alexnet_features.10} parent=0 // pred_check_branch
    %9 = sbr.rel (0) target = $region5
  $region4: #{alexnet_features.10} parent=0 // pred_region
    _
  $region5: #{alexnet_features.10} parent=0 // pred_fallthru
    _
  // Predicated region
  $region6: #{alexnet_features.10} parent=0 // pred_check
    _
  $region7: #{alexnet_features.10} parent=0 // pred_check_branch
    %11 = sbr.rel (0) target = $region9
  $region8: #{alexnet_features.10} parent=0 // pred_region
    _
  $region9: #{alexnet_features.10} parent=0 // pred_fallthru
    _
  // Predicated region
  $region10: #{alexnet_features.10} parent=0 // pred_check
    _
  $region11: #{alexnet_features.10} parent=0 // pred_check_branch
    %13 = sbr.rel (0) target = $region13
  $region12: #{alexnet_features.10} parent=0 // pred_region
    _
  $region13: #{alexnet_features.10} parent=0 // pred_fallthru
    _
  %v15 = vld [vmem:[%s0] sm:$0xff]
  %v16 = vld [vmem:[%s0 + $0x8] sm:$0xff]
  %v17 = vld [vmem:[%s0 + $0x10] sm:$0xff]
  %v18 = vld [vmem:[%s0 + $0x18] sm:$0xff]
  %v19 = vld [vmem:[%s0 + $0x20] sm:$0xff]
  %v20 = vld [vmem:[%s0 + $0x28] sm:$0xff]
  %v21 = vld [vmem:[%s0 + $0x30] sm:$0xf]
  %v22 = vld [vmem:[%s0 + $0x34] sm:$0xff]
  %v23 = vld [vmem:[%s0 + $0x3c] sm:$0xff]
  %v24 = vld [vmem:[%s0 + $0x44] sm:$0xff]
  %v25 = vld [vmem:[%s0 + $0x4c] sm:$0xff]
  %v26 = vld [vmem:[%s0 + $0x54] sm:$0xff]
  %v27 = vld [vmem:[%s0 + $0x5c] sm:$0xff]
  %v28 = vld [vmem:[%s0 + $0x64] sm:$0xf]
  %v29 = vld [vmem:[%s0 + $0x68] sm:$0xff]
  %v30 = vld [vmem:[%s0 + $0x70] sm:$0xff]
  %v31 = vld [vmem:[%s0 + $0x78] sm:$0xff]
  %v32 = vld [vmem:[%s0 + $0x80] sm:$0xff]
  %v33 = vld [vmem:[%s0 + $0x88] sm:$0xff]
  %v34 = vld [vmem:[%s0 + $0x90] sm:$0xff]
  %v35 = vld [vmem:[%s0 + $0x98] sm:$0xf]
  %v36 = vld [vmem:[%s0 + $0x9c] sm:$0xff]
  %v37 = vld [vmem:[%s0 + $0xa4] sm:$0xff]
  %v38 = vld [vmem:[%s0 + $0xac] sm:$0xff]
  %v39 = vld [vmem:[%s0 + $0xb4] sm:$0xff]
  %v40 = vld [vmem:[%s0 + $0xbc] sm:$0xff]
  %v41 = vld [vmem:[%s0 + $0xc4] sm:$0xff]
  %v42 = vld [vmem:[%s0 + $0xcc] sm:$0xf]
  %v43 = vld [vmem:[%s0 + $0xd0] sm:$0xff]
  %v44 = vld [vmem:[%s0 + $0xd8] sm:$0xff]
  %v45 = vld [vmem:[%s0 + $0xe0] sm:$0xff]
  %v46 = vld [vmem:[%s0 + $0xe8] sm:$0xff]
  %v47 = vld [vmem:[%s0 + $0xf0] sm:$0xff]
  %v48 = vld [vmem:[%s0 + $0xf8] sm:$0xff]
  %v49 = vld [vmem:[%s0 + $0x100] sm:$0xf]
  %v50 = vld [vmem:[%s0 + $0x104] sm:$0xff]
  %v51 = vld [vmem:[%s0 + $0x10c] sm:$0xff]
  %v52 = vld [vmem:[%s0 + $0x114] sm:$0xff]
  %v53 = vld [vmem:[%s0 + $0x11c] sm:$0xff]
  %v54 = vld [vmem:[%s0 + $0x124] sm:$0xff]
  %v55 = vld [vmem:[%s0 + $0x12c] sm:$0xff]
  %v56 = vld [vmem:[%s0 + $0x134] sm:$0xf]
  %v57 = vld [vmem:[%s0 + $0x138] sm:$0xff]
  %v58 = vld [vmem:[%s0 + $0x140] sm:$0xff]
  %v59 = vld [vmem:[%s0 + $0x148] sm:$0xff]
  %v60 = vld [vmem:[%s0 + $0x150] sm:$0xff]
  %v61 = vld [vmem:[%s0 + $0x158] sm:$0xff]
  %v62 = vld [vmem:[%s0 + $0x160] sm:$0xff]
  %v63 = vld [vmem:[%s0 + $0x168] sm:$0xf]
  %v64 = vld [vmem:[%s0 + $0x16c] sm:$0xff]
  %v65 = vld [vmem:[%s0 + $0x174] sm:$0xff]
  %v66 = vld [vmem:[%s0 + $0x17c] sm:$0xff]
  %v67 = vld [vmem:[%s0 + $0x184] sm:$0xff]
  %v68 = vld [vmem:[%s0 + $0x18c] sm:$0xff]
  %v69 = vld [vmem:[%s0 + $0x194] sm:$0xff]
  %v70 = vld [vmem:[%s0 + $0x19c] sm:$0xf]
  %v71 = vld [vmem:[%s0 + $0x1a0] sm:$0xff]
  %v72 = vld [vmem:[%s0 + $0x1a8] sm:$0xff]
  %v73 = vld [vmem:[%s0 + $0x1b0] sm:$0xff]
  %v74 = vld [vmem:[%s0 + $0x1b8] sm:$0xff]
  %v75 = vld [vmem:[%s0 + $0x1c0] sm:$0xff]
  %v76 = vld [vmem:[%s0 + $0x1c8] sm:$0xff]
  %v77 = vld [vmem:[%s0 + $0x1d0] sm:$0xf]
  %v78 = vld [vmem:[%s0 + $0x1d4] sm:$0xff]
  %v79 = vld [vmem:[%s0 + $0x1dc] sm:$0xff]
  %v80 = vld [vmem:[%s0 + $0x1e4] sm:$0xff]
  %v81 = vld [vmem:[%s0 + $0x1ec] sm:$0xff]
  %v82 = vld [vmem:[%s0 + $0x1f4] sm:$0xff]
  %v83 = vld [vmem:[%s0 + $0x1fc] sm:$0xff]
  %v84 = vld [vmem:[%s0 + $0x204] sm:$0xf]
  %v85 = vld [vmem:[%s0 + $0x208] sm:$0xff]
  %v86 = vld [vmem:[%s0 + $0x210] sm:$0xff]
  %v87 = vld [vmem:[%s0 + $0x218] sm:$0xff]
  %v88 = vld [vmem:[%s0 + $0x220] sm:$0xff]
  %v89 = vld [vmem:[%s0 + $0x228] sm:$0xff]
  %v90 = vld [vmem:[%s0 + $0x230] sm:$0xff]
  %v91 = vld [vmem:[%s0 + $0x238] sm:$0xf]
  %v92 = vld [vmem:[%s0 + $0x23c] sm:$0xff]
  %v93 = vld [vmem:[%s0 + $0x244] sm:$0xff]
  %v94 = vld [vmem:[%s0 + $0x24c] sm:$0xff]
  %v95 = vld [vmem:[%s0 + $0x254] sm:$0xff]
  %v96 = vld [vmem:[%s0 + $0x25c] sm:$0xff]
  %v97 = vld [vmem:[%s0 + $0x264] sm:$0xff]
  %v98 = vld [vmem:[%s0 + $0x26c] sm:$0xf]
  %v99 = vld [vmem:[%s0 + $0x270] sm:$0xff]
  %v100 = vld [vmem:[%s0 + $0x278] sm:$0xff]
  %v101 = vld [vmem:[%s0 + $0x280] sm:$0xff]
  %v102 = vld [vmem:[%s0 + $0x288] sm:$0xff]
  %v103 = vld [vmem:[%s0 + $0x290] sm:$0xff]
  %v104 = vld [vmem:[%s0 + $0x298] sm:$0xff]
  %v105 = vld [vmem:[%s0 + $0x2a0] sm:$0xf]
  %v106 = vld [vmem:[%s0 + $0x2a4] sm:$0xff]
  %v107 = vld [vmem:[%s0 + $0x2ac] sm:$0xff]
  %v108 = vld [vmem:[%s0 + $0x2b4] sm:$0xff]
  %v109 = vld [vmem:[%s0 + $0x2bc] sm:$0xff]
  %v110 = vld [vmem:[%s0 + $0x2c4] sm:$0xff]
  %v111 = vld [vmem:[%s0 + $0x2cc] sm:$0xff]
  %v112 = vld [vmem:[%s0 + $0x2d4] sm:$0xf]
  %v113 = vld [vmem:[%s1] sm:$0xff]
  %v114 = vld [vmem:[%s1 + $0x8] sm:$0xff]
  %v115 = vld [vmem:[%s1 + $0x10] sm:$0xff]
  %v116 = vld [vmem:[%s1 + $0x18] sm:$0xff]
  %v117 = vld [vmem:[%s1 + $0x20] sm:$0xff]
  %v118 = vld [vmem:[%s1 + $0x28] sm:$0xff]
  %v119 = vld [vmem:[%s1 + $0x30] sm:$0xff]
  %v120 = vld [vmem:[%s1 + $0x38] sm:$0xff]
  %v121 = vld [vmem:[%s1 + $0x40] sm:$0xff]
  %v122 = vld [vmem:[%s1 + $0x48] sm:$0xff]
  %v123 = vld [vmem:[%s1 + $0x50] sm:$0xff]
  %v124 = vld [vmem:[%s1 + $0x58] sm:$0xff]
  %v125 = vld [vmem:[%s1 + $0x60] sm:$0xff]
  %v126 = vld [vmem:[%s1 + $0x68] sm:$0xff]
  %v127 = vld [vmem:[%s1 + $0x70] sm:$0xff]
  %v128 = vld [vmem:[%s1 + $0x78] sm:$0xff]
  %v129 = vld [vmem:[%s1 + $0x80] sm:$0xff]
  %v130 = vld [vmem:[%s1 + $0x88] sm:$0xff]
  %v131 = vld [vmem:[%s1 + $0x90] sm:$0xff]
  %v132 = vld [vmem:[%s1 + $0x98] sm:$0xff]
  %v133 = vld [vmem:[%s1 + $0xa0] sm:$0xff]
  %v134 = vld [vmem:[%s1 + $0xa8] sm:$0xff]
  %v135 = vld [vmem:[%s1 + $0xb0] sm:$0xff]
  %v136 = vld [vmem:[%s1 + $0xb8] sm:$0xff]
  %v137 = vld [vmem:[%s1 + $0xc0] sm:$0xff]
  %v138 = vld [vmem:[%s1 + $0xc8] sm:$0xff]
  %v139 = vld [vmem:[%s1 + $0xd0] sm:$0xff]
  %v140 = vld [vmem:[%s1 + $0xd8] sm:$0xff]
  %v141 = vld [vmem:[%s1 + $0xe0] sm:$0xff]
  %v142 = vld [vmem:[%s1 + $0xe8] sm:$0xff]
  %v143 = vld [vmem:[%s1 + $0xf0] sm:$0xff]
  %v144 = vld [vmem:[%s1 + $0xf8] sm:$0xff]
  %v145 = vld [vmem:[%s1 + $0x100] sm:$0xff]
  %v146 = vld [vmem:[%s1 + $0x108] sm:$0xff]
  %v147 = vld [vmem:[%s1 + $0x110] sm:$0xff]
  %v148 = vld [vmem:[%s1 + $0x118] sm:$0xff]
  %v149 = vld [vmem:[%s1 + $0x120] sm:$0xff]
  %v150 = vld [vmem:[%s1 + $0x128] sm:$0xff]
  %v151 = vld [vmem:[%s1 + $0x130] sm:$0xff]
  %v152 = vld [vmem:[%s1 + $0x138] sm:$0xff]
  %v153 = vld [vmem:[%s1 + $0x140] sm:$0xff]
  %v154 = vld [vmem:[%s1 + $0x148] sm:$0xff]
  %v155 = vld [vmem:[%s1 + $0x150] sm:$0xff]
  %v156 = vld [vmem:[%s1 + $0x158] sm:$0xff]
  %v157 = vld [vmem:[%s1 + $0x160] sm:$0xff]
  %v158 = vld [vmem:[%s1 + $0x168] sm:$0xff]
  %v159 = vld [vmem:[%s1 + $0x170] sm:$0xff]
  %v160 = vld [vmem:[%s1 + $0x178] sm:$0xff]
  %v161 = vld [vmem:[%s1 + $0x180] sm:$0xff]
  %v162 = vld [vmem:[%s1 + $0x188] sm:$0xff]
  %v163 = vld [vmem:[%s1 + $0x190] sm:$0xff]
  %v164 = vld [vmem:[%s1 + $0x198] sm:$0xff]
  %v165 = vld [vmem:[%s1 + $0x1a0] sm:$0xff]
  %v166 = vld [vmem:[%s1 + $0x1a8] sm:$0xff]
  %v167 = vld [vmem:[%s1 + $0x1b0] sm:$0xff]
  %v168 = vld [vmem:[%s1 + $0x1b8] sm:$0xff]
  %v169 = vld [vmem:[%s1 + $0x1c0] sm:$0xff]
  %v170 = vld [vmem:[%s1 + $0x1c8] sm:$0xff]
  %v171 = vld [vmem:[%s1 + $0x1d0] sm:$0xff]
  %v172 = vld [vmem:[%s1 + $0x1d8] sm:$0xff]
  %v173 = vld [vmem:[%s1 + $0x1e0] sm:$0xff]
  %v174 = vld [vmem:[%s1 + $0x1e8] sm:$0xff]
  %v175 = vld [vmem:[%s1 + $0x1f0] sm:$0xff]
  %v176 = vld [vmem:[%s1 + $0x1f8] sm:$0xff]
  %v177 = vld [vmem:[%s1 + $0x200] sm:$0xff]
  %v178 = vld [vmem:[%s1 + $0x208] sm:$0xff]
  %v179 = vld [vmem:[%s1 + $0x210] sm:$0xff]
  %v180 = vld [vmem:[%s1 + $0x218] sm:$0xff]
  %v181 = vld [vmem:[%s1 + $0x220] sm:$0xff]
  %v182 = vld [vmem:[%s1 + $0x228] sm:$0xff]
  %v183 = vld [vmem:[%s1 + $0x230] sm:$0xff]
  %v184 = vld [vmem:[%s1 + $0x238] sm:$0xff]
  %v185 = vld [vmem:[%s1 + $0x240] sm:$0xff]
  %v186 = vld [vmem:[%s1 + $0x248] sm:$0xff]
  %v187 = vld [vmem:[%s1 + $0x250] sm:$0xff]
  %v188 = vld [vmem:[%s1 + $0x258] sm:$0xff]
  %v189 = vld [vmem:[%s1 + $0x260] sm:$0xff]
  %v190 = vld [vmem:[%s1 + $0x268] sm:$0xff]
  %v191 = vld [vmem:[%s1 + $0x270] sm:$0xff]
  %v192 = vld [vmem:[%s1 + $0x278] sm:$0xff]
  %v193 = vld [vmem:[%s1 + $0x280] sm:$0xff]
  %v194 = vld [vmem:[%s1 + $0x288] sm:$0xff]
  %v195 = vld [vmem:[%s1 + $0x290] sm:$0xff]
  %v196 = vld [vmem:[%s1 + $0x298] sm:$0xff]
  %v197 = vld [vmem:[%s1 + $0x2a0] sm:$0xff]
  %v198 = vld [vmem:[%s1 + $0x2a8] sm:$0xff]
  %v199 = vld [vmem:[%s1 + $0x2b0] sm:$0xff]
  %v200 = vld [vmem:[%s1 + $0x2b8] sm:$0xff]
  %v201 = vld [vmem:[%s1 + $0x2c0] sm:$0xff]
  %v202 = vld [vmem:[%s1 + $0x2c8] sm:$0xff]
  %v203 = vld [vmem:[%s1 + $0x2d0] sm:$0xff]
  %v204 = vld [vmem:[%s1 + $0x2d8] sm:$0xff]
  %v205 = vld [vmem:[%s1 + $0x2e0] sm:$0xff]
  %v206 = vld [vmem:[%s1 + $0x2e8] sm:$0xff]
  %v207 = vld [vmem:[%s1 + $0x2f0] sm:$0xff]
  %v208 = vld [vmem:[%s1 + $0x2f8] sm:$0xff]
  %v209 = vld [vmem:[%s1 + $0x300] sm:$0xff]
  %v210 = vld [vmem:[%s1 + $0x308] sm:$0xff]
  %v211 = vld [vmem:[%s1 + $0x310] sm:$0xff]
  %v212 = vld [vmem:[%s1 + $0x318] sm:$0xff]
  %v213 = vld [vmem:[%s1 + $0x320] sm:$0xff]
  %v214 = vld [vmem:[%s1 + $0x328] sm:$0xff]
  %v215 = vld [vmem:[%s1 + $0x330] sm:$0xff]
  %v216 = vld [vmem:[%s1 + $0x338] sm:$0xff]
  %v217 = vld [vmem:[%s1 + $0x340] sm:$0xff]
  %v218 = vld [vmem:[%s1 + $0x348] sm:$0xff]
  %v219 = vld [vmem:[%s1 + $0x350] sm:$0xff]
  %v220 = vld [vmem:[%s1 + $0x358] sm:$0xff]
  %v221 = vld [vmem:[%s1 + $0x360] sm:$0xff]
  %v222 = vld [vmem:[%s1 + $0x368] sm:$0xff]
  %v223 = vld [vmem:[%s1 + $0x370] sm:$0xff]
  %v224 = vld [vmem:[%s1 + $0x378] sm:$0xff]
  %v225 = vld [vmem:[%s1 + $0x380] sm:$0xff]
  %v226 = vld [vmem:[%s1 + $0x388] sm:$0xff]
  %v227 = vld [vmem:[%s1 + $0x390] sm:$0xff]
  %v228 = vld [vmem:[%s1 + $0x398] sm:$0xff]
  %v229 = vld [vmem:[%s1 + $0x3a0] sm:$0xff]
  %v230 = vld [vmem:[%s1 + $0x3a8] sm:$0xff]
  %v231 = vld [vmem:[%s1 + $0x3b0] sm:$0xff]
  %v232 = vld [vmem:[%s1 + $0x3b8] sm:$0xff]
  %v233 = vld [vmem:[%s1 + $0x3c0] sm:$0xff]
  %v234 = vld [vmem:[%s1 + $0x3c8] sm:$0xff]
  %v235 = vld [vmem:[%s1 + $0x3d0] sm:$0xff]
  %v236 = vld [vmem:[%s1 + $0x3d8] sm:$0xff]
  %v237 = vld [vmem:[%s1 + $0x3e0] sm:$0xff]
  %v238 = vld [vmem:[%s1 + $0x3e8] sm:$0xff]
  %v239 = vld [vmem:[%s1 + $0x3f0] sm:$0xff]
  %v240 = vld [vmem:[%s1 + $0x3f8] sm:$0xff]
  %v241 = vld [vmem:[%s1 + $0x400] sm:$0xff]
  %v242 = vld [vmem:[%s1 + $0x408] sm:$0xff]
  %v243 = vld [vmem:[%s1 + $0x410] sm:$0xff]
  %v244 = vld [vmem:[%s1 + $0x418] sm:$0xff]
  %v245 = vld [vmem:[%s1 + $0x420] sm:$0xff]
  %v246 = vld [vmem:[%s1 + $0x428] sm:$0xff]
  %v247 = vld [vmem:[%s1 + $0x430] sm:$0xff]
  %v248 = vld [vmem:[%s1 + $0x438] sm:$0xff]
  %v249 = vld [vmem:[%s1 + $0x440] sm:$0xff]
  %v250 = vld [vmem:[%s1 + $0x448] sm:$0xff]
  %v251 = vld [vmem:[%s1 + $0x450] sm:$0xff]
  %v252 = vld [vmem:[%s1 + $0x458] sm:$0xff]
  %v253 = vld [vmem:[%s1 + $0x460] sm:$0xff]
  %v254 = vld [vmem:[%s1 + $0x468] sm:$0xff]
  %v255 = vld [vmem:[%s1 + $0x470] sm:$0xff]
  %v256 = vld [vmem:[%s1 + $0x478] sm:$0xff]
  %v257 = vld [vmem:[%s1 + $0x480] sm:$0xff]
  %v258 = vld [vmem:[%s1 + $0x488] sm:$0xff]
  %v259 = vld [vmem:[%s1 + $0x490] sm:$0xff]
  %v260 = vld [vmem:[%s1 + $0x498] sm:$0xff]
  %v261 = vld [vmem:[%s1 + $0x4a0] sm:$0xff]
  %v262 = vld [vmem:[%s1 + $0x4a8] sm:$0xff]
  %v263 = vld [vmem:[%s1 + $0x4b0] sm:$0xff]
  %v264 = vld [vmem:[%s1 + $0x4b8] sm:$0xff]
  %v265 = vld [vmem:[%s1 + $0x4c0] sm:$0xff]
  %v266 = vld [vmem:[%s1 + $0x4c8] sm:$0xff]
  %v267 = vld [vmem:[%s1 + $0x4d0] sm:$0xff]
  %v268 = vld [vmem:[%s1 + $0x4d8] sm:$0xff]
  %v269 = vld [vmem:[%s1 + $0x4e0] sm:$0xff]
  %v270 = vld [vmem:[%s1 + $0x4e8] sm:$0xff]
  %v271 = vld [vmem:[%s1 + $0x4f0] sm:$0xff]
  %v272 = vld [vmem:[%s1 + $0x4f8] sm:$0xff]
  %v273 = vld [vmem:[%s1 + $0x500] sm:$0xff]
  %v274 = vld [vmem:[%s1 + $0x508] sm:$0xff]
  %v275 = vld [vmem:[%s1 + $0x510] sm:$0xff]
  %v276 = vld [vmem:[%s1 + $0x518] sm:$0xff]
  %v277 = vld [vmem:[%s1 + $0x520] sm:$0xff]
  %v278 = vld [vmem:[%s1 + $0x528] sm:$0xff]
  %v279 = vld [vmem:[%s1 + $0x530] sm:$0xff]
  %v280 = vld [vmem:[%s1 + $0x538] sm:$0xff]
  %v281 = vld [vmem:[%s1 + $0x540] sm:$0xff]
  %v282 = vld [vmem:[%s1 + $0x548] sm:$0xff]
  %v283 = vld [vmem:[%s1 + $0x550] sm:$0xff]
  %v284 = vld [vmem:[%s1 + $0x558] sm:$0xff]
  %v285 = vld [vmem:[%s1 + $0x560] sm:$0xff]
  %v286 = vld [vmem:[%s1 + $0x568] sm:$0xff]
  %v287 = vld [vmem:[%s1 + $0x570] sm:$0xff]
  %v288 = vld [vmem:[%s1 + $0x578] sm:$0xff]
  %v289 = vld [vmem:[%s1 + $0x580] sm:$0xff]
  %v290 = vld [vmem:[%s1 + $0x588] sm:$0xff]
  %v291 = vld [vmem:[%s1 + $0x590] sm:$0xff]
  %v292 = vld [vmem:[%s1 + $0x598] sm:$0xff]
  %v293 = vld [vmem:[%s1 + $0x5a0] sm:$0xff]
  %v294 = vld [vmem:[%s1 + $0x5a8] sm:$0xff]
  %v295 = vld [vmem:[%s1 + $0x5b0] sm:$0xff]
  %v296 = vld [vmem:[%s1 + $0x5b8] sm:$0xff]
  %v297 = vld [vmem:[%s1 + $0x5c0] sm:$0xff]
  %v298 = vld [vmem:[%s1 + $0x5c8] sm:$0xff]
  %v299 = vld [vmem:[%s1 + $0x5d0] sm:$0xff]
  %v300 = vld [vmem:[%s1 + $0x5d8] sm:$0xff]
  %v301 = vld [vmem:[%s1 + $0x5e0] sm:$0xff]
  %v302 = vld [vmem:[%s1 + $0x5e8] sm:$0xff]
  %v303 = vld [vmem:[%s1 + $0x5f0] sm:$0xff]
  %v304 = vld [vmem:[%s1 + $0x5f8] sm:$0xff]
  %v305 = vld [vmem:[%s1 + $0x600] sm:$0xff]
  %v306 = vld [vmem:[%s1 + $0x608] sm:$0xff]
  %v307 = vld [vmem:[%s1 + $0x610] sm:$0xff]
  %v308 = vld [vmem:[%s1 + $0x618] sm:$0xff]
  %v309 = vld [vmem:[%s1 + $0x620] sm:$0xff]
  %v310 = vld [vmem:[%s1 + $0x628] sm:$0xff]
  %v311 = vld [vmem:[%s1 + $0x630] sm:$0xff]
  %v312 = vld [vmem:[%s1 + $0x638] sm:$0xff]
  %v313 = vld [vmem:[%s1 + $0x640] sm:$0xff]
  %v314 = vld [vmem:[%s1 + $0x648] sm:$0xff]
  %v315 = vld [vmem:[%s1 + $0x650] sm:$0xff]
  %v316 = vld [vmem:[%s1 + $0x658] sm:$0xff]
  %v317 = vld [vmem:[%s1 + $0x660] sm:$0xff]
  %v318 = vld [vmem:[%s1 + $0x668] sm:$0xff]
  %v319 = vld [vmem:[%s1 + $0x670] sm:$0xff]
  %v320 = vld [vmem:[%s1 + $0x678] sm:$0xff]
  %v321 = vld [vmem:[%s2] sm:$0x3]
  %v323 = vlaneseq
  %v324 = vshrl.u32 %v323, 7
  %v325 = vsub.s32 0, %v324
  %v326 = vrot.slane %v321, %v325
  %v327 = vlaneseq
  %v328 = vshrl.u32 %v327, 7
  %v329 = vsub.s32 1, %v328
  %v330 = vrot.slane %v321, %v329
  %v431 = vunpack.c.l.b16 %v15
  %v432 = vunpack.c.h.b16 %v15
  %v433 = vunpack.c.l.b16 %v16
  %v434 = vunpack.c.h.b16 %v16
  %v435 = vunpack.c.l.b16 %v17
  %v436 = vunpack.c.h.b16 %v17
  %v437 = vunpack.c.l.b16 %v18
  %v438 = vunpack.c.h.b16 %v18
  %v439 = vunpack.c.l.b16 %v19
  %v440 = vunpack.c.h.b16 %v19
  %v441 = vunpack.c.l.b16 %v20
  %v442 = vunpack.c.h.b16 %v20
  %v443 = vunpack.c.l.b16 %v21
  %v444 = vunpack.c.l.b16 %v22
  %v445 = vunpack.c.h.b16 %v22
  %v446 = vunpack.c.l.b16 %v23
  %v447 = vunpack.c.h.b16 %v23
  %v448 = vunpack.c.l.b16 %v24
  %v449 = vunpack.c.h.b16 %v24
  %v450 = vunpack.c.l.b16 %v25
  %v451 = vunpack.c.h.b16 %v25
  %v452 = vunpack.c.l.b16 %v26
  %v453 = vunpack.c.h.b16 %v26
  %v454 = vunpack.c.l.b16 %v27
  %v455 = vunpack.c.h.b16 %v27
  %v456 = vunpack.c.l.b16 %v28
  %v457 = vunpack.c.l.b16 %v29
  %v458 = vunpack.c.h.b16 %v29
  %v459 = vunpack.c.l.b16 %v30
  %v460 = vunpack.c.h.b16 %v30
  %v461 = vunpack.c.l.b16 %v31
  %v462 = vunpack.c.h.b16 %v31
  %v463 = vunpack.c.l.b16 %v32
  %v464 = vunpack.c.h.b16 %v32
  %v465 = vunpack.c.l.b16 %v33
  %v466 = vunpack.c.h.b16 %v33
  %v467 = vunpack.c.l.b16 %v34
  %v468 = vunpack.c.h.b16 %v34
  %v469 = vunpack.c.l.b16 %v35
  %v470 = vunpack.c.l.b16 %v36
  %v471 = vunpack.c.h.b16 %v36
  %v472 = vunpack.c.l.b16 %v37
  %v473 = vunpack.c.h.b16 %v37
  %v474 = vunpack.c.l.b16 %v38
  %v475 = vunpack.c.h.b16 %v38
  %v476 = vunpack.c.l.b16 %v39
  %v477 = vunpack.c.h.b16 %v39
  %v478 = vunpack.c.l.b16 %v40
  %v479 = vunpack.c.h.b16 %v40
  %v480 = vunpack.c.l.b16 %v41
  %v481 = vunpack.c.h.b16 %v41
  %v482 = vunpack.c.l.b16 %v42
  %v483 = vunpack.c.l.b16 %v43
  %v484 = vunpack.c.h.b16 %v43
  %v485 = vunpack.c.l.b16 %v44
  %v486 = vunpack.c.h.b16 %v44
  %v487 = vunpack.c.l.b16 %v45
  %v488 = vunpack.c.h.b16 %v45
  %v489 = vunpack.c.l.b16 %v46
  %v490 = vunpack.c.h.b16 %v46
  %v491 = vunpack.c.l.b16 %v47
  %v492 = vunpack.c.h.b16 %v47
  %v493 = vunpack.c.l.b16 %v48
  %v494 = vunpack.c.h.b16 %v48
  %v495 = vunpack.c.l.b16 %v49
  %v496 = vunpack.c.l.b16 %v50
  %v497 = vunpack.c.h.b16 %v50
  %v498 = vunpack.c.l.b16 %v51
  %v499 = vunpack.c.h.b16 %v51
  %v500 = vunpack.c.l.b16 %v52
  %v501 = vunpack.c.h.b16 %v52
  %v502 = vunpack.c.l.b16 %v53
  %v503 = vunpack.c.h.b16 %v53
  %v504 = vunpack.c.l.b16 %v54
  %v505 = vunpack.c.h.b16 %v54
  %v506 = vunpack.c.l.b16 %v55
  %v507 = vunpack.c.h.b16 %v55
  %v508 = vunpack.c.l.b16 %v56
  %v509 = vunpack.c.l.b16 %v57
  %v510 = vunpack.c.h.b16 %v57
  %v511 = vunpack.c.l.b16 %v58
  %v512 = vunpack.c.h.b16 %v58
  %v513 = vunpack.c.l.b16 %v59
  %v514 = vunpack.c.h.b16 %v59
  %v515 = vunpack.c.l.b16 %v60
  %v516 = vunpack.c.h.b16 %v60
  %v517 = vunpack.c.l.b16 %v61
  %v518 = vunpack.c.h.b16 %v61
  %v519 = vunpack.c.l.b16 %v62
  %v520 = vunpack.c.h.b16 %v62
  %v521 = vunpack.c.l.b16 %v63
  %v522 = vunpack.c.l.b16 %v64
  %v523 = vunpack.c.h.b16 %v64
  %v524 = vunpack.c.l.b16 %v65
  %v525 = vunpack.c.h.b16 %v65
  %v526 = vunpack.c.l.b16 %v66
  %v527 = vunpack.c.h.b16 %v66
  %v528 = vunpack.c.l.b16 %v67
  %v529 = vunpack.c.h.b16 %v67
  %v530 = vunpack.c.l.b16 %v68
  %v531 = vunpack.c.h.b16 %v68
  %v532 = vunpack.c.l.b16 %v69
  %v533 = vunpack.c.h.b16 %v69
  %v534 = vunpack.c.l.b16 %v70
  %v535 = vunpack.c.l.b16 %v71
  %v536 = vunpack.c.h.b16 %v71
  %v537 = vunpack.c.l.b16 %v72
  %v538 = vunpack.c.h.b16 %v72
  %v539 = vunpack.c.l.b16 %v73
  %v540 = vunpack.c.h.b16 %v73
  %v541 = vunpack.c.l.b16 %v74
  %v542 = vunpack.c.h.b16 %v74
  %v543 = vunpack.c.l.b16 %v75
  %v544 = vunpack.c.h.b16 %v75
  %v545 = vunpack.c.l.b16 %v76
  %v546 = vunpack.c.h.b16 %v76
  %v547 = vunpack.c.l.b16 %v77
  %v548 = vunpack.c.l.b16 %v78
  %v549 = vunpack.c.h.b16 %v78
  %v550 = vunpack.c.l.b16 %v79
  %v551 = vunpack.c.h.b16 %v79
  %v552 = vunpack.c.l.b16 %v80
  %v553 = vunpack.c.h.b16 %v80
  %v554 = vunpack.c.l.b16 %v81
  %v555 = vunpack.c.h.b16 %v81
  %v556 = vunpack.c.l.b16 %v82
  %v557 = vunpack.c.h.b16 %v82
  %v558 = vunpack.c.l.b16 %v83
  %v559 = vunpack.c.h.b16 %v83
  %v560 = vunpack.c.l.b16 %v84
  %v561 = vunpack.c.l.b16 %v85
  %v562 = vunpack.c.h.b16 %v85
  %v563 = vunpack.c.l.b16 %v86
  %v564 = vunpack.c.h.b16 %v86
  %v565 = vunpack.c.l.b16 %v87
  %v566 = vunpack.c.h.b16 %v87
  %v567 = vunpack.c.l.b16 %v88
  %v568 = vunpack.c.h.b16 %v88
  %v569 = vunpack.c.l.b16 %v89
  %v570 = vunpack.c.h.b16 %v89
  %v571 = vunpack.c.l.b16 %v90
  %v572 = vunpack.c.h.b16 %v90
  %v573 = vunpack.c.l.b16 %v91
  %v574 = vunpack.c.l.b16 %v92
  %v575 = vunpack.c.h.b16 %v92
  %v576 = vunpack.c.l.b16 %v93
  %v577 = vunpack.c.h.b16 %v93
  %v578 = vunpack.c.l.b16 %v94
  %v579 = vunpack.c.h.b16 %v94
  %v580 = vunpack.c.l.b16 %v95
  %v581 = vunpack.c.h.b16 %v95
  %v582 = vunpack.c.l.b16 %v96
  %v583 = vunpack.c.h.b16 %v96
  %v584 = vunpack.c.l.b16 %v97
  %v585 = vunpack.c.h.b16 %v97
  %v586 = vunpack.c.l.b16 %v98
  %v587 = vunpack.c.l.b16 %v99
  %v588 = vunpack.c.h.b16 %v99
  %v589 = vunpack.c.l.b16 %v100
  %v590 = vunpack.c.h.b16 %v100
  %v591 = vunpack.c.l.b16 %v101
  %v592 = vunpack.c.h.b16 %v101
  %v593 = vunpack.c.l.b16 %v102
  %v594 = vunpack.c.h.b16 %v102
  %v595 = vunpack.c.l.b16 %v103
  %v596 = vunpack.c.h.b16 %v103
  %v597 = vunpack.c.l.b16 %v104
  %v598 = vunpack.c.h.b16 %v104
  %v599 = vunpack.c.l.b16 %v105
  %v600 = vunpack.c.l.b16 %v106
  %v601 = vunpack.c.h.b16 %v106
  %v602 = vunpack.c.l.b16 %v107
  %v603 = vunpack.c.h.b16 %v107
  %v604 = vunpack.c.l.b16 %v108
  %v605 = vunpack.c.h.b16 %v108
  %v606 = vunpack.c.l.b16 %v109
  %v607 = vunpack.c.h.b16 %v109
  %v608 = vunpack.c.l.b16 %v110
  %v609 = vunpack.c.h.b16 %v110
  %v610 = vunpack.c.l.b16 %v111
  %v611 = vunpack.c.h.b16 %v111
  %v612 = vunpack.c.l.b16 %v112
  %v613 = vpack.c.b16 %v444, %v431
  %v614 = vpack.c.b16 %v445, %v432
  %v615 = vpack.c.b16 %v446, %v433
  %v616 = vpack.c.b16 %v447, %v434
  %v617 = vpack.c.b16 %v448, %v435
  %v618 = vpack.c.b16 %v449, %v436
  %v619 = vpack.c.b16 %v450, %v437
  %v620 = vpack.c.b16 %v451, %v438
  %v621 = vpack.c.b16 %v452, %v439
  %v622 = vpack.c.b16 %v453, %v440
  %v623 = vpack.c.b16 %v454, %v441
  %v624 = vpack.c.b16 %v455, %v442
  %v625 = vpack.c.b16 %v456, %v443
  %v626 = vpack.c.b16 %v470, %v457
  %v627 = vpack.c.b16 %v471, %v458
  %v628 = vpack.c.b16 %v472, %v459
  %v629 = vpack.c.b16 %v473, %v460
  %v630 = vpack.c.b16 %v474, %v461
  %v631 = vpack.c.b16 %v475, %v462
  %v632 = vpack.c.b16 %v476, %v463
  %v633 = vpack.c.b16 %v477, %v464
  %v634 = vpack.c.b16 %v478, %v465
  %v635 = vpack.c.b16 %v479, %v466
  %v636 = vpack.c.b16 %v480, %v467
  %v637 = vpack.c.b16 %v481, %v468
  %v638 = vpack.c.b16 %v482, %v469
  %v639 = vpack.c.b16 %v496, %v483
  %v640 = vpack.c.b16 %v497, %v484
  %v641 = vpack.c.b16 %v498, %v485
  %v642 = vpack.c.b16 %v499, %v486
  %v643 = vpack.c.b16 %v500, %v487
  %v644 = vpack.c.b16 %v501, %v488
  %v645 = vpack.c.b16 %v502, %v489
  %v646 = vpack.c.b16 %v503, %v490
  %v647 = vpack.c.b16 %v504, %v491
  %v648 = vpack.c.b16 %v505, %v492
  %v649 = vpack.c.b16 %v506, %v493
  %v650 = vpack.c.b16 %v507, %v494
  %v651 = vpack.c.b16 %v508, %v495
  %v652 = vpack.c.b16 %v522, %v509
  %v653 = vpack.c.b16 %v523, %v510
  %v654 = vpack.c.b16 %v524, %v511
  %v655 = vpack.c.b16 %v525, %v512
  %v656 = vpack.c.b16 %v526, %v513
  %v657 = vpack.c.b16 %v527, %v514
  %v658 = vpack.c.b16 %v528, %v515
  %v659 = vpack.c.b16 %v529, %v516
  %v660 = vpack.c.b16 %v530, %v517
  %v661 = vpack.c.b16 %v531, %v518
  %v662 = vpack.c.b16 %v532, %v519
  %v663 = vpack.c.b16 %v533, %v520
  %v664 = vpack.c.b16 %v534, %v521
  %v665 = vpack.c.b16 %v548, %v535
  %v666 = vpack.c.b16 %v549, %v536
  %v667 = vpack.c.b16 %v550, %v537
  %v668 = vpack.c.b16 %v551, %v538
  %v669 = vpack.c.b16 %v552, %v539
  %v670 = vpack.c.b16 %v553, %v540
  %v671 = vpack.c.b16 %v554, %v541
  %v672 = vpack.c.b16 %v555, %v542
  %v673 = vpack.c.b16 %v556, %v543
  %v674 = vpack.c.b16 %v557, %v544
  %v675 = vpack.c.b16 %v558, %v545
  %v676 = vpack.c.b16 %v559, %v546
  %v677 = vpack.c.b16 %v560, %v547
  %v678 = vpack.c.b16 %v574, %v561
  %v679 = vpack.c.b16 %v575, %v562
  %v680 = vpack.c.b16 %v576, %v563
  %v681 = vpack.c.b16 %v577, %v564
  %v682 = vpack.c.b16 %v578, %v565
  %v683 = vpack.c.b16 %v579, %v566
  %v684 = vpack.c.b16 %v580, %v567
  %v685 = vpack.c.b16 %v581, %v568
  %v686 = vpack.c.b16 %v582, %v569
  %v687 = vpack.c.b16 %v583, %v570
  %v688 = vpack.c.b16 %v584, %v571
  %v689 = vpack.c.b16 %v585, %v572
  %v690 = vpack.c.b16 %v586, %v573
  %v691 = vpack.c.b16 %v600, %v587
  %v692 = vpack.c.b16 %v601, %v588
  %v693 = vpack.c.b16 %v602, %v589
  %v694 = vpack.c.b16 %v603, %v590
  %v695 = vpack.c.b16 %v604, %v591
  %v696 = vpack.c.b16 %v605, %v592
  %v697 = vpack.c.b16 %v606, %v593
  %v698 = vpack.c.b16 %v607, %v594
  %v699 = vpack.c.b16 %v608, %v595
  %v700 = vpack.c.b16 %v609, %v596
  %v701 = vpack.c.b16 %v610, %v597
  %v702 = vpack.c.b16 %v611, %v598
  %v703 = vpack.c.b16 %v612, %v599
  %v1003 = vunpack.c.l.b16 %v113
  %v1004 = vunpack.c.h.b16 %v113
  %v1005 = vunpack.c.l.b16 %v114
  %v1006 = vunpack.c.h.b16 %v114
  %v1007 = vunpack.c.l.b16 %v115
  %v1008 = vunpack.c.h.b16 %v115
  %v1009 = vunpack.c.l.b16 %v116
  %v1010 = vunpack.c.h.b16 %v116
  %v1011 = vunpack.c.l.b16 %v117
  %v1012 = vunpack.c.h.b16 %v117
  %v1013 = vunpack.c.l.b16 %v118
  %v1014 = vunpack.c.h.b16 %v118
  %v1015 = vunpack.c.l.b16 %v119
  %v1016 = vunpack.c.h.b16 %v119
  %v1017 = vunpack.c.l.b16 %v120
  %v1018 = vunpack.c.h.b16 %v120
  %v1019 = vunpack.c.l.b16 %v121
  %v1020 = vunpack.c.h.b16 %v121
  %v1021 = vunpack.c.l.b16 %v122
  %v1022 = vunpack.c.h.b16 %v122
  %v1023 = vunpack.c.l.b16 %v123
  %v1024 = vunpack.c.h.b16 %v123
  %v1025 = vunpack.c.l.b16 %v124
  %v1026 = vunpack.c.h.b16 %v124
  %v1027 = vunpack.c.l.b16 %v125
  %v1028 = vunpack.c.h.b16 %v125
  %v1029 = vunpack.c.l.b16 %v126
  %v1030 = vunpack.c.h.b16 %v126
  %v1031 = vunpack.c.l.b16 %v127
  %v1032 = vunpack.c.h.b16 %v127
  %v1033 = vunpack.c.l.b16 %v128
  %v1034 = vunpack.c.h.b16 %v128
  %v1035 = vunpack.c.l.b16 %v129
  %v1036 = vunpack.c.h.b16 %v129
  %v1037 = vunpack.c.l.b16 %v130
  %v1038 = vunpack.c.h.b16 %v130
  %v1039 = vunpack.c.l.b16 %v131
  %v1040 = vunpack.c.h.b16 %v131
  %v1041 = vunpack.c.l.b16 %v132
  %v1042 = vunpack.c.h.b16 %v132
  %v1043 = vunpack.c.l.b16 %v133
  %v1044 = vunpack.c.h.b16 %v133
  %v1045 = vunpack.c.l.b16 %v134
  %v1046 = vunpack.c.h.b16 %v134
  %v1047 = vunpack.c.l.b16 %v135
  %v1048 = vunpack.c.h.b16 %v135
  %v1049 = vunpack.c.l.b16 %v136
  %v1050 = vunpack.c.h.b16 %v136
  %v1051 = vunpack.c.l.b16 %v137
  %v1052 = vunpack.c.h.b16 %v137
  %v1053 = vunpack.c.l.b16 %v138
  %v1054 = vunpack.c.h.b16 %v138
  %v1055 = vunpack.c.l.b16 %v139
  %v1056 = vunpack.c.h.b16 %v139
  %v1057 = vunpack.c.l.b16 %v140
  %v1058 = vunpack.c.h.b16 %v140
  %v1059 = vunpack.c.l.b16 %v141
  %v1060 = vunpack.c.h.b16 %v141
  %v1061 = vunpack.c.l.b16 %v142
  %v1062 = vunpack.c.h.b16 %v142
  %v1063 = vunpack.c.l.b16 %v143
  %v1064 = vunpack.c.h.b16 %v143
  %v1065 = vunpack.c.l.b16 %v144
  %v1066 = vunpack.c.h.b16 %v144
  %v1067 = vunpack.c.l.b16 %v145
  %v1068 = vunpack.c.h.b16 %v145
  %v1069 = vunpack.c.l.b16 %v146
  %v1070 = vunpack.c.h.b16 %v146
  %v1071 = vunpack.c.l.b16 %v147
  %v1072 = vunpack.c.h.b16 %v147
  %v1073 = vunpack.c.l.b16 %v148
  %v1074 = vunpack.c.h.b16 %v148
  %v1075 = vunpack.c.l.b16 %v149
  %v1076 = vunpack.c.h.b16 %v149
  %v1077 = vunpack.c.l.b16 %v150
  %v1078 = vunpack.c.h.b16 %v150
  %v1079 = vunpack.c.l.b16 %v151
  %v1080 = vunpack.c.h.b16 %v151
  %v1081 = vunpack.c.l.b16 %v152
  %v1082 = vunpack.c.h.b16 %v152
  %v1083 = vunpack.c.l.b16 %v153
  %v1084 = vunpack.c.h.b16 %v153
  %v1085 = vunpack.c.l.b16 %v154
  %v1086 = vunpack.c.h.b16 %v154
  %v1087 = vunpack.c.l.b16 %v155
  %v1088 = vunpack.c.h.b16 %v155
  %v1089 = vunpack.c.l.b16 %v156
  %v1090 = vunpack.c.h.b16 %v156
  %v1091 = vunpack.c.l.b16 %v157
  %v1092 = vunpack.c.h.b16 %v157
  %v1093 = vunpack.c.l.b16 %v158
  %v1094 = vunpack.c.h.b16 %v158
  %v1095 = vunpack.c.l.b16 %v159
  %v1096 = vunpack.c.h.b16 %v159
  %v1097 = vunpack.c.l.b16 %v160
  %v1098 = vunpack.c.h.b16 %v160
  %v1099 = vunpack.c.l.b16 %v161
  %v1100 = vunpack.c.h.b16 %v161
  %v1101 = vunpack.c.l.b16 %v162
  %v1102 = vunpack.c.h.b16 %v162
  %v1103 = vunpack.c.l.b16 %v163
  %v1104 = vunpack.c.h.b16 %v163
  %v1105 = vunpack.c.l.b16 %v164
  %v1106 = vunpack.c.h.b16 %v164
  %v1107 = vunpack.c.l.b16 %v165
  %v1108 = vunpack.c.h.b16 %v165
  %v1109 = vunpack.c.l.b16 %v166
  %v1110 = vunpack.c.h.b16 %v166
  %v1111 = vunpack.c.l.b16 %v167
  %v1112 = vunpack.c.h.b16 %v167
  %v1113 = vunpack.c.l.b16 %v168
  %v1114 = vunpack.c.h.b16 %v168
  %v1115 = vunpack.c.l.b16 %v169
  %v1116 = vunpack.c.h.b16 %v169
  %v1117 = vunpack.c.l.b16 %v170
  %v1118 = vunpack.c.h.b16 %v170
  %v1119 = vunpack.c.l.b16 %v171
  %v1120 = vunpack.c.h.b16 %v171
  %v1121 = vunpack.c.l.b16 %v172
  %v1122 = vunpack.c.h.b16 %v172
  %v1123 = vunpack.c.l.b16 %v173
  %v1124 = vunpack.c.h.b16 %v173
  %v1125 = vunpack.c.l.b16 %v174
  %v1126 = vunpack.c.h.b16 %v174
  %v1127 = vunpack.c.l.b16 %v175
  %v1128 = vunpack.c.h.b16 %v175
  %v1129 = vunpack.c.l.b16 %v176
  %v1130 = vunpack.c.h.b16 %v176
  %v1131 = vunpack.c.l.b16 %v177
  %v1132 = vunpack.c.h.b16 %v177
  %v1133 = vunpack.c.l.b16 %v178
  %v1134 = vunpack.c.h.b16 %v178
  %v1135 = vunpack.c.l.b16 %v179
  %v1136 = vunpack.c.h.b16 %v179
  %v1137 = vunpack.c.l.b16 %v180
  %v1138 = vunpack.c.h.b16 %v180
  %v1139 = vunpack.c.l.b16 %v181
  %v1140 = vunpack.c.h.b16 %v181
  %v1141 = vunpack.c.l.b16 %v182
  %v1142 = vunpack.c.h.b16 %v182
  %v1143 = vunpack.c.l.b16 %v183
  %v1144 = vunpack.c.h.b16 %v183
  %v1145 = vunpack.c.l.b16 %v184
  %v1146 = vunpack.c.h.b16 %v184
  %v1147 = vunpack.c.l.b16 %v185
  %v1148 = vunpack.c.h.b16 %v185
  %v1149 = vunpack.c.l.b16 %v186
  %v1150 = vunpack.c.h.b16 %v186
  %v1151 = vunpack.c.l.b16 %v187
  %v1152 = vunpack.c.h.b16 %v187
  %v1153 = vunpack.c.l.b16 %v188
  %v1154 = vunpack.c.h.b16 %v188
  %v1155 = vunpack.c.l.b16 %v189
  %v1156 = vunpack.c.h.b16 %v189
  %v1157 = vunpack.c.l.b16 %v190
  %v1158 = vunpack.c.h.b16 %v190
  %v1159 = vunpack.c.l.b16 %v191
  %v1160 = vunpack.c.h.b16 %v191
  %v1161 = vunpack.c.l.b16 %v192
  %v1162 = vunpack.c.h.b16 %v192
  %v1163 = vunpack.c.l.b16 %v193
  %v1164 = vunpack.c.h.b16 %v193
  %v1165 = vunpack.c.l.b16 %v194
  %v1166 = vunpack.c.h.b16 %v194
  %v1167 = vunpack.c.l.b16 %v195
  %v1168 = vunpack.c.h.b16 %v195
  %v1169 = vunpack.c.l.b16 %v196
  %v1170 = vunpack.c.h.b16 %v196
  %v1171 = vunpack.c.l.b16 %v197
  %v1172 = vunpack.c.h.b16 %v197
  %v1173 = vunpack.c.l.b16 %v198
  %v1174 = vunpack.c.h.b16 %v198
  %v1175 = vunpack.c.l.b16 %v199
  %v1176 = vunpack.c.h.b16 %v199
  %v1177 = vunpack.c.l.b16 %v200
  %v1178 = vunpack.c.h.b16 %v200
  %v1179 = vunpack.c.l.b16 %v201
  %v1180 = vunpack.c.h.b16 %v201
  %v1181 = vunpack.c.l.b16 %v202
  %v1182 = vunpack.c.h.b16 %v202
  %v1183 = vunpack.c.l.b16 %v203
  %v1184 = vunpack.c.h.b16 %v203
  %v1185 = vunpack.c.l.b16 %v204
  %v1186 = vunpack.c.h.b16 %v204
  %v1187 = vunpack.c.l.b16 %v205
  %v1188 = vunpack.c.h.b16 %v205
  %v1189 = vunpack.c.l.b16 %v206
  %v1190 = vunpack.c.h.b16 %v206
  %v1191 = vunpack.c.l.b16 %v207
  %v1192 = vunpack.c.h.b16 %v207
  %v1193 = vunpack.c.l.b16 %v208
  %v1194 = vunpack.c.h.b16 %v208
  %v1195 = vunpack.c.l.b16 %v209
  %v1196 = vunpack.c.h.b16 %v209
  %v1197 = vunpack.c.l.b16 %v210
  %v1198 = vunpack.c.h.b16 %v210
  %v1199 = vunpack.c.l.b16 %v211
  %v1200 = vunpack.c.h.b16 %v211
  %v1201 = vunpack.c.l.b16 %v212
  %v1202 = vunpack.c.h.b16 %v212
  %v1203 = vunpack.c.l.b16 %v213
  %v1204 = vunpack.c.h.b16 %v213
  %v1205 = vunpack.c.l.b16 %v214
  %v1206 = vunpack.c.h.b16 %v214
  %v1207 = vunpack.c.l.b16 %v215
  %v1208 = vunpack.c.h.b16 %v215
  %v1209 = vunpack.c.l.b16 %v216
  %v1210 = vunpack.c.h.b16 %v216
  %v1211 = vunpack.c.l.b16 %v217
  %v1212 = vunpack.c.h.b16 %v217
  %v1213 = vunpack.c.l.b16 %v218
  %v1214 = vunpack.c.h.b16 %v218
  %v1215 = vunpack.c.l.b16 %v219
  %v1216 = vunpack.c.h.b16 %v219
  %v1217 = vunpack.c.l.b16 %v220
  %v1218 = vunpack.c.h.b16 %v220
  %v1219 = vunpack.c.l.b16 %v221
  %v1220 = vunpack.c.h.b16 %v221
  %v1221 = vunpack.c.l.b16 %v222
  %v1222 = vunpack.c.h.b16 %v222
  %v1223 = vunpack.c.l.b16 %v223
  %v1224 = vunpack.c.h.b16 %v223
  %v1225 = vunpack.c.l.b16 %v224
  %v1226 = vunpack.c.h.b16 %v224
  %v1227 = vunpack.c.l.b16 %v225
  %v1228 = vunpack.c.h.b16 %v225
  %v1229 = vunpack.c.l.b16 %v226
  %v1230 = vunpack.c.h.b16 %v226
  %v1231 = vunpack.c.l.b16 %v227
  %v1232 = vunpack.c.h.b16 %v227
  %v1233 = vunpack.c.l.b16 %v228
  %v1234 = vunpack.c.h.b16 %v228
  %v1235 = vunpack.c.l.b16 %v229
  %v1236 = vunpack.c.h.b16 %v229
  %v1237 = vunpack.c.l.b16 %v230
  %v1238 = vunpack.c.h.b16 %v230
  %v1239 = vunpack.c.l.b16 %v231
  %v1240 = vunpack.c.h.b16 %v231
  %v1241 = vunpack.c.l.b16 %v232
  %v1242 = vunpack.c.h.b16 %v232
  %v1243 = vunpack.c.l.b16 %v233
  %v1244 = vunpack.c.h.b16 %v233
  %v1245 = vunpack.c.l.b16 %v234
  %v1246 = vunpack.c.h.b16 %v234
  %v1247 = vunpack.c.l.b16 %v235
  %v1248 = vunpack.c.h.b16 %v235
  %v1249 = vunpack.c.l.b16 %v236
  %v1250 = vunpack.c.h.b16 %v236
  %v1251 = vunpack.c.l.b16 %v237
  %v1252 = vunpack.c.h.b16 %v237
  %v1253 = vunpack.c.l.b16 %v238
  %v1254 = vunpack.c.h.b16 %v238
  %v1255 = vunpack.c.l.b16 %v239
  %v1256 = vunpack.c.h.b16 %v239
  %v1257 = vunpack.c.l.b16 %v240
  %v1258 = vunpack.c.h.b16 %v240
  %v1259 = vunpack.c.l.b16 %v241
  %v1260 = vunpack.c.h.b16 %v241
  %v1261 = vunpack.c.l.b16 %v242
  %v1262 = vunpack.c.h.b16 %v242
  %v1263 = vunpack.c.l.b16 %v243
  %v1264 = vunpack.c.h.b16 %v243
  %v1265 = vunpack.c.l.b16 %v244
  %v1266 = vunpack.c.h.b16 %v244
  %v1267 = vunpack.c.l.b16 %v245
  %v1268 = vunpack.c.h.b16 %v245
  %v1269 = vunpack.c.l.b16 %v246
  %v1270 = vunpack.c.h.b16 %v246
  %v1271 = vunpack.c.l.b16 %v247
  %v1272 = vunpack.c.h.b16 %v247
  %v1273 = vunpack.c.l.b16 %v248
  %v1274 = vunpack.c.h.b16 %v248
  %v1275 = vunpack.c.l.b16 %v249
  %v1276 = vunpack.c.h.b16 %v249
  %v1277 = vunpack.c.l.b16 %v250
  %v1278 = vunpack.c.h.b16 %v250
  %v1279 = vunpack.c.l.b16 %v251
  %v1280 = vunpack.c.h.b16 %v251
  %v1281 = vunpack.c.l.b16 %v252
  %v1282 = vunpack.c.h.b16 %v252
  %v1283 = vunpack.c.l.b16 %v253
  %v1284 = vunpack.c.h.b16 %v253
  %v1285 = vunpack.c.l.b16 %v254
  %v1286 = vunpack.c.h.b16 %v254
  %v1287 = vunpack.c.l.b16 %v255
  %v1288 = vunpack.c.h.b16 %v255
  %v1289 = vunpack.c.l.b16 %v256
  %v1290 = vunpack.c.h.b16 %v256
  %v1291 = vunpack.c.l.b16 %v257
  %v1292 = vunpack.c.h.b16 %v257
  %v1293 = vunpack.c.l.b16 %v258
  %v1294 = vunpack.c.h.b16 %v258
  %v1295 = vunpack.c.l.b16 %v259
  %v1296 = vunpack.c.h.b16 %v259
  %v1297 = vunpack.c.l.b16 %v260
  %v1298 = vunpack.c.h.b16 %v260
  %v1299 = vunpack.c.l.b16 %v261
  %v1300 = vunpack.c.h.b16 %v261
  %v1301 = vunpack.c.l.b16 %v262
  %v1302 = vunpack.c.h.b16 %v262
  %v1303 = vunpack.c.l.b16 %v263
  %v1304 = vunpack.c.h.b16 %v263
  %v1305 = vunpack.c.l.b16 %v264
  %v1306 = vunpack.c.h.b16 %v264
  %v1307 = vunpack.c.l.b16 %v265
  %v1308 = vunpack.c.h.b16 %v265
  %v1309 = vunpack.c.l.b16 %v266
  %v1310 = vunpack.c.h.b16 %v266
  %v1311 = vunpack.c.l.b16 %v267
  %v1312 = vunpack.c.h.b16 %v267
  %v1313 = vunpack.c.l.b16 %v268
  %v1314 = vunpack.c.h.b16 %v268
  %v1315 = vunpack.c.l.b16 %v269
  %v1316 = vunpack.c.h.b16 %v269
  %v1317 = vunpack.c.l.b16 %v270
  %v1318 = vunpack.c.h.b16 %v270
  %v1319 = vunpack.c.l.b16 %v271
  %v1320 = vunpack.c.h.b16 %v271
  %v1321 = vunpack.c.l.b16 %v272
  %v1322 = vunpack.c.h.b16 %v272
  %v1323 = vunpack.c.l.b16 %v273
  %v1324 = vunpack.c.h.b16 %v273
  %v1325 = vunpack.c.l.b16 %v274
  %v1326 = vunpack.c.h.b16 %v274
  %v1327 = vunpack.c.l.b16 %v275
  %v1328 = vunpack.c.h.b16 %v275
  %v1329 = vunpack.c.l.b16 %v276
  %v1330 = vunpack.c.h.b16 %v276
  %v1331 = vunpack.c.l.b16 %v277
  %v1332 = vunpack.c.h.b16 %v277
  %v1333 = vunpack.c.l.b16 %v278
  %v1334 = vunpack.c.h.b16 %v278
  %v1335 = vunpack.c.l.b16 %v279
  %v1336 = vunpack.c.h.b16 %v279
  %v1337 = vunpack.c.l.b16 %v280
  %v1338 = vunpack.c.h.b16 %v280
  %v1339 = vunpack.c.l.b16 %v281
  %v1340 = vunpack.c.h.b16 %v281
  %v1341 = vunpack.c.l.b16 %v282
  %v1342 = vunpack.c.h.b16 %v282
  %v1343 = vunpack.c.l.b16 %v283
  %v1344 = vunpack.c.h.b16 %v283
  %v1345 = vunpack.c.l.b16 %v284
  %v1346 = vunpack.c.h.b16 %v284
  %v1347 = vunpack.c.l.b16 %v285
  %v1348 = vunpack.c.h.b16 %v285
  %v1349 = vunpack.c.l.b16 %v286
  %v1350 = vunpack.c.h.b16 %v286
  %v1351 = vunpack.c.l.b16 %v287
  %v1352 = vunpack.c.h.b16 %v287
  %v1353 = vunpack.c.l.b16 %v288
  %v1354 = vunpack.c.h.b16 %v288
  %v1355 = vunpack.c.l.b16 %v289
  %v1356 = vunpack.c.h.b16 %v289
  %v1357 = vunpack.c.l.b16 %v290
  %v1358 = vunpack.c.h.b16 %v290
  %v1359 = vunpack.c.l.b16 %v291
  %v1360 = vunpack.c.h.b16 %v291
  %v1361 = vunpack.c.l.b16 %v292
  %v1362 = vunpack.c.h.b16 %v292
  %v1363 = vunpack.c.l.b16 %v293
  %v1364 = vunpack.c.h.b16 %v293
  %v1365 = vunpack.c.l.b16 %v294
  %v1366 = vunpack.c.h.b16 %v294
  %v1367 = vunpack.c.l.b16 %v295
  %v1368 = vunpack.c.h.b16 %v295
  %v1369 = vunpack.c.l.b16 %v296
  %v1370 = vunpack.c.h.b16 %v296
  %v1371 = vunpack.c.l.b16 %v297
  %v1372 = vunpack.c.h.b16 %v297
  %v1373 = vunpack.c.l.b16 %v298
  %v1374 = vunpack.c.h.b16 %v298
  %v1375 = vunpack.c.l.b16 %v299
  %v1376 = vunpack.c.h.b16 %v299
  %v1377 = vunpack.c.l.b16 %v300
  %v1378 = vunpack.c.h.b16 %v300
  %v1379 = vunpack.c.l.b16 %v301
  %v1380 = vunpack.c.h.b16 %v301
  %v1381 = vunpack.c.l.b16 %v302
  %v1382 = vunpack.c.h.b16 %v302
  %v1383 = vunpack.c.l.b16 %v303
  %v1384 = vunpack.c.h.b16 %v303
  %v1385 = vunpack.c.l.b16 %v304
  %v1386 = vunpack.c.h.b16 %v304
  %v1387 = vunpack.c.l.b16 %v305
  %v1388 = vunpack.c.h.b16 %v305
  %v1389 = vunpack.c.l.b16 %v306
  %v1390 = vunpack.c.h.b16 %v306
  %v1391 = vunpack.c.l.b16 %v307
  %v1392 = vunpack.c.h.b16 %v307
  %v1393 = vunpack.c.l.b16 %v308
  %v1394 = vunpack.c.h.b16 %v308
  %v1395 = vunpack.c.l.b16 %v309
  %v1396 = vunpack.c.h.b16 %v309
  %v1397 = vunpack.c.l.b16 %v310
  %v1398 = vunpack.c.h.b16 %v310
  %v1399 = vunpack.c.l.b16 %v311
  %v1400 = vunpack.c.h.b16 %v311
  %v1401 = vunpack.c.l.b16 %v312
  %v1402 = vunpack.c.h.b16 %v312
  %v1403 = vunpack.c.l.b16 %v313
  %v1404 = vunpack.c.h.b16 %v313
  %v1405 = vunpack.c.l.b16 %v314
  %v1406 = vunpack.c.h.b16 %v314
  %v1407 = vunpack.c.l.b16 %v315
  %v1408 = vunpack.c.h.b16 %v315
  %v1409 = vunpack.c.l.b16 %v316
  %v1410 = vunpack.c.h.b16 %v316
  %v1411 = vunpack.c.l.b16 %v317
  %v1412 = vunpack.c.h.b16 %v317
  %v1413 = vunpack.c.l.b16 %v318
  %v1414 = vunpack.c.h.b16 %v318
  %v1415 = vunpack.c.l.b16 %v319
  %v1416 = vunpack.c.h.b16 %v319
  %v1417 = vunpack.c.l.b16 %v320
  %v1418 = vunpack.c.h.b16 %v320
  %v1419 = vpack.c.b16 %v1005, %v1003
  %v1420 = vpack.c.b16 %v1006, %v1004
  %v1421 = vpack.c.b16 %v1009, %v1007
  %v1422 = vpack.c.b16 %v1010, %v1008
  %v1423 = vpack.c.b16 %v1013, %v1011
  %v1424 = vpack.c.b16 %v1014, %v1012
  %v1425 = vpack.c.b16 %v1017, %v1015
  %v1426 = vpack.c.b16 %v1018, %v1016
  %v1427 = vpack.c.b16 %v1021, %v1019
  %v1428 = vpack.c.b16 %v1022, %v1020
  %v1429 = vpack.c.b16 %v1025, %v1023
  %v1430 = vpack.c.b16 %v1026, %v1024
  %v1431 = vpack.c.b16 %v1029, %v1027
  %v1432 = vpack.c.b16 %v1030, %v1028
  %v1433 = vpack.c.b16 %v1033, %v1031
  %v1434 = vpack.c.b16 %v1034, %v1032
  %v1435 = vpack.c.b16 %v1037, %v1035
  %v1436 = vpack.c.b16 %v1038, %v1036
  %v1437 = vpack.c.b16 %v1041, %v1039
  %v1438 = vpack.c.b16 %v1042, %v1040
  %v1439 = vpack.c.b16 %v1045, %v1043
  %v1440 = vpack.c.b16 %v1046, %v1044
  %v1441 = vpack.c.b16 %v1049, %v1047
  %v1442 = vpack.c.b16 %v1050, %v1048
  %v1443 = vpack.c.b16 %v1053, %v1051
  %v1444 = vpack.c.b16 %v1054, %v1052
  %v1445 = vpack.c.b16 %v1057, %v1055
  %v1446 = vpack.c.b16 %v1058, %v1056
  %v1447 = vpack.c.b16 %v1061, %v1059
  %v1448 = vpack.c.b16 %v1062, %v1060
  %v1449 = vpack.c.b16 %v1065, %v1063
  %v1450 = vpack.c.b16 %v1066, %v1064
  %v1451 = vpack.c.b16 %v1069, %v1067
  %v1452 = vpack.c.b16 %v1070, %v1068
  %v1453 = vpack.c.b16 %v1073, %v1071
  %v1454 = vpack.c.b16 %v1074, %v1072
  %v1455 = vpack.c.b16 %v1077, %v1075
  %v1456 = vpack.c.b16 %v1078, %v1076
  %v1457 = vpack.c.b16 %v1081, %v1079
  %v1458 = vpack.c.b16 %v1082, %v1080
  %v1459 = vpack.c.b16 %v1085, %v1083
  %v1460 = vpack.c.b16 %v1086, %v1084
  %v1461 = vpack.c.b16 %v1089, %v1087
  %v1462 = vpack.c.b16 %v1090, %v1088
  %v1463 = vpack.c.b16 %v1093, %v1091
  %v1464 = vpack.c.b16 %v1094, %v1092
  %v1465 = vpack.c.b16 %v1097, %v1095
  %v1466 = vpack.c.b16 %v1098, %v1096
  %v1467 = vpack.c.b16 %v1101, %v1099
  %v1468 = vpack.c.b16 %v1102, %v1100
  %v1469 = vpack.c.b16 %v1105, %v1103
  %v1470 = vpack.c.b16 %v1106, %v1104
  %v1471 = vpack.c.b16 %v1109, %v1107
  %v1472 = vpack.c.b16 %v1110, %v1108
  %v1473 = vpack.c.b16 %v1113, %v1111
  %v1474 = vpack.c.b16 %v1114, %v1112
  %v1475 = vpack.c.b16 %v1117, %v1115
  %v1476 = vpack.c.b16 %v1118, %v1116
  %v1477 = vpack.c.b16 %v1121, %v1119
  %v1478 = vpack.c.b16 %v1122, %v1120
  %v1479 = vpack.c.b16 %v1125, %v1123
  %v1480 = vpack.c.b16 %v1126, %v1124
  %v1481 = vpack.c.b16 %v1129, %v1127
  %v1482 = vpack.c.b16 %v1130, %v1128
  %v1483 = vpack.c.b16 %v1133, %v1131
  %v1484 = vpack.c.b16 %v1134, %v1132
  %v1485 = vpack.c.b16 %v1137, %v1135
  %v1486 = vpack.c.b16 %v1138, %v1136
  %v1487 = vpack.c.b16 %v1141, %v1139
  %v1488 = vpack.c.b16 %v1142, %v1140
  %v1489 = vpack.c.b16 %v1145, %v1143
  %v1490 = vpack.c.b16 %v1146, %v1144
  %v1491 = vpack.c.b16 %v1149, %v1147
  %v1492 = vpack.c.b16 %v1150, %v1148
  %v1493 = vpack.c.b16 %v1153, %v1151
  %v1494 = vpack.c.b16 %v1154, %v1152
  %v1495 = vpack.c.b16 %v1157, %v1155
  %v1496 = vpack.c.b16 %v1158, %v1156
  %v1497 = vpack.c.b16 %v1161, %v1159
  %v1498 = vpack.c.b16 %v1162, %v1160
  %v1499 = vpack.c.b16 %v1165, %v1163
  %v1500 = vpack.c.b16 %v1166, %v1164
  %v1501 = vpack.c.b16 %v1169, %v1167
  %v1502 = vpack.c.b16 %v1170, %v1168
  %v1503 = vpack.c.b16 %v1173, %v1171
  %v1504 = vpack.c.b16 %v1174, %v1172
  %v1505 = vpack.c.b16 %v1177, %v1175
  %v1506 = vpack.c.b16 %v1178, %v1176
  %v1507 = vpack.c.b16 %v1181, %v1179
  %v1508 = vpack.c.b16 %v1182, %v1180
  %v1509 = vpack.c.b16 %v1185, %v1183
  %v1510 = vpack.c.b16 %v1186, %v1184
  %v1511 = vpack.c.b16 %v1189, %v1187
  %v1512 = vpack.c.b16 %v1190, %v1188
  %v1513 = vpack.c.b16 %v1193, %v1191
  %v1514 = vpack.c.b16 %v1194, %v1192
  %v1515 = vpack.c.b16 %v1197, %v1195
  %v1516 = vpack.c.b16 %v1198, %v1196
  %v1517 = vpack.c.b16 %v1201, %v1199
  %v1518 = vpack.c.b16 %v1202, %v1200
  %v1519 = vpack.c.b16 %v1205, %v1203
  %v1520 = vpack.c.b16 %v1206, %v1204
  %v1521 = vpack.c.b16 %v1209, %v1207
  %v1522 = vpack.c.b16 %v1210, %v1208
  %v1523 = vpack.c.b16 %v1213, %v1211
  %v1524 = vpack.c.b16 %v1214, %v1212
  %v1525 = vpack.c.b16 %v1217, %v1215
  %v1526 = vpack.c.b16 %v1218, %v1216
  %v1527 = vpack.c.b16 %v1221, %v1219
  %v1528 = vpack.c.b16 %v1222, %v1220
  %v1529 = vpack.c.b16 %v1225, %v1223
  %v1530 = vpack.c.b16 %v1226, %v1224
  %v1531 = vpack.c.b16 %v1229, %v1227
  %v1532 = vpack.c.b16 %v1230, %v1228
  %v1533 = vpack.c.b16 %v1233, %v1231
  %v1534 = vpack.c.b16 %v1234, %v1232
  %v1535 = vpack.c.b16 %v1237, %v1235
  %v1536 = vpack.c.b16 %v1238, %v1236
  %v1537 = vpack.c.b16 %v1241, %v1239
  %v1538 = vpack.c.b16 %v1242, %v1240
  %v1539 = vpack.c.b16 %v1245, %v1243
  %v1540 = vpack.c.b16 %v1246, %v1244
  %v1541 = vpack.c.b16 %v1249, %v1247
  %v1542 = vpack.c.b16 %v1250, %v1248
  %v1543 = vpack.c.b16 %v1253, %v1251
  %v1544 = vpack.c.b16 %v1254, %v1252
  %v1545 = vpack.c.b16 %v1257, %v1255
  %v1546 = vpack.c.b16 %v1258, %v1256
  %v1547 = vpack.c.b16 %v1261, %v1259
  %v1548 = vpack.c.b16 %v1262, %v1260
  %v1549 = vpack.c.b16 %v1265, %v1263
  %v1550 = vpack.c.b16 %v1266, %v1264
  %v1551 = vpack.c.b16 %v1269, %v1267
  %v1552 = vpack.c.b16 %v1270, %v1268
  %v1553 = vpack.c.b16 %v1273, %v1271
  %v1554 = vpack.c.b16 %v1274, %v1272
  %v1555 = vpack.c.b16 %v1277, %v1275
  %v1556 = vpack.c.b16 %v1278, %v1276
  %v1557 = vpack.c.b16 %v1281, %v1279
  %v1558 = vpack.c.b16 %v1282, %v1280
  %v1559 = vpack.c.b16 %v1285, %v1283
  %v1560 = vpack.c.b16 %v1286, %v1284
  %v1561 = vpack.c.b16 %v1289, %v1287
  %v1562 = vpack.c.b16 %v1290, %v1288
  %v1563 = vpack.c.b16 %v1293, %v1291
  %v1564 = vpack.c.b16 %v1294, %v1292
  %v1565 = vpack.c.b16 %v1297, %v1295
  %v1566 = vpack.c.b16 %v1298, %v1296
  %v1567 = vpack.c.b16 %v1301, %v1299
  %v1568 = vpack.c.b16 %v1302, %v1300
  %v1569 = vpack.c.b16 %v1305, %v1303
  %v1570 = vpack.c.b16 %v1306, %v1304
  %v1571 = vpack.c.b16 %v1309, %v1307
  %v1572 = vpack.c.b16 %v1310, %v1308
  %v1573 = vpack.c.b16 %v1313, %v1311
  %v1574 = vpack.c.b16 %v1314, %v1312
  %v1575 = vpack.c.b16 %v1317, %v1315
  %v1576 = vpack.c.b16 %v1318, %v1316
  %v1577 = vpack.c.b16 %v1321, %v1319
  %v1578 = vpack.c.b16 %v1322, %v1320
  %v1579 = vpack.c.b16 %v1325, %v1323
  %v1580 = vpack.c.b16 %v1326, %v1324
  %v1581 = vpack.c.b16 %v1329, %v1327
  %v1582 = vpack.c.b16 %v1330, %v1328
  %v1583 = vpack.c.b16 %v1333, %v1331
  %v1584 = vpack.c.b16 %v1334, %v1332
  %v1585 = vpack.c.b16 %v1337, %v1335
  %v1586 = vpack.c.b16 %v1338, %v1336
  %v1587 = vpack.c.b16 %v1341, %v1339
  %v1588 = vpack.c.b16 %v1342, %v1340
  %v1589 = vpack.c.b16 %v1345, %v1343
  %v1590 = vpack.c.b16 %v1346, %v1344
  %v1591 = vpack.c.b16 %v1349, %v1347
  %v1592 = vpack.c.b16 %v1350, %v1348
  %v1593 = vpack.c.b16 %v1353, %v1351
  %v1594 = vpack.c.b16 %v1354, %v1352
  %v1595 = vpack.c.b16 %v1357, %v1355
  %v1596 = vpack.c.b16 %v1358, %v1356
  %v1597 = vpack.c.b16 %v1361, %v1359
  %v1598 = vpack.c.b16 %v1362, %v1360
  %v1599 = vpack.c.b16 %v1365, %v1363
  %v1600 = vpack.c.b16 %v1366, %v1364
  %v1601 = vpack.c.b16 %v1369, %v1367
  %v1602 = vpack.c.b16 %v1370, %v1368
  %v1603 = vpack.c.b16 %v1373, %v1371
  %v1604 = vpack.c.b16 %v1374, %v1372
  %v1605 = vpack.c.b16 %v1377, %v1375
  %v1606 = vpack.c.b16 %v1378, %v1376
  %v1607 = vpack.c.b16 %v1381, %v1379
  %v1608 = vpack.c.b16 %v1382, %v1380
  %v1609 = vpack.c.b16 %v1385, %v1383
  %v1610 = vpack.c.b16 %v1386, %v1384
  %v1611 = vpack.c.b16 %v1389, %v1387
  %v1612 = vpack.c.b16 %v1390, %v1388
  %v1613 = vpack.c.b16 %v1393, %v1391
  %v1614 = vpack.c.b16 %v1394, %v1392
  %v1615 = vpack.c.b16 %v1397, %v1395
  %v1616 = vpack.c.b16 %v1398, %v1396
  %v1617 = vpack.c.b16 %v1401, %v1399
  %v1618 = vpack.c.b16 %v1402, %v1400
  %v1619 = vpack.c.b16 %v1405, %v1403
  %v1620 = vpack.c.b16 %v1406, %v1404
  %v1621 = vpack.c.b16 %v1409, %v1407
  %v1622 = vpack.c.b16 %v1410, %v1408
  %v1623 = vpack.c.b16 %v1413, %v1411
  %v1624 = vpack.c.b16 %v1414, %v1412
  %v1625 = vpack.c.b16 %v1417, %v1415
  %v1626 = vpack.c.b16 %v1418, %v1416
  %1835 = vmatprep.subr.bf16.mxu0 %v1434
  %1836 = vmatpush1.bf16.msra.mxu0 %v1433
  %1837 = vmatprep.subr.bf16.mxu0 %v1432
  %1838 = vmatpush1.bf16.msra.mxu0 %v1431
  %1839 = vmatprep.subr.bf16.mxu0 %v1430
  %1840 = vmatpush1.bf16.msra.mxu0 %v1429
  %1841 = vmatprep.subr.bf16.mxu0 %v1428
  %1842 = vmatpush1.bf16.msra.mxu0 %v1427
  %1843 = vmatprep.subr.bf16.mxu0 %v1426
  %1844 = vmatpush1.bf16.msra.mxu0 %v1425
  %1845 = vmatprep.subr.bf16.mxu0 %v1424
  %1846 = vmatpush1.bf16.msra.mxu0 %v1423
  %1847 = vmatprep.subr.bf16.mxu0 %v1422
  %1848 = vmatpush1.bf16.msra.mxu0 %v1421
  %1849 = vmatprep.subr.bf16.mxu0 %v1420
  %1850 = vmatpush1.bf16.msra.mxu0 %v1419
  %1851 = vmatprep.subr.bf16.mxu0 %v1450
  %1852 = vmatpush2.bf16.msra.mxu0 %v1449
  %1853 = vmatprep.subr.bf16.mxu0 %v1448
  %1854 = vmatpush2.bf16.msra.mxu0 %v1447
  %1855 = vmatprep.subr.bf16.mxu0 %v1446
  %1856 = vmatpush2.bf16.msra.mxu0 %v1445
  %1857 = vmatprep.subr.bf16.mxu0 %v1444
  %1858 = vmatpush2.bf16.msra.mxu0 %v1443
  %1859 = vmatprep.subr.bf16.mxu0 %v1442
  %1860 = vmatpush2.bf16.msra.mxu0 %v1441
  %1861 = vmatprep.subr.bf16.mxu0 %v1440
  %1862 = vmatpush2.bf16.msra.mxu0 %v1439
  %1863 = vmatprep.subr.bf16.mxu0 %v1438
  %1864 = vmatpush2.bf16.msra.mxu0 %v1437
  %1865 = vmatprep.subr.bf16.mxu0 %v1436
  %1866 = vmatpush2.bf16.msra.mxu0 %v1435
  %1867 = vmatprep.mubr.bf16.mxu0 %v614
  %1868 = vmatmul.mubr.bf16.gmra.mxu0 %v613
  %v1869 = vpop.f32.mrf.mxu0
  %v1870 = vadd.f32 %v326, %v1869
  %v1871 = vpop.f32.mrf.mxu0
  %v1872 = vadd.f32 %v330, %v1871
  %v1873 = vpop.f32.mrf.mxu0
  %v1874 = vadd.f32 %v326, %v1873
  %v1875 = vpop.f32.mrf.mxu0
  %v1876 = vadd.f32 %v330, %v1875
  %1877 = vmatprep.mubr.bf16.mxu0 %v627
  %1878 = vmatmul.mubr.bf16.gmra.mxu0 %v626
  %v1879 = vpop.f32.mrf.mxu0
  %v1880 = vadd.f32 %v326, %v1879
  %v1881 = vpop.f32.mrf.mxu0
  %v1882 = vadd.f32 %v330, %v1881
  %v1883 = vpop.f32.mrf.mxu0
  %v1884 = vadd.f32 %v326, %v1883
  %v1885 = vpop.f32.mrf.mxu0
  %v1886 = vadd.f32 %v330, %v1885
  %1887 = vmatprep.mubr.bf16.mxu0 %v640
  %1888 = vmatmul.mubr.bf16.gmra.mxu0 %v639
  %v1889 = vpop.f32.mrf.mxu0
  %v1890 = vadd.f32 %v326, %v1889
  %v1891 = vpop.f32.mrf.mxu0
  %v1892 = vadd.f32 %v330, %v1891
  %v1893 = vpop.f32.mrf.mxu0
  %v1894 = vadd.f32 %v326, %v1893
  %v1895 = vpop.f32.mrf.mxu0
  %v1896 = vadd.f32 %v330, %v1895
  %1897 = vmatprep.mubr.bf16.mxu0 %v653
  %1898 = vmatmul.mubr.bf16.gmra.mxu0 %v652
  %v1899 = vpop.f32.mrf.mxu0
  %v1900 = vadd.f32 %v326, %v1899
  %v1901 = vpop.f32.mrf.mxu0
  %v1902 = vadd.f32 %v330, %v1901
  %v1903 = vpop.f32.mrf.mxu0
  %v1904 = vadd.f32 %v326, %v1903
  %v1905 = vpop.f32.mrf.mxu0
  %v1906 = vadd.f32 %v330, %v1905
  %1907 = vmatprep.mubr.bf16.mxu0 %v666
  %1908 = vmatmul.mubr.bf16.gmra.mxu0 %v665
  %v1909 = vpop.f32.mrf.mxu0
  %v1910 = vadd.f32 %v326, %v1909
  %v1911 = vpop.f32.mrf.mxu0
  %v1912 = vadd.f32 %v330, %v1911
  %v1913 = vpop.f32.mrf.mxu0
  %v1914 = vadd.f32 %v326, %v1913
  %v1915 = vpop.f32.mrf.mxu0
  %v1916 = vadd.f32 %v330, %v1915
  %1917 = vmatprep.mubr.bf16.mxu0 %v679
  %1918 = vmatmul.mubr.bf16.gmra.mxu0 %v678
  %v1919 = vpop.f32.mrf.mxu0
  %v1920 = vadd.f32 %v326, %v1919
  %v1921 = vpop.f32.mrf.mxu0
  %v1922 = vadd.f32 %v330, %v1921
  %v1923 = vpop.f32.mrf.mxu0
  %v1924 = vadd.f32 %v326, %v1923
  %v1925 = vpop.f32.mrf.mxu0
  %v1926 = vadd.f32 %v330, %v1925
  %1927 = vmatprep.mubr.bf16.mxu0 %v692
  %1928 = vmatmul.mubr.bf16.gmra.mxu0 %v691
  %v1929 = vpop.f32.mrf.mxu0
  %v1930 = vadd.f32 %v326, %v1929
  %v1931 = vpop.f32.mrf.mxu0
  %v1932 = vadd.f32 %v330, %v1931
  %v1933 = vpop.f32.mrf.mxu0
  %v1934 = vadd.f32 %v326, %v1933
  %v1935 = vpop.f32.mrf.mxu0
  %v1936 = vadd.f32 %v330, %v1935
  %1937 = vdwg.mxu0
  %1938 = vmatprep.subr.bf16.mxu0 %v1466
  %1939 = vmatpush1.bf16.msra.mxu0 %v1465
  %1940 = vmatprep.subr.bf16.mxu0 %v1464
  %1941 = vmatpush1.bf16.msra.mxu0 %v1463
  %1942 = vmatprep.subr.bf16.mxu0 %v1462
  %1943 = vmatpush1.bf16.msra.mxu0 %v1461
  %1944 = vmatprep.subr.bf16.mxu0 %v1460
  %1945 = vmatpush1.bf16.msra.mxu0 %v1459
  %1946 = vmatprep.subr.bf16.mxu0 %v1458
  %1947 = vmatpush1.bf16.msra.mxu0 %v1457
  %1948 = vmatprep.subr.bf16.mxu0 %v1456
  %1949 = vmatpush1.bf16.msra.mxu0 %v1455
  %1950 = vmatprep.subr.bf16.mxu0 %v1454
  %1951 = vmatpush1.bf16.msra.mxu0 %v1453
  %1952 = vmatprep.subr.bf16.mxu0 %v1452
  %1953 = vmatpush1.bf16.msra.mxu0 %v1451
  %1954 = vmatprep.subr.bf16.mxu0 %v1482
  %1955 = vmatpush2.bf16.msra.mxu0 %v1481
  %1956 = vmatprep.subr.bf16.mxu0 %v1480
  %1957 = vmatpush2.bf16.msra.mxu0 %v1479
  %1958 = vmatprep.subr.bf16.mxu0 %v1478
  %1959 = vmatpush2.bf16.msra.mxu0 %v1477
  %1960 = vmatprep.subr.bf16.mxu0 %v1476
  %1961 = vmatpush2.bf16.msra.mxu0 %v1475
  %1962 = vmatprep.subr.bf16.mxu0 %v1474
  %1963 = vmatpush2.bf16.msra.mxu0 %v1473
  %1964 = vmatprep.subr.bf16.mxu0 %v1472
  %1965 = vmatpush2.bf16.msra.mxu0 %v1471
  %1966 = vmatprep.subr.bf16.mxu0 %v1470
  %1967 = vmatpush2.bf16.msra.mxu0 %v1469
  %1968 = vmatprep.subr.bf16.mxu0 %v1468
  %1969 = vmatpush2.bf16.msra.mxu0 %v1467
  %1970 = vmatprep.mubr.bf16.mxu0 %v616
  %1971 = vmatmul.mubr.bf16.gmra.mxu0 %v615
  %v1972 = vpop.f32.mrf.mxu0
  %v1973 = vadd.f32 %v1870, %v1972
  %v1974 = vpop.f32.mrf.mxu0
  %v1975 = vadd.f32 %v1872, %v1974
  %v1976 = vpop.f32.mrf.mxu0
  %v1977 = vadd.f32 %v1874, %v1976
  %v1978 = vpop.f32.mrf.mxu0
  %v1979 = vadd.f32 %v1876, %v1978
  %1980 = vmatprep.mubr.bf16.mxu0 %v629
  %1981 = vmatmul.mubr.bf16.gmra.mxu0 %v628
  %v1982 = vpop.f32.mrf.mxu0
  %v1983 = vadd.f32 %v1880, %v1982
  %v1984 = vpop.f32.mrf.mxu0
  %v1985 = vadd.f32 %v1882, %v1984
  %v1986 = vpop.f32.mrf.mxu0
  %v1987 = vadd.f32 %v1884, %v1986
  %v1988 = vpop.f32.mrf.mxu0
  %v1989 = vadd.f32 %v1886, %v1988
  %1990 = vmatprep.mubr.bf16.mxu0 %v642
  %1991 = vmatmul.mubr.bf16.gmra.mxu0 %v641
  %v1992 = vpop.f32.mrf.mxu0
  %v1993 = vadd.f32 %v1890, %v1992
  %v1994 = vpop.f32.mrf.mxu0
  %v1995 = vadd.f32 %v1892, %v1994
  %v1996 = vpop.f32.mrf.mxu0
  %v1997 = vadd.f32 %v1894, %v1996
  %v1998 = vpop.f32.mrf.mxu0
  %v1999 = vadd.f32 %v1896, %v1998
  %2000 = vmatprep.mubr.bf16.mxu0 %v655
  %2001 = vmatmul.mubr.bf16.gmra.mxu0 %v654
  %v2002 = vpop.f32.mrf.mxu0
  %v2003 = vadd.f32 %v1900, %v2002
  %v2004 = vpop.f32.mrf.mxu0
  %v2005 = vadd.f32 %v1902, %v2004
  %v2006 = vpop.f32.mrf.mxu0
  %v2007 = vadd.f32 %v1904, %v2006
  %v2008 = vpop.f32.mrf.mxu0
  %v2009 = vadd.f32 %v1906, %v2008
  %2010 = vmatprep.mubr.bf16.mxu0 %v668
  %2011 = vmatmul.mubr.bf16.gmra.mxu0 %v667
  %v2012 = vpop.f32.mrf.mxu0
  %v2013 = vadd.f32 %v1910, %v2012
  %v2014 = vpop.f32.mrf.mxu0
  %v2015 = vadd.f32 %v1912, %v2014
  %v2016 = vpop.f32.mrf.mxu0
  %v2017 = vadd.f32 %v1914, %v2016
  %v2018 = vpop.f32.mrf.mxu0
  %v2019 = vadd.f32 %v1916, %v2018
  %2020 = vmatprep.mubr.bf16.mxu0 %v681
  %2021 = vmatmul.mubr.bf16.gmra.mxu0 %v680
  %v2022 = vpop.f32.mrf.mxu0
  %v2023 = vadd.f32 %v1920, %v2022
  %v2024 = vpop.f32.mrf.mxu0
  %v2025 = vadd.f32 %v1922, %v2024
  %v2026 = vpop.f32.mrf.mxu0
  %v2027 = vadd.f32 %v1924, %v2026
  %v2028 = vpop.f32.mrf.mxu0
  %v2029 = vadd.f32 %v1926, %v2028
  %2030 = vmatprep.mubr.bf16.mxu0 %v694
  %2031 = vmatmul.mubr.bf16.gmra.mxu0 %v693
  %v2032 = vpop.f32.mrf.mxu0
  %v2033 = vadd.f32 %v1930, %v2032
  %v2034 = vpop.f32.mrf.mxu0
  %v2035 = vadd.f32 %v1932, %v2034
  %v2036 = vpop.f32.mrf.mxu0
  %v2037 = vadd.f32 %v1934, %v2036
  %v2038 = vpop.f32.mrf.mxu0
  %v2039 = vadd.f32 %v1936, %v2038
  %2040 = vdwg.mxu0
  %2041 = vmatprep.subr.bf16.mxu0 %v1498
  %2042 = vmatpush1.bf16.msra.mxu0 %v1497
  %2043 = vmatprep.subr.bf16.mxu0 %v1496
  %2044 = vmatpush1.bf16.msra.mxu0 %v1495
  %2045 = vmatprep.subr.bf16.mxu0 %v1494
  %2046 = vmatpush1.bf16.msra.mxu0 %v1493
  %2047 = vmatprep.subr.bf16.mxu0 %v1492
  %2048 = vmatpush1.bf16.msra.mxu0 %v1491
  %2049 = vmatprep.subr.bf16.mxu0 %v1490
  %2050 = vmatpush1.bf16.msra.mxu0 %v1489
  %2051 = vmatprep.subr.bf16.mxu0 %v1488
  %2052 = vmatpush1.bf16.msra.mxu0 %v1487
  %2053 = vmatprep.subr.bf16.mxu0 %v1486
  %2054 = vmatpush1.bf16.msra.mxu0 %v1485
  %2055 = vmatprep.subr.bf16.mxu0 %v1484
  %2056 = vmatpush1.bf16.msra.mxu0 %v1483
  %2057 = vmatprep.subr.bf16.mxu0 %v1514
  %2058 = vmatpush2.bf16.msra.mxu0 %v1513
  %2059 = vmatprep.subr.bf16.mxu0 %v1512
  %2060 = vmatpush2.bf16.msra.mxu0 %v1511
  %2061 = vmatprep.subr.bf16.mxu0 %v1510
  %2062 = vmatpush2.bf16.msra.mxu0 %v1509
  %2063 = vmatprep.subr.bf16.mxu0 %v1508
  %2064 = vmatpush2.bf16.msra.mxu0 %v1507
  %2065 = vmatprep.subr.bf16.mxu0 %v1506
  %2066 = vmatpush2.bf16.msra.mxu0 %v1505
  %2067 = vmatprep.subr.bf16.mxu0 %v1504
  %2068 = vmatpush2.bf16.msra.mxu0 %v1503
  %2069 = vmatprep.subr.bf16.mxu0 %v1502
  %2070 = vmatpush2.bf16.msra.mxu0 %v1501
  %2071 = vmatprep.subr.bf16.mxu0 %v1500
  %2072 = vmatpush2.bf16.msra.mxu0 %v1499
  %2073 = vmatprep.mubr.bf16.mxu0 %v618
  %2074 = vmatmul.mubr.bf16.gmra.mxu0 %v617
  %v2075 = vpop.f32.mrf.mxu0
  %v2076 = vadd.f32 %v1973, %v2075
  %v2077 = vpop.f32.mrf.mxu0
  %v2078 = vadd.f32 %v1975, %v2077
  %v2079 = vpop.f32.mrf.mxu0
  %v2080 = vadd.f32 %v1977, %v2079
  %v2081 = vpop.f32.mrf.mxu0
  %v2082 = vadd.f32 %v1979, %v2081
  %2083 = vmatprep.mubr.bf16.mxu0 %v631
  %2084 = vmatmul.mubr.bf16.gmra.mxu0 %v630
  %v2085 = vpop.f32.mrf.mxu0
  %v2086 = vadd.f32 %v1983, %v2085
  %v2087 = vpop.f32.mrf.mxu0
  %v2088 = vadd.f32 %v1985, %v2087
  %v2089 = vpop.f32.mrf.mxu0
  %v2090 = vadd.f32 %v1987, %v2089
  %v2091 = vpop.f32.mrf.mxu0
  %v2092 = vadd.f32 %v1989, %v2091
  %2093 = vmatprep.mubr.bf16.mxu0 %v644
  %2094 = vmatmul.mubr.bf16.gmra.mxu0 %v643
  %v2095 = vpop.f32.mrf.mxu0
  %v2096 = vadd.f32 %v1993, %v2095
  %v2097 = vpop.f32.mrf.mxu0
  %v2098 = vadd.f32 %v1995, %v2097
  %v2099 = vpop.f32.mrf.mxu0
  %v2100 = vadd.f32 %v1997, %v2099
  %v2101 = vpop.f32.mrf.mxu0
  %v2102 = vadd.f32 %v1999, %v2101
  %2103 = vmatprep.mubr.bf16.mxu0 %v657
  %2104 = vmatmul.mubr.bf16.gmra.mxu0 %v656
  %v2105 = vpop.f32.mrf.mxu0
  %v2106 = vadd.f32 %v2003, %v2105
  %v2107 = vpop.f32.mrf.mxu0
  %v2108 = vadd.f32 %v2005, %v2107
  %v2109 = vpop.f32.mrf.mxu0
  %v2110 = vadd.f32 %v2007, %v2109
  %v2111 = vpop.f32.mrf.mxu0
  %v2112 = vadd.f32 %v2009, %v2111
  %2113 = vmatprep.mubr.bf16.mxu0 %v670
  %2114 = vmatmul.mubr.bf16.gmra.mxu0 %v669
  %v2115 = vpop.f32.mrf.mxu0
  %v2116 = vadd.f32 %v2013, %v2115
  %v2117 = vpop.f32.mrf.mxu0
  %v2118 = vadd.f32 %v2015, %v2117
  %v2119 = vpop.f32.mrf.mxu0
  %v2120 = vadd.f32 %v2017, %v2119
  %v2121 = vpop.f32.mrf.mxu0
  %v2122 = vadd.f32 %v2019, %v2121
  %2123 = vmatprep.mubr.bf16.mxu0 %v683
  %2124 = vmatmul.mubr.bf16.gmra.mxu0 %v682
  %v2125 = vpop.f32.mrf.mxu0
  %v2126 = vadd.f32 %v2023, %v2125
  %v2127 = vpop.f32.mrf.mxu0
  %v2128 = vadd.f32 %v2025, %v2127
  %v2129 = vpop.f32.mrf.mxu0
  %v2130 = vadd.f32 %v2027, %v2129
  %v2131 = vpop.f32.mrf.mxu0
  %v2132 = vadd.f32 %v2029, %v2131
  %2133 = vmatprep.mubr.bf16.mxu0 %v696
  %2134 = vmatmul.mubr.bf16.gmra.mxu0 %v695
  %v2135 = vpop.f32.mrf.mxu0
  %v2136 = vadd.f32 %v2033, %v2135
  %v2137 = vpop.f32.mrf.mxu0
  %v2138 = vadd.f32 %v2035, %v2137
  %v2139 = vpop.f32.mrf.mxu0
  %v2140 = vadd.f32 %v2037, %v2139
  %v2141 = vpop.f32.mrf.mxu0
  %v2142 = vadd.f32 %v2039, %v2141
  %2143 = vdwg.mxu0
  %2144 = vmatprep.subr.bf16.mxu0 %v1530
  %2145 = vmatpush1.bf16.msra.mxu0 %v1529
  %2146 = vmatprep.subr.bf16.mxu0 %v1528
  %2147 = vmatpush1.bf16.msra.mxu0 %v1527
  %2148 = vmatprep.subr.bf16.mxu0 %v1526
  %2149 = vmatpush1.bf16.msra.mxu0 %v1525
  %2150 = vmatprep.subr.bf16.mxu0 %v1524
  %2151 = vmatpush1.bf16.msra.mxu0 %v1523
  %2152 = vmatprep.subr.bf16.mxu0 %v1522
  %2153 = vmatpush1.bf16.msra.mxu0 %v1521
  %2154 = vmatprep.subr.bf16.mxu0 %v1520
  %2155 = vmatpush1.bf16.msra.mxu0 %v1519
  %2156 = vmatprep.subr.bf16.mxu0 %v1518
  %2157 = vmatpush1.bf16.msra.mxu0 %v1517
  %2158 = vmatprep.subr.bf16.mxu0 %v1516
  %2159 = vmatpush1.bf16.msra.mxu0 %v1515
  %2160 = vmatprep.subr.bf16.mxu0 %v1546
  %2161 = vmatpush2.bf16.msra.mxu0 %v1545
  %2162 = vmatprep.subr.bf16.mxu0 %v1544
  %2163 = vmatpush2.bf16.msra.mxu0 %v1543
  %2164 = vmatprep.subr.bf16.mxu0 %v1542
  %2165 = vmatpush2.bf16.msra.mxu0 %v1541
  %2166 = vmatprep.subr.bf16.mxu0 %v1540
  %2167 = vmatpush2.bf16.msra.mxu0 %v1539
  %2168 = vmatprep.subr.bf16.mxu0 %v1538
  %2169 = vmatpush2.bf16.msra.mxu0 %v1537
  %2170 = vmatprep.subr.bf16.mxu0 %v1536
  %2171 = vmatpush2.bf16.msra.mxu0 %v1535
  %2172 = vmatprep.subr.bf16.mxu0 %v1534
  %2173 = vmatpush2.bf16.msra.mxu0 %v1533
  %2174 = vmatprep.subr.bf16.mxu0 %v1532
  %2175 = vmatpush2.bf16.msra.mxu0 %v1531
  %2176 = vmatprep.mubr.bf16.mxu0 %v620
  %2177 = vmatmul.mubr.bf16.gmra.mxu0 %v619
  %v2178 = vpop.f32.mrf.mxu0
  %v2179 = vadd.f32 %v2076, %v2178
  %v2180 = vpop.f32.mrf.mxu0
  %v2181 = vadd.f32 %v2078, %v2180
  %v2182 = vpop.f32.mrf.mxu0
  %v2183 = vadd.f32 %v2080, %v2182
  %v2184 = vpop.f32.mrf.mxu0
  %v2185 = vadd.f32 %v2082, %v2184
  %2186 = vmatprep.mubr.bf16.mxu0 %v633
  %2187 = vmatmul.mubr.bf16.gmra.mxu0 %v632
  %v2188 = vpop.f32.mrf.mxu0
  %v2189 = vadd.f32 %v2086, %v2188
  %v2190 = vpop.f32.mrf.mxu0
  %v2191 = vadd.f32 %v2088, %v2190
  %v2192 = vpop.f32.mrf.mxu0
  %v2193 = vadd.f32 %v2090, %v2192
  %v2194 = vpop.f32.mrf.mxu0
  %v2195 = vadd.f32 %v2092, %v2194
  %2196 = vmatprep.mubr.bf16.mxu0 %v646
  %2197 = vmatmul.mubr.bf16.gmra.mxu0 %v645
  %v2198 = vpop.f32.mrf.mxu0
  %v2199 = vadd.f32 %v2096, %v2198
  %v2200 = vpop.f32.mrf.mxu0
  %v2201 = vadd.f32 %v2098, %v2200
  %v2202 = vpop.f32.mrf.mxu0
  %v2203 = vadd.f32 %v2100, %v2202
  %v2204 = vpop.f32.mrf.mxu0
  %v2205 = vadd.f32 %v2102, %v2204
  %2206 = vmatprep.mubr.bf16.mxu0 %v659
  %2207 = vmatmul.mubr.bf16.gmra.mxu0 %v658
  %v2208 = vpop.f32.mrf.mxu0
  %v2209 = vadd.f32 %v2106, %v2208
  %v2210 = vpop.f32.mrf.mxu0
  %v2211 = vadd.f32 %v2108, %v2210
  %v2212 = vpop.f32.mrf.mxu0
  %v2213 = vadd.f32 %v2110, %v2212
  %v2214 = vpop.f32.mrf.mxu0
  %v2215 = vadd.f32 %v2112, %v2214
  %2216 = vmatprep.mubr.bf16.mxu0 %v672
  %2217 = vmatmul.mubr.bf16.gmra.mxu0 %v671
  %v2218 = vpop.f32.mrf.mxu0
  %v2219 = vadd.f32 %v2116, %v2218
  %v2220 = vpop.f32.mrf.mxu0
  %v2221 = vadd.f32 %v2118, %v2220
  %v2222 = vpop.f32.mrf.mxu0
  %v2223 = vadd.f32 %v2120, %v2222
  %v2224 = vpop.f32.mrf.mxu0
  %v2225 = vadd.f32 %v2122, %v2224
  %2226 = vmatprep.mubr.bf16.mxu0 %v685
  %2227 = vmatmul.mubr.bf16.gmra.mxu0 %v684
  %v2228 = vpop.f32.mrf.mxu0
  %v2229 = vadd.f32 %v2126, %v2228
  %v2230 = vpop.f32.mrf.mxu0
  %v2231 = vadd.f32 %v2128, %v2230
  %v2232 = vpop.f32.mrf.mxu0
  %v2233 = vadd.f32 %v2130, %v2232
  %v2234 = vpop.f32.mrf.mxu0
  %v2235 = vadd.f32 %v2132, %v2234
  %2236 = vmatprep.mubr.bf16.mxu0 %v698
  %2237 = vmatmul.mubr.bf16.gmra.mxu0 %v697
  %v2238 = vpop.f32.mrf.mxu0
  %v2239 = vadd.f32 %v2136, %v2238
  %v2240 = vpop.f32.mrf.mxu0
  %v2241 = vadd.f32 %v2138, %v2240
  %v2242 = vpop.f32.mrf.mxu0
  %v2243 = vadd.f32 %v2140, %v2242
  %v2244 = vpop.f32.mrf.mxu0
  %v2245 = vadd.f32 %v2142, %v2244
  %2246 = vdwg.mxu0
  %2247 = vmatprep.subr.bf16.mxu0 %v1562
  %2248 = vmatpush1.bf16.msra.mxu0 %v1561
  %2249 = vmatprep.subr.bf16.mxu0 %v1560
  %2250 = vmatpush1.bf16.msra.mxu0 %v1559
  %2251 = vmatprep.subr.bf16.mxu0 %v1558
  %2252 = vmatpush1.bf16.msra.mxu0 %v1557
  %2253 = vmatprep.subr.bf16.mxu0 %v1556
  %2254 = vmatpush1.bf16.msra.mxu0 %v1555
  %2255 = vmatprep.subr.bf16.mxu0 %v1554
  %2256 = vmatpush1.bf16.msra.mxu0 %v1553
  %2257 = vmatprep.subr.bf16.mxu0 %v1552
  %2258 = vmatpush1.bf16.msra.mxu0 %v1551
  %2259 = vmatprep.subr.bf16.mxu0 %v1550
  %2260 = vmatpush1.bf16.msra.mxu0 %v1549
  %2261 = vmatprep.subr.bf16.mxu0 %v1548
  %2262 = vmatpush1.bf16.msra.mxu0 %v1547
  %2263 = vmatprep.subr.bf16.mxu0 %v1578
  %2264 = vmatpush2.bf16.msra.mxu0 %v1577
  %2265 = vmatprep.subr.bf16.mxu0 %v1576
  %2266 = vmatpush2.bf16.msra.mxu0 %v1575
  %2267 = vmatprep.subr.bf16.mxu0 %v1574
  %2268 = vmatpush2.bf16.msra.mxu0 %v1573
  %2269 = vmatprep.subr.bf16.mxu0 %v1572
  %2270 = vmatpush2.bf16.msra.mxu0 %v1571
  %2271 = vmatprep.subr.bf16.mxu0 %v1570
  %2272 = vmatpush2.bf16.msra.mxu0 %v1569
  %2273 = vmatprep.subr.bf16.mxu0 %v1568
  %2274 = vmatpush2.bf16.msra.mxu0 %v1567
  %2275 = vmatprep.subr.bf16.mxu0 %v1566
  %2276 = vmatpush2.bf16.msra.mxu0 %v1565
  %2277 = vmatprep.subr.bf16.mxu0 %v1564
  %2278 = vmatpush2.bf16.msra.mxu0 %v1563
  %2279 = vmatprep.mubr.bf16.mxu0 %v622
  %2280 = vmatmul.mubr.bf16.gmra.mxu0 %v621
  %v2281 = vpop.f32.mrf.mxu0
  %v2282 = vadd.f32 %v2179, %v2281
  %v2283 = vpop.f32.mrf.mxu0
  %v2284 = vadd.f32 %v2181, %v2283
  %v2285 = vpop.f32.mrf.mxu0
  %v2286 = vadd.f32 %v2183, %v2285
  %v2287 = vpop.f32.mrf.mxu0
  %v2288 = vadd.f32 %v2185, %v2287
  %2289 = vmatprep.mubr.bf16.mxu0 %v635
  %2290 = vmatmul.mubr.bf16.gmra.mxu0 %v634
  %v2291 = vpop.f32.mrf.mxu0
  %v2292 = vadd.f32 %v2189, %v2291
  %v2293 = vpop.f32.mrf.mxu0
  %v2294 = vadd.f32 %v2191, %v2293
  %v2295 = vpop.f32.mrf.mxu0
  %v2296 = vadd.f32 %v2193, %v2295
  %v2297 = vpop.f32.mrf.mxu0
  %v2298 = vadd.f32 %v2195, %v2297
  %2299 = vmatprep.mubr.bf16.mxu0 %v648
  %2300 = vmatmul.mubr.bf16.gmra.mxu0 %v647
  %v2301 = vpop.f32.mrf.mxu0
  %v2302 = vadd.f32 %v2199, %v2301
  %v2303 = vpop.f32.mrf.mxu0
  %v2304 = vadd.f32 %v2201, %v2303
  %v2305 = vpop.f32.mrf.mxu0
  %v2306 = vadd.f32 %v2203, %v2305
  %v2307 = vpop.f32.mrf.mxu0
  %v2308 = vadd.f32 %v2205, %v2307
  %2309 = vmatprep.mubr.bf16.mxu0 %v661
  %2310 = vmatmul.mubr.bf16.gmra.mxu0 %v660
  %v2311 = vpop.f32.mrf.mxu0
  %v2312 = vadd.f32 %v2209, %v2311
  %v2313 = vpop.f32.mrf.mxu0
  %v2314 = vadd.f32 %v2211, %v2313
  %v2315 = vpop.f32.mrf.mxu0
  %v2316 = vadd.f32 %v2213, %v2315
  %v2317 = vpop.f32.mrf.mxu0
  %v2318 = vadd.f32 %v2215, %v2317
  %2319 = vmatprep.mubr.bf16.mxu0 %v674
  %2320 = vmatmul.mubr.bf16.gmra.mxu0 %v673
  %v2321 = vpop.f32.mrf.mxu0
  %v2322 = vadd.f32 %v2219, %v2321
  %v2323 = vpop.f32.mrf.mxu0
  %v2324 = vadd.f32 %v2221, %v2323
  %v2325 = vpop.f32.mrf.mxu0
  %v2326 = vadd.f32 %v2223, %v2325
  %v2327 = vpop.f32.mrf.mxu0
  %v2328 = vadd.f32 %v2225, %v2327
  %2329 = vmatprep.mubr.bf16.mxu0 %v687
  %2330 = vmatmul.mubr.bf16.gmra.mxu0 %v686
  %v2331 = vpop.f32.mrf.mxu0
  %v2332 = vadd.f32 %v2229, %v2331
  %v2333 = vpop.f32.mrf.mxu0
  %v2334 = vadd.f32 %v2231, %v2333
  %v2335 = vpop.f32.mrf.mxu0
  %v2336 = vadd.f32 %v2233, %v2335
  %v2337 = vpop.f32.mrf.mxu0
  %v2338 = vadd.f32 %v2235, %v2337
  %2339 = vmatprep.mubr.bf16.mxu0 %v700
  %2340 = vmatmul.mubr.bf16.gmra.mxu0 %v699
  %v2341 = vpop.f32.mrf.mxu0
  %v2342 = vadd.f32 %v2239, %v2341
  %v2343 = vpop.f32.mrf.mxu0
  %v2344 = vadd.f32 %v2241, %v2343
  %v2345 = vpop.f32.mrf.mxu0
  %v2346 = vadd.f32 %v2243, %v2345
  %v2347 = vpop.f32.mrf.mxu0
  %v2348 = vadd.f32 %v2245, %v2347
  %2349 = vdwg.mxu0
  %2350 = vmatprep.subr.bf16.mxu0 %v1594
  %2351 = vmatpush1.bf16.msra.mxu0 %v1593
  %2352 = vmatprep.subr.bf16.mxu0 %v1592
  %2353 = vmatpush1.bf16.msra.mxu0 %v1591
  %2354 = vmatprep.subr.bf16.mxu0 %v1590
  %2355 = vmatpush1.bf16.msra.mxu0 %v1589
  %2356 = vmatprep.subr.bf16.mxu0 %v1588
  %2357 = vmatpush1.bf16.msra.mxu0 %v1587
  %2358 = vmatprep.subr.bf16.mxu0 %v1586
  %2359 = vmatpush1.bf16.msra.mxu0 %v1585
  %2360 = vmatprep.subr.bf16.mxu0 %v1584
  %2361 = vmatpush1.bf16.msra.mxu0 %v1583
  %2362 = vmatprep.subr.bf16.mxu0 %v1582
  %2363 = vmatpush1.bf16.msra.mxu0 %v1581
  %2364 = vmatprep.subr.bf16.mxu0 %v1580
  %2365 = vmatpush1.bf16.msra.mxu0 %v1579
  %2366 = vmatprep.subr.bf16.mxu0 %v1610
  %2367 = vmatpush2.bf16.msra.mxu0 %v1609
  %2368 = vmatprep.subr.bf16.mxu0 %v1608
  %2369 = vmatpush2.bf16.msra.mxu0 %v1607
  %2370 = vmatprep.subr.bf16.mxu0 %v1606
  %2371 = vmatpush2.bf16.msra.mxu0 %v1605
  %2372 = vmatprep.subr.bf16.mxu0 %v1604
  %2373 = vmatpush2.bf16.msra.mxu0 %v1603
  %2374 = vmatprep.subr.bf16.mxu0 %v1602
  %2375 = vmatpush2.bf16.msra.mxu0 %v1601
  %2376 = vmatprep.subr.bf16.mxu0 %v1600
  %2377 = vmatpush2.bf16.msra.mxu0 %v1599
  %2378 = vmatprep.subr.bf16.mxu0 %v1598
  %2379 = vmatpush2.bf16.msra.mxu0 %v1597
  %2380 = vmatprep.subr.bf16.mxu0 %v1596
  %2381 = vmatpush2.bf16.msra.mxu0 %v1595
  %2382 = vmatprep.mubr.bf16.mxu0 %v624
  %2383 = vmatmul.mubr.bf16.gmra.mxu0 %v623
  %v2384 = vpop.f32.mrf.mxu0
  %v2385 = vadd.f32 %v2282, %v2384
  %v2386 = vpop.f32.mrf.mxu0
  %v2387 = vadd.f32 %v2284, %v2386
  %v2388 = vpop.f32.mrf.mxu0
  %v2389 = vadd.f32 %v2286, %v2388
  %v2390 = vpop.f32.mrf.mxu0
  %v2391 = vadd.f32 %v2288, %v2390
  %2392 = vmatprep.mubr.bf16.mxu0 %v637
  %2393 = vmatmul.mubr.bf16.gmra.mxu0 %v636
  %v2394 = vpop.f32.mrf.mxu0
  %v2395 = vadd.f32 %v2292, %v2394
  %v2396 = vpop.f32.mrf.mxu0
  %v2397 = vadd.f32 %v2294, %v2396
  %v2398 = vpop.f32.mrf.mxu0
  %v2399 = vadd.f32 %v2296, %v2398
  %v2400 = vpop.f32.mrf.mxu0
  %v2401 = vadd.f32 %v2298, %v2400
  %2402 = vmatprep.mubr.bf16.mxu0 %v650
  %2403 = vmatmul.mubr.bf16.gmra.mxu0 %v649
  %v2404 = vpop.f32.mrf.mxu0
  %v2405 = vadd.f32 %v2302, %v2404
  %v2406 = vpop.f32.mrf.mxu0
  %v2407 = vadd.f32 %v2304, %v2406
  %v2408 = vpop.f32.mrf.mxu0
  %v2409 = vadd.f32 %v2306, %v2408
  %v2410 = vpop.f32.mrf.mxu0
  %v2411 = vadd.f32 %v2308, %v2410
  %2412 = vmatprep.mubr.bf16.mxu0 %v663
  %2413 = vmatmul.mubr.bf16.gmra.mxu0 %v662
  %v2414 = vpop.f32.mrf.mxu0
  %v2415 = vadd.f32 %v2312, %v2414
  %v2416 = vpop.f32.mrf.mxu0
  %v2417 = vadd.f32 %v2314, %v2416
  %v2418 = vpop.f32.mrf.mxu0
  %v2419 = vadd.f32 %v2316, %v2418
  %v2420 = vpop.f32.mrf.mxu0
  %v2421 = vadd.f32 %v2318, %v2420
  %2422 = vmatprep.mubr.bf16.mxu0 %v676
  %2423 = vmatmul.mubr.bf16.gmra.mxu0 %v675
  %v2424 = vpop.f32.mrf.mxu0
  %v2425 = vadd.f32 %v2322, %v2424
  %v2426 = vpop.f32.mrf.mxu0
  %v2427 = vadd.f32 %v2324, %v2426
  %v2428 = vpop.f32.mrf.mxu0
  %v2429 = vadd.f32 %v2326, %v2428
  %v2430 = vpop.f32.mrf.mxu0
  %v2431 = vadd.f32 %v2328, %v2430
  %2432 = vmatprep.mubr.bf16.mxu0 %v689
  %2433 = vmatmul.mubr.bf16.gmra.mxu0 %v688
  %v2434 = vpop.f32.mrf.mxu0
  %v2435 = vadd.f32 %v2332, %v2434
  %v2436 = vpop.f32.mrf.mxu0
  %v2437 = vadd.f32 %v2334, %v2436
  %v2438 = vpop.f32.mrf.mxu0
  %v2439 = vadd.f32 %v2336, %v2438
  %v2440 = vpop.f32.mrf.mxu0
  %v2441 = vadd.f32 %v2338, %v2440
  %2442 = vmatprep.mubr.bf16.mxu0 %v702
  %2443 = vmatmul.mubr.bf16.gmra.mxu0 %v701
  %v2444 = vpop.f32.mrf.mxu0
  %v2445 = vadd.f32 %v2342, %v2444
  %v2446 = vpop.f32.mrf.mxu0
  %v2447 = vadd.f32 %v2344, %v2446
  %v2448 = vpop.f32.mrf.mxu0
  %v2449 = vadd.f32 %v2346, %v2448
  %v2450 = vpop.f32.mrf.mxu0
  %v2451 = vadd.f32 %v2348, %v2450
  %2452 = vdwg.mxu0
  %2453 = vmatprep.subr.bf16.mxu0 %v1626
  %2454 = vmatpush1.bf16.msra.mxu0 %v1625
  %2455 = vmatprep.subr.bf16.mxu0 %v1624
  %2456 = vmatpush1.bf16.msra.mxu0 %v1623
  %2457 = vmatprep.subr.bf16.mxu0 %v1622
  %2458 = vmatpush1.bf16.msra.mxu0 %v1621
  %2459 = vmatprep.subr.bf16.mxu0 %v1620
  %2460 = vmatpush1.bf16.msra.mxu0 %v1619
  %2461 = vmatprep.subr.bf16.mxu0 %v1618
  %2462 = vmatpush1.bf16.msra.mxu0 %v1617
  %2463 = vmatprep.subr.bf16.mxu0 %v1616
  %2464 = vmatpush1.bf16.msra.mxu0 %v1615
  %2465 = vmatprep.subr.bf16.mxu0 %v1614
  %2466 = vmatpush1.bf16.msra.mxu0 %v1613
  %2467 = vmatprep.subr.bf16.mxu0 %v1612
  %2468 = vmatpush1.bf16.msra.mxu0 %v1611
  %2469 = vmatprep.subr.bf16.mxu0 0
  %2470 = vmatpush2.bf16.msra.mxu0 0
  %2471 = vmatprep.subr.bf16.mxu0 0
  %2472 = vmatpush2.bf16.msra.mxu0 0
  %2473 = vmatprep.subr.bf16.mxu0 0
  %2474 = vmatpush2.bf16.msra.mxu0 0
  %2475 = vmatprep.subr.bf16.mxu0 0
  %2476 = vmatpush2.bf16.msra.mxu0 0
  %2477 = vmatprep.subr.bf16.mxu0 0
  %2478 = vmatpush2.bf16.msra.mxu0 0
  %2479 = vmatprep.subr.bf16.mxu0 0
  %2480 = vmatpush2.bf16.msra.mxu0 0
  %2481 = vmatprep.subr.bf16.mxu0 0
  %2482 = vmatpush2.bf16.msra.mxu0 0
  %2483 = vmatprep.subr.bf16.mxu0 0
  %2484 = vmatpush2.bf16.msra.mxu0 0
  %2485 = vmatprep.mubr.bf16.mxu0 0
  %2486 = vmatmul.mubr.bf16.gmra.mxu0 %v625
  %v2487 = vpop.f32.mrf.mxu0
  %v2488 = vadd.f32 %v2385, %v2487
  %v2489 = vpop.f32.mrf.mxu0
  %v2490 = vadd.f32 %v2387, %v2489
  %v2491 = vpop.f32.mrf.mxu0
  %v2492 = vadd.f32 %v2389, %v2491
  %v2493 = vpop.f32.mrf.mxu0
  %v2494 = vadd.f32 %v2391, %v2493
  %2495 = vmatprep.mubr.bf16.mxu0 0
  %2496 = vmatmul.mubr.bf16.gmra.mxu0 %v638
  %v2497 = vpop.f32.mrf.mxu0
  %v2498 = vadd.f32 %v2395, %v2497
  %v2499 = vpop.f32.mrf.mxu0
  %v2500 = vadd.f32 %v2397, %v2499
  %v2501 = vpop.f32.mrf.mxu0
  %v2502 = vadd.f32 %v2399, %v2501
  %v2503 = vpop.f32.mrf.mxu0
  %v2504 = vadd.f32 %v2401, %v2503
  %2505 = vmatprep.mubr.bf16.mxu0 0
  %2506 = vmatmul.mubr.bf16.gmra.mxu0 %v651
  %v2507 = vpop.f32.mrf.mxu0
  %v2508 = vadd.f32 %v2405, %v2507
  %v2509 = vpop.f32.mrf.mxu0
  %v2510 = vadd.f32 %v2407, %v2509
  %v2511 = vpop.f32.mrf.mxu0
  %v2512 = vadd.f32 %v2409, %v2511
  %v2513 = vpop.f32.mrf.mxu0
  %v2514 = vadd.f32 %v2411, %v2513
  %2515 = vmatprep.mubr.bf16.mxu0 0
  %2516 = vmatmul.mubr.bf16.gmra.mxu0 %v664
  %v2517 = vpop.f32.mrf.mxu0
  %v2518 = vadd.f32 %v2415, %v2517
  %v2519 = vpop.f32.mrf.mxu0
  %v2520 = vadd.f32 %v2417, %v2519
  %v2521 = vpop.f32.mrf.mxu0
  %v2522 = vadd.f32 %v2419, %v2521
  %v2523 = vpop.f32.mrf.mxu0
  %v2524 = vadd.f32 %v2421, %v2523
  %2525 = vmatprep.mubr.bf16.mxu0 0
  %2526 = vmatmul.mubr.bf16.gmra.mxu0 %v677
  %v2527 = vpop.f32.mrf.mxu0
  %v2528 = vadd.f32 %v2425, %v2527
  %v2529 = vpop.f32.mrf.mxu0
  %v2530 = vadd.f32 %v2427, %v2529
  %v2531 = vpop.f32.mrf.mxu0
  %v2532 = vadd.f32 %v2429, %v2531
  %v2533 = vpop.f32.mrf.mxu0
  %v2534 = vadd.f32 %v2431, %v2533
  %2535 = vmatprep.mubr.bf16.mxu0 0
  %2536 = vmatmul.mubr.bf16.gmra.mxu0 %v690
  %v2537 = vpop.f32.mrf.mxu0
  %v2538 = vadd.f32 %v2435, %v2537
  %v2539 = vpop.f32.mrf.mxu0
  %v2540 = vadd.f32 %v2437, %v2539
  %v2541 = vpop.f32.mrf.mxu0
  %v2542 = vadd.f32 %v2439, %v2541
  %v2543 = vpop.f32.mrf.mxu0
  %v2544 = vadd.f32 %v2441, %v2543
  %2545 = vmatprep.mubr.bf16.mxu0 0
  %2546 = vmatmul.mubr.bf16.gmra.mxu0 %v703
  %v2547 = vpop.f32.mrf.mxu0
  %v2548 = vadd.f32 %v2445, %v2547
  %v2549 = vpop.f32.mrf.mxu0
  %v2550 = vadd.f32 %v2447, %v2549
  %v2551 = vpop.f32.mrf.mxu0
  %v2552 = vadd.f32 %v2449, %v2551
  %v2553 = vpop.f32.mrf.mxu0
  %v2554 = vadd.f32 %v2451, %v2553
  %2555 = vdwg.mxu0
  %v2556 = vmax.f32 %v2488, 0.0
  %v2557 = vmax.f32 %v2490, 0.0
  %v2558 = vmax.f32 %v2492, 0.0
  %v2559 = vmax.f32 %v2494, 0.0
  %v2560 = vmax.f32 %v2498, 0.0
  %v2561 = vmax.f32 %v2500, 0.0
  %v2562 = vmax.f32 %v2502, 0.0
  %v2563 = vmax.f32 %v2504, 0.0
  %v2564 = vmax.f32 %v2508, 0.0
  %v2565 = vmax.f32 %v2510, 0.0
  %v2566 = vmax.f32 %v2512, 0.0
  %v2567 = vmax.f32 %v2514, 0.0
  %v2568 = vmax.f32 %v2518, 0.0
  %v2569 = vmax.f32 %v2520, 0.0
  %v2570 = vmax.f32 %v2522, 0.0
  %v2571 = vmax.f32 %v2524, 0.0
  %v2572 = vmax.f32 %v2528, 0.0
  %v2573 = vmax.f32 %v2530, 0.0
  %v2574 = vmax.f32 %v2532, 0.0
  %v2575 = vmax.f32 %v2534, 0.0
  %v2576 = vmax.f32 %v2538, 0.0
  %v2577 = vmax.f32 %v2540, 0.0
  %v2578 = vmax.f32 %v2542, 0.0
  %v2579 = vmax.f32 %v2544, 0.0
  %v2580 = vmax.f32 %v2548, 0.0
  %v2581 = vmax.f32 %v2550, 0.0
  %v2582 = vmax.f32 %v2552, 0.0
  %v2583 = vmax.f32 %v2554, 0.0
  %v2584 = vpack.c.bf16 %v2558, %v2556
  %v2585 = vpack.c.bf16 %v2559, %v2557
  %v2586 = vpack.c.bf16 %v2562, %v2560
  %v2587 = vpack.c.bf16 %v2563, %v2561
  %v2588 = vpack.c.bf16 %v2566, %v2564
  %v2589 = vpack.c.bf16 %v2567, %v2565
  %v2590 = vpack.c.bf16 %v2570, %v2568
  %v2591 = vpack.c.bf16 %v2571, %v2569
  %v2592 = vpack.c.bf16 %v2574, %v2572
  %v2593 = vpack.c.bf16 %v2575, %v2573
  %v2594 = vpack.c.bf16 %v2578, %v2576
  %v2595 = vpack.c.bf16 %v2579, %v2577
  %v2596 = vpack.c.bf16 %v2582, %v2580
  %v2597 = vpack.c.bf16 %v2583, %v2581
  %v2612 = vunpack.c.l.b16 %v2584
  %v2613 = vunpack.c.l.b16 %v2585
  %v2614 = vunpack.c.h.b16 %v2584
  %v2615 = vunpack.c.h.b16 %v2585
  %v2616 = vunpack.c.l.b16 %v2586
  %v2617 = vunpack.c.l.b16 %v2587
  %v2618 = vunpack.c.h.b16 %v2586
  %v2619 = vunpack.c.h.b16 %v2587
  %v2620 = vunpack.c.l.b16 %v2588
  %v2621 = vunpack.c.l.b16 %v2589
  %v2622 = vunpack.c.h.b16 %v2588
  %v2623 = vunpack.c.h.b16 %v2589
  %v2624 = vunpack.c.l.b16 %v2590
  %v2625 = vunpack.c.l.b16 %v2591
  %v2626 = vunpack.c.h.b16 %v2590
  %v2627 = vunpack.c.h.b16 %v2591
  %v2628 = vunpack.c.l.b16 %v2592
  %v2629 = vunpack.c.l.b16 %v2593
  %v2630 = vunpack.c.h.b16 %v2592
  %v2631 = vunpack.c.h.b16 %v2593
  %v2632 = vunpack.c.l.b16 %v2594
  %v2633 = vunpack.c.l.b16 %v2595
  %v2634 = vunpack.c.h.b16 %v2594
  %v2635 = vunpack.c.h.b16 %v2595
  %v2636 = vunpack.c.l.b16 %v2596
  %v2637 = vunpack.c.l.b16 %v2597
  %v2638 = vunpack.c.h.b16 %v2596
  %v2639 = vunpack.c.h.b16 %v2597
  %v2640 = vpack.c.b16 %v2613, %v2612
  %v2641 = vpack.c.b16 %v2615, %v2614
  %v2642 = vpack.c.b16 %v2617, %v2616
  %v2643 = vpack.c.b16 %v2619, %v2618
  %v2644 = vpack.c.b16 %v2621, %v2620
  %v2645 = vpack.c.b16 %v2623, %v2622
  %v2646 = vpack.c.b16 %v2625, %v2624
  %v2647 = vpack.c.b16 %v2627, %v2626
  %v2648 = vpack.c.b16 %v2629, %v2628
  %v2649 = vpack.c.b16 %v2631, %v2630
  %v2650 = vpack.c.b16 %v2633, %v2632
  %v2651 = vpack.c.b16 %v2635, %v2634
  %v2652 = vpack.c.b16 %v2637, %v2636
  %v2653 = vpack.c.b16 %v2639, %v2638
  %2668 = vst [vmem:[%s3] sm:$0xff] %v2640
  %2669 = vst [vmem:[%s3 + $0x8] sm:$0xff] %v2641
  %2670 = vst [vmem:[%s3 + $0x10] sm:$0xff] %v2642
  %2671 = vst [vmem:[%s3 + $0x18] sm:$0xff] %v2643
  %2672 = vst [vmem:[%s3 + $0x20] sm:$0xff] %v2644
  %2673 = vst [vmem:[%s3 + $0x28] sm:$0xff] %v2645
  %2674 = vst [vmem:[%s3 + $0x30] sm:$0xff] %v2646
  %2675 = vst [vmem:[%s3 + $0x38] sm:$0xff] %v2647
  %2676 = vst [vmem:[%s3 + $0x40] sm:$0xff] %v2648
  %2677 = vst [vmem:[%s3 + $0x48] sm:$0xff] %v2649
  %2678 = vst [vmem:[%s3 + $0x50] sm:$0xff] %v2650
  %2679 = vst [vmem:[%s3 + $0x58] sm:$0xff] %v2651
  %2680 = vst [vmem:[%s3 + $0x60] sm:$0xff] %v2652
  %2681 = vst [vmem:[%s3 + $0x68] sm:$0xff] %v2653
  // Predicated region
  $region14: #{alexnet_features.10} parent=0 // pred_check
    _
  $region15: #{alexnet_features.10} parent=0 // pred_check_branch
    %2683 = sbr.rel (0) target = $region17
  $region16: #{alexnet_features.10} parent=0 // pred_region
    _
  $region17: #{alexnet_features.10} parent=0 // pred_fallthru
    _
  // Predicated region
  $region18: #{alexnet_features.10} parent=0 // pred_check
    _
  $region19: #{alexnet_features.10} parent=0 // pred_check_branch
    %2685 = sbr.rel (0) target = $region21
  $region20: #{alexnet_features.10} parent=0 // pred_region
    _
  $region21: #{alexnet_features.10} parent=0 // pred_fallthru
    _

// kernel: alexnet_features.12
$region0: #{alexnet_features.12}
  #allocation0 [shape = 'u32[]', space=smem, size = 0x4, offset = 0x4, fixed_abs, tag = 'smem constant byte address 0x4 - core index']
  #allocation1 [shape = 'u32[144,128]{1,0:T(1,128)}', space=vmem, size = 0x12000, scoped, tag = 'internal scratch']
  %s0 = inlined_call_operand.vmem [shape: bf16[32,1792], index: 0, kind: input, shape index: {}]
  %s1 = inlined_call_operand.vmem [shape: bf16[1792,384], index: 1, kind: input, shape index: {}]
  %s2 = inlined_call_operand.vmem [shape: f32[1,384], index: 2, kind: input, shape index: {}]
  %s3 = inlined_call_operand.vmem [shape: bf16[32,384], index: 3, kind: output, shape index: {}]
  %s4 = sld [smem:[#allocation0]]
  $region22: #{alexnet_features.12} parent=0
    _
  %s6 = ssub.s32 1, %s4
  %s7 = scalar_select 0, %s6, %s4
  // Predicated region
  $region2: #{alexnet_features.12} parent=0 // pred_check
    _
  $region3: #{alexnet_features.12} parent=0 // pred_check_branch
    %9 = sbr.rel (0) target = $region5
  $region4: #{alexnet_features.12} parent=0 // pred_region
    _
  $region5: #{alexnet_features.12} parent=0 // pred_fallthru
    _
  // Predicated region
  $region6: #{alexnet_features.12} parent=0 // pred_check
    _
  $region7: #{alexnet_features.12} parent=0 // pred_check_branch
    %11 = sbr.rel (0) target = $region9
  $region8: #{alexnet_features.12} parent=0 // pred_region
    _
  $region9: #{alexnet_features.12} parent=0 // pred_fallthru
    _
  // Predicated region
  $region10: #{alexnet_features.12} parent=0 // pred_check
    _
  $region11: #{alexnet_features.12} parent=0 // pred_check_branch
    %13 = sbr.rel (0) target = $region13
  $region12: #{alexnet_features.12} parent=0 // pred_region
    _
  $region13: #{alexnet_features.12} parent=0 // pred_fallthru
    _
  %v15 = vld [vmem:[%s0] sm:$0xff]
  %v16 = vld [vmem:[%s0 + $0x8] sm:$0xff]
  %v17 = vld [vmem:[%s0 + $0x10] sm:$0xff]
  %v18 = vld [vmem:[%s0 + $0x18] sm:$0xff]
  %v19 = vld [vmem:[%s0 + $0x20] sm:$0xff]
  %v20 = vld [vmem:[%s0 + $0x28] sm:$0xff]
  %v21 = vld [vmem:[%s0 + $0x30] sm:$0xff]
  %v22 = vld [vmem:[%s0 + $0x38] sm:$0xff]
  %v23 = vld [vmem:[%s0 + $0x40] sm:$0xff]
  %v24 = vld [vmem:[%s0 + $0x48] sm:$0xff]
  %v25 = vld [vmem:[%s0 + $0x50] sm:$0xff]
  %v26 = vld [vmem:[%s0 + $0x58] sm:$0xff]
  %v27 = vld [vmem:[%s0 + $0x60] sm:$0xff]
  %v28 = vld [vmem:[%s0 + $0x68] sm:$0xff]
  %v29 = vld [vmem:[%s0 + $0x70] sm:$0xff]
  %v30 = vld [vmem:[%s0 + $0x78] sm:$0xff]
  %v31 = vld [vmem:[%s0 + $0x80] sm:$0xff]
  %v32 = vld [vmem:[%s0 + $0x88] sm:$0xff]
  %v33 = vld [vmem:[%s0 + $0x90] sm:$0xff]
  %v34 = vld [vmem:[%s0 + $0x98] sm:$0xff]
  %v35 = vld [vmem:[%s0 + $0xa0] sm:$0xff]
  %v36 = vld [vmem:[%s0 + $0xa8] sm:$0xff]
  %v37 = vld [vmem:[%s0 + $0xb0] sm:$0xff]
  %v38 = vld [vmem:[%s0 + $0xb8] sm:$0xff]
  %v39 = vld [vmem:[%s0 + $0xc0] sm:$0xff]
  %v40 = vld [vmem:[%s0 + $0xc8] sm:$0xff]
  %v41 = vld [vmem:[%s0 + $0xd0] sm:$0xff]
  %v42 = vld [vmem:[%s0 + $0xd8] sm:$0xff]
  %v43 = vld [vmem:[%s1] sm:$0xff]
  %v44 = vld [vmem:[%s1 + $0x8] sm:$0xf]
  %v45 = vld [vmem:[%s1 + $0xc] sm:$0xff]
  %v46 = vld [vmem:[%s1 + $0x14] sm:$0xf]
  %v47 = vld [vmem:[%s1 + $0x18] sm:$0xff]
  %v48 = vld [vmem:[%s1 + $0x20] sm:$0xf]
  %v49 = vld [vmem:[%s1 + $0x24] sm:$0xff]
  %v50 = vld [vmem:[%s1 + $0x2c] sm:$0xf]
  %v51 = vld [vmem:[%s1 + $0x30] sm:$0xff]
  %v52 = vld [vmem:[%s1 + $0x38] sm:$0xf]
  %v53 = vld [vmem:[%s1 + $0x3c] sm:$0xff]
  %v54 = vld [vmem:[%s1 + $0x44] sm:$0xf]
  %v55 = vld [vmem:[%s1 + $0x48] sm:$0xff]
  %v56 = vld [vmem:[%s1 + $0x50] sm:$0xf]
  %v57 = vld [vmem:[%s1 + $0x54] sm:$0xff]
  %v58 = vld [vmem:[%s1 + $0x5c] sm:$0xf]
  %v59 = vld [vmem:[%s1 + $0x60] sm:$0xff]
  %v60 = vld [vmem:[%s1 + $0x68] sm:$0xf]
  %v61 = vld [vmem:[%s1 + $0x6c] sm:$0xff]
  %v62 = vld [vmem:[%s1 + $0x74] sm:$0xf]
  %v63 = vld [vmem:[%s1 + $0x78] sm:$0xff]
  %v64 = vld [vmem:[%s1 + $0x80] sm:$0xf]
  %v65 = vld [vmem:[%s1 + $0x84] sm:$0xff]
  %v66 = vld [vmem:[%s1 + $0x8c] sm:$0xf]
  %v67 = vld [vmem:[%s1 + $0x90] sm:$0xff]
  %v68 = vld [vmem:[%s1 + $0x98] sm:$0xf]
  %v69 = vld [vmem:[%s1 + $0x9c] sm:$0xff]
  %v70 = vld [vmem:[%s1 + $0xa4] sm:$0xf]
  %v71 = vld [vmem:[%s1 + $0xa8] sm:$0xff]
  %v72 = vld [vmem:[%s1 + $0xb0] sm:$0xf]
  %v73 = vld [vmem:[%s1 + $0xb4] sm:$0xff]
  %v74 = vld [vmem:[%s1 + $0xbc] sm:$0xf]
  %v75 = vld [vmem:[%s1 + $0xc0] sm:$0xff]
  %v76 = vld [vmem:[%s1 + $0xc8] sm:$0xf]
  %v77 = vld [vmem:[%s1 + $0xcc] sm:$0xff]
  %v78 = vld [vmem:[%s1 + $0xd4] sm:$0xf]
  %v79 = vld [vmem:[%s1 + $0xd8] sm:$0xff]
  %v80 = vld [vmem:[%s1 + $0xe0] sm:$0xf]
  %v81 = vld [vmem:[%s1 + $0xe4] sm:$0xff]
  %v82 = vld [vmem:[%s1 + $0xec] sm:$0xf]
  %v83 = vld [vmem:[%s1 + $0xf0] sm:$0xff]
  %v84 = vld [vmem:[%s1 + $0xf8] sm:$0xf]
  %v85 = vld [vmem:[%s1 + $0xfc] sm:$0xff]
  %v86 = vld [vmem:[%s1 + $0x104] sm:$0xf]
  %v87 = vld [vmem:[%s1 + $0x108] sm:$0xff]
  %v88 = vld [vmem:[%s1 + $0x110] sm:$0xf]
  %v89 = vld [vmem:[%s1 + $0x114] sm:$0xff]
  %v90 = vld [vmem:[%s1 + $0x11c] sm:$0xf]
  %v91 = vld [vmem:[%s1 + $0x120] sm:$0xff]
  %v92 = vld [vmem:[%s1 + $0x128] sm:$0xf]
  %v93 = vld [vmem:[%s1 + $0x12c] sm:$0xff]
  %v94 = vld [vmem:[%s1 + $0x134] sm:$0xf]
  %v95 = vld [vmem:[%s1 + $0x138] sm:$0xff]
  %v96 = vld [vmem:[%s1 + $0x140] sm:$0xf]
  %v97 = vld [vmem:[%s1 + $0x144] sm:$0xff]
  %v98 = vld [vmem:[%s1 + $0x14c] sm:$0xf]
  %v99 = vld [vmem:[%s1 + $0x150] sm:$0xff]
  %v100 = vld [vmem:[%s1 + $0x158] sm:$0xf]
  %v101 = vld [vmem:[%s1 + $0x15c] sm:$0xff]
  %v102 = vld [vmem:[%s1 + $0x164] sm:$0xf]
  %v103 = vld [vmem:[%s1 + $0x168] sm:$0xff]
  %v104 = vld [vmem:[%s1 + $0x170] sm:$0xf]
  %v105 = vld [vmem:[%s1 + $0x174] sm:$0xff]
  %v106 = vld [vmem:[%s1 + $0x17c] sm:$0xf]
  %v107 = vld [vmem:[%s1 + $0x180] sm:$0xff]
  %v108 = vld [vmem:[%s1 + $0x188] sm:$0xf]
  %v109 = vld [vmem:[%s1 + $0x18c] sm:$0xff]
  %v110 = vld [vmem:[%s1 + $0x194] sm:$0xf]
  %v111 = vld [vmem:[%s1 + $0x198] sm:$0xff]
  %v112 = vld [vmem:[%s1 + $0x1a0] sm:$0xf]
  %v113 = vld [vmem:[%s1 + $0x1a4] sm:$0xff]
  %v114 = vld [vmem:[%s1 + $0x1ac] sm:$0xf]
  %v115 = vld [vmem:[%s1 + $0x1b0] sm:$0xff]
  %v116 = vld [vmem:[%s1 + $0x1b8] sm:$0xf]
  %v117 = vld [vmem:[%s1 + $0x1bc] sm:$0xff]
  %v118 = vld [vmem:[%s1 + $0x1c4] sm:$0xf]
  %v119 = vld [vmem:[%s1 + $0x1c8] sm:$0xff]
  %v120 = vld [vmem:[%s1 + $0x1d0] sm:$0xf]
  %v121 = vld [vmem:[%s1 + $0x1d4] sm:$0xff]
  %v122 = vld [vmem:[%s1 + $0x1dc] sm:$0xf]
  %v123 = vld [vmem:[%s1 + $0x1e0] sm:$0xff]
  %v124 = vld [vmem:[%s1 + $0x1e8] sm:$0xf]
  %v125 = vld [vmem:[%s1 + $0x1ec] sm:$0xff]
  %v126 = vld [vmem:[%s1 + $0x1f4] sm:$0xf]
  %v127 = vld [vmem:[%s1 + $0x1f8] sm:$0xff]
  %v128 = vld [vmem:[%s1 + $0x200] sm:$0xf]
  %v129 = vld [vmem:[%s1 + $0x204] sm:$0xff]
  %v130 = vld [vmem:[%s1 + $0x20c] sm:$0xf]
  %v131 = vld [vmem:[%s1 + $0x210] sm:$0xff]
  %v132 = vld [vmem:[%s1 + $0x218] sm:$0xf]
  %v133 = vld [vmem:[%s1 + $0x21c] sm:$0xff]
  %v134 = vld [vmem:[%s1 + $0x224] sm:$0xf]
  %v135 = vld [vmem:[%s1 + $0x228] sm:$0xff]
  %v136 = vld [vmem:[%s1 + $0x230] sm:$0xf]
  %v137 = vld [vmem:[%s1 + $0x234] sm:$0xff]
  %v138 = vld [vmem:[%s1 + $0x23c] sm:$0xf]
  %v139 = vld [vmem:[%s1 + $0x240] sm:$0xff]
  %v140 = vld [vmem:[%s1 + $0x248] sm:$0xf]
  %v141 = vld [vmem:[%s1 + $0x24c] sm:$0xff]
  %v142 = vld [vmem:[%s1 + $0x254] sm:$0xf]
  %v143 = vld [vmem:[%s1 + $0x258] sm:$0xff]
  %v144 = vld [vmem:[%s1 + $0x260] sm:$0xf]
  %v145 = vld [vmem:[%s1 + $0x264] sm:$0xff]
  %v146 = vld [vmem:[%s1 + $0x26c] sm:$0xf]
  %v147 = vld [vmem:[%s1 + $0x270] sm:$0xff]
  %v148 = vld [vmem:[%s1 + $0x278] sm:$0xf]
  %v149 = vld [vmem:[%s1 + $0x27c] sm:$0xff]
  %v150 = vld [vmem:[%s1 + $0x284] sm:$0xf]
  %v151 = vld [vmem:[%s1 + $0x288] sm:$0xff]
  %v152 = vld [vmem:[%s1 + $0x290] sm:$0xf]
  %v153 = vld [vmem:[%s1 + $0x294] sm:$0xff]
  %v154 = vld [vmem:[%s1 + $0x29c] sm:$0xf]
  %v155 = vld [vmem:[%s1 + $0x2a0] sm:$0xff]
  %v156 = vld [vmem:[%s1 + $0x2a8] sm:$0xf]
  %v157 = vld [vmem:[%s1 + $0x2ac] sm:$0xff]
  %v158 = vld [vmem:[%s1 + $0x2b4] sm:$0xf]
  %v159 = vld [vmem:[%s1 + $0x2b8] sm:$0xff]
  %v160 = vld [vmem:[%s1 + $0x2c0] sm:$0xf]
  %v161 = vld [vmem:[%s1 + $0x2c4] sm:$0xff]
  %v162 = vld [vmem:[%s1 + $0x2cc] sm:$0xf]
  %v163 = vld [vmem:[%s1 + $0x2d0] sm:$0xff]
  %v164 = vld [vmem:[%s1 + $0x2d8] sm:$0xf]
  %v165 = vld [vmem:[%s1 + $0x2dc] sm:$0xff]
  %v166 = vld [vmem:[%s1 + $0x2e4] sm:$0xf]
  %v167 = vld [vmem:[%s1 + $0x2e8] sm:$0xff]
  %v168 = vld [vmem:[%s1 + $0x2f0] sm:$0xf]
  %v169 = vld [vmem:[%s1 + $0x2f4] sm:$0xff]
  %v170 = vld [vmem:[%s1 + $0x2fc] sm:$0xf]
  %v171 = vld [vmem:[%s1 + $0x300] sm:$0xff]
  %v172 = vld [vmem:[%s1 + $0x308] sm:$0xf]
  %v173 = vld [vmem:[%s1 + $0x30c] sm:$0xff]
  %v174 = vld [vmem:[%s1 + $0x314] sm:$0xf]
  %v175 = vld [vmem:[%s1 + $0x318] sm:$0xff]
  %v176 = vld [vmem:[%s1 + $0x320] sm:$0xf]
  %v177 = vld [vmem:[%s1 + $0x324] sm:$0xff]
  %v178 = vld [vmem:[%s1 + $0x32c] sm:$0xf]
  %v179 = vld [vmem:[%s1 + $0x330] sm:$0xff]
  %v180 = vld [vmem:[%s1 + $0x338] sm:$0xf]
  %v181 = vld [vmem:[%s1 + $0x33c] sm:$0xff]
  %v182 = vld [vmem:[%s1 + $0x344] sm:$0xf]
  %v183 = vld [vmem:[%s1 + $0x348] sm:$0xff]
  %v184 = vld [vmem:[%s1 + $0x350] sm:$0xf]
  %v185 = vld [vmem:[%s1 + $0x354] sm:$0xff]
  %v186 = vld [vmem:[%s1 + $0x35c] sm:$0xf]
  %v187 = vld [vmem:[%s1 + $0x360] sm:$0xff]
  %v188 = vld [vmem:[%s1 + $0x368] sm:$0xf]
  %v189 = vld [vmem:[%s1 + $0x36c] sm:$0xff]
  %v190 = vld [vmem:[%s1 + $0x374] sm:$0xf]
  %v191 = vld [vmem:[%s1 + $0x378] sm:$0xff]
  %v192 = vld [vmem:[%s1 + $0x380] sm:$0xf]
  %v193 = vld [vmem:[%s1 + $0x384] sm:$0xff]
  %v194 = vld [vmem:[%s1 + $0x38c] sm:$0xf]
  %v195 = vld [vmem:[%s1 + $0x390] sm:$0xff]
  %v196 = vld [vmem:[%s1 + $0x398] sm:$0xf]
  %v197 = vld [vmem:[%s1 + $0x39c] sm:$0xff]
  %v198 = vld [vmem:[%s1 + $0x3a4] sm:$0xf]
  %v199 = vld [vmem:[%s1 + $0x3a8] sm:$0xff]
  %v200 = vld [vmem:[%s1 + $0x3b0] sm:$0xf]
  %v201 = vld [vmem:[%s1 + $0x3b4] sm:$0xff]
  %v202 = vld [vmem:[%s1 + $0x3bc] sm:$0xf]
  %v203 = vld [vmem:[%s1 + $0x3c0] sm:$0xff]
  %v204 = vld [vmem:[%s1 + $0x3c8] sm:$0xf]
  %v205 = vld [vmem:[%s1 + $0x3cc] sm:$0xff]
  %v206 = vld [vmem:[%s1 + $0x3d4] sm:$0xf]
  %v207 = vld [vmem:[%s1 + $0x3d8] sm:$0xff]
  %v208 = vld [vmem:[%s1 + $0x3e0] sm:$0xf]
  %v209 = vld [vmem:[%s1 + $0x3e4] sm:$0xff]
  %v210 = vld [vmem:[%s1 + $0x3ec] sm:$0xf]
  %v211 = vld [vmem:[%s1 + $0x3f0] sm:$0xff]
  %v212 = vld [vmem:[%s1 + $0x3f8] sm:$0xf]
  %v213 = vld [vmem:[%s1 + $0x3fc] sm:$0xff]
  %v214 = vld [vmem:[%s1 + $0x404] sm:$0xf]
  %v215 = vld [vmem:[%s1 + $0x408] sm:$0xff]
  %v216 = vld [vmem:[%s1 + $0x410] sm:$0xf]
  %v217 = vld [vmem:[%s1 + $0x414] sm:$0xff]
  %v218 = vld [vmem:[%s1 + $0x41c] sm:$0xf]
  %v219 = vld [vmem:[%s1 + $0x420] sm:$0xff]
  %v220 = vld [vmem:[%s1 + $0x428] sm:$0xf]
  %v221 = vld [vmem:[%s1 + $0x42c] sm:$0xff]
  %v222 = vld [vmem:[%s1 + $0x434] sm:$0xf]
  %v223 = vld [vmem:[%s1 + $0x438] sm:$0xff]
  %v224 = vld [vmem:[%s1 + $0x440] sm:$0xf]
  %v225 = vld [vmem:[%s1 + $0x444] sm:$0xff]
  %v226 = vld [vmem:[%s1 + $0x44c] sm:$0xf]
  %v227 = vld [vmem:[%s1 + $0x450] sm:$0xff]
  %v228 = vld [vmem:[%s1 + $0x458] sm:$0xf]
  %v229 = vld [vmem:[%s1 + $0x45c] sm:$0xff]
  %v230 = vld [vmem:[%s1 + $0x464] sm:$0xf]
  %v231 = vld [vmem:[%s1 + $0x468] sm:$0xff]
  %v232 = vld [vmem:[%s1 + $0x470] sm:$0xf]
  %v233 = vld [vmem:[%s1 + $0x474] sm:$0xff]
  %v234 = vld [vmem:[%s1 + $0x47c] sm:$0xf]
  %v235 = vld [vmem:[%s1 + $0x480] sm:$0xff]
  %v236 = vld [vmem:[%s1 + $0x488] sm:$0xf]
  %v237 = vld [vmem:[%s1 + $0x48c] sm:$0xff]
  %v238 = vld [vmem:[%s1 + $0x494] sm:$0xf]
  %v239 = vld [vmem:[%s1 + $0x498] sm:$0xff]
  %v240 = vld [vmem:[%s1 + $0x4a0] sm:$0xf]
  %v241 = vld [vmem:[%s1 + $0x4a4] sm:$0xff]
  %v242 = vld [vmem:[%s1 + $0x4ac] sm:$0xf]
  %v243 = vld [vmem:[%s1 + $0x4b0] sm:$0xff]
  %v244 = vld [vmem:[%s1 + $0x4b8] sm:$0xf]
  %v245 = vld [vmem:[%s1 + $0x4bc] sm:$0xff]
  %v246 = vld [vmem:[%s1 + $0x4c4] sm:$0xf]
  %v247 = vld [vmem:[%s1 + $0x4c8] sm:$0xff]
  %v248 = vld [vmem:[%s1 + $0x4d0] sm:$0xf]
  %v249 = vld [vmem:[%s1 + $0x4d4] sm:$0xff]
  %v250 = vld [vmem:[%s1 + $0x4dc] sm:$0xf]
  %v251 = vld [vmem:[%s1 + $0x4e0] sm:$0xff]
  %v252 = vld [vmem:[%s1 + $0x4e8] sm:$0xf]
  %v253 = vld [vmem:[%s1 + $0x4ec] sm:$0xff]
  %v254 = vld [vmem:[%s1 + $0x4f4] sm:$0xf]
  %v255 = vld [vmem:[%s1 + $0x4f8] sm:$0xff]
  %v256 = vld [vmem:[%s1 + $0x500] sm:$0xf]
  %v257 = vld [vmem:[%s1 + $0x504] sm:$0xff]
  %v258 = vld [vmem:[%s1 + $0x50c] sm:$0xf]
  %v259 = vld [vmem:[%s1 + $0x510] sm:$0xff]
  %v260 = vld [vmem:[%s1 + $0x518] sm:$0xf]
  %v261 = vld [vmem:[%s1 + $0x51c] sm:$0xff]
  %v262 = vld [vmem:[%s1 + $0x524] sm:$0xf]
  %v263 = vld [vmem:[%s1 + $0x528] sm:$0xff]
  %v264 = vld [vmem:[%s1 + $0x530] sm:$0xf]
  %v265 = vld [vmem:[%s1 + $0x534] sm:$0xff]
  %v266 = vld [vmem:[%s1 + $0x53c] sm:$0xf]
  %v267 = vld [vmem:[%s1 + $0x540] sm:$0xff]
  %v268 = vld [vmem:[%s1 + $0x548] sm:$0xf]
  %v269 = vld [vmem:[%s1 + $0x54c] sm:$0xff]
  %v270 = vld [vmem:[%s1 + $0x554] sm:$0xf]
  %v271 = vld [vmem:[%s1 + $0x558] sm:$0xff]
  %v272 = vld [vmem:[%s1 + $0x560] sm:$0xf]
  %v273 = vld [vmem:[%s1 + $0x564] sm:$0xff]
  %v274 = vld [vmem:[%s1 + $0x56c] sm:$0xf]
  %v275 = vld [vmem:[%s1 + $0x570] sm:$0xff]
  %v276 = vld [vmem:[%s1 + $0x578] sm:$0xf]
  %v277 = vld [vmem:[%s1 + $0x57c] sm:$0xff]
  %v278 = vld [vmem:[%s1 + $0x584] sm:$0xf]
  %v279 = vld [vmem:[%s1 + $0x588] sm:$0xff]
  %v280 = vld [vmem:[%s1 + $0x590] sm:$0xf]
  %v281 = vld [vmem:[%s1 + $0x594] sm:$0xff]
  %v282 = vld [vmem:[%s1 + $0x59c] sm:$0xf]
  %v283 = vld [vmem:[%s1 + $0x5a0] sm:$0xff]
  %v284 = vld [vmem:[%s1 + $0x5a8] sm:$0xf]
  %v285 = vld [vmem:[%s1 + $0x5ac] sm:$0xff]
  %v286 = vld [vmem:[%s1 + $0x5b4] sm:$0xf]
  %v287 = vld [vmem:[%s1 + $0x5b8] sm:$0xff]
  %v288 = vld [vmem:[%s1 + $0x5c0] sm:$0xf]
  %v289 = vld [vmem:[%s1 + $0x5c4] sm:$0xff]
  %v290 = vld [vmem:[%s1 + $0x5cc] sm:$0xf]
  %v291 = vld [vmem:[%s1 + $0x5d0] sm:$0xff]
  %v292 = vld [vmem:[%s1 + $0x5d8] sm:$0xf]
  %v293 = vld [vmem:[%s1 + $0x5dc] sm:$0xff]
  %v294 = vld [vmem:[%s1 + $0x5e4] sm:$0xf]
  %v295 = vld [vmem:[%s1 + $0x5e8] sm:$0xff]
  %v296 = vld [vmem:[%s1 + $0x5f0] sm:$0xf]
  %v297 = vld [vmem:[%s1 + $0x5f4] sm:$0xff]
  %v298 = vld [vmem:[%s1 + $0x5fc] sm:$0xf]
  %v299 = vld [vmem:[%s1 + $0x600] sm:$0xff]
  %v300 = vld [vmem:[%s1 + $0x608] sm:$0xf]
  %v301 = vld [vmem:[%s1 + $0x60c] sm:$0xff]
  %v302 = vld [vmem:[%s1 + $0x614] sm:$0xf]
  %v303 = vld [vmem:[%s1 + $0x618] sm:$0xff]
  %v304 = vld [vmem:[%s1 + $0x620] sm:$0xf]
  %v305 = vld [vmem:[%s1 + $0x624] sm:$0xff]
  %v306 = vld [vmem:[%s1 + $0x62c] sm:$0xf]
  %v307 = vld [vmem:[%s1 + $0x630] sm:$0xff]
  %v308 = vld [vmem:[%s1 + $0x638] sm:$0xf]
  %v309 = vld [vmem:[%s1 + $0x63c] sm:$0xff]
  %v310 = vld [vmem:[%s1 + $0x644] sm:$0xf]
  %v311 = vld [vmem:[%s1 + $0x648] sm:$0xff]
  %v312 = vld [vmem:[%s1 + $0x650] sm:$0xf]
  %v313 = vld [vmem:[%s1 + $0x654] sm:$0xff]
  %v314 = vld [vmem:[%s1 + $0x65c] sm:$0xf]
  %v315 = vld [vmem:[%s1 + $0x660] sm:$0xff]
  %v316 = vld [vmem:[%s1 + $0x668] sm:$0xf]
  %v317 = vld [vmem:[%s1 + $0x66c] sm:$0xff]
  %v318 = vld [vmem:[%s1 + $0x674] sm:$0xf]
  %v319 = vld [vmem:[%s1 + $0x678] sm:$0xff]
  %v320 = vld [vmem:[%s1 + $0x680] sm:$0xf]
  %v321 = vld [vmem:[%s1 + $0x684] sm:$0xff]
  %v322 = vld [vmem:[%s1 + $0x68c] sm:$0xf]
  %v323 = vld [vmem:[%s1 + $0x690] sm:$0xff]
  %v324 = vld [vmem:[%s1 + $0x698] sm:$0xf]
  %v325 = vld [vmem:[%s1 + $0x69c] sm:$0xff]
  %v326 = vld [vmem:[%s1 + $0x6a4] sm:$0xf]
  %v327 = vld [vmem:[%s1 + $0x6a8] sm:$0xff]
  %v328 = vld [vmem:[%s1 + $0x6b0] sm:$0xf]
  %v329 = vld [vmem:[%s1 + $0x6b4] sm:$0xff]
  %v330 = vld [vmem:[%s1 + $0x6bc] sm:$0xf]
  %v331 = vld [vmem:[%s1 + $0x6c0] sm:$0xff]
  %v332 = vld [vmem:[%s1 + $0x6c8] sm:$0xf]
  %v333 = vld [vmem:[%s1 + $0x6cc] sm:$0xff]
  %v334 = vld [vmem:[%s1 + $0x6d4] sm:$0xf]
  %v335 = vld [vmem:[%s1 + $0x6d8] sm:$0xff]
  %v336 = vld [vmem:[%s1 + $0x6e0] sm:$0xf]
  %v337 = vld [vmem:[%s1 + $0x6e4] sm:$0xff]
  %v338 = vld [vmem:[%s1 + $0x6ec] sm:$0xf]
  %v339 = vld [vmem:[%s1 + $0x6f0] sm:$0xff]
  %v340 = vld [vmem:[%s1 + $0x6f8] sm:$0xf]
  %v341 = vld [vmem:[%s1 + $0x6fc] sm:$0xff]
  %v342 = vld [vmem:[%s1 + $0x704] sm:$0xf]
  %v343 = vld [vmem:[%s1 + $0x708] sm:$0xff]
  %v344 = vld [vmem:[%s1 + $0x710] sm:$0xf]
  %v345 = vld [vmem:[%s1 + $0x714] sm:$0xff]
  %v346 = vld [vmem:[%s1 + $0x71c] sm:$0xf]
  %v347 = vld [vmem:[%s1 + $0x720] sm:$0xff]
  %v348 = vld [vmem:[%s1 + $0x728] sm:$0xf]
  %v349 = vld [vmem:[%s1 + $0x72c] sm:$0xff]
  %v350 = vld [vmem:[%s1 + $0x734] sm:$0xf]
  %v351 = vld [vmem:[%s1 + $0x738] sm:$0xff]
  %v352 = vld [vmem:[%s1 + $0x740] sm:$0xf]
  %v353 = vld [vmem:[%s1 + $0x744] sm:$0xff]
  %v354 = vld [vmem:[%s1 + $0x74c] sm:$0xf]
  %v355 = vld [vmem:[%s1 + $0x750] sm:$0xff]
  %v356 = vld [vmem:[%s1 + $0x758] sm:$0xf]
  %v357 = vld [vmem:[%s1 + $0x75c] sm:$0xff]
  %v358 = vld [vmem:[%s1 + $0x764] sm:$0xf]
  %v359 = vld [vmem:[%s1 + $0x768] sm:$0xff]
  %v360 = vld [vmem:[%s1 + $0x770] sm:$0xf]
  %v361 = vld [vmem:[%s1 + $0x774] sm:$0xff]
  %v362 = vld [vmem:[%s1 + $0x77c] sm:$0xf]
  %v363 = vld [vmem:[%s1 + $0x780] sm:$0xff]
  %v364 = vld [vmem:[%s1 + $0x788] sm:$0xf]
  %v365 = vld [vmem:[%s1 + $0x78c] sm:$0xff]
  %v366 = vld [vmem:[%s1 + $0x794] sm:$0xf]
  %v367 = vld [vmem:[%s1 + $0x798] sm:$0xff]
  %v368 = vld [vmem:[%s1 + $0x7a0] sm:$0xf]
  %v369 = vld [vmem:[%s1 + $0x7a4] sm:$0xff]
  %v370 = vld [vmem:[%s1 + $0x7ac] sm:$0xf]
  %v371 = vld [vmem:[%s1 + $0x7b0] sm:$0xff]
  %v372 = vld [vmem:[%s1 + $0x7b8] sm:$0xf]
  %v373 = vld [vmem:[%s1 + $0x7bc] sm:$0xff]
  %v374 = vld [vmem:[%s1 + $0x7c4] sm:$0xf]
  %v375 = vld [vmem:[%s1 + $0x7c8] sm:$0xff]
  %v376 = vld [vmem:[%s1 + $0x7d0] sm:$0xf]
  %v377 = vld [vmem:[%s1 + $0x7d4] sm:$0xff]
  %v378 = vld [vmem:[%s1 + $0x7dc] sm:$0xf]
  %v379 = vld [vmem:[%s1 + $0x7e0] sm:$0xff]
  %v380 = vld [vmem:[%s1 + $0x7e8] sm:$0xf]
  %v381 = vld [vmem:[%s1 + $0x7ec] sm:$0xff]
  %v382 = vld [vmem:[%s1 + $0x7f4] sm:$0xf]
  %v383 = vld [vmem:[%s1 + $0x7f8] sm:$0xff]
  %v384 = vld [vmem:[%s1 + $0x800] sm:$0xf]
  %v385 = vld [vmem:[%s1 + $0x804] sm:$0xff]
  %v386 = vld [vmem:[%s1 + $0x80c] sm:$0xf]
  %v387 = vld [vmem:[%s1 + $0x810] sm:$0xff]
  %v388 = vld [vmem:[%s1 + $0x818] sm:$0xf]
  %v389 = vld [vmem:[%s1 + $0x81c] sm:$0xff]
  %v390 = vld [vmem:[%s1 + $0x824] sm:$0xf]
  %v391 = vld [vmem:[%s1 + $0x828] sm:$0xff]
  %v392 = vld [vmem:[%s1 + $0x830] sm:$0xf]
  %v393 = vld [vmem:[%s1 + $0x834] sm:$0xff]
  %v394 = vld [vmem:[%s1 + $0x83c] sm:$0xf]
  %v395 = vld [vmem:[%s1 + $0x840] sm:$0xff]
  %v396 = vld [vmem:[%s1 + $0x848] sm:$0xf]
  %v397 = vld [vmem:[%s1 + $0x84c] sm:$0xff]
  %v398 = vld [vmem:[%s1 + $0x854] sm:$0xf]
  %v399 = vld [vmem:[%s1 + $0x858] sm:$0xff]
  %v400 = vld [vmem:[%s1 + $0x860] sm:$0xf]
  %v401 = vld [vmem:[%s1 + $0x864] sm:$0xff]
  %v402 = vld [vmem:[%s1 + $0x86c] sm:$0xf]
  %v403 = vld [vmem:[%s1 + $0x870] sm:$0xff]
  %v404 = vld [vmem:[%s1 + $0x878] sm:$0xf]
  %v405 = vld [vmem:[%s1 + $0x87c] sm:$0xff]
  %v406 = vld [vmem:[%s1 + $0x884] sm:$0xf]
  %v407 = vld [vmem:[%s1 + $0x888] sm:$0xff]
  %v408 = vld [vmem:[%s1 + $0x890] sm:$0xf]
  %v409 = vld [vmem:[%s1 + $0x894] sm:$0xff]
  %v410 = vld [vmem:[%s1 + $0x89c] sm:$0xf]
  %v411 = vld [vmem:[%s1 + $0x8a0] sm:$0xff]
  %v412 = vld [vmem:[%s1 + $0x8a8] sm:$0xf]
  %v413 = vld [vmem:[%s1 + $0x8ac] sm:$0xff]
  %v414 = vld [vmem:[%s1 + $0x8b4] sm:$0xf]
  %v415 = vld [vmem:[%s1 + $0x8b8] sm:$0xff]
  %v416 = vld [vmem:[%s1 + $0x8c0] sm:$0xf]
  %v417 = vld [vmem:[%s1 + $0x8c4] sm:$0xff]
  %v418 = vld [vmem:[%s1 + $0x8cc] sm:$0xf]
  %v419 = vld [vmem:[%s1 + $0x8d0] sm:$0xff]
  %v420 = vld [vmem:[%s1 + $0x8d8] sm:$0xf]
  %v421 = vld [vmem:[%s1 + $0x8dc] sm:$0xff]
  %v422 = vld [vmem:[%s1 + $0x8e4] sm:$0xf]
  %v423 = vld [vmem:[%s1 + $0x8e8] sm:$0xff]
  %v424 = vld [vmem:[%s1 + $0x8f0] sm:$0xf]
  %v425 = vld [vmem:[%s1 + $0x8f4] sm:$0xff]
  %v426 = vld [vmem:[%s1 + $0x8fc] sm:$0xf]
  %v427 = vld [vmem:[%s1 + $0x900] sm:$0xff]
  %v428 = vld [vmem:[%s1 + $0x908] sm:$0xf]
  %v429 = vld [vmem:[%s1 + $0x90c] sm:$0xff]
  %v430 = vld [vmem:[%s1 + $0x914] sm:$0xf]
  %v431 = vld [vmem:[%s1 + $0x918] sm:$0xff]
  %v432 = vld [vmem:[%s1 + $0x920] sm:$0xf]
  %v433 = vld [vmem:[%s1 + $0x924] sm:$0xff]
  %v434 = vld [vmem:[%s1 + $0x92c] sm:$0xf]
  %v435 = vld [vmem:[%s1 + $0x930] sm:$0xff]
  %v436 = vld [vmem:[%s1 + $0x938] sm:$0xf]
  %v437 = vld [vmem:[%s1 + $0x93c] sm:$0xff]
  %v438 = vld [vmem:[%s1 + $0x944] sm:$0xf]
  %v439 = vld [vmem:[%s1 + $0x948] sm:$0xff]
  %v440 = vld [vmem:[%s1 + $0x950] sm:$0xf]
  %v441 = vld [vmem:[%s1 + $0x954] sm:$0xff]
  %v442 = vld [vmem:[%s1 + $0x95c] sm:$0xf]
  %v443 = vld [vmem:[%s1 + $0x960] sm:$0xff]
  %v444 = vld [vmem:[%s1 + $0x968] sm:$0xf]
  %v445 = vld [vmem:[%s1 + $0x96c] sm:$0xff]
  %v446 = vld [vmem:[%s1 + $0x974] sm:$0xf]
  %v447 = vld [vmem:[%s1 + $0x978] sm:$0xff]
  %v448 = vld [vmem:[%s1 + $0x980] sm:$0xf]
  %v449 = vld [vmem:[%s1 + $0x984] sm:$0xff]
  %v450 = vld [vmem:[%s1 + $0x98c] sm:$0xf]
  %v451 = vld [vmem:[%s1 + $0x990] sm:$0xff]
  %v452 = vld [vmem:[%s1 + $0x998] sm:$0xf]
  %v453 = vld [vmem:[%s1 + $0x99c] sm:$0xff]
  %v454 = vld [vmem:[%s1 + $0x9a4] sm:$0xf]
  %v455 = vld [vmem:[%s1 + $0x9a8] sm:$0xff]
  %v456 = vld [vmem:[%s1 + $0x9b0] sm:$0xf]
  %v457 = vld [vmem:[%s1 + $0x9b4] sm:$0xff]
  %v458 = vld [vmem:[%s1 + $0x9bc] sm:$0xf]
  %v459 = vld [vmem:[%s1 + $0x9c0] sm:$0xff]
  %v460 = vld [vmem:[%s1 + $0x9c8] sm:$0xf]
  %v461 = vld [vmem:[%s1 + $0x9cc] sm:$0xff]
  %v462 = vld [vmem:[%s1 + $0x9d4] sm:$0xf]
  %v463 = vld [vmem:[%s1 + $0x9d8] sm:$0xff]
  %v464 = vld [vmem:[%s1 + $0x9e0] sm:$0xf]
  %v465 = vld [vmem:[%s1 + $0x9e4] sm:$0xff]
  %v466 = vld [vmem:[%s1 + $0x9ec] sm:$0xf]
  %v467 = vld [vmem:[%s1 + $0x9f0] sm:$0xff]
  %v468 = vld [vmem:[%s1 + $0x9f8] sm:$0xf]
  %v469 = vld [vmem:[%s1 + $0x9fc] sm:$0xff]
  %v470 = vld [vmem:[%s1 + $0xa04] sm:$0xf]
  %v471 = vld [vmem:[%s1 + $0xa08] sm:$0xff]
  %v472 = vld [vmem:[%s1 + $0xa10] sm:$0xf]
  %v473 = vld [vmem:[%s1 + $0xa14] sm:$0xff]
  %v474 = vld [vmem:[%s1 + $0xa1c] sm:$0xf]
  %v475 = vld [vmem:[%s1 + $0xa20] sm:$0xff]
  %v476 = vld [vmem:[%s1 + $0xa28] sm:$0xf]
  %v477 = vld [vmem:[%s1 + $0xa2c] sm:$0xff]
  %v478 = vld [vmem:[%s1 + $0xa34] sm:$0xf]
  %v479 = vld [vmem:[%s1 + $0xa38] sm:$0xff]
  %v480 = vld [vmem:[%s1 + $0xa40] sm:$0xf]
  %v481 = vld [vmem:[%s1 + $0xa44] sm:$0xff]
  %v482 = vld [vmem:[%s1 + $0xa4c] sm:$0xf]
  %v483 = vld [vmem:[%s1 + $0xa50] sm:$0xff]
  %v484 = vld [vmem:[%s1 + $0xa58] sm:$0xf]
  %v485 = vld [vmem:[%s1 + $0xa5c] sm:$0xff]
  %v486 = vld [vmem:[%s1 + $0xa64] sm:$0xf]
  %v487 = vld [vmem:[%s1 + $0xa68] sm:$0xff]
  %v488 = vld [vmem:[%s1 + $0xa70] sm:$0xf]
  %v489 = vld [vmem:[%s1 + $0xa74] sm:$0xff]
  %v490 = vld [vmem:[%s1 + $0xa7c] sm:$0xf]
  %v491 = vld [vmem:[%s2] sm:$0x7]
  %v493 = vlaneseq
  %v494 = vshrl.u32 %v493, 7
  %v495 = vsub.s32 0, %v494
  %v496 = vrot.slane %v491, %v495
  %v497 = vlaneseq
  %v498 = vshrl.u32 %v497, 7
  %v499 = vsub.s32 1, %v498
  %v500 = vrot.slane %v491, %v499
  %v501 = vlaneseq
  %v502 = vshrl.u32 %v501, 7
  %v503 = vsub.s32 2, %v502
  %v504 = vrot.slane %v491, %v503
  %v536 = vunpack.c.l.b16 %v15
  %v537 = vunpack.c.h.b16 %v15
  %v538 = vunpack.c.l.b16 %v16
  %v539 = vunpack.c.h.b16 %v16
  %v540 = vunpack.c.l.b16 %v17
  %v541 = vunpack.c.h.b16 %v17
  %v542 = vunpack.c.l.b16 %v18
  %v543 = vunpack.c.h.b16 %v18
  %v544 = vunpack.c.l.b16 %v19
  %v545 = vunpack.c.h.b16 %v19
  %v546 = vunpack.c.l.b16 %v20
  %v547 = vunpack.c.h.b16 %v20
  %v548 = vunpack.c.l.b16 %v21
  %v549 = vunpack.c.h.b16 %v21
  %v550 = vunpack.c.l.b16 %v22
  %v551 = vunpack.c.h.b16 %v22
  %v552 = vunpack.c.l.b16 %v23
  %v553 = vunpack.c.h.b16 %v23
  %v554 = vunpack.c.l.b16 %v24
  %v555 = vunpack.c.h.b16 %v24
  %v556 = vunpack.c.l.b16 %v25
  %v557 = vunpack.c.h.b16 %v25
  %v558 = vunpack.c.l.b16 %v26
  %v559 = vunpack.c.h.b16 %v26
  %v560 = vunpack.c.l.b16 %v27
  %v561 = vunpack.c.h.b16 %v27
  %v562 = vunpack.c.l.b16 %v28
  %v563 = vunpack.c.h.b16 %v28
  %v564 = vunpack.c.l.b16 %v29
  %v565 = vunpack.c.h.b16 %v29
  %v566 = vunpack.c.l.b16 %v30
  %v567 = vunpack.c.h.b16 %v30
  %v568 = vunpack.c.l.b16 %v31
  %v569 = vunpack.c.h.b16 %v31
  %v570 = vunpack.c.l.b16 %v32
  %v571 = vunpack.c.h.b16 %v32
  %v572 = vunpack.c.l.b16 %v33
  %v573 = vunpack.c.h.b16 %v33
  %v574 = vunpack.c.l.b16 %v34
  %v575 = vunpack.c.h.b16 %v34
  %v576 = vunpack.c.l.b16 %v35
  %v577 = vunpack.c.h.b16 %v35
  %v578 = vunpack.c.l.b16 %v36
  %v579 = vunpack.c.h.b16 %v36
  %v580 = vunpack.c.l.b16 %v37
  %v581 = vunpack.c.h.b16 %v37
  %v582 = vunpack.c.l.b16 %v38
  %v583 = vunpack.c.h.b16 %v38
  %v584 = vunpack.c.l.b16 %v39
  %v585 = vunpack.c.h.b16 %v39
  %v586 = vunpack.c.l.b16 %v40
  %v587 = vunpack.c.h.b16 %v40
  %v588 = vunpack.c.l.b16 %v41
  %v589 = vunpack.c.h.b16 %v41
  %v590 = vunpack.c.l.b16 %v42
  %v591 = vunpack.c.h.b16 %v42
  %v592 = vpack.c.b16 %v550, %v536
  %v593 = vpack.c.b16 %v551, %v537
  %v594 = vpack.c.b16 %v552, %v538
  %v595 = vpack.c.b16 %v553, %v539
  %v596 = vpack.c.b16 %v554, %v540
  %v597 = vpack.c.b16 %v555, %v541
  %v598 = vpack.c.b16 %v556, %v542
  %v599 = vpack.c.b16 %v557, %v543
  %v600 = vpack.c.b16 %v558, %v544
  %v601 = vpack.c.b16 %v559, %v545
  %v602 = vpack.c.b16 %v560, %v546
  %v603 = vpack.c.b16 %v561, %v547
  %v604 = vpack.c.b16 %v562, %v548
  %v605 = vpack.c.b16 %v563, %v549
  %v606 = vpack.c.b16 %v578, %v564
  %v607 = vpack.c.b16 %v579, %v565
  %v608 = vpack.c.b16 %v580, %v566
  %v609 = vpack.c.b16 %v581, %v567
  %v610 = vpack.c.b16 %v582, %v568
  %v611 = vpack.c.b16 %v583, %v569
  %v612 = vpack.c.b16 %v584, %v570
  %v613 = vpack.c.b16 %v585, %v571
  %v614 = vpack.c.b16 %v586, %v572
  %v615 = vpack.c.b16 %v587, %v573
  %v616 = vpack.c.b16 %v588, %v574
  %v617 = vpack.c.b16 %v589, %v575
  %v618 = vpack.c.b16 %v590, %v576
  %v619 = vpack.c.b16 %v591, %v577
  %v1096 = vunpack.c.l.b16 %v43
  %v1097 = vunpack.c.h.b16 %v43
  %v1098 = vunpack.c.l.b16 %v44
  %v1099 = vunpack.c.l.b16 %v45
  %v1100 = vunpack.c.h.b16 %v45
  %v1101 = vunpack.c.l.b16 %v46
  %v1102 = vunpack.c.l.b16 %v47
  %v1103 = vunpack.c.h.b16 %v47
  %v1104 = vunpack.c.l.b16 %v48
  %v1105 = vunpack.c.l.b16 %v49
  %v1106 = vunpack.c.h.b16 %v49
  %v1107 = vunpack.c.l.b16 %v50
  %v1108 = vunpack.c.l.b16 %v51
  %v1109 = vunpack.c.h.b16 %v51
  %v1110 = vunpack.c.l.b16 %v52
  %v1111 = vunpack.c.l.b16 %v53
  %v1112 = vunpack.c.h.b16 %v53
  %v1113 = vunpack.c.l.b16 %v54
  %v1114 = vunpack.c.l.b16 %v55
  %v1115 = vunpack.c.h.b16 %v55
  %v1116 = vunpack.c.l.b16 %v56
  %v1117 = vunpack.c.l.b16 %v57
  %v1118 = vunpack.c.h.b16 %v57
  %v1119 = vunpack.c.l.b16 %v58
  %v1120 = vunpack.c.l.b16 %v59
  %v1121 = vunpack.c.h.b16 %v59
  %v1122 = vunpack.c.l.b16 %v60
  %v1123 = vunpack.c.l.b16 %v61
  %v1124 = vunpack.c.h.b16 %v61
  %v1125 = vunpack.c.l.b16 %v62
  %v1126 = vunpack.c.l.b16 %v63
  %v1127 = vunpack.c.h.b16 %v63
  %v1128 = vunpack.c.l.b16 %v64
  %v1129 = vunpack.c.l.b16 %v65
  %v1130 = vunpack.c.h.b16 %v65
  %v1131 = vunpack.c.l.b16 %v66
  %v1132 = vunpack.c.l.b16 %v67
  %v1133 = vunpack.c.h.b16 %v67
  %v1134 = vunpack.c.l.b16 %v68
  %v1135 = vunpack.c.l.b16 %v69
  %v1136 = vunpack.c.h.b16 %v69
  %v1137 = vunpack.c.l.b16 %v70
  %v1138 = vunpack.c.l.b16 %v71
  %v1139 = vunpack.c.h.b16 %v71
  %v1140 = vunpack.c.l.b16 %v72
  %v1141 = vunpack.c.l.b16 %v73
  %v1142 = vunpack.c.h.b16 %v73
  %v1143 = vunpack.c.l.b16 %v74
  %v1144 = vunpack.c.l.b16 %v75
  %v1145 = vunpack.c.h.b16 %v75
  %v1146 = vunpack.c.l.b16 %v76
  %v1147 = vunpack.c.l.b16 %v77
  %v1148 = vunpack.c.h.b16 %v77
  %v1149 = vunpack.c.l.b16 %v78
  %v1150 = vunpack.c.l.b16 %v79
  %v1151 = vunpack.c.h.b16 %v79
  %v1152 = vunpack.c.l.b16 %v80
  %v1153 = vunpack.c.l.b16 %v81
  %v1154 = vunpack.c.h.b16 %v81
  %v1155 = vunpack.c.l.b16 %v82
  %v1156 = vunpack.c.l.b16 %v83
  %v1157 = vunpack.c.h.b16 %v83
  %v1158 = vunpack.c.l.b16 %v84
  %v1159 = vunpack.c.l.b16 %v85
  %v1160 = vunpack.c.h.b16 %v85
  %v1161 = vunpack.c.l.b16 %v86
  %v1162 = vunpack.c.l.b16 %v87
  %v1163 = vunpack.c.h.b16 %v87
  %v1164 = vunpack.c.l.b16 %v88
  %v1165 = vunpack.c.l.b16 %v89
  %v1166 = vunpack.c.h.b16 %v89
  %v1167 = vunpack.c.l.b16 %v90
  %v1168 = vunpack.c.l.b16 %v91
  %v1169 = vunpack.c.h.b16 %v91
  %v1170 = vunpack.c.l.b16 %v92
  %v1171 = vunpack.c.l.b16 %v93
  %v1172 = vunpack.c.h.b16 %v93
  %v1173 = vunpack.c.l.b16 %v94
  %v1174 = vunpack.c.l.b16 %v95
  %v1175 = vunpack.c.h.b16 %v95
  %v1176 = vunpack.c.l.b16 %v96
  %v1177 = vunpack.c.l.b16 %v97
  %v1178 = vunpack.c.h.b16 %v97
  %v1179 = vunpack.c.l.b16 %v98
  %v1180 = vunpack.c.l.b16 %v99
  %v1181 = vunpack.c.h.b16 %v99
  %v1182 = vunpack.c.l.b16 %v100
  %v1183 = vunpack.c.l.b16 %v101
  %v1184 = vunpack.c.h.b16 %v101
  %v1185 = vunpack.c.l.b16 %v102
  %v1186 = vunpack.c.l.b16 %v103
  %v1187 = vunpack.c.h.b16 %v103
  %v1188 = vunpack.c.l.b16 %v104
  %v1189 = vunpack.c.l.b16 %v105
  %v1190 = vunpack.c.h.b16 %v105
  %v1191 = vunpack.c.l.b16 %v106
  %v1192 = vunpack.c.l.b16 %v107
  %v1193 = vunpack.c.h.b16 %v107
  %v1194 = vunpack.c.l.b16 %v108
  %v1195 = vunpack.c.l.b16 %v109
  %v1196 = vunpack.c.h.b16 %v109
  %v1197 = vunpack.c.l.b16 %v110
  %v1198 = vunpack.c.l.b16 %v111
  %v1199 = vunpack.c.h.b16 %v111
  %v1200 = vunpack.c.l.b16 %v112
  %v1201 = vunpack.c.l.b16 %v113
  %v1202 = vunpack.c.h.b16 %v113
  %v1203 = vunpack.c.l.b16 %v114
  %v1204 = vunpack.c.l.b16 %v115
  %v1205 = vunpack.c.h.b16 %v115
  %v1206 = vunpack.c.l.b16 %v116
  %v1207 = vunpack.c.l.b16 %v117
  %v1208 = vunpack.c.h.b16 %v117
  %v1209 = vunpack.c.l.b16 %v118
  %v1210 = vunpack.c.l.b16 %v119
  %v1211 = vunpack.c.h.b16 %v119
  %v1212 = vunpack.c.l.b16 %v120
  %v1213 = vunpack.c.l.b16 %v121
  %v1214 = vunpack.c.h.b16 %v121
  %v1215 = vunpack.c.l.b16 %v122
  %v1216 = vunpack.c.l.b16 %v123
  %v1217 = vunpack.c.h.b16 %v123
  %v1218 = vunpack.c.l.b16 %v124
  %v1219 = vunpack.c.l.b16 %v125
  %v1220 = vunpack.c.h.b16 %v125
  %v1221 = vunpack.c.l.b16 %v126
  %v1222 = vunpack.c.l.b16 %v127
  %v1223 = vunpack.c.h.b16 %v127
  %v1224 = vunpack.c.l.b16 %v128
  %v1225 = vunpack.c.l.b16 %v129
  %v1226 = vunpack.c.h.b16 %v129
  %v1227 = vunpack.c.l.b16 %v130
  %v1228 = vunpack.c.l.b16 %v131
  %v1229 = vunpack.c.h.b16 %v131
  %v1230 = vunpack.c.l.b16 %v132
  %v1231 = vunpack.c.l.b16 %v133
  %v1232 = vunpack.c.h.b16 %v133
  %v1233 = vunpack.c.l.b16 %v134
  %v1234 = vunpack.c.l.b16 %v135
  %v1235 = vunpack.c.h.b16 %v135
  %v1236 = vunpack.c.l.b16 %v136
  %v1237 = vunpack.c.l.b16 %v137
  %v1238 = vunpack.c.h.b16 %v137
  %v1239 = vunpack.c.l.b16 %v138
  %v1240 = vunpack.c.l.b16 %v139
  %v1241 = vunpack.c.h.b16 %v139
  %v1242 = vunpack.c.l.b16 %v140
  %v1243 = vunpack.c.l.b16 %v141
  %v1244 = vunpack.c.h.b16 %v141
  %v1245 = vunpack.c.l.b16 %v142
  %v1246 = vunpack.c.l.b16 %v143
  %v1247 = vunpack.c.h.b16 %v143
  %v1248 = vunpack.c.l.b16 %v144
  %v1249 = vunpack.c.l.b16 %v145
  %v1250 = vunpack.c.h.b16 %v145
  %v1251 = vunpack.c.l.b16 %v146
  %v1252 = vunpack.c.l.b16 %v147
  %v1253 = vunpack.c.h.b16 %v147
  %v1254 = vunpack.c.l.b16 %v148
  %v1255 = vunpack.c.l.b16 %v149
  %v1256 = vunpack.c.h.b16 %v149
  %v1257 = vunpack.c.l.b16 %v150
  %v1258 = vunpack.c.l.b16 %v151
  %v1259 = vunpack.c.h.b16 %v151
  %v1260 = vunpack.c.l.b16 %v152
  %v1261 = vunpack.c.l.b16 %v153
  %v1262 = vunpack.c.h.b16 %v153
  %v1263 = vunpack.c.l.b16 %v154
  %v1264 = vunpack.c.l.b16 %v155
  %v1265 = vunpack.c.h.b16 %v155
  %v1266 = vunpack.c.l.b16 %v156
  %v1267 = vunpack.c.l.b16 %v157
  %v1268 = vunpack.c.h.b16 %v157
  %v1269 = vunpack.c.l.b16 %v158
  %v1270 = vunpack.c.l.b16 %v159
  %v1271 = vunpack.c.h.b16 %v159
  %v1272 = vunpack.c.l.b16 %v160
  %v1273 = vunpack.c.l.b16 %v161
  %v1274 = vunpack.c.h.b16 %v161
  %v1275 = vunpack.c.l.b16 %v162
  %v1276 = vunpack.c.l.b16 %v163
  %v1277 = vunpack.c.h.b16 %v163
  %v1278 = vunpack.c.l.b16 %v164
  %v1279 = vunpack.c.l.b16 %v165
  %v1280 = vunpack.c.h.b16 %v165
  %v1281 = vunpack.c.l.b16 %v166
  %v1282 = vunpack.c.l.b16 %v167
  %v1283 = vunpack.c.h.b16 %v167
  %v1284 = vunpack.c.l.b16 %v168
  %v1285 = vunpack.c.l.b16 %v169
  %v1286 = vunpack.c.h.b16 %v169
  %v1287 = vunpack.c.l.b16 %v170
  %v1288 = vunpack.c.l.b16 %v171
  %v1289 = vunpack.c.h.b16 %v171
  %v1290 = vunpack.c.l.b16 %v172
  %v1291 = vunpack.c.l.b16 %v173
  %v1292 = vunpack.c.h.b16 %v173
  %v1293 = vunpack.c.l.b16 %v174
  %v1294 = vunpack.c.l.b16 %v175
  %v1295 = vunpack.c.h.b16 %v175
  %v1296 = vunpack.c.l.b16 %v176
  %v1297 = vunpack.c.l.b16 %v177
  %v1298 = vunpack.c.h.b16 %v177
  %v1299 = vunpack.c.l.b16 %v178
  %v1300 = vunpack.c.l.b16 %v179
  %v1301 = vunpack.c.h.b16 %v179
  %v1302 = vunpack.c.l.b16 %v180
  %v1303 = vunpack.c.l.b16 %v181
  %v1304 = vunpack.c.h.b16 %v181
  %v1305 = vunpack.c.l.b16 %v182
  %v1306 = vunpack.c.l.b16 %v183
  %v1307 = vunpack.c.h.b16 %v183
  %v1308 = vunpack.c.l.b16 %v184
  %v1309 = vunpack.c.l.b16 %v185
  %v1310 = vunpack.c.h.b16 %v185
  %v1311 = vunpack.c.l.b16 %v186
  %v1312 = vunpack.c.l.b16 %v187
  %v1313 = vunpack.c.h.b16 %v187
  %v1314 = vunpack.c.l.b16 %v188
  %v1315 = vunpack.c.l.b16 %v189
  %v1316 = vunpack.c.h.b16 %v189
  %v1317 = vunpack.c.l.b16 %v190
  %v1318 = vunpack.c.l.b16 %v191
  %v1319 = vunpack.c.h.b16 %v191
  %v1320 = vunpack.c.l.b16 %v192
  %v1321 = vunpack.c.l.b16 %v193
  %v1322 = vunpack.c.h.b16 %v193
  %v1323 = vunpack.c.l.b16 %v194
  %v1324 = vunpack.c.l.b16 %v195
  %v1325 = vunpack.c.h.b16 %v195
  %v1326 = vunpack.c.l.b16 %v196
  %v1327 = vunpack.c.l.b16 %v197
  %v1328 = vunpack.c.h.b16 %v197
  %v1329 = vunpack.c.l.b16 %v198
  %v1330 = vunpack.c.l.b16 %v199
  %v1331 = vunpack.c.h.b16 %v199
  %v1332 = vunpack.c.l.b16 %v200
  %v1333 = vunpack.c.l.b16 %v201
  %v1334 = vunpack.c.h.b16 %v201
  %v1335 = vunpack.c.l.b16 %v202
  %v1336 = vunpack.c.l.b16 %v203
  %v1337 = vunpack.c.h.b16 %v203
  %v1338 = vunpack.c.l.b16 %v204
  %v1339 = vunpack.c.l.b16 %v205
  %v1340 = vunpack.c.h.b16 %v205
  %v1341 = vunpack.c.l.b16 %v206
  %v1342 = vunpack.c.l.b16 %v207
  %v1343 = vunpack.c.h.b16 %v207
  %v1344 = vunpack.c.l.b16 %v208
  %v1345 = vunpack.c.l.b16 %v209
  %v1346 = vunpack.c.h.b16 %v209
  %v1347 = vunpack.c.l.b16 %v210
  %v1348 = vunpack.c.l.b16 %v211
  %v1349 = vunpack.c.h.b16 %v211
  %v1350 = vunpack.c.l.b16 %v212
  %v1351 = vunpack.c.l.b16 %v213
  %v1352 = vunpack.c.h.b16 %v213
  %v1353 = vunpack.c.l.b16 %v214
  %v1354 = vunpack.c.l.b16 %v215
  %v1355 = vunpack.c.h.b16 %v215
  %v1356 = vunpack.c.l.b16 %v216
  %v1357 = vunpack.c.l.b16 %v217
  %v1358 = vunpack.c.h.b16 %v217
  %v1359 = vunpack.c.l.b16 %v218
  %v1360 = vunpack.c.l.b16 %v219
  %v1361 = vunpack.c.h.b16 %v219
  %v1362 = vunpack.c.l.b16 %v220
  %v1363 = vunpack.c.l.b16 %v221
  %v1364 = vunpack.c.h.b16 %v221
  %v1365 = vunpack.c.l.b16 %v222
  %v1366 = vunpack.c.l.b16 %v223
  %v1367 = vunpack.c.h.b16 %v223
  %v1368 = vunpack.c.l.b16 %v224
  %v1369 = vunpack.c.l.b16 %v225
  %v1370 = vunpack.c.h.b16 %v225
  %v1371 = vunpack.c.l.b16 %v226
  %v1372 = vunpack.c.l.b16 %v227
  %v1373 = vunpack.c.h.b16 %v227
  %v1374 = vunpack.c.l.b16 %v228
  %v1375 = vunpack.c.l.b16 %v229
  %v1376 = vunpack.c.h.b16 %v229
  %v1377 = vunpack.c.l.b16 %v230
  %v1378 = vunpack.c.l.b16 %v231
  %v1379 = vunpack.c.h.b16 %v231
  %v1380 = vunpack.c.l.b16 %v232
  %v1381 = vunpack.c.l.b16 %v233
  %v1382 = vunpack.c.h.b16 %v233
  %v1383 = vunpack.c.l.b16 %v234
  %v1384 = vunpack.c.l.b16 %v235
  %v1385 = vunpack.c.h.b16 %v235
  %v1386 = vunpack.c.l.b16 %v236
  %v1387 = vunpack.c.l.b16 %v237
  %v1388 = vunpack.c.h.b16 %v237
  %v1389 = vunpack.c.l.b16 %v238
  %v1390 = vunpack.c.l.b16 %v239
  %v1391 = vunpack.c.h.b16 %v239
  %v1392 = vunpack.c.l.b16 %v240
  %v1393 = vunpack.c.l.b16 %v241
  %v1394 = vunpack.c.h.b16 %v241
  %v1395 = vunpack.c.l.b16 %v242
  %v1396 = vunpack.c.l.b16 %v243
  %v1397 = vunpack.c.h.b16 %v243
  %v1398 = vunpack.c.l.b16 %v244
  %v1399 = vunpack.c.l.b16 %v245
  %v1400 = vunpack.c.h.b16 %v245
  %v1401 = vunpack.c.l.b16 %v246
  %v1402 = vunpack.c.l.b16 %v247
  %v1403 = vunpack.c.h.b16 %v247
  %v1404 = vunpack.c.l.b16 %v248
  %v1405 = vunpack.c.l.b16 %v249
  %v1406 = vunpack.c.h.b16 %v249
  %v1407 = vunpack.c.l.b16 %v250
  %v1408 = vunpack.c.l.b16 %v251
  %v1409 = vunpack.c.h.b16 %v251
  %v1410 = vunpack.c.l.b16 %v252
  %v1411 = vunpack.c.l.b16 %v253
  %v1412 = vunpack.c.h.b16 %v253
  %v1413 = vunpack.c.l.b16 %v254
  %v1414 = vunpack.c.l.b16 %v255
  %v1415 = vunpack.c.h.b16 %v255
  %v1416 = vunpack.c.l.b16 %v256
  %v1417 = vunpack.c.l.b16 %v257
  %v1418 = vunpack.c.h.b16 %v257
  %v1419 = vunpack.c.l.b16 %v258
  %v1420 = vunpack.c.l.b16 %v259
  %v1421 = vunpack.c.h.b16 %v259
  %v1422 = vunpack.c.l.b16 %v260
  %v1423 = vunpack.c.l.b16 %v261
  %v1424 = vunpack.c.h.b16 %v261
  %v1425 = vunpack.c.l.b16 %v262
  %v1426 = vunpack.c.l.b16 %v263
  %v1427 = vunpack.c.h.b16 %v263
  %v1428 = vunpack.c.l.b16 %v264
  %v1429 = vunpack.c.l.b16 %v265
  %v1430 = vunpack.c.h.b16 %v265
  %v1431 = vunpack.c.l.b16 %v266
  %v1432 = vunpack.c.l.b16 %v267
  %v1433 = vunpack.c.h.b16 %v267
  %v1434 = vunpack.c.l.b16 %v268
  %v1435 = vunpack.c.l.b16 %v269
  %v1436 = vunpack.c.h.b16 %v269
  %v1437 = vunpack.c.l.b16 %v270
  %v1438 = vunpack.c.l.b16 %v271
  %v1439 = vunpack.c.h.b16 %v271
  %v1440 = vunpack.c.l.b16 %v272
  %v1441 = vunpack.c.l.b16 %v273
  %v1442 = vunpack.c.h.b16 %v273
  %v1443 = vunpack.c.l.b16 %v274
  %v1444 = vunpack.c.l.b16 %v275
  %v1445 = vunpack.c.h.b16 %v275
  %v1446 = vunpack.c.l.b16 %v276
  %v1447 = vunpack.c.l.b16 %v277
  %v1448 = vunpack.c.h.b16 %v277
  %v1449 = vunpack.c.l.b16 %v278
  %v1450 = vunpack.c.l.b16 %v279
  %v1451 = vunpack.c.h.b16 %v279
  %v1452 = vunpack.c.l.b16 %v280
  %v1453 = vunpack.c.l.b16 %v281
  %v1454 = vunpack.c.h.b16 %v281
  %v1455 = vunpack.c.l.b16 %v282
  %v1456 = vunpack.c.l.b16 %v283
  %v1457 = vunpack.c.h.b16 %v283
  %v1458 = vunpack.c.l.b16 %v284
  %v1459 = vunpack.c.l.b16 %v285
  %v1460 = vunpack.c.h.b16 %v285
  %v1461 = vunpack.c.l.b16 %v286
  %v1462 = vunpack.c.l.b16 %v287
  %v1463 = vunpack.c.h.b16 %v287
  %v1464 = vunpack.c.l.b16 %v288
  %v1465 = vunpack.c.l.b16 %v289
  %v1466 = vunpack.c.h.b16 %v289
  %v1467 = vunpack.c.l.b16 %v290
  %v1468 = vunpack.c.l.b16 %v291
  %v1469 = vunpack.c.h.b16 %v291
  %v1470 = vunpack.c.l.b16 %v292
  %v1471 = vunpack.c.l.b16 %v293
  %v1472 = vunpack.c.h.b16 %v293
  %v1473 = vunpack.c.l.b16 %v294
  %v1474 = vunpack.c.l.b16 %v295
  %v1475 = vunpack.c.h.b16 %v295
  %v1476 = vunpack.c.l.b16 %v296
  %v1477 = vunpack.c.l.b16 %v297
  %v1478 = vunpack.c.h.b16 %v297
  %v1479 = vunpack.c.l.b16 %v298
  %v1480 = vunpack.c.l.b16 %v299
  %v1481 = vunpack.c.h.b16 %v299
  %v1482 = vunpack.c.l.b16 %v300
  %v1483 = vunpack.c.l.b16 %v301
  %v1484 = vunpack.c.h.b16 %v301
  %v1485 = vunpack.c.l.b16 %v302
  %v1486 = vunpack.c.l.b16 %v303
  %v1487 = vunpack.c.h.b16 %v303
  %v1488 = vunpack.c.l.b16 %v304
  %v1489 = vunpack.c.l.b16 %v305
  %v1490 = vunpack.c.h.b16 %v305
  %v1491 = vunpack.c.l.b16 %v306
  %v1492 = vunpack.c.l.b16 %v307
  %v1493 = vunpack.c.h.b16 %v307
  %v1494 = vunpack.c.l.b16 %v308
  %v1495 = vunpack.c.l.b16 %v309
  %v1496 = vunpack.c.h.b16 %v309
  %v1497 = vunpack.c.l.b16 %v310
  %v1498 = vunpack.c.l.b16 %v311
  %v1499 = vunpack.c.h.b16 %v311
  %v1500 = vunpack.c.l.b16 %v312
  %v1501 = vunpack.c.l.b16 %v313
  %v1502 = vunpack.c.h.b16 %v313
  %v1503 = vunpack.c.l.b16 %v314
  %v1504 = vunpack.c.l.b16 %v315
  %v1505 = vunpack.c.h.b16 %v315
  %v1506 = vunpack.c.l.b16 %v316
  %v1507 = vunpack.c.l.b16 %v317
  %v1508 = vunpack.c.h.b16 %v317
  %v1509 = vunpack.c.l.b16 %v318
  %v1510 = vunpack.c.l.b16 %v319
  %v1511 = vunpack.c.h.b16 %v319
  %v1512 = vunpack.c.l.b16 %v320
  %v1513 = vunpack.c.l.b16 %v321
  %v1514 = vunpack.c.h.b16 %v321
  %v1515 = vunpack.c.l.b16 %v322
  %v1516 = vunpack.c.l.b16 %v323
  %v1517 = vunpack.c.h.b16 %v323
  %v1518 = vunpack.c.l.b16 %v324
  %v1519 = vunpack.c.l.b16 %v325
  %v1520 = vunpack.c.h.b16 %v325
  %v1521 = vunpack.c.l.b16 %v326
  %v1522 = vunpack.c.l.b16 %v327
  %v1523 = vunpack.c.h.b16 %v327
  %v1524 = vunpack.c.l.b16 %v328
  %v1525 = vunpack.c.l.b16 %v329
  %v1526 = vunpack.c.h.b16 %v329
  %v1527 = vunpack.c.l.b16 %v330
  %v1528 = vunpack.c.l.b16 %v331
  %v1529 = vunpack.c.h.b16 %v331
  %v1530 = vunpack.c.l.b16 %v332
  %v1531 = vunpack.c.l.b16 %v333
  %v1532 = vunpack.c.h.b16 %v333
  %v1533 = vunpack.c.l.b16 %v334
  %v1534 = vunpack.c.l.b16 %v335
  %v1535 = vunpack.c.h.b16 %v335
  %v1536 = vunpack.c.l.b16 %v336
  %v1537 = vunpack.c.l.b16 %v337
  %v1538 = vunpack.c.h.b16 %v337
  %v1539 = vunpack.c.l.b16 %v338
  %v1540 = vunpack.c.l.b16 %v339
  %v1541 = vunpack.c.h.b16 %v339
  %v1542 = vunpack.c.l.b16 %v340
  %v1543 = vunpack.c.l.b16 %v341
  %v1544 = vunpack.c.h.b16 %v341
  %v1545 = vunpack.c.l.b16 %v342
  %v1546 = vunpack.c.l.b16 %v343
  %v1547 = vunpack.c.h.b16 %v343
  %v1548 = vunpack.c.l.b16 %v344
  %v1549 = vunpack.c.l.b16 %v345
  %v1550 = vunpack.c.h.b16 %v345
  %v1551 = vunpack.c.l.b16 %v346
  %v1552 = vunpack.c.l.b16 %v347
  %v1553 = vunpack.c.h.b16 %v347
  %v1554 = vunpack.c.l.b16 %v348
  %v1555 = vunpack.c.l.b16 %v349
  %v1556 = vunpack.c.h.b16 %v349
  %v1557 = vunpack.c.l.b16 %v350
  %v1558 = vunpack.c.l.b16 %v351
  %v1559 = vunpack.c.h.b16 %v351
  %v1560 = vunpack.c.l.b16 %v352
  %v1561 = vunpack.c.l.b16 %v353
  %v1562 = vunpack.c.h.b16 %v353
  %v1563 = vunpack.c.l.b16 %v354
  %v1564 = vunpack.c.l.b16 %v355
  %v1565 = vunpack.c.h.b16 %v355
  %v1566 = vunpack.c.l.b16 %v356
  %v1567 = vunpack.c.l.b16 %v357
  %v1568 = vunpack.c.h.b16 %v357
  %v1569 = vunpack.c.l.b16 %v358
  %v1570 = vunpack.c.l.b16 %v359
  %v1571 = vunpack.c.h.b16 %v359
  %v1572 = vunpack.c.l.b16 %v360
  %v1573 = vunpack.c.l.b16 %v361
  %v1574 = vunpack.c.h.b16 %v361
  %v1575 = vunpack.c.l.b16 %v362
  %v1576 = vunpack.c.l.b16 %v363
  %v1577 = vunpack.c.h.b16 %v363
  %v1578 = vunpack.c.l.b16 %v364
  %v1579 = vunpack.c.l.b16 %v365
  %v1580 = vunpack.c.h.b16 %v365
  %v1581 = vunpack.c.l.b16 %v366
  %v1582 = vunpack.c.l.b16 %v367
  %v1583 = vunpack.c.h.b16 %v367
  %v1584 = vunpack.c.l.b16 %v368
  %v1585 = vunpack.c.l.b16 %v369
  %v1586 = vunpack.c.h.b16 %v369
  %v1587 = vunpack.c.l.b16 %v370
  %v1588 = vunpack.c.l.b16 %v371
  %v1589 = vunpack.c.h.b16 %v371
  %v1590 = vunpack.c.l.b16 %v372
  %v1591 = vunpack.c.l.b16 %v373
  %v1592 = vunpack.c.h.b16 %v373
  %v1593 = vunpack.c.l.b16 %v374
  %v1594 = vunpack.c.l.b16 %v375
  %v1595 = vunpack.c.h.b16 %v375
  %v1596 = vunpack.c.l.b16 %v376
  %v1597 = vunpack.c.l.b16 %v377
  %v1598 = vunpack.c.h.b16 %v377
  %v1599 = vunpack.c.l.b16 %v378
  %v1600 = vunpack.c.l.b16 %v379
  %v1601 = vunpack.c.h.b16 %v379
  %v1602 = vunpack.c.l.b16 %v380
  %v1603 = vunpack.c.l.b16 %v381
  %v1604 = vunpack.c.h.b16 %v381
  %v1605 = vunpack.c.l.b16 %v382
  %v1606 = vunpack.c.l.b16 %v383
  %v1607 = vunpack.c.h.b16 %v383
  %v1608 = vunpack.c.l.b16 %v384
  %v1609 = vunpack.c.l.b16 %v385
  %v1610 = vunpack.c.h.b16 %v385
  %v1611 = vunpack.c.l.b16 %v386
  %v1612 = vunpack.c.l.b16 %v387
  %v1613 = vunpack.c.h.b16 %v387
  %v1614 = vunpack.c.l.b16 %v388
  %v1615 = vunpack.c.l.b16 %v389
  %v1616 = vunpack.c.h.b16 %v389
  %v1617 = vunpack.c.l.b16 %v390
  %v1618 = vunpack.c.l.b16 %v391
  %v1619 = vunpack.c.h.b16 %v391
  %v1620 = vunpack.c.l.b16 %v392
  %v1621 = vunpack.c.l.b16 %v393
  %v1622 = vunpack.c.h.b16 %v393
  %v1623 = vunpack.c.l.b16 %v394
  %v1624 = vunpack.c.l.b16 %v395
  %v1625 = vunpack.c.h.b16 %v395
  %v1626 = vunpack.c.l.b16 %v396
  %v1627 = vunpack.c.l.b16 %v397
  %v1628 = vunpack.c.h.b16 %v397
  %v1629 = vunpack.c.l.b16 %v398
  %v1630 = vunpack.c.l.b16 %v399
  %v1631 = vunpack.c.h.b16 %v399
  %v1632 = vunpack.c.l.b16 %v400
  %v1633 = vunpack.c.l.b16 %v401
  %v1634 = vunpack.c.h.b16 %v401
  %v1635 = vunpack.c.l.b16 %v402
  %v1636 = vunpack.c.l.b16 %v403
  %v1637 = vunpack.c.h.b16 %v403
  %v1638 = vunpack.c.l.b16 %v404
  %v1639 = vunpack.c.l.b16 %v405
  %v1640 = vunpack.c.h.b16 %v405
  %v1641 = vunpack.c.l.b16 %v406
  %v1642 = vunpack.c.l.b16 %v407
  %v1643 = vunpack.c.h.b16 %v407
  %v1644 = vunpack.c.l.b16 %v408
  %v1645 = vunpack.c.l.b16 %v409
  %v1646 = vunpack.c.h.b16 %v409
  %v1647 = vunpack.c.l.b16 %v410
  %v1648 = vunpack.c.l.b16 %v411
  %v1649 = vunpack.c.h.b16 %v411
  %v1650 = vunpack.c.l.b16 %v412
  %v1651 = vunpack.c.l.b16 %v413
  %v1652 = vunpack.c.h.b16 %v413
  %v1653 = vunpack.c.l.b16 %v414
  %v1654 = vunpack.c.l.b16 %v415
  %v1655 = vunpack.c.h.b16 %v415
  %v1656 = vunpack.c.l.b16 %v416
  %v1657 = vunpack.c.l.b16 %v417
  %v1658 = vunpack.c.h.b16 %v417
  %v1659 = vunpack.c.l.b16 %v418
  %v1660 = vunpack.c.l.b16 %v419
  %v1661 = vunpack.c.h.b16 %v419
  %v1662 = vunpack.c.l.b16 %v420
  %v1663 = vunpack.c.l.b16 %v421
  %v1664 = vunpack.c.h.b16 %v421
  %v1665 = vunpack.c.l.b16 %v422
  %v1666 = vunpack.c.l.b16 %v423
  %v1667 = vunpack.c.h.b16 %v423
  %v1668 = vunpack.c.l.b16 %v424
  %v1669 = vunpack.c.l.b16 %v425
  %v1670 = vunpack.c.h.b16 %v425
  %v1671 = vunpack.c.l.b16 %v426
  %v1672 = vunpack.c.l.b16 %v427
  %v1673 = vunpack.c.h.b16 %v427
  %v1674 = vunpack.c.l.b16 %v428
  %v1675 = vunpack.c.l.b16 %v429
  %v1676 = vunpack.c.h.b16 %v429
  %v1677 = vunpack.c.l.b16 %v430
  %v1678 = vunpack.c.l.b16 %v431
  %v1679 = vunpack.c.h.b16 %v431
  %v1680 = vunpack.c.l.b16 %v432
  %v1681 = vunpack.c.l.b16 %v433
  %v1682 = vunpack.c.h.b16 %v433
  %v1683 = vunpack.c.l.b16 %v434
  %v1684 = vunpack.c.l.b16 %v435
  %v1685 = vunpack.c.h.b16 %v435
  %v1686 = vunpack.c.l.b16 %v436
  %v1687 = vunpack.c.l.b16 %v437
  %v1688 = vunpack.c.h.b16 %v437
  %v1689 = vunpack.c.l.b16 %v438
  %v1690 = vunpack.c.l.b16 %v439
  %v1691 = vunpack.c.h.b16 %v439
  %v1692 = vunpack.c.l.b16 %v440
  %v1693 = vunpack.c.l.b16 %v441
  %v1694 = vunpack.c.h.b16 %v441
  %v1695 = vunpack.c.l.b16 %v442
  %v1696 = vunpack.c.l.b16 %v443
  %v1697 = vunpack.c.h.b16 %v443
  %v1698 = vunpack.c.l.b16 %v444
  %v1699 = vunpack.c.l.b16 %v445
  %v1700 = vunpack.c.h.b16 %v445
  %v1701 = vunpack.c.l.b16 %v446
  %v1702 = vunpack.c.l.b16 %v447
  %v1703 = vunpack.c.h.b16 %v447
  %v1704 = vunpack.c.l.b16 %v448
  %v1705 = vunpack.c.l.b16 %v449
  %v1706 = vunpack.c.h.b16 %v449
  %v1707 = vunpack.c.l.b16 %v450
  %v1708 = vunpack.c.l.b16 %v451
  %v1709 = vunpack.c.h.b16 %v451
  %v1710 = vunpack.c.l.b16 %v452
  %v1711 = vunpack.c.l.b16 %v453
  %v1712 = vunpack.c.h.b16 %v453
  %v1713 = vunpack.c.l.b16 %v454
  %v1714 = vunpack.c.l.b16 %v455
  %v1715 = vunpack.c.h.b16 %v455
  %v1716 = vunpack.c.l.b16 %v456
  %v1717 = vunpack.c.l.b16 %v457
  %v1718 = vunpack.c.h.b16 %v457
  %v1719 = vunpack.c.l.b16 %v458
  %v1720 = vunpack.c.l.b16 %v459
  %v1721 = vunpack.c.h.b16 %v459
  %v1722 = vunpack.c.l.b16 %v460
  %v1723 = vunpack.c.l.b16 %v461
  %v1724 = vunpack.c.h.b16 %v461
  %v1725 = vunpack.c.l.b16 %v462
  %v1726 = vunpack.c.l.b16 %v463
  %v1727 = vunpack.c.h.b16 %v463
  %v1728 = vunpack.c.l.b16 %v464
  %v1729 = vunpack.c.l.b16 %v465
  %v1730 = vunpack.c.h.b16 %v465
  %v1731 = vunpack.c.l.b16 %v466
  %v1732 = vunpack.c.l.b16 %v467
  %v1733 = vunpack.c.h.b16 %v467
  %v1734 = vunpack.c.l.b16 %v468
  %v1735 = vunpack.c.l.b16 %v469
  %v1736 = vunpack.c.h.b16 %v469
  %v1737 = vunpack.c.l.b16 %v470
  %v1738 = vunpack.c.l.b16 %v471
  %v1739 = vunpack.c.h.b16 %v471
  %v1740 = vunpack.c.l.b16 %v472
  %v1741 = vunpack.c.l.b16 %v473
  %v1742 = vunpack.c.h.b16 %v473
  %v1743 = vunpack.c.l.b16 %v474
  %v1744 = vunpack.c.l.b16 %v475
  %v1745 = vunpack.c.h.b16 %v475
  %v1746 = vunpack.c.l.b16 %v476
  %v1747 = vunpack.c.l.b16 %v477
  %v1748 = vunpack.c.h.b16 %v477
  %v1749 = vunpack.c.l.b16 %v478
  %v1750 = vunpack.c.l.b16 %v479
  %v1751 = vunpack.c.h.b16 %v479
  %v1752 = vunpack.c.l.b16 %v480
  %v1753 = vunpack.c.l.b16 %v481
  %v1754 = vunpack.c.h.b16 %v481
  %v1755 = vunpack.c.l.b16 %v482
  %v1756 = vunpack.c.l.b16 %v483
  %v1757 = vunpack.c.h.b16 %v483
  %v1758 = vunpack.c.l.b16 %v484
  %v1759 = vunpack.c.l.b16 %v485
  %v1760 = vunpack.c.h.b16 %v485
  %v1761 = vunpack.c.l.b16 %v486
  %v1762 = vunpack.c.l.b16 %v487
  %v1763 = vunpack.c.h.b16 %v487
  %v1764 = vunpack.c.l.b16 %v488
  %v1765 = vunpack.c.l.b16 %v489
  %v1766 = vunpack.c.h.b16 %v489
  %v1767 = vunpack.c.l.b16 %v490
  %v1768 = vpack.c.b16 %v1099, %v1096
  %v1769 = vpack.c.b16 %v1100, %v1097
  %v1770 = vpack.c.b16 %v1101, %v1098
  %v1771 = vpack.c.b16 %v1105, %v1102
  %v1772 = vpack.c.b16 %v1106, %v1103
  %v1773 = vpack.c.b16 %v1107, %v1104
  %v1774 = vpack.c.b16 %v1111, %v1108
  %v1775 = vpack.c.b16 %v1112, %v1109
  %v1776 = vpack.c.b16 %v1113, %v1110
  %v1777 = vpack.c.b16 %v1117, %v1114
  %v1778 = vpack.c.b16 %v1118, %v1115
  %v1779 = vpack.c.b16 %v1119, %v1116
  %v1780 = vpack.c.b16 %v1123, %v1120
  %v1781 = vpack.c.b16 %v1124, %v1121
  %v1782 = vpack.c.b16 %v1125, %v1122
  %v1783 = vpack.c.b16 %v1129, %v1126
  %v1784 = vpack.c.b16 %v1130, %v1127
  %v1785 = vpack.c.b16 %v1131, %v1128
  %v1786 = vpack.c.b16 %v1135, %v1132
  %v1787 = vpack.c.b16 %v1136, %v1133
  %v1788 = vpack.c.b16 %v1137, %v1134
  %v1789 = vpack.c.b16 %v1141, %v1138
  %v1790 = vpack.c.b16 %v1142, %v1139
  %v1791 = vpack.c.b16 %v1143, %v1140
  %v1792 = vpack.c.b16 %v1147, %v1144
  %v1793 = vpack.c.b16 %v1148, %v1145
  %v1794 = vpack.c.b16 %v1149, %v1146
  %v1795 = vpack.c.b16 %v1153, %v1150
  %v1796 = vpack.c.b16 %v1154, %v1151
  %v1797 = vpack.c.b16 %v1155, %v1152
  %v1798 = vpack.c.b16 %v1159, %v1156
  %v1799 = vpack.c.b16 %v1160, %v1157
  %v1800 = vpack.c.b16 %v1161, %v1158
  %v1801 = vpack.c.b16 %v1165, %v1162
  %v1802 = vpack.c.b16 %v1166, %v1163
  %v1803 = vpack.c.b16 %v1167, %v1164
  %v1804 = vpack.c.b16 %v1171, %v1168
  %v1805 = vpack.c.b16 %v1172, %v1169
  %v1806 = vpack.c.b16 %v1173, %v1170
  %v1807 = vpack.c.b16 %v1177, %v1174
  %v1808 = vpack.c.b16 %v1178, %v1175
  %v1809 = vpack.c.b16 %v1179, %v1176
  %v1810 = vpack.c.b16 %v1183, %v1180
  %v1811 = vpack.c.b16 %v1184, %v1181
  %v1812 = vpack.c.b16 %v1185, %v1182
  %v1813 = vpack.c.b16 %v1189, %v1186
  %v1814 = vpack.c.b16 %v1190, %v1187
  %v1815 = vpack.c.b16 %v1191, %v1188
  %v1816 = vpack.c.b16 %v1195, %v1192
  %v1817 = vpack.c.b16 %v1196, %v1193
  %v1818 = vpack.c.b16 %v1197, %v1194
  %v1819 = vpack.c.b16 %v1201, %v1198
  %v1820 = vpack.c.b16 %v1202, %v1199
  %v1821 = vpack.c.b16 %v1203, %v1200
  %v1822 = vpack.c.b16 %v1207, %v1204
  %v1823 = vpack.c.b16 %v1208, %v1205
  %v1824 = vpack.c.b16 %v1209, %v1206
  %v1825 = vpack.c.b16 %v1213, %v1210
  %v1826 = vpack.c.b16 %v1214, %v1211
  %v1827 = vpack.c.b16 %v1215, %v1212
  %v1828 = vpack.c.b16 %v1219, %v1216
  %v1829 = vpack.c.b16 %v1220, %v1217
  %v1830 = vpack.c.b16 %v1221, %v1218
  %v1831 = vpack.c.b16 %v1225, %v1222
  %v1832 = vpack.c.b16 %v1226, %v1223
  %v1833 = vpack.c.b16 %v1227, %v1224
  %v1834 = vpack.c.b16 %v1231, %v1228
  %v1835 = vpack.c.b16 %v1232, %v1229
  %v1836 = vpack.c.b16 %v1233, %v1230
  %v1837 = vpack.c.b16 %v1237, %v1234
  %v1838 = vpack.c.b16 %v1238, %v1235
  %v1839 = vpack.c.b16 %v1239, %v1236
  %v1840 = vpack.c.b16 %v1243, %v1240
  %v1841 = vpack.c.b16 %v1244, %v1241
  %v1842 = vpack.c.b16 %v1245, %v1242
  %v1843 = vpack.c.b16 %v1249, %v1246
  %v1844 = vpack.c.b16 %v1250, %v1247
  %v1845 = vpack.c.b16 %v1251, %v1248
  %v1846 = vpack.c.b16 %v1255, %v1252
  %v1847 = vpack.c.b16 %v1256, %v1253
  %v1848 = vpack.c.b16 %v1257, %v1254
  %v1849 = vpack.c.b16 %v1261, %v1258
  %v1850 = vpack.c.b16 %v1262, %v1259
  %v1851 = vpack.c.b16 %v1263, %v1260
  %v1852 = vpack.c.b16 %v1267, %v1264
  %v1853 = vpack.c.b16 %v1268, %v1265
  %v1854 = vpack.c.b16 %v1269, %v1266
  %v1855 = vpack.c.b16 %v1273, %v1270
  %v1856 = vpack.c.b16 %v1274, %v1271
  %v1857 = vpack.c.b16 %v1275, %v1272
  %v1858 = vpack.c.b16 %v1279, %v1276
  %v1859 = vpack.c.b16 %v1280, %v1277
  %v1860 = vpack.c.b16 %v1281, %v1278
  %v1861 = vpack.c.b16 %v1285, %v1282
  %v1862 = vpack.c.b16 %v1286, %v1283
  %v1863 = vpack.c.b16 %v1287, %v1284
  %v1864 = vpack.c.b16 %v1291, %v1288
  %v1865 = vpack.c.b16 %v1292, %v1289
  %v1866 = vpack.c.b16 %v1293, %v1290
  %v1867 = vpack.c.b16 %v1297, %v1294
  %v1868 = vpack.c.b16 %v1298, %v1295
  %v1869 = vpack.c.b16 %v1299, %v1296
  %v1870 = vpack.c.b16 %v1303, %v1300
  %v1871 = vpack.c.b16 %v1304, %v1301
  %v1872 = vpack.c.b16 %v1305, %v1302
  %v1873 = vpack.c.b16 %v1309, %v1306
  %v1874 = vpack.c.b16 %v1310, %v1307
  %v1875 = vpack.c.b16 %v1311, %v1308
  %v1876 = vpack.c.b16 %v1315, %v1312
  %v1877 = vpack.c.b16 %v1316, %v1313
  %v1878 = vpack.c.b16 %v1317, %v1314
  %v1879 = vpack.c.b16 %v1321, %v1318
  %v1880 = vpack.c.b16 %v1322, %v1319
  %v1881 = vpack.c.b16 %v1323, %v1320
  %v1882 = vpack.c.b16 %v1327, %v1324
  %v1883 = vpack.c.b16 %v1328, %v1325
  %v1884 = vpack.c.b16 %v1329, %v1326
  %v1885 = vpack.c.b16 %v1333, %v1330
  %v1886 = vpack.c.b16 %v1334, %v1331
  %v1887 = vpack.c.b16 %v1335, %v1332
  %v1888 = vpack.c.b16 %v1339, %v1336
  %v1889 = vpack.c.b16 %v1340, %v1337
  %v1890 = vpack.c.b16 %v1341, %v1338
  %v1891 = vpack.c.b16 %v1345, %v1342
  %v1892 = vpack.c.b16 %v1346, %v1343
  %v1893 = vpack.c.b16 %v1347, %v1344
  %v1894 = vpack.c.b16 %v1351, %v1348
  %v1895 = vpack.c.b16 %v1352, %v1349
  %v1896 = vpack.c.b16 %v1353, %v1350
  %v1897 = vpack.c.b16 %v1357, %v1354
  %v1898 = vpack.c.b16 %v1358, %v1355
  %v1899 = vpack.c.b16 %v1359, %v1356
  %v1900 = vpack.c.b16 %v1363, %v1360
  %v1901 = vpack.c.b16 %v1364, %v1361
  %v1902 = vpack.c.b16 %v1365, %v1362
  %v1903 = vpack.c.b16 %v1369, %v1366
  %v1904 = vpack.c.b16 %v1370, %v1367
  %v1905 = vpack.c.b16 %v1371, %v1368
  %v1906 = vpack.c.b16 %v1375, %v1372
  %v1907 = vpack.c.b16 %v1376, %v1373
  %v1908 = vpack.c.b16 %v1377, %v1374
  %v1909 = vpack.c.b16 %v1381, %v1378
  %v1910 = vpack.c.b16 %v1382, %v1379
  %v1911 = vpack.c.b16 %v1383, %v1380
  %v1912 = vpack.c.b16 %v1387, %v1384
  %v1913 = vpack.c.b16 %v1388, %v1385
  %v1914 = vpack.c.b16 %v1389, %v1386
  %v1915 = vpack.c.b16 %v1393, %v1390
  %v1916 = vpack.c.b16 %v1394, %v1391
  %v1917 = vpack.c.b16 %v1395, %v1392
  %v1918 = vpack.c.b16 %v1399, %v1396
  %v1919 = vpack.c.b16 %v1400, %v1397
  %v1920 = vpack.c.b16 %v1401, %v1398
  %v1921 = vpack.c.b16 %v1405, %v1402
  %v1922 = vpack.c.b16 %v1406, %v1403
  %v1923 = vpack.c.b16 %v1407, %v1404
  %v1924 = vpack.c.b16 %v1411, %v1408
  %v1925 = vpack.c.b16 %v1412, %v1409
  %v1926 = vpack.c.b16 %v1413, %v1410
  %v1927 = vpack.c.b16 %v1417, %v1414
  %v1928 = vpack.c.b16 %v1418, %v1415
  %v1929 = vpack.c.b16 %v1419, %v1416
  %v1930 = vpack.c.b16 %v1423, %v1420
  %v1931 = vpack.c.b16 %v1424, %v1421
  %v1932 = vpack.c.b16 %v1425, %v1422
  %v1933 = vpack.c.b16 %v1429, %v1426
  %v1934 = vpack.c.b16 %v1430, %v1427
  %v1935 = vpack.c.b16 %v1431, %v1428
  %v1936 = vpack.c.b16 %v1435, %v1432
  %v1937 = vpack.c.b16 %v1436, %v1433
  %v1938 = vpack.c.b16 %v1437, %v1434
  %v1939 = vpack.c.b16 %v1441, %v1438
  %v1940 = vpack.c.b16 %v1442, %v1439
  %v1941 = vpack.c.b16 %v1443, %v1440
  %v1942 = vpack.c.b16 %v1447, %v1444
  %v1943 = vpack.c.b16 %v1448, %v1445
  %v1944 = vpack.c.b16 %v1449, %v1446
  %v1945 = vpack.c.b16 %v1453, %v1450
  %v1946 = vpack.c.b16 %v1454, %v1451
  %v1947 = vpack.c.b16 %v1455, %v1452
  %v1948 = vpack.c.b16 %v1459, %v1456
  %v1949 = vpack.c.b16 %v1460, %v1457
  %v1950 = vpack.c.b16 %v1461, %v1458
  %v1951 = vpack.c.b16 %v1465, %v1462
  %v1952 = vpack.c.b16 %v1466, %v1463
  %v1953 = vpack.c.b16 %v1467, %v1464
  %v1954 = vpack.c.b16 %v1471, %v1468
  %v1955 = vpack.c.b16 %v1472, %v1469
  %v1956 = vpack.c.b16 %v1473, %v1470
  %v1957 = vpack.c.b16 %v1477, %v1474
  %v1958 = vpack.c.b16 %v1478, %v1475
  %v1959 = vpack.c.b16 %v1479, %v1476
  %v1960 = vpack.c.b16 %v1483, %v1480
  %v1961 = vpack.c.b16 %v1484, %v1481
  %v1962 = vpack.c.b16 %v1485, %v1482
  %v1963 = vpack.c.b16 %v1489, %v1486
  %v1964 = vpack.c.b16 %v1490, %v1487
  %v1965 = vpack.c.b16 %v1491, %v1488
  %v1966 = vpack.c.b16 %v1495, %v1492
  %v1967 = vpack.c.b16 %v1496, %v1493
  %v1968 = vpack.c.b16 %v1497, %v1494
  %v1969 = vpack.c.b16 %v1501, %v1498
  %v1970 = vpack.c.b16 %v1502, %v1499
  %v1971 = vpack.c.b16 %v1503, %v1500
  %v1972 = vpack.c.b16 %v1507, %v1504
  %v1973 = vpack.c.b16 %v1508, %v1505
  %v1974 = vpack.c.b16 %v1509, %v1506
  %v1975 = vpack.c.b16 %v1513, %v1510
  %v1976 = vpack.c.b16 %v1514, %v1511
  %v1977 = vpack.c.b16 %v1515, %v1512
  %v1978 = vpack.c.b16 %v1519, %v1516
  %v1979 = vpack.c.b16 %v1520, %v1517
  %v1980 = vpack.c.b16 %v1521, %v1518
  %v1981 = vpack.c.b16 %v1525, %v1522
  %v1982 = vpack.c.b16 %v1526, %v1523
  %v1983 = vpack.c.b16 %v1527, %v1524
  %v1984 = vpack.c.b16 %v1531, %v1528
  %v1985 = vpack.c.b16 %v1532, %v1529
  %v1986 = vpack.c.b16 %v1533, %v1530
  %v1987 = vpack.c.b16 %v1537, %v1534
  %v1988 = vpack.c.b16 %v1538, %v1535
  %v1989 = vpack.c.b16 %v1539, %v1536
  %v1990 = vpack.c.b16 %v1543, %v1540
  %v1991 = vpack.c.b16 %v1544, %v1541
  %v1992 = vpack.c.b16 %v1545, %v1542
  %v1993 = vpack.c.b16 %v1549, %v1546
  %v1994 = vpack.c.b16 %v1550, %v1547
  %v1995 = vpack.c.b16 %v1551, %v1548
  %v1996 = vpack.c.b16 %v1555, %v1552
  %v1997 = vpack.c.b16 %v1556, %v1553
  %v1998 = vpack.c.b16 %v1557, %v1554
  %v1999 = vpack.c.b16 %v1561, %v1558
  %v2000 = vpack.c.b16 %v1562, %v1559
  %v2001 = vpack.c.b16 %v1563, %v1560
  %v2002 = vpack.c.b16 %v1567, %v1564
  %v2003 = vpack.c.b16 %v1568, %v1565
  %v2004 = vpack.c.b16 %v1569, %v1566
  %v2005 = vpack.c.b16 %v1573, %v1570
  %v2006 = vpack.c.b16 %v1574, %v1571
  %v2007 = vpack.c.b16 %v1575, %v1572
  %v2008 = vpack.c.b16 %v1579, %v1576
  %v2009 = vpack.c.b16 %v1580, %v1577
  %v2010 = vpack.c.b16 %v1581, %v1578
  %v2011 = vpack.c.b16 %v1585, %v1582
  %v2012 = vpack.c.b16 %v1586, %v1583
  %v2013 = vpack.c.b16 %v1587, %v1584
  %v2014 = vpack.c.b16 %v1591, %v1588
  %v2015 = vpack.c.b16 %v1592, %v1589
  %v2016 = vpack.c.b16 %v1593, %v1590
  %v2017 = vpack.c.b16 %v1597, %v1594
  %v2018 = vpack.c.b16 %v1598, %v1595
  %v2019 = vpack.c.b16 %v1599, %v1596
  %v2020 = vpack.c.b16 %v1603, %v1600
  %v2021 = vpack.c.b16 %v1604, %v1601
  %v2022 = vpack.c.b16 %v1605, %v1602
  %v2023 = vpack.c.b16 %v1609, %v1606
  %v2024 = vpack.c.b16 %v1610, %v1607
  %v2025 = vpack.c.b16 %v1611, %v1608
  %v2026 = vpack.c.b16 %v1615, %v1612
  %v2027 = vpack.c.b16 %v1616, %v1613
  %v2028 = vpack.c.b16 %v1617, %v1614
  %v2029 = vpack.c.b16 %v1621, %v1618
  %v2030 = vpack.c.b16 %v1622, %v1619
  %v2031 = vpack.c.b16 %v1623, %v1620
  %v2032 = vpack.c.b16 %v1627, %v1624
  %v2033 = vpack.c.b16 %v1628, %v1625
  %v2034 = vpack.c.b16 %v1629, %v1626
  %v2035 = vpack.c.b16 %v1633, %v1630
  %v2036 = vpack.c.b16 %v1634, %v1631
  %v2037 = vpack.c.b16 %v1635, %v1632
  %v2038 = vpack.c.b16 %v1639, %v1636
  %v2039 = vpack.c.b16 %v1640, %v1637
  %v2040 = vpack.c.b16 %v1641, %v1638
  %v2041 = vpack.c.b16 %v1645, %v1642
  %v2042 = vpack.c.b16 %v1646, %v1643
  %v2043 = vpack.c.b16 %v1647, %v1644
  %v2044 = vpack.c.b16 %v1651, %v1648
  %v2045 = vpack.c.b16 %v1652, %v1649
  %v2046 = vpack.c.b16 %v1653, %v1650
  %v2047 = vpack.c.b16 %v1657, %v1654
  %v2048 = vpack.c.b16 %v1658, %v1655
  %v2049 = vpack.c.b16 %v1659, %v1656
  %v2050 = vpack.c.b16 %v1663, %v1660
  %v2051 = vpack.c.b16 %v1664, %v1661
  %v2052 = vpack.c.b16 %v1665, %v1662
  %v2053 = vpack.c.b16 %v1669, %v1666
  %v2054 = vpack.c.b16 %v1670, %v1667
  %v2055 = vpack.c.b16 %v1671, %v1668
  %v2056 = vpack.c.b16 %v1675, %v1672
  %v2057 = vpack.c.b16 %v1676, %v1673
  %v2058 = vpack.c.b16 %v1677, %v1674
  %v2059 = vpack.c.b16 %v1681, %v1678
  %v2060 = vpack.c.b16 %v1682, %v1679
  %v2061 = vpack.c.b16 %v1683, %v1680
  %v2062 = vpack.c.b16 %v1687, %v1684
  %v2063 = vpack.c.b16 %v1688, %v1685
  %v2064 = vpack.c.b16 %v1689, %v1686
  %v2065 = vpack.c.b16 %v1693, %v1690
  %v2066 = vpack.c.b16 %v1694, %v1691
  %v2067 = vpack.c.b16 %v1695, %v1692
  %v2068 = vpack.c.b16 %v1699, %v1696
  %v2069 = vpack.c.b16 %v1700, %v1697
  %v2070 = vpack.c.b16 %v1701, %v1698
  %v2071 = vpack.c.b16 %v1705, %v1702
  %v2072 = vpack.c.b16 %v1706, %v1703
  %v2073 = vpack.c.b16 %v1707, %v1704
  %v2074 = vpack.c.b16 %v1711, %v1708
  %v2075 = vpack.c.b16 %v1712, %v1709
  %v2076 = vpack.c.b16 %v1713, %v1710
  %v2077 = vpack.c.b16 %v1717, %v1714
  %v2078 = vpack.c.b16 %v1718, %v1715
  %v2079 = vpack.c.b16 %v1719, %v1716
  %v2080 = vpack.c.b16 %v1723, %v1720
  %v2081 = vpack.c.b16 %v1724, %v1721
  %v2082 = vpack.c.b16 %v1725, %v1722
  %v2083 = vpack.c.b16 %v1729, %v1726
  %v2084 = vpack.c.b16 %v1730, %v1727
  %v2085 = vpack.c.b16 %v1731, %v1728
  %v2086 = vpack.c.b16 %v1735, %v1732
  %v2087 = vpack.c.b16 %v1736, %v1733
  %v2088 = vpack.c.b16 %v1737, %v1734
  %v2089 = vpack.c.b16 %v1741, %v1738
  %v2090 = vpack.c.b16 %v1742, %v1739
  %v2091 = vpack.c.b16 %v1743, %v1740
  %v2092 = vpack.c.b16 %v1747, %v1744
  %v2093 = vpack.c.b16 %v1748, %v1745
  %v2094 = vpack.c.b16 %v1749, %v1746
  %v2095 = vpack.c.b16 %v1753, %v1750
  %v2096 = vpack.c.b16 %v1754, %v1751
  %v2097 = vpack.c.b16 %v1755, %v1752
  %v2098 = vpack.c.b16 %v1759, %v1756
  %v2099 = vpack.c.b16 %v1760, %v1757
  %v2100 = vpack.c.b16 %v1761, %v1758
  %v2101 = vpack.c.b16 %v1765, %v1762
  %v2102 = vpack.c.b16 %v1766, %v1763
  %v2103 = vpack.c.b16 %v1767, %v1764
  %2440 = vmatprep.subr.bf16.mxu0 %v1790
  %2441 = vmatpush1.bf16.msra.mxu0 %v1789
  %2442 = vmatprep.subr.bf16.mxu0 %v1787
  %2443 = vmatpush1.bf16.msra.mxu0 %v1786
  %2444 = vmatprep.subr.bf16.mxu0 %v1784
  %2445 = vmatpush1.bf16.msra.mxu0 %v1783
  %2446 = vmatprep.subr.bf16.mxu0 %v1781
  %2447 = vmatpush1.bf16.msra.mxu0 %v1780
  %2448 = vmatprep.subr.bf16.mxu0 %v1778
  %2449 = vmatpush1.bf16.msra.mxu0 %v1777
  %2450 = vmatprep.subr.bf16.mxu0 %v1775
  %2451 = vmatpush1.bf16.msra.mxu0 %v1774
  %2452 = vmatprep.subr.bf16.mxu0 %v1772
  %2453 = vmatpush1.bf16.msra.mxu0 %v1771
  %2454 = vmatprep.subr.bf16.mxu0 %v1769
  %2455 = vmatpush1.bf16.msra.mxu0 %v1768
  %2456 = vmatprep.subr.bf16.mxu0 %v1814
  %2457 = vmatpush2.bf16.msra.mxu0 %v1813
  %2458 = vmatprep.subr.bf16.mxu0 %v1811
  %2459 = vmatpush2.bf16.msra.mxu0 %v1810
  %2460 = vmatprep.subr.bf16.mxu0 %v1808
  %2461 = vmatpush2.bf16.msra.mxu0 %v1807
  %2462 = vmatprep.subr.bf16.mxu0 %v1805
  %2463 = vmatpush2.bf16.msra.mxu0 %v1804
  %2464 = vmatprep.subr.bf16.mxu0 %v1802
  %2465 = vmatpush2.bf16.msra.mxu0 %v1801
  %2466 = vmatprep.subr.bf16.mxu0 %v1799
  %2467 = vmatpush2.bf16.msra.mxu0 %v1798
  %2468 = vmatprep.subr.bf16.mxu0 %v1796
  %2469 = vmatpush2.bf16.msra.mxu0 %v1795
  %2470 = vmatprep.subr.bf16.mxu0 %v1793
  %2471 = vmatpush2.bf16.msra.mxu0 %v1792
  %2472 = vmatprep.mubr.bf16.mxu0 %v593
  %2473 = vmatmul.mubr.bf16.gmra.mxu0 %v592
  %v2474 = vpop.f32.mrf.mxu0
  %v2475 = vadd.f32 %v496, %v2474
  %v2476 = vpop.f32.mrf.mxu0
  %v2477 = vadd.f32 %v500, %v2476
  %v2478 = vpop.f32.mrf.mxu0
  %v2479 = vadd.f32 %v496, %v2478
  %v2480 = vpop.f32.mrf.mxu0
  %v2481 = vadd.f32 %v500, %v2480
  %2482 = vmatprep.mubr.bf16.mxu0 %v607
  %2483 = vmatmul.mubr.bf16.gmra.mxu0 %v606
  %v2484 = vpop.f32.mrf.mxu0
  %v2485 = vadd.f32 %v496, %v2484
  %v2486 = vpop.f32.mrf.mxu0
  %v2487 = vadd.f32 %v500, %v2486
  %v2488 = vpop.f32.mrf.mxu0
  %v2489 = vadd.f32 %v496, %v2488
  %v2490 = vpop.f32.mrf.mxu0
  %v2491 = vadd.f32 %v500, %v2490
  %2492 = vdwg.mxu0
  %2493 = vmatprep.subr.bf16.mxu0 %v1838
  %2494 = vmatpush1.bf16.msra.mxu0 %v1837
  %2495 = vmatprep.subr.bf16.mxu0 %v1835
  %2496 = vmatpush1.bf16.msra.mxu0 %v1834
  %2497 = vmatprep.subr.bf16.mxu0 %v1832
  %2498 = vmatpush1.bf16.msra.mxu0 %v1831
  %2499 = vmatprep.subr.bf16.mxu0 %v1829
  %2500 = vmatpush1.bf16.msra.mxu0 %v1828
  %2501 = vmatprep.subr.bf16.mxu0 %v1826
  %2502 = vmatpush1.bf16.msra.mxu0 %v1825
  %2503 = vmatprep.subr.bf16.mxu0 %v1823
  %2504 = vmatpush1.bf16.msra.mxu0 %v1822
  %2505 = vmatprep.subr.bf16.mxu0 %v1820
  %2506 = vmatpush1.bf16.msra.mxu0 %v1819
  %2507 = vmatprep.subr.bf16.mxu0 %v1817
  %2508 = vmatpush1.bf16.msra.mxu0 %v1816
  %2509 = vmatprep.subr.bf16.mxu0 %v1862
  %2510 = vmatpush2.bf16.msra.mxu0 %v1861
  %2511 = vmatprep.subr.bf16.mxu0 %v1859
  %2512 = vmatpush2.bf16.msra.mxu0 %v1858
  %2513 = vmatprep.subr.bf16.mxu0 %v1856
  %2514 = vmatpush2.bf16.msra.mxu0 %v1855
  %2515 = vmatprep.subr.bf16.mxu0 %v1853
  %2516 = vmatpush2.bf16.msra.mxu0 %v1852
  %2517 = vmatprep.subr.bf16.mxu0 %v1850
  %2518 = vmatpush2.bf16.msra.mxu0 %v1849
  %2519 = vmatprep.subr.bf16.mxu0 %v1847
  %2520 = vmatpush2.bf16.msra.mxu0 %v1846
  %2521 = vmatprep.subr.bf16.mxu0 %v1844
  %2522 = vmatpush2.bf16.msra.mxu0 %v1843
  %2523 = vmatprep.subr.bf16.mxu0 %v1841
  %2524 = vmatpush2.bf16.msra.mxu0 %v1840
  %2525 = vmatprep.mubr.bf16.mxu0 %v595
  %2526 = vmatmul.mubr.bf16.gmra.mxu0 %v594
  %v2527 = vpop.f32.mrf.mxu0
  %v2528 = vadd.f32 %v2475, %v2527
  %v2529 = vpop.f32.mrf.mxu0
  %v2530 = vadd.f32 %v2477, %v2529
  %v2531 = vpop.f32.mrf.mxu0
  %v2532 = vadd.f32 %v2479, %v2531
  %v2533 = vpop.f32.mrf.mxu0
  %v2534 = vadd.f32 %v2481, %v2533
  %2535 = vmatprep.mubr.bf16.mxu0 %v609
  %2536 = vmatmul.mubr.bf16.gmra.mxu0 %v608
  %v2537 = vpop.f32.mrf.mxu0
  %v2538 = vadd.f32 %v2485, %v2537
  %v2539 = vpop.f32.mrf.mxu0
  %v2540 = vadd.f32 %v2487, %v2539
  %v2541 = vpop.f32.mrf.mxu0
  %v2542 = vadd.f32 %v2489, %v2541
  %v2543 = vpop.f32.mrf.mxu0
  %v2544 = vadd.f32 %v2491, %v2543
  %2545 = vdwg.mxu0
  %2546 = vmatprep.subr.bf16.mxu0 %v1886
  %2547 = vmatpush1.bf16.msra.mxu0 %v1885
  %2548 = vmatprep.subr.bf16.mxu0 %v1883
  %2549 = vmatpush1.bf16.msra.mxu0 %v1882
  %2550 = vmatprep.subr.bf16.mxu0 %v1880
  %2551 = vmatpush1.bf16.msra.mxu0 %v1879
  %2552 = vmatprep.subr.bf16.mxu0 %v1877
  %2553 = vmatpush1.bf16.msra.mxu0 %v1876
  %2554 = vmatprep.subr.bf16.mxu0 %v1874
  %2555 = vmatpush1.bf16.msra.mxu0 %v1873
  %2556 = vmatprep.subr.bf16.mxu0 %v1871
  %2557 = vmatpush1.bf16.msra.mxu0 %v1870
  %2558 = vmatprep.subr.bf16.mxu0 %v1868
  %2559 = vmatpush1.bf16.msra.mxu0 %v1867
  %2560 = vmatprep.subr.bf16.mxu0 %v1865
  %2561 = vmatpush1.bf16.msra.mxu0 %v1864
  %2562 = vmatprep.subr.bf16.mxu0 %v1910
  %2563 = vmatpush2.bf16.msra.mxu0 %v1909
  %2564 = vmatprep.subr.bf16.mxu0 %v1907
  %2565 = vmatpush2.bf16.msra.mxu0 %v1906
  %2566 = vmatprep.subr.bf16.mxu0 %v1904
  %2567 = vmatpush2.bf16.msra.mxu0 %v1903
  %2568 = vmatprep.subr.bf16.mxu0 %v1901
  %2569 = vmatpush2.bf16.msra.mxu0 %v1900
  %2570 = vmatprep.subr.bf16.mxu0 %v1898
  %2571 = vmatpush2.bf16.msra.mxu0 %v1897
  %2572 = vmatprep.subr.bf16.mxu0 %v1895
  %2573 = vmatpush2.bf16.msra.mxu0 %v1894
  %2574 = vmatprep.subr.bf16.mxu0 %v1892
  %2575 = vmatpush2.bf16.msra.mxu0 %v1891
  %2576 = vmatprep.subr.bf16.mxu0 %v1889
  %2577 = vmatpush2.bf16.msra.mxu0 %v1888
  %2578 = vmatprep.mubr.bf16.mxu0 %v597
  %2579 = vmatmul.mubr.bf16.gmra.mxu0 %v596
  %v2580 = vpop.f32.mrf.mxu0
  %v2581 = vadd.f32 %v2528, %v2580
  %v2582 = vpop.f32.mrf.mxu0
  %v2583 = vadd.f32 %v2530, %v2582
  %v2584 = vpop.f32.mrf.mxu0
  %v2585 = vadd.f32 %v2532, %v2584
  %v2586 = vpop.f32.mrf.mxu0
  %v2587 = vadd.f32 %v2534, %v2586
  %2588 = vmatprep.mubr.bf16.mxu0 %v611
  %2589 = vmatmul.mubr.bf16.gmra.mxu0 %v610
  %v2590 = vpop.f32.mrf.mxu0
  %v2591 = vadd.f32 %v2538, %v2590
  %v2592 = vpop.f32.mrf.mxu0
  %v2593 = vadd.f32 %v2540, %v2592
  %v2594 = vpop.f32.mrf.mxu0
  %v2595 = vadd.f32 %v2542, %v2594
  %v2596 = vpop.f32.mrf.mxu0
  %v2597 = vadd.f32 %v2544, %v2596
  %2598 = vdwg.mxu0
  %2599 = vmatprep.subr.bf16.mxu0 %v1934
  %2600 = vmatpush1.bf16.msra.mxu0 %v1933
  %2601 = vmatprep.subr.bf16.mxu0 %v1931
  %2602 = vmatpush1.bf16.msra.mxu0 %v1930
  %2603 = vmatprep.subr.bf16.mxu0 %v1928
  %2604 = vmatpush1.bf16.msra.mxu0 %v1927
  %2605 = vmatprep.subr.bf16.mxu0 %v1925
  %2606 = vmatpush1.bf16.msra.mxu0 %v1924
  %2607 = vmatprep.subr.bf16.mxu0 %v1922
  %2608 = vmatpush1.bf16.msra.mxu0 %v1921
  %2609 = vmatprep.subr.bf16.mxu0 %v1919
  %2610 = vmatpush1.bf16.msra.mxu0 %v1918
  %2611 = vmatprep.subr.bf16.mxu0 %v1916
  %2612 = vmatpush1.bf16.msra.mxu0 %v1915
  %2613 = vmatprep.subr.bf16.mxu0 %v1913
  %2614 = vmatpush1.bf16.msra.mxu0 %v1912
  %2615 = vmatprep.subr.bf16.mxu0 %v1958
  %2616 = vmatpush2.bf16.msra.mxu0 %v1957
  %2617 = vmatprep.subr.bf16.mxu0 %v1955
  %2618 = vmatpush2.bf16.msra.mxu0 %v1954
  %2619 = vmatprep.subr.bf16.mxu0 %v1952
  %2620 = vmatpush2.bf16.msra.mxu0 %v1951
  %2621 = vmatprep.subr.bf16.mxu0 %v1949
  %2622 = vmatpush2.bf16.msra.mxu0 %v1948
  %2623 = vmatprep.subr.bf16.mxu0 %v1946
  %2624 = vmatpush2.bf16.msra.mxu0 %v1945
  %2625 = vmatprep.subr.bf16.mxu0 %v1943
  %2626 = vmatpush2.bf16.msra.mxu0 %v1942
  %2627 = vmatprep.subr.bf16.mxu0 %v1940
  %2628 = vmatpush2.bf16.msra.mxu0 %v1939
  %2629 = vmatprep.subr.bf16.mxu0 %v1937
  %2630 = vmatpush2.bf16.msra.mxu0 %v1936
  %2631 = vmatprep.mubr.bf16.mxu0 %v599
  %2632 = vmatmul.mubr.bf16.gmra.mxu0 %v598
  %v2633 = vpop.f32.mrf.mxu0
  %v2634 = vadd.f32 %v2581, %v2633
  %v2635 = vpop.f32.mrf.mxu0
  %v2636 = vadd.f32 %v2583, %v2635
  %v2637 = vpop.f32.mrf.mxu0
  %v2638 = vadd.f32 %v2585, %v2637
  %v2639 = vpop.f32.mrf.mxu0
  %v2640 = vadd.f32 %v2587, %v2639
  %2641 = vmatprep.mubr.bf16.mxu0 %v613
  %2642 = vmatmul.mubr.bf16.gmra.mxu0 %v612
  %v2643 = vpop.f32.mrf.mxu0
  %v2644 = vadd.f32 %v2591, %v2643
  %v2645 = vpop.f32.mrf.mxu0
  %v2646 = vadd.f32 %v2593, %v2645
  %v2647 = vpop.f32.mrf.mxu0
  %v2648 = vadd.f32 %v2595, %v2647
  %v2649 = vpop.f32.mrf.mxu0
  %v2650 = vadd.f32 %v2597, %v2649
  %2651 = vdwg.mxu0
  %2652 = vmatprep.subr.bf16.mxu0 %v1982
  %2653 = vmatpush1.bf16.msra.mxu0 %v1981
  %2654 = vmatprep.subr.bf16.mxu0 %v1979
  %2655 = vmatpush1.bf16.msra.mxu0 %v1978
  %2656 = vmatprep.subr.bf16.mxu0 %v1976
  %2657 = vmatpush1.bf16.msra.mxu0 %v1975
  %2658 = vmatprep.subr.bf16.mxu0 %v1973
  %2659 = vmatpush1.bf16.msra.mxu0 %v1972
  %2660 = vmatprep.subr.bf16.mxu0 %v1970
  %2661 = vmatpush1.bf16.msra.mxu0 %v1969
  %2662 = vmatprep.subr.bf16.mxu0 %v1967
  %2663 = vmatpush1.bf16.msra.mxu0 %v1966
  %2664 = vmatprep.subr.bf16.mxu0 %v1964
  %2665 = vmatpush1.bf16.msra.mxu0 %v1963
  %2666 = vmatprep.subr.bf16.mxu0 %v1961
  %2667 = vmatpush1.bf16.msra.mxu0 %v1960
  %2668 = vmatprep.subr.bf16.mxu0 %v2006
  %2669 = vmatpush2.bf16.msra.mxu0 %v2005
  %2670 = vmatprep.subr.bf16.mxu0 %v2003
  %2671 = vmatpush2.bf16.msra.mxu0 %v2002
  %2672 = vmatprep.subr.bf16.mxu0 %v2000
  %2673 = vmatpush2.bf16.msra.mxu0 %v1999
  %2674 = vmatprep.subr.bf16.mxu0 %v1997
  %2675 = vmatpush2.bf16.msra.mxu0 %v1996
  %2676 = vmatprep.subr.bf16.mxu0 %v1994
  %2677 = vmatpush2.bf16.msra.mxu0 %v1993
  %2678 = vmatprep.subr.bf16.mxu0 %v1991
  %2679 = vmatpush2.bf16.msra.mxu0 %v1990
  %2680 = vmatprep.subr.bf16.mxu0 %v1988
  %2681 = vmatpush2.bf16.msra.mxu0 %v1987
  %2682 = vmatprep.subr.bf16.mxu0 %v1985
  %2683 = vmatpush2.bf16.msra.mxu0 %v1984
  %2684 = vmatprep.mubr.bf16.mxu0 %v601
  %2685 = vmatmul.mubr.bf16.gmra.mxu0 %v600
  %v2686 = vpop.f32.mrf.mxu0
  %v2687 = vadd.f32 %v2634, %v2686
  %v2688 = vpop.f32.mrf.mxu0
  %v2689 = vadd.f32 %v2636, %v2688
  %v2690 = vpop.f32.mrf.mxu0
  %v2691 = vadd.f32 %v2638, %v2690
  %v2692 = vpop.f32.mrf.mxu0
  %v2693 = vadd.f32 %v2640, %v2692
  %2694 = vmatprep.mubr.bf16.mxu0 %v615
  %2695 = vmatmul.mubr.bf16.gmra.mxu0 %v614
  %v2696 = vpop.f32.mrf.mxu0
  %v2697 = vadd.f32 %v2644, %v2696
  %v2698 = vpop.f32.mrf.mxu0
  %v2699 = vadd.f32 %v2646, %v2698
  %v2700 = vpop.f32.mrf.mxu0
  %v2701 = vadd.f32 %v2648, %v2700
  %v2702 = vpop.f32.mrf.mxu0
  %v2703 = vadd.f32 %v2650, %v2702
  %2704 = vdwg.mxu0
  %2705 = vmatprep.subr.bf16.mxu0 %v2030
  %2706 = vmatpush1.bf16.msra.mxu0 %v2029
  %2707 = vmatprep.subr.bf16.mxu0 %v2027
  %2708 = vmatpush1.bf16.msra.mxu0 %v2026
  %2709 = vmatprep.subr.bf16.mxu0 %v2024
  %2710 = vmatpush1.bf16.msra.mxu0 %v2023
  %2711 = vmatprep.subr.bf16.mxu0 %v2021
  %2712 = vmatpush1.bf16.msra.mxu0 %v2020
  %2713 = vmatprep.subr.bf16.mxu0 %v2018
  %2714 = vmatpush1.bf16.msra.mxu0 %v2017
  %2715 = vmatprep.subr.bf16.mxu0 %v2015
  %2716 = vmatpush1.bf16.msra.mxu0 %v2014
  %2717 = vmatprep.subr.bf16.mxu0 %v2012
  %2718 = vmatpush1.bf16.msra.mxu0 %v2011
  %2719 = vmatprep.subr.bf16.mxu0 %v2009
  %2720 = vmatpush1.bf16.msra.mxu0 %v2008
  %2721 = vmatprep.subr.bf16.mxu0 %v2054
  %2722 = vmatpush2.bf16.msra.mxu0 %v2053
  %2723 = vmatprep.subr.bf16.mxu0 %v2051
  %2724 = vmatpush2.bf16.msra.mxu0 %v2050
  %2725 = vmatprep.subr.bf16.mxu0 %v2048
  %2726 = vmatpush2.bf16.msra.mxu0 %v2047
  %2727 = vmatprep.subr.bf16.mxu0 %v2045
  %2728 = vmatpush2.bf16.msra.mxu0 %v2044
  %2729 = vmatprep.subr.bf16.mxu0 %v2042
  %2730 = vmatpush2.bf16.msra.mxu0 %v2041
  %2731 = vmatprep.subr.bf16.mxu0 %v2039
  %2732 = vmatpush2.bf16.msra.mxu0 %v2038
  %2733 = vmatprep.subr.bf16.mxu0 %v2036
  %2734 = vmatpush2.bf16.msra.mxu0 %v2035
  %2735 = vmatprep.subr.bf16.mxu0 %v2033
  %2736 = vmatpush2.bf16.msra.mxu0 %v2032
  %2737 = vmatprep.mubr.bf16.mxu0 %v603
  %2738 = vmatmul.mubr.bf16.gmra.mxu0 %v602
  %v2739 = vpop.f32.mrf.mxu0
  %v2740 = vadd.f32 %v2687, %v2739
  %v2741 = vpop.f32.mrf.mxu0
  %v2742 = vadd.f32 %v2689, %v2741
  %v2743 = vpop.f32.mrf.mxu0
  %v2744 = vadd.f32 %v2691, %v2743
  %v2745 = vpop.f32.mrf.mxu0
  %v2746 = vadd.f32 %v2693, %v2745
  %2747 = vmatprep.mubr.bf16.mxu0 %v617
  %2748 = vmatmul.mubr.bf16.gmra.mxu0 %v616
  %v2749 = vpop.f32.mrf.mxu0
  %v2750 = vadd.f32 %v2697, %v2749
  %v2751 = vpop.f32.mrf.mxu0
  %v2752 = vadd.f32 %v2699, %v2751
  %v2753 = vpop.f32.mrf.mxu0
  %v2754 = vadd.f32 %v2701, %v2753
  %v2755 = vpop.f32.mrf.mxu0
  %v2756 = vadd.f32 %v2703, %v2755
  %2757 = vdwg.mxu0
  %2758 = vmatprep.subr.bf16.mxu0 %v2078
  %2759 = vmatpush1.bf16.msra.mxu0 %v2077
  %2760 = vmatprep.subr.bf16.mxu0 %v2075
  %2761 = vmatpush1.bf16.msra.mxu0 %v2074
  %2762 = vmatprep.subr.bf16.mxu0 %v2072
  %2763 = vmatpush1.bf16.msra.mxu0 %v2071
  %2764 = vmatprep.subr.bf16.mxu0 %v2069
  %2765 = vmatpush1.bf16.msra.mxu0 %v2068
  %2766 = vmatprep.subr.bf16.mxu0 %v2066
  %2767 = vmatpush1.bf16.msra.mxu0 %v2065
  %2768 = vmatprep.subr.bf16.mxu0 %v2063
  %2769 = vmatpush1.bf16.msra.mxu0 %v2062
  %2770 = vmatprep.subr.bf16.mxu0 %v2060
  %2771 = vmatpush1.bf16.msra.mxu0 %v2059
  %2772 = vmatprep.subr.bf16.mxu0 %v2057
  %2773 = vmatpush1.bf16.msra.mxu0 %v2056
  %2774 = vmatprep.subr.bf16.mxu0 %v2102
  %2775 = vmatpush2.bf16.msra.mxu0 %v2101
  %2776 = vmatprep.subr.bf16.mxu0 %v2099
  %2777 = vmatpush2.bf16.msra.mxu0 %v2098
  %2778 = vmatprep.subr.bf16.mxu0 %v2096
  %2779 = vmatpush2.bf16.msra.mxu0 %v2095
  %2780 = vmatprep.subr.bf16.mxu0 %v2093
  %2781 = vmatpush2.bf16.msra.mxu0 %v2092
  %2782 = vmatprep.subr.bf16.mxu0 %v2090
  %2783 = vmatpush2.bf16.msra.mxu0 %v2089
  %2784 = vmatprep.subr.bf16.mxu0 %v2087
  %2785 = vmatpush2.bf16.msra.mxu0 %v2086
  %2786 = vmatprep.subr.bf16.mxu0 %v2084
  %2787 = vmatpush2.bf16.msra.mxu0 %v2083
  %2788 = vmatprep.subr.bf16.mxu0 %v2081
  %2789 = vmatpush2.bf16.msra.mxu0 %v2080
  %2790 = vmatprep.mubr.bf16.mxu0 %v605
  %2791 = vmatmul.mubr.bf16.gmra.mxu0 %v604
  %v2792 = vpop.f32.mrf.mxu0
  %v2793 = vadd.f32 %v2740, %v2792
  %v2794 = vpop.f32.mrf.mxu0
  %v2795 = vadd.f32 %v2742, %v2794
  %v2796 = vpop.f32.mrf.mxu0
  %v2797 = vadd.f32 %v2744, %v2796
  %v2798 = vpop.f32.mrf.mxu0
  %v2799 = vadd.f32 %v2746, %v2798
  %2800 = vmatprep.mubr.bf16.mxu0 %v619
  %2801 = vmatmul.mubr.bf16.gmra.mxu0 %v618
  %v2802 = vpop.f32.mrf.mxu0
  %v2803 = vadd.f32 %v2750, %v2802
  %v2804 = vpop.f32.mrf.mxu0
  %v2805 = vadd.f32 %v2752, %v2804
  %v2806 = vpop.f32.mrf.mxu0
  %v2807 = vadd.f32 %v2754, %v2806
  %v2808 = vpop.f32.mrf.mxu0
  %v2809 = vadd.f32 %v2756, %v2808
  %2810 = vdwg.mxu0
  %2811 = vmatprep.subr.bf16.mxu0 0
  %2812 = vmatpush1.bf16.msra.mxu0 %v1791
  %2813 = vmatprep.subr.bf16.mxu0 0
  %2814 = vmatpush1.bf16.msra.mxu0 %v1788
  %2815 = vmatprep.subr.bf16.mxu0 0
  %2816 = vmatpush1.bf16.msra.mxu0 %v1785
  %2817 = vmatprep.subr.bf16.mxu0 0
  %2818 = vmatpush1.bf16.msra.mxu0 %v1782
  %2819 = vmatprep.subr.bf16.mxu0 0
  %2820 = vmatpush1.bf16.msra.mxu0 %v1779
  %2821 = vmatprep.subr.bf16.mxu0 0
  %2822 = vmatpush1.bf16.msra.mxu0 %v1776
  %2823 = vmatprep.subr.bf16.mxu0 0
  %2824 = vmatpush1.bf16.msra.mxu0 %v1773
  %2825 = vmatprep.subr.bf16.mxu0 0
  %2826 = vmatpush1.bf16.msra.mxu0 %v1770
  %2827 = vmatprep.subr.bf16.mxu0 0
  %2828 = vmatpush2.bf16.msra.mxu0 %v1815
  %2829 = vmatprep.subr.bf16.mxu0 0
  %2830 = vmatpush2.bf16.msra.mxu0 %v1812
  %2831 = vmatprep.subr.bf16.mxu0 0
  %2832 = vmatpush2.bf16.msra.mxu0 %v1809
  %2833 = vmatprep.subr.bf16.mxu0 0
  %2834 = vmatpush2.bf16.msra.mxu0 %v1806
  %2835 = vmatprep.subr.bf16.mxu0 0
  %2836 = vmatpush2.bf16.msra.mxu0 %v1803
  %2837 = vmatprep.subr.bf16.mxu0 0
  %2838 = vmatpush2.bf16.msra.mxu0 %v1800
  %2839 = vmatprep.subr.bf16.mxu0 0
  %2840 = vmatpush2.bf16.msra.mxu0 %v1797
  %2841 = vmatprep.subr.bf16.mxu0 0
  %2842 = vmatpush2.bf16.msra.mxu0 %v1794
  %2843 = vmatprep.mubr.bf16.mxu0 %v593
  %2844 = vmatmul.mubr.bf16.gmra.mxu0 %v592
  %v2845 = vpop.f32.mrf.mxu0
  %v2846 = vadd.f32 %v504, %v2845
  %v2847 = vpop.f32.mrf.mxu0
  %v2848 = vpop.f32.mrf.mxu0
  %v2849 = vadd.f32 %v504, %v2848
  %v2850 = vpop.f32.mrf.mxu0
  %2851 = vmatprep.mubr.bf16.mxu0 %v607
  %2852 = vmatmul.mubr.bf16.gmra.mxu0 %v606
  %v2853 = vpop.f32.mrf.mxu0
  %v2854 = vadd.f32 %v504, %v2853
  %v2855 = vpop.f32.mrf.mxu0
  %v2856 = vpop.f32.mrf.mxu0
  %v2857 = vadd.f32 %v504, %v2856
  %v2858 = vpop.f32.mrf.mxu0
  %2859 = vdwg.mxu0
  %2860 = vmatprep.subr.bf16.mxu0 0
  %2861 = vmatpush1.bf16.msra.mxu0 %v1839
  %2862 = vmatprep.subr.bf16.mxu0 0
  %2863 = vmatpush1.bf16.msra.mxu0 %v1836
  %2864 = vmatprep.subr.bf16.mxu0 0
  %2865 = vmatpush1.bf16.msra.mxu0 %v1833
  %2866 = vmatprep.subr.bf16.mxu0 0
  %2867 = vmatpush1.bf16.msra.mxu0 %v1830
  %2868 = vmatprep.subr.bf16.mxu0 0
  %2869 = vmatpush1.bf16.msra.mxu0 %v1827
  %2870 = vmatprep.subr.bf16.mxu0 0
  %2871 = vmatpush1.bf16.msra.mxu0 %v1824
  %2872 = vmatprep.subr.bf16.mxu0 0
  %2873 = vmatpush1.bf16.msra.mxu0 %v1821
  %2874 = vmatprep.subr.bf16.mxu0 0
  %2875 = vmatpush1.bf16.msra.mxu0 %v1818
  %2876 = vmatprep.subr.bf16.mxu0 0
  %2877 = vmatpush2.bf16.msra.mxu0 %v1863
  %2878 = vmatprep.subr.bf16.mxu0 0
  %2879 = vmatpush2.bf16.msra.mxu0 %v1860
  %2880 = vmatprep.subr.bf16.mxu0 0
  %2881 = vmatpush2.bf16.msra.mxu0 %v1857
  %2882 = vmatprep.subr.bf16.mxu0 0
  %2883 = vmatpush2.bf16.msra.mxu0 %v1854
  %2884 = vmatprep.subr.bf16.mxu0 0
  %2885 = vmatpush2.bf16.msra.mxu0 %v1851
  %2886 = vmatprep.subr.bf16.mxu0 0
  %2887 = vmatpush2.bf16.msra.mxu0 %v1848
  %2888 = vmatprep.subr.bf16.mxu0 0
  %2889 = vmatpush2.bf16.msra.mxu0 %v1845
  %2890 = vmatprep.subr.bf16.mxu0 0
  %2891 = vmatpush2.bf16.msra.mxu0 %v1842
  %2892 = vmatprep.mubr.bf16.mxu0 %v595
  %2893 = vmatmul.mubr.bf16.gmra.mxu0 %v594
  %v2894 = vpop.f32.mrf.mxu0
  %v2895 = vadd.f32 %v2846, %v2894
  %v2896 = vpop.f32.mrf.mxu0
  %v2897 = vpop.f32.mrf.mxu0
  %v2898 = vadd.f32 %v2849, %v2897
  %v2899 = vpop.f32.mrf.mxu0
  %2900 = vmatprep.mubr.bf16.mxu0 %v609
  %2901 = vmatmul.mubr.bf16.gmra.mxu0 %v608
  %v2902 = vpop.f32.mrf.mxu0
  %v2903 = vadd.f32 %v2854, %v2902
  %v2904 = vpop.f32.mrf.mxu0
  %v2905 = vpop.f32.mrf.mxu0
  %v2906 = vadd.f32 %v2857, %v2905
  %v2907 = vpop.f32.mrf.mxu0
  %2908 = vdwg.mxu0
  %2909 = vmatprep.subr.bf16.mxu0 0
  %2910 = vmatpush1.bf16.msra.mxu0 %v1887
  %2911 = vmatprep.subr.bf16.mxu0 0
  %2912 = vmatpush1.bf16.msra.mxu0 %v1884
  %2913 = vmatprep.subr.bf16.mxu0 0
  %2914 = vmatpush1.bf16.msra.mxu0 %v1881
  %2915 = vmatprep.subr.bf16.mxu0 0
  %2916 = vmatpush1.bf16.msra.mxu0 %v1878
  %2917 = vmatprep.subr.bf16.mxu0 0
  %2918 = vmatpush1.bf16.msra.mxu0 %v1875
  %2919 = vmatprep.subr.bf16.mxu0 0
  %2920 = vmatpush1.bf16.msra.mxu0 %v1872
  %2921 = vmatprep.subr.bf16.mxu0 0
  %2922 = vmatpush1.bf16.msra.mxu0 %v1869
  %2923 = vmatprep.subr.bf16.mxu0 0
  %2924 = vmatpush1.bf16.msra.mxu0 %v1866
  %2925 = vmatprep.subr.bf16.mxu0 0
  %2926 = vmatpush2.bf16.msra.mxu0 %v1911
  %2927 = vmatprep.subr.bf16.mxu0 0
  %2928 = vmatpush2.bf16.msra.mxu0 %v1908
  %2929 = vmatprep.subr.bf16.mxu0 0
  %2930 = vmatpush2.bf16.msra.mxu0 %v1905
  %2931 = vmatprep.subr.bf16.mxu0 0
  %2932 = vmatpush2.bf16.msra.mxu0 %v1902
  %2933 = vmatprep.subr.bf16.mxu0 0
  %2934 = vmatpush2.bf16.msra.mxu0 %v1899
  %2935 = vmatprep.subr.bf16.mxu0 0
  %2936 = vmatpush2.bf16.msra.mxu0 %v1896
  %2937 = vmatprep.subr.bf16.mxu0 0
  %2938 = vmatpush2.bf16.msra.mxu0 %v1893
  %2939 = vmatprep.subr.bf16.mxu0 0
  %2940 = vmatpush2.bf16.msra.mxu0 %v1890
  %2941 = vmatprep.mubr.bf16.mxu0 %v597
  %2942 = vmatmul.mubr.bf16.gmra.mxu0 %v596
  %v2943 = vpop.f32.mrf.mxu0
  %v2944 = vadd.f32 %v2895, %v2943
  %v2945 = vpop.f32.mrf.mxu0
  %v2946 = vpop.f32.mrf.mxu0
  %v2947 = vadd.f32 %v2898, %v2946
  %v2948 = vpop.f32.mrf.mxu0
  %2949 = vmatprep.mubr.bf16.mxu0 %v611
  %2950 = vmatmul.mubr.bf16.gmra.mxu0 %v610
  %v2951 = vpop.f32.mrf.mxu0
  %v2952 = vadd.f32 %v2903, %v2951
  %v2953 = vpop.f32.mrf.mxu0
  %v2954 = vpop.f32.mrf.mxu0
  %v2955 = vadd.f32 %v2906, %v2954
  %v2956 = vpop.f32.mrf.mxu0
  %2957 = vdwg.mxu0
  %2958 = vmatprep.subr.bf16.mxu0 0
  %2959 = vmatpush1.bf16.msra.mxu0 %v1935
  %2960 = vmatprep.subr.bf16.mxu0 0
  %2961 = vmatpush1.bf16.msra.mxu0 %v1932
  %2962 = vmatprep.subr.bf16.mxu0 0
  %2963 = vmatpush1.bf16.msra.mxu0 %v1929
  %2964 = vmatprep.subr.bf16.mxu0 0
  %2965 = vmatpush1.bf16.msra.mxu0 %v1926
  %2966 = vmatprep.subr.bf16.mxu0 0
  %2967 = vmatpush1.bf16.msra.mxu0 %v1923
  %2968 = vmatprep.subr.bf16.mxu0 0
  %2969 = vmatpush1.bf16.msra.mxu0 %v1920
  %2970 = vmatprep.subr.bf16.mxu0 0
  %2971 = vmatpush1.bf16.msra.mxu0 %v1917
  %2972 = vmatprep.subr.bf16.mxu0 0
  %2973 = vmatpush1.bf16.msra.mxu0 %v1914
  %2974 = vmatprep.subr.bf16.mxu0 0
  %2975 = vmatpush2.bf16.msra.mxu0 %v1959
  %2976 = vmatprep.subr.bf16.mxu0 0
  %2977 = vmatpush2.bf16.msra.mxu0 %v1956
  %2978 = vmatprep.subr.bf16.mxu0 0
  %2979 = vmatpush2.bf16.msra.mxu0 %v1953
  %2980 = vmatprep.subr.bf16.mxu0 0
  %2981 = vmatpush2.bf16.msra.mxu0 %v1950
  %2982 = vmatprep.subr.bf16.mxu0 0
  %2983 = vmatpush2.bf16.msra.mxu0 %v1947
  %2984 = vmatprep.subr.bf16.mxu0 0
  %2985 = vmatpush2.bf16.msra.mxu0 %v1944
  %2986 = vmatprep.subr.bf16.mxu0 0
  %2987 = vmatpush2.bf16.msra.mxu0 %v1941
  %2988 = vmatprep.subr.bf16.mxu0 0
  %2989 = vmatpush2.bf16.msra.mxu0 %v1938
  %2990 = vmatprep.mubr.bf16.mxu0 %v599
  %2991 = vmatmul.mubr.bf16.gmra.mxu0 %v598
  %v2992 = vpop.f32.mrf.mxu0
  %v2993 = vadd.f32 %v2944, %v2992
  %v2994 = vpop.f32.mrf.mxu0
  %v2995 = vpop.f32.mrf.mxu0
  %v2996 = vadd.f32 %v2947, %v2995
  %v2997 = vpop.f32.mrf.mxu0
  %2998 = vmatprep.mubr.bf16.mxu0 %v613
  %2999 = vmatmul.mubr.bf16.gmra.mxu0 %v612
  %v3000 = vpop.f32.mrf.mxu0
  %v3001 = vadd.f32 %v2952, %v3000
  %v3002 = vpop.f32.mrf.mxu0
  %v3003 = vpop.f32.mrf.mxu0
  %v3004 = vadd.f32 %v2955, %v3003
  %v3005 = vpop.f32.mrf.mxu0
  %3006 = vdwg.mxu0
  %3007 = vmatprep.subr.bf16.mxu0 0
  %3008 = vmatpush1.bf16.msra.mxu0 %v1983
  %3009 = vmatprep.subr.bf16.mxu0 0
  %3010 = vmatpush1.bf16.msra.mxu0 %v1980
  %3011 = vmatprep.subr.bf16.mxu0 0
  %3012 = vmatpush1.bf16.msra.mxu0 %v1977
  %3013 = vmatprep.subr.bf16.mxu0 0
  %3014 = vmatpush1.bf16.msra.mxu0 %v1974
  %3015 = vmatprep.subr.bf16.mxu0 0
  %3016 = vmatpush1.bf16.msra.mxu0 %v1971
  %3017 = vmatprep.subr.bf16.mxu0 0
  %3018 = vmatpush1.bf16.msra.mxu0 %v1968
  %3019 = vmatprep.subr.bf16.mxu0 0
  %3020 = vmatpush1.bf16.msra.mxu0 %v1965
  %3021 = vmatprep.subr.bf16.mxu0 0
  %3022 = vmatpush1.bf16.msra.mxu0 %v1962
  %3023 = vmatprep.subr.bf16.mxu0 0
  %3024 = vmatpush2.bf16.msra.mxu0 %v2007
  %3025 = vmatprep.subr.bf16.mxu0 0
  %3026 = vmatpush2.bf16.msra.mxu0 %v2004
  %3027 = vmatprep.subr.bf16.mxu0 0
  %3028 = vmatpush2.bf16.msra.mxu0 %v2001
  %3029 = vmatprep.subr.bf16.mxu0 0
  %3030 = vmatpush2.bf16.msra.mxu0 %v1998
  %3031 = vmatprep.subr.bf16.mxu0 0
  %3032 = vmatpush2.bf16.msra.mxu0 %v1995
  %3033 = vmatprep.subr.bf16.mxu0 0
  %3034 = vmatpush2.bf16.msra.mxu0 %v1992
  %3035 = vmatprep.subr.bf16.mxu0 0
  %3036 = vmatpush2.bf16.msra.mxu0 %v1989
  %3037 = vmatprep.subr.bf16.mxu0 0
  %3038 = vmatpush2.bf16.msra.mxu0 %v1986
  %3039 = vmatprep.mubr.bf16.mxu0 %v601
  %3040 = vmatmul.mubr.bf16.gmra.mxu0 %v600
  %v3041 = vpop.f32.mrf.mxu0
  %v3042 = vadd.f32 %v2993, %v3041
  %v3043 = vpop.f32.mrf.mxu0
  %v3044 = vpop.f32.mrf.mxu0
  %v3045 = vadd.f32 %v2996, %v3044
  %v3046 = vpop.f32.mrf.mxu0
  %3047 = vmatprep.mubr.bf16.mxu0 %v615
  %3048 = vmatmul.mubr.bf16.gmra.mxu0 %v614
  %v3049 = vpop.f32.mrf.mxu0
  %v3050 = vadd.f32 %v3001, %v3049
  %v3051 = vpop.f32.mrf.mxu0
  %v3052 = vpop.f32.mrf.mxu0
  %v3053 = vadd.f32 %v3004, %v3052
  %v3054 = vpop.f32.mrf.mxu0
  %3055 = vdwg.mxu0
  %3056 = vmatprep.subr.bf16.mxu0 0
  %3057 = vmatpush1.bf16.msra.mxu0 %v2031
  %3058 = vmatprep.subr.bf16.mxu0 0
  %3059 = vmatpush1.bf16.msra.mxu0 %v2028
  %3060 = vmatprep.subr.bf16.mxu0 0
  %3061 = vmatpush1.bf16.msra.mxu0 %v2025
  %3062 = vmatprep.subr.bf16.mxu0 0
  %3063 = vmatpush1.bf16.msra.mxu0 %v2022
  %3064 = vmatprep.subr.bf16.mxu0 0
  %3065 = vmatpush1.bf16.msra.mxu0 %v2019
  %3066 = vmatprep.subr.bf16.mxu0 0
  %3067 = vmatpush1.bf16.msra.mxu0 %v2016
  %3068 = vmatprep.subr.bf16.mxu0 0
  %3069 = vmatpush1.bf16.msra.mxu0 %v2013
  %3070 = vmatprep.subr.bf16.mxu0 0
  %3071 = vmatpush1.bf16.msra.mxu0 %v2010
  %3072 = vmatprep.subr.bf16.mxu0 0
  %3073 = vmatpush2.bf16.msra.mxu0 %v2055
  %3074 = vmatprep.subr.bf16.mxu0 0
  %3075 = vmatpush2.bf16.msra.mxu0 %v2052
  %3076 = vmatprep.subr.bf16.mxu0 0
  %3077 = vmatpush2.bf16.msra.mxu0 %v2049
  %3078 = vmatprep.subr.bf16.mxu0 0
  %3079 = vmatpush2.bf16.msra.mxu0 %v2046
  %3080 = vmatprep.subr.bf16.mxu0 0
  %3081 = vmatpush2.bf16.msra.mxu0 %v2043
  %3082 = vmatprep.subr.bf16.mxu0 0
  %3083 = vmatpush2.bf16.msra.mxu0 %v2040
  %3084 = vmatprep.subr.bf16.mxu0 0
  %3085 = vmatpush2.bf16.msra.mxu0 %v2037
  %3086 = vmatprep.subr.bf16.mxu0 0
  %3087 = vmatpush2.bf16.msra.mxu0 %v2034
  %3088 = vmatprep.mubr.bf16.mxu0 %v603
  %3089 = vmatmul.mubr.bf16.gmra.mxu0 %v602
  %v3090 = vpop.f32.mrf.mxu0
  %v3091 = vadd.f32 %v3042, %v3090
  %v3092 = vpop.f32.mrf.mxu0
  %v3093 = vpop.f32.mrf.mxu0
  %v3094 = vadd.f32 %v3045, %v3093
  %v3095 = vpop.f32.mrf.mxu0
  %3096 = vmatprep.mubr.bf16.mxu0 %v617
  %3097 = vmatmul.mubr.bf16.gmra.mxu0 %v616
  %v3098 = vpop.f32.mrf.mxu0
  %v3099 = vadd.f32 %v3050, %v3098
  %v3100 = vpop.f32.mrf.mxu0
  %v3101 = vpop.f32.mrf.mxu0
  %v3102 = vadd.f32 %v3053, %v3101
  %v3103 = vpop.f32.mrf.mxu0
  %3104 = vdwg.mxu0
  %3105 = vmatprep.subr.bf16.mxu0 0
  %3106 = vmatpush1.bf16.msra.mxu0 %v2079
  %3107 = vmatprep.subr.bf16.mxu0 0
  %3108 = vmatpush1.bf16.msra.mxu0 %v2076
  %3109 = vmatprep.subr.bf16.mxu0 0
  %3110 = vmatpush1.bf16.msra.mxu0 %v2073
  %3111 = vmatprep.subr.bf16.mxu0 0
  %3112 = vmatpush1.bf16.msra.mxu0 %v2070
  %3113 = vmatprep.subr.bf16.mxu0 0
  %3114 = vmatpush1.bf16.msra.mxu0 %v2067
  %3115 = vmatprep.subr.bf16.mxu0 0
  %3116 = vmatpush1.bf16.msra.mxu0 %v2064
  %3117 = vmatprep.subr.bf16.mxu0 0
  %3118 = vmatpush1.bf16.msra.mxu0 %v2061
  %3119 = vmatprep.subr.bf16.mxu0 0
  %3120 = vmatpush1.bf16.msra.mxu0 %v2058
  %3121 = vmatprep.subr.bf16.mxu0 0
  %3122 = vmatpush2.bf16.msra.mxu0 %v2103
  %3123 = vmatprep.subr.bf16.mxu0 0
  %3124 = vmatpush2.bf16.msra.mxu0 %v2100
  %3125 = vmatprep.subr.bf16.mxu0 0
  %3126 = vmatpush2.bf16.msra.mxu0 %v2097
  %3127 = vmatprep.subr.bf16.mxu0 0
  %3128 = vmatpush2.bf16.msra.mxu0 %v2094
  %3129 = vmatprep.subr.bf16.mxu0 0
  %3130 = vmatpush2.bf16.msra.mxu0 %v2091
  %3131 = vmatprep.subr.bf16.mxu0 0
  %3132 = vmatpush2.bf16.msra.mxu0 %v2088
  %3133 = vmatprep.subr.bf16.mxu0 0
  %3134 = vmatpush2.bf16.msra.mxu0 %v2085
  %3135 = vmatprep.subr.bf16.mxu0 0
  %3136 = vmatpush2.bf16.msra.mxu0 %v2082
  %3137 = vmatprep.mubr.bf16.mxu0 %v605
  %3138 = vmatmul.mubr.bf16.gmra.mxu0 %v604
  %v3139 = vpop.f32.mrf.mxu0
  %v3140 = vadd.f32 %v3091, %v3139
  %v3141 = vpop.f32.mrf.mxu0
  %v3142 = vpop.f32.mrf.mxu0
  %v3143 = vadd.f32 %v3094, %v3142
  %v3144 = vpop.f32.mrf.mxu0
  %3145 = vmatprep.mubr.bf16.mxu0 %v619
  %3146 = vmatmul.mubr.bf16.gmra.mxu0 %v618
  %v3147 = vpop.f32.mrf.mxu0
  %v3148 = vadd.f32 %v3099, %v3147
  %v3149 = vpop.f32.mrf.mxu0
  %v3150 = vpop.f32.mrf.mxu0
  %v3151 = vadd.f32 %v3102, %v3150
  %v3152 = vpop.f32.mrf.mxu0
  %3153 = vdwg.mxu0
  %v3154 = vmax.f32 %v2793, 0.0
  %v3155 = vmax.f32 %v2795, 0.0
  %v3156 = vmax.f32 %v3140, 0.0
  %v3157 = vmax.f32 %v2797, 0.0
  %v3158 = vmax.f32 %v2799, 0.0
  %v3159 = vmax.f32 %v3143, 0.0
  %v3160 = vmax.f32 %v2803, 0.0
  %v3161 = vmax.f32 %v2805, 0.0
  %v3162 = vmax.f32 %v3148, 0.0
  %v3163 = vmax.f32 %v2807, 0.0
  %v3164 = vmax.f32 %v2809, 0.0
  %v3165 = vmax.f32 %v3151, 0.0
  %v3166 = vpack.c.bf16 %v3157, %v3154
  %v3167 = vpack.c.bf16 %v3158, %v3155
  %v3168 = vpack.c.bf16 %v3159, %v3156
  %v3169 = vpack.c.bf16 %v3163, %v3160
  %v3170 = vpack.c.bf16 %v3164, %v3161
  %v3171 = vpack.c.bf16 %v3165, %v3162
  %v3178 = vunpack.c.l.b16 %v3166
  %v3179 = vunpack.c.l.b16 %v3167
  %v3180 = vunpack.c.l.b16 %v3168
  %v3181 = vunpack.c.h.b16 %v3166
  %v3182 = vunpack.c.h.b16 %v3167
  %v3183 = vunpack.c.h.b16 %v3168
  %v3184 = vunpack.c.l.b16 %v3169
  %v3185 = vunpack.c.l.b16 %v3170
  %v3186 = vunpack.c.l.b16 %v3171
  %v3187 = vunpack.c.h.b16 %v3169
  %v3188 = vunpack.c.h.b16 %v3170
  %v3189 = vunpack.c.h.b16 %v3171
  %v3190 = vpack.c.b16 %v3179, %v3178
  %v3191 = vpack.c.b16 %v3180, %v3180
  %v3192 = vpack.c.b16 %v3182, %v3181
  %v3193 = vpack.c.b16 %v3183, %v3183
  %v3194 = vpack.c.b16 %v3185, %v3184
  %v3195 = vpack.c.b16 %v3186, %v3186
  %v3196 = vpack.c.b16 %v3188, %v3187
  %v3197 = vpack.c.b16 %v3189, %v3189
  %3206 = vst [vmem:[%s3] sm:$0xff] %v3190
  %3207 = vst [vmem:[%s3 + $0x8] sm:$0xf] %v3191
  %3208 = vst [vmem:[%s3 + $0xc] sm:$0xff] %v3192
  %3209 = vst [vmem:[%s3 + $0x14] sm:$0xf] %v3193
  %3210 = vst [vmem:[%s3 + $0x18] sm:$0xff] %v3194
  %3211 = vst [vmem:[%s3 + $0x20] sm:$0xf] %v3195
  %3212 = vst [vmem:[%s3 + $0x24] sm:$0xff] %v3196
  %3213 = vst [vmem:[%s3 + $0x2c] sm:$0xf] %v3197
  // Predicated region
  $region14: #{alexnet_features.12} parent=0 // pred_check
    _
  $region15: #{alexnet_features.12} parent=0 // pred_check_branch
    %3215 = sbr.rel (0) target = $region17
  $region16: #{alexnet_features.12} parent=0 // pred_region
    _
  $region17: #{alexnet_features.12} parent=0 // pred_fallthru
    _
  // Predicated region
  $region18: #{alexnet_features.12} parent=0 // pred_check
    _
  $region19: #{alexnet_features.12} parent=0 // pred_check_branch
    %3217 = sbr.rel (0) target = $region21
  $region20: #{alexnet_features.12} parent=0 // pred_region
    _
  $region21: #{alexnet_features.12} parent=0 // pred_fallthru
    _

// kernel: alexnet_features.11
$region0: #{alexnet_features.11}
  #allocation0 [shape = 'u32[]', space=smem, size = 0x4, offset = 0x4, fixed_abs, tag = 'smem constant byte address 0x4 - core index']
  #allocation1 [shape = 'u32[144,128]{1,0:T(1,128)}', space=vmem, size = 0x12000, scoped, tag = 'internal scratch']
  %s0 = inlined_call_operand.vmem [shape: bf16[9,32,192], index: 0, kind: input, shape index: {}]
  %s1 = inlined_call_operand.vmem [shape: bf16[32,192], index: 1, kind: output, shape index: {}]
  %s2 = sld [smem:[#allocation0]]
  $region14: #{alexnet_features.11} parent=0
    _
  %s4 = ssub.s32 1, %s2
  %s5 = scalar_select 0, %s4, %s2
  // Predicated region
  $region2: #{alexnet_features.11} parent=0 // pred_check
    _
  $region3: #{alexnet_features.11} parent=0 // pred_check_branch
    %7 = sbr.rel (0) target = $region5
  $region4: #{alexnet_features.11} parent=0 // pred_region
    _
  $region5: #{alexnet_features.11} parent=0 // pred_fallthru
    _
  %v9 = vld [vmem:[%s0] sm:$0xff]
  %v10 = vld [vmem:[%s0 + $0x8] sm:$0xff]
  %v11 = vld [vmem:[%s0 + $0x10] sm:$0xff]
  %v12 = vld [vmem:[%s0 + $0x18] sm:$0xff]
  %v13 = vld [vmem:[%s0 + $0x20] sm:$0xff]
  %v14 = vld [vmem:[%s0 + $0x28] sm:$0xff]
  %v15 = vld [vmem:[%s0 + $0x30] sm:$0xff]
  %v16 = vld [vmem:[%s0 + $0x38] sm:$0xff]
  %v17 = vld [vmem:[%s0 + $0x40] sm:$0xff]
  %v18 = vld [vmem:[%s0 + $0x48] sm:$0xff]
  %v19 = vld [vmem:[%s0 + $0x50] sm:$0xff]
  %v20 = vld [vmem:[%s0 + $0x58] sm:$0xff]
  %v21 = vld [vmem:[%s0 + $0x60] sm:$0xff]
  %v22 = vld [vmem:[%s0 + $0x68] sm:$0xff]
  %v23 = vld [vmem:[%s0 + $0x70] sm:$0xff]
  %v24 = vld [vmem:[%s0 + $0x78] sm:$0xff]
  %v25 = vld [vmem:[%s0 + $0x80] sm:$0xff]
  %v26 = vld [vmem:[%s0 + $0x88] sm:$0xff]
  %v27 = vld [vmem:[%s0 + $0x90] sm:$0xff]
  %v28 = vld [vmem:[%s0 + $0x98] sm:$0xff]
  %v29 = vld [vmem:[%s0 + $0xa0] sm:$0xff]
  %v30 = vld [vmem:[%s0 + $0xa8] sm:$0xff]
  %v31 = vld [vmem:[%s0 + $0xb0] sm:$0xff]
  %v32 = vld [vmem:[%s0 + $0xb8] sm:$0xff]
  %v33 = vld [vmem:[%s0 + $0xc0] sm:$0xff]
  %v34 = vld [vmem:[%s0 + $0xc8] sm:$0xff]
  %v35 = vld [vmem:[%s0 + $0xd0] sm:$0xff]
  %v36 = vld [vmem:[%s0 + $0xd8] sm:$0xff]
  %v37 = vld [vmem:[%s0 + $0xe0] sm:$0xff]
  %v38 = vld [vmem:[%s0 + $0xe8] sm:$0xff]
  %v39 = vld [vmem:[%s0 + $0xf0] sm:$0xff]
  %v40 = vld [vmem:[%s0 + $0xf8] sm:$0xff]
  %v41 = vld [vmem:[%s0 + $0x100] sm:$0xff]
  %v42 = vld [vmem:[%s0 + $0x108] sm:$0xff]
  %v43 = vld [vmem:[%s0 + $0x110] sm:$0xff]
  %v44 = vld [vmem:[%s0 + $0x118] sm:$0xff]
  %vm45 = vcmask 1043456
  %vm46 = vcmask 523268
  %vm47 = vmor %vm46, %vm45
  %v50 = vsel %vm47, %v9, 4286644096
  %v53 = vsel %vm47, %v13, 4286644096
  %v55 = vmax.bf16 %v50, %v53
  %v57 = vsel %vm47, %v17, 4286644096
  %v59 = vmax.bf16 %v55, %v57
  %v61 = vsel %vm47, %v21, 4286644096
  %v63 = vmax.bf16 %v59, %v61
  %v65 = vsel %vm47, %v25, 4286644096
  %v67 = vmax.bf16 %v63, %v65
  %v69 = vsel %vm47, %v29, 4286644096
  %v71 = vmax.bf16 %v67, %v69
  %v73 = vsel %vm47, %v33, 4286644096
  %v75 = vmax.bf16 %v71, %v73
  %v77 = vsel %vm47, %v37, 4286644096
  %v79 = vmax.bf16 %v75, %v77
  %v81 = vsel %vm47, %v41, 4286644096
  %v83 = vmax.bf16 %v79, %v81
  %v85 = vsel %vm47, %v10, 4286644096
  %v88 = vsel %vm47, %v14, 4286644096
  %v90 = vmax.bf16 %v85, %v88
  %v92 = vsel %vm47, %v18, 4286644096
  %v94 = vmax.bf16 %v90, %v92
  %v96 = vsel %vm47, %v22, 4286644096
  %v98 = vmax.bf16 %v94, %v96
  %v100 = vsel %vm47, %v26, 4286644096
  %v102 = vmax.bf16 %v98, %v100
  %v104 = vsel %vm47, %v30, 4286644096
  %v106 = vmax.bf16 %v102, %v104
  %v108 = vsel %vm47, %v34, 4286644096
  %v110 = vmax.bf16 %v106, %v108
  %v112 = vsel %vm47, %v38, 4286644096
  %v114 = vmax.bf16 %v110, %v112
  %v116 = vsel %vm47, %v42, 4286644096
  %v118 = vmax.bf16 %v114, %v116
  %v120 = vsel %vm47, %v11, 4286644096
  %v123 = vsel %vm47, %v15, 4286644096
  %v125 = vmax.bf16 %v120, %v123
  %v127 = vsel %vm47, %v19, 4286644096
  %v129 = vmax.bf16 %v125, %v127
  %v131 = vsel %vm47, %v23, 4286644096
  %v133 = vmax.bf16 %v129, %v131
  %v135 = vsel %vm47, %v27, 4286644096
  %v137 = vmax.bf16 %v133, %v135
  %v139 = vsel %vm47, %v31, 4286644096
  %v141 = vmax.bf16 %v137, %v139
  %v143 = vsel %vm47, %v35, 4286644096
  %v145 = vmax.bf16 %v141, %v143
  %v147 = vsel %vm47, %v39, 4286644096
  %v149 = vmax.bf16 %v145, %v147
  %v151 = vsel %vm47, %v43, 4286644096
  %v153 = vmax.bf16 %v149, %v151
  %v155 = vsel %vm47, %v12, 4286644096
  %v158 = vsel %vm47, %v16, 4286644096
  %v160 = vmax.bf16 %v155, %v158
  %v162 = vsel %vm47, %v20, 4286644096
  %v164 = vmax.bf16 %v160, %v162
  %v166 = vsel %vm47, %v24, 4286644096
  %v168 = vmax.bf16 %v164, %v166
  %v170 = vsel %vm47, %v28, 4286644096
  %v172 = vmax.bf16 %v168, %v170
  %v174 = vsel %vm47, %v32, 4286644096
  %v176 = vmax.bf16 %v172, %v174
  %v178 = vsel %vm47, %v36, 4286644096
  %v180 = vmax.bf16 %v176, %v178
  %v182 = vsel %vm47, %v40, 4286644096
  %v184 = vmax.bf16 %v180, %v182
  %v186 = vsel %vm47, %v44, 4286644096
  %v188 = vmax.bf16 %v184, %v186
  %189 = vst.msk [vmem:[%s1] sm:$0xff] %vm47, %v83
  %190 = vst.msk [vmem:[%s1 + $0x8] sm:$0xff] %vm47, %v118
  %191 = vst.msk [vmem:[%s1 + $0x10] sm:$0xff] %vm47, %v153
  %192 = vst.msk [vmem:[%s1 + $0x18] sm:$0xff] %vm47, %v188
  // Predicated region
  $region6: #{alexnet_features.11} parent=0 // pred_check
    _
  $region7: #{alexnet_features.11} parent=0 // pred_check_branch
    %194 = sbr.rel (0) target = $region9
  $region8: #{alexnet_features.11} parent=0 // pred_region
    _
  $region9: #{alexnet_features.11} parent=0 // pred_fallthru
    _
  // Predicated region
  $region10: #{alexnet_features.11} parent=0 // pred_check
    _
  $region11: #{alexnet_features.11} parent=0 // pred_check_branch
    %196 = sbr.rel (0) target = $region13
  $region12: #{alexnet_features.11} parent=0 // pred_region
    _
  $region13: #{alexnet_features.11} parent=0 // pred_fallthru
    _

// kernel: alexnet_features.15
$region0: #{alexnet_features.15}
  #allocation0 [shape = 'u32[]', space=smem, size = 0x4, offset = 0x4, fixed_abs, tag = 'smem constant byte address 0x4 - core index']
  #allocation1 [shape = 'u32[144,128]{1,0:T(1,128)}', space=vmem, size = 0x12000, scoped, tag = 'internal scratch']
  %s0 = inlined_call_operand.vmem [shape: bf16[9,16,256], index: 0, kind: input, shape index: {}]
  %s1 = inlined_call_operand.vmem [shape: bf16[16,256], index: 1, kind: output, shape index: {}]
  %s2 = sld [smem:[#allocation0]]
  $region14: #{alexnet_features.15} parent=0
    _
  %s4 = ssub.s32 1, %s2
  %s5 = scalar_select 0, %s4, %s2
  // Predicated region
  $region2: #{alexnet_features.15} parent=0 // pred_check
    _
  $region3: #{alexnet_features.15} parent=0 // pred_check_branch
    %7 = sbr.rel (0) target = $region5
  $region4: #{alexnet_features.15} parent=0 // pred_region
    _
  $region5: #{alexnet_features.15} parent=0 // pred_fallthru
    _
  %v8 = vld [vmem:[%s0] sm:$0xff]
  %v9 = vld [vmem:[%s0 + $0x8] sm:$0xff]
  %v10 = vld [vmem:[%s0 + $0x10] sm:$0xff]
  %v11 = vld [vmem:[%s0 + $0x18] sm:$0xff]
  %v12 = vld [vmem:[%s0 + $0x20] sm:$0xff]
  %v13 = vld [vmem:[%s0 + $0x28] sm:$0xff]
  %v14 = vld [vmem:[%s0 + $0x30] sm:$0xff]
  %v15 = vld [vmem:[%s0 + $0x38] sm:$0xff]
  %v16 = vld [vmem:[%s0 + $0x40] sm:$0xff]
  %v17 = vld [vmem:[%s0 + $0x48] sm:$0xff]
  %v18 = vld [vmem:[%s0 + $0x50] sm:$0xff]
  %v19 = vld [vmem:[%s0 + $0x58] sm:$0xff]
  %v20 = vld [vmem:[%s0 + $0x60] sm:$0xff]
  %v21 = vld [vmem:[%s0 + $0x68] sm:$0xff]
  %v22 = vld [vmem:[%s0 + $0x70] sm:$0xff]
  %v23 = vld [vmem:[%s0 + $0x78] sm:$0xff]
  %v24 = vld [vmem:[%s0 + $0x80] sm:$0xff]
  %v25 = vld [vmem:[%s0 + $0x88] sm:$0xff]
  %v26 = vmax.bf16 %v8, %v12
  %v27 = vmax.bf16 %v10, %v14
  %v28 = vmax.bf16 %v26, %v16
  %v29 = vmax.bf16 %v27, %v18
  %v30 = vmax.bf16 %v28, %v20
  %v31 = vmax.bf16 %v29, %v22
  %v32 = vmax.bf16 %v30, %v24
  %v33 = vmax.bf16 %v32, %v31
  %v34 = vmax.bf16 %v9, %v13
  %v35 = vmax.bf16 %v11, %v15
  %v36 = vmax.bf16 %v34, %v17
  %v37 = vmax.bf16 %v35, %v19
  %v38 = vmax.bf16 %v36, %v21
  %v39 = vmax.bf16 %v37, %v23
  %v40 = vmax.bf16 %v38, %v25
  %v41 = vmax.bf16 %v40, %v39
  %42 = vst [vmem:[%s1] sm:$0xff] %v33
  %43 = vst [vmem:[%s1 + $0x8] sm:$0xff] %v41
  // Predicated region
  $region6: #{alexnet_features.15} parent=0 // pred_check
    _
  $region7: #{alexnet_features.15} parent=0 // pred_check_branch
    %45 = sbr.rel (0) target = $region9
  $region8: #{alexnet_features.15} parent=0 // pred_region
    _
  $region9: #{alexnet_features.15} parent=0 // pred_fallthru
    _
  // Predicated region
  $region10: #{alexnet_features.15} parent=0 // pred_check
    _
  $region11: #{alexnet_features.15} parent=0 // pred_check_branch
    %47 = sbr.rel (0) target = $region13
  $region12: #{alexnet_features.15} parent=0 // pred_region
    _
  $region13: #{alexnet_features.15} parent=0 // pred_fallthru
    _

// kernel: alexnet_features.14
$region0: #{alexnet_features.14}
  #allocation0 [shape = 'u32[]', space=smem, size = 0x4, offset = 0x4, fixed_abs, tag = 'smem constant byte address 0x4 - core index']
  #allocation1 [shape = 'u32[144,128]{1,0:T(1,128)}', space=vmem, size = 0x12000, scoped, tag = 'internal scratch']
  %s0 = inlined_call_operand.vmem [shape: bf16[32,2304], index: 0, kind: input, shape index: {}]
  %s1 = inlined_call_operand.vmem [shape: bf16[2304,256], index: 1, kind: input, shape index: {}]
  %s2 = inlined_call_operand.vmem [shape: f32[1,256], index: 2, kind: input, shape index: {}]
  %s3 = inlined_call_operand.vmem [shape: bf16[32,256], index: 3, kind: output, shape index: {}]
  %s4 = sld [smem:[#allocation0]]
  $region22: #{alexnet_features.14} parent=0
    _
  %s6 = ssub.s32 1, %s4
  %s7 = scalar_select 0, %s6, %s4
  // Predicated region
  $region2: #{alexnet_features.14} parent=0 // pred_check
    _
  $region3: #{alexnet_features.14} parent=0 // pred_check_branch
    %9 = sbr.rel (0) target = $region5
  $region4: #{alexnet_features.14} parent=0 // pred_region
    _
  $region5: #{alexnet_features.14} parent=0 // pred_fallthru
    _
  // Predicated region
  $region6: #{alexnet_features.14} parent=0 // pred_check
    _
  $region7: #{alexnet_features.14} parent=0 // pred_check_branch
    %11 = sbr.rel (0) target = $region9
  $region8: #{alexnet_features.14} parent=0 // pred_region
    _
  $region9: #{alexnet_features.14} parent=0 // pred_fallthru
    _
  // Predicated region
  $region10: #{alexnet_features.14} parent=0 // pred_check
    _
  $region11: #{alexnet_features.14} parent=0 // pred_check_branch
    %13 = sbr.rel (0) target = $region13
  $region12: #{alexnet_features.14} parent=0 // pred_region
    _
  $region13: #{alexnet_features.14} parent=0 // pred_fallthru
    _
  %v14 = vld [vmem:[%s0] sm:$0xff]
  %v15 = vld [vmem:[%s0 + $0x8] sm:$0xff]
  %v16 = vld [vmem:[%s0 + $0x10] sm:$0xff]
  %v17 = vld [vmem:[%s0 + $0x18] sm:$0xff]
  %v18 = vld [vmem:[%s0 + $0x20] sm:$0xff]
  %v19 = vld [vmem:[%s0 + $0x28] sm:$0xff]
  %v20 = vld [vmem:[%s0 + $0x30] sm:$0xff]
  %v21 = vld [vmem:[%s0 + $0x38] sm:$0xff]
  %v22 = vld [vmem:[%s0 + $0x40] sm:$0xff]
  %v23 = vld [vmem:[%s0 + $0x48] sm:$0xff]
  %v24 = vld [vmem:[%s0 + $0x50] sm:$0xff]
  %v25 = vld [vmem:[%s0 + $0x58] sm:$0xff]
  %v26 = vld [vmem:[%s0 + $0x60] sm:$0xff]
  %v27 = vld [vmem:[%s0 + $0x68] sm:$0xff]
  %v28 = vld [vmem:[%s0 + $0x70] sm:$0xff]
  %v29 = vld [vmem:[%s0 + $0x78] sm:$0xff]
  %v30 = vld [vmem:[%s0 + $0x80] sm:$0xff]
  %v31 = vld [vmem:[%s0 + $0x88] sm:$0xff]
  %v32 = vld [vmem:[%s0 + $0x90] sm:$0xff]
  %v33 = vld [vmem:[%s0 + $0x98] sm:$0xff]
  %v34 = vld [vmem:[%s0 + $0xa0] sm:$0xff]
  %v35 = vld [vmem:[%s0 + $0xa8] sm:$0xff]
  %v36 = vld [vmem:[%s0 + $0xb0] sm:$0xff]
  %v37 = vld [vmem:[%s0 + $0xb8] sm:$0xff]
  %v38 = vld [vmem:[%s0 + $0xc0] sm:$0xff]
  %v39 = vld [vmem:[%s0 + $0xc8] sm:$0xff]
  %v40 = vld [vmem:[%s0 + $0xd0] sm:$0xff]
  %v41 = vld [vmem:[%s0 + $0xd8] sm:$0xff]
  %v42 = vld [vmem:[%s0 + $0xe0] sm:$0xff]
  %v43 = vld [vmem:[%s0 + $0xe8] sm:$0xff]
  %v44 = vld [vmem:[%s0 + $0xf0] sm:$0xff]
  %v45 = vld [vmem:[%s0 + $0xf8] sm:$0xff]
  %v46 = vld [vmem:[%s0 + $0x100] sm:$0xff]
  %v47 = vld [vmem:[%s0 + $0x108] sm:$0xff]
  %v48 = vld [vmem:[%s0 + $0x110] sm:$0xff]
  %v49 = vld [vmem:[%s0 + $0x118] sm:$0xff]
  %v50 = vld [vmem:[%s1] sm:$0xff]
  %v51 = vld [vmem:[%s1 + $0x8] sm:$0xff]
  %v52 = vld [vmem:[%s1 + $0x10] sm:$0xff]
  %v53 = vld [vmem:[%s1 + $0x18] sm:$0xff]
  %v54 = vld [vmem:[%s1 + $0x20] sm:$0xff]
  %v55 = vld [vmem:[%s1 + $0x28] sm:$0xff]
  %v56 = vld [vmem:[%s1 + $0x30] sm:$0xff]
  %v57 = vld [vmem:[%s1 + $0x38] sm:$0xff]
  %v58 = vld [vmem:[%s1 + $0x40] sm:$0xff]
  %v59 = vld [vmem:[%s1 + $0x48] sm:$0xff]
  %v60 = vld [vmem:[%s1 + $0x50] sm:$0xff]
  %v61 = vld [vmem:[%s1 + $0x58] sm:$0xff]
  %v62 = vld [vmem:[%s1 + $0x60] sm:$0xff]
  %v63 = vld [vmem:[%s1 + $0x68] sm:$0xff]
  %v64 = vld [vmem:[%s1 + $0x70] sm:$0xff]
  %v65 = vld [vmem:[%s1 + $0x78] sm:$0xff]
  %v66 = vld [vmem:[%s1 + $0x80] sm:$0xff]
  %v67 = vld [vmem:[%s1 + $0x88] sm:$0xff]
  %v68 = vld [vmem:[%s1 + $0x90] sm:$0xff]
  %v69 = vld [vmem:[%s1 + $0x98] sm:$0xff]
  %v70 = vld [vmem:[%s1 + $0xa0] sm:$0xff]
  %v71 = vld [vmem:[%s1 + $0xa8] sm:$0xff]
  %v72 = vld [vmem:[%s1 + $0xb0] sm:$0xff]
  %v73 = vld [vmem:[%s1 + $0xb8] sm:$0xff]
  %v74 = vld [vmem:[%s1 + $0xc0] sm:$0xff]
  %v75 = vld [vmem:[%s1 + $0xc8] sm:$0xff]
  %v76 = vld [vmem:[%s1 + $0xd0] sm:$0xff]
  %v77 = vld [vmem:[%s1 + $0xd8] sm:$0xff]
  %v78 = vld [vmem:[%s1 + $0xe0] sm:$0xff]
  %v79 = vld [vmem:[%s1 + $0xe8] sm:$0xff]
  %v80 = vld [vmem:[%s1 + $0xf0] sm:$0xff]
  %v81 = vld [vmem:[%s1 + $0xf8] sm:$0xff]
  %v82 = vld [vmem:[%s1 + $0x100] sm:$0xff]
  %v83 = vld [vmem:[%s1 + $0x108] sm:$0xff]
  %v84 = vld [vmem:[%s1 + $0x110] sm:$0xff]
  %v85 = vld [vmem:[%s1 + $0x118] sm:$0xff]
  %v86 = vld [vmem:[%s1 + $0x120] sm:$0xff]
  %v87 = vld [vmem:[%s1 + $0x128] sm:$0xff]
  %v88 = vld [vmem:[%s1 + $0x130] sm:$0xff]
  %v89 = vld [vmem:[%s1 + $0x138] sm:$0xff]
  %v90 = vld [vmem:[%s1 + $0x140] sm:$0xff]
  %v91 = vld [vmem:[%s1 + $0x148] sm:$0xff]
  %v92 = vld [vmem:[%s1 + $0x150] sm:$0xff]
  %v93 = vld [vmem:[%s1 + $0x158] sm:$0xff]
  %v94 = vld [vmem:[%s1 + $0x160] sm:$0xff]
  %v95 = vld [vmem:[%s1 + $0x168] sm:$0xff]
  %v96 = vld [vmem:[%s1 + $0x170] sm:$0xff]
  %v97 = vld [vmem:[%s1 + $0x178] sm:$0xff]
  %v98 = vld [vmem:[%s1 + $0x180] sm:$0xff]
  %v99 = vld [vmem:[%s1 + $0x188] sm:$0xff]
  %v100 = vld [vmem:[%s1 + $0x190] sm:$0xff]
  %v101 = vld [vmem:[%s1 + $0x198] sm:$0xff]
  %v102 = vld [vmem:[%s1 + $0x1a0] sm:$0xff]
  %v103 = vld [vmem:[%s1 + $0x1a8] sm:$0xff]
  %v104 = vld [vmem:[%s1 + $0x1b0] sm:$0xff]
  %v105 = vld [vmem:[%s1 + $0x1b8] sm:$0xff]
  %v106 = vld [vmem:[%s1 + $0x1c0] sm:$0xff]
  %v107 = vld [vmem:[%s1 + $0x1c8] sm:$0xff]
  %v108 = vld [vmem:[%s1 + $0x1d0] sm:$0xff]
  %v109 = vld [vmem:[%s1 + $0x1d8] sm:$0xff]
  %v110 = vld [vmem:[%s1 + $0x1e0] sm:$0xff]
  %v111 = vld [vmem:[%s1 + $0x1e8] sm:$0xff]
  %v112 = vld [vmem:[%s1 + $0x1f0] sm:$0xff]
  %v113 = vld [vmem:[%s1 + $0x1f8] sm:$0xff]
  %v114 = vld [vmem:[%s1 + $0x200] sm:$0xff]
  %v115 = vld [vmem:[%s1 + $0x208] sm:$0xff]
  %v116 = vld [vmem:[%s1 + $0x210] sm:$0xff]
  %v117 = vld [vmem:[%s1 + $0x218] sm:$0xff]
  %v118 = vld [vmem:[%s1 + $0x220] sm:$0xff]
  %v119 = vld [vmem:[%s1 + $0x228] sm:$0xff]
  %v120 = vld [vmem:[%s1 + $0x230] sm:$0xff]
  %v121 = vld [vmem:[%s1 + $0x238] sm:$0xff]
  %v122 = vld [vmem:[%s1 + $0x240] sm:$0xff]
  %v123 = vld [vmem:[%s1 + $0x248] sm:$0xff]
  %v124 = vld [vmem:[%s1 + $0x250] sm:$0xff]
  %v125 = vld [vmem:[%s1 + $0x258] sm:$0xff]
  %v126 = vld [vmem:[%s1 + $0x260] sm:$0xff]
  %v127 = vld [vmem:[%s1 + $0x268] sm:$0xff]
  %v128 = vld [vmem:[%s1 + $0x270] sm:$0xff]
  %v129 = vld [vmem:[%s1 + $0x278] sm:$0xff]
  %v130 = vld [vmem:[%s1 + $0x280] sm:$0xff]
  %v131 = vld [vmem:[%s1 + $0x288] sm:$0xff]
  %v132 = vld [vmem:[%s1 + $0x290] sm:$0xff]
  %v133 = vld [vmem:[%s1 + $0x298] sm:$0xff]
  %v134 = vld [vmem:[%s1 + $0x2a0] sm:$0xff]
  %v135 = vld [vmem:[%s1 + $0x2a8] sm:$0xff]
  %v136 = vld [vmem:[%s1 + $0x2b0] sm:$0xff]
  %v137 = vld [vmem:[%s1 + $0x2b8] sm:$0xff]
  %v138 = vld [vmem:[%s1 + $0x2c0] sm:$0xff]
  %v139 = vld [vmem:[%s1 + $0x2c8] sm:$0xff]
  %v140 = vld [vmem:[%s1 + $0x2d0] sm:$0xff]
  %v141 = vld [vmem:[%s1 + $0x2d8] sm:$0xff]
  %v142 = vld [vmem:[%s1 + $0x2e0] sm:$0xff]
  %v143 = vld [vmem:[%s1 + $0x2e8] sm:$0xff]
  %v144 = vld [vmem:[%s1 + $0x2f0] sm:$0xff]
  %v145 = vld [vmem:[%s1 + $0x2f8] sm:$0xff]
  %v146 = vld [vmem:[%s1 + $0x300] sm:$0xff]
  %v147 = vld [vmem:[%s1 + $0x308] sm:$0xff]
  %v148 = vld [vmem:[%s1 + $0x310] sm:$0xff]
  %v149 = vld [vmem:[%s1 + $0x318] sm:$0xff]
  %v150 = vld [vmem:[%s1 + $0x320] sm:$0xff]
  %v151 = vld [vmem:[%s1 + $0x328] sm:$0xff]
  %v152 = vld [vmem:[%s1 + $0x330] sm:$0xff]
  %v153 = vld [vmem:[%s1 + $0x338] sm:$0xff]
  %v154 = vld [vmem:[%s1 + $0x340] sm:$0xff]
  %v155 = vld [vmem:[%s1 + $0x348] sm:$0xff]
  %v156 = vld [vmem:[%s1 + $0x350] sm:$0xff]
  %v157 = vld [vmem:[%s1 + $0x358] sm:$0xff]
  %v158 = vld [vmem:[%s1 + $0x360] sm:$0xff]
  %v159 = vld [vmem:[%s1 + $0x368] sm:$0xff]
  %v160 = vld [vmem:[%s1 + $0x370] sm:$0xff]
  %v161 = vld [vmem:[%s1 + $0x378] sm:$0xff]
  %v162 = vld [vmem:[%s1 + $0x380] sm:$0xff]
  %v163 = vld [vmem:[%s1 + $0x388] sm:$0xff]
  %v164 = vld [vmem:[%s1 + $0x390] sm:$0xff]
  %v165 = vld [vmem:[%s1 + $0x398] sm:$0xff]
  %v166 = vld [vmem:[%s1 + $0x3a0] sm:$0xff]
  %v167 = vld [vmem:[%s1 + $0x3a8] sm:$0xff]
  %v168 = vld [vmem:[%s1 + $0x3b0] sm:$0xff]
  %v169 = vld [vmem:[%s1 + $0x3b8] sm:$0xff]
  %v170 = vld [vmem:[%s1 + $0x3c0] sm:$0xff]
  %v171 = vld [vmem:[%s1 + $0x3c8] sm:$0xff]
  %v172 = vld [vmem:[%s1 + $0x3d0] sm:$0xff]
  %v173 = vld [vmem:[%s1 + $0x3d8] sm:$0xff]
  %v174 = vld [vmem:[%s1 + $0x3e0] sm:$0xff]
  %v175 = vld [vmem:[%s1 + $0x3e8] sm:$0xff]
  %v176 = vld [vmem:[%s1 + $0x3f0] sm:$0xff]
  %v177 = vld [vmem:[%s1 + $0x3f8] sm:$0xff]
  %v178 = vld [vmem:[%s1 + $0x400] sm:$0xff]
  %v179 = vld [vmem:[%s1 + $0x408] sm:$0xff]
  %v180 = vld [vmem:[%s1 + $0x410] sm:$0xff]
  %v181 = vld [vmem:[%s1 + $0x418] sm:$0xff]
  %v182 = vld [vmem:[%s1 + $0x420] sm:$0xff]
  %v183 = vld [vmem:[%s1 + $0x428] sm:$0xff]
  %v184 = vld [vmem:[%s1 + $0x430] sm:$0xff]
  %v185 = vld [vmem:[%s1 + $0x438] sm:$0xff]
  %v186 = vld [vmem:[%s1 + $0x440] sm:$0xff]
  %v187 = vld [vmem:[%s1 + $0x448] sm:$0xff]
  %v188 = vld [vmem:[%s1 + $0x450] sm:$0xff]
  %v189 = vld [vmem:[%s1 + $0x458] sm:$0xff]
  %v190 = vld [vmem:[%s1 + $0x460] sm:$0xff]
  %v191 = vld [vmem:[%s1 + $0x468] sm:$0xff]
  %v192 = vld [vmem:[%s1 + $0x470] sm:$0xff]
  %v193 = vld [vmem:[%s1 + $0x478] sm:$0xff]
  %v194 = vld [vmem:[%s1 + $0x480] sm:$0xff]
  %v195 = vld [vmem:[%s1 + $0x488] sm:$0xff]
  %v196 = vld [vmem:[%s1 + $0x490] sm:$0xff]
  %v197 = vld [vmem:[%s1 + $0x498] sm:$0xff]
  %v198 = vld [vmem:[%s1 + $0x4a0] sm:$0xff]
  %v199 = vld [vmem:[%s1 + $0x4a8] sm:$0xff]
  %v200 = vld [vmem:[%s1 + $0x4b0] sm:$0xff]
  %v201 = vld [vmem:[%s1 + $0x4b8] sm:$0xff]
  %v202 = vld [vmem:[%s1 + $0x4c0] sm:$0xff]
  %v203 = vld [vmem:[%s1 + $0x4c8] sm:$0xff]
  %v204 = vld [vmem:[%s1 + $0x4d0] sm:$0xff]
  %v205 = vld [vmem:[%s1 + $0x4d8] sm:$0xff]
  %v206 = vld [vmem:[%s1 + $0x4e0] sm:$0xff]
  %v207 = vld [vmem:[%s1 + $0x4e8] sm:$0xff]
  %v208 = vld [vmem:[%s1 + $0x4f0] sm:$0xff]
  %v209 = vld [vmem:[%s1 + $0x4f8] sm:$0xff]
  %v210 = vld [vmem:[%s1 + $0x500] sm:$0xff]
  %v211 = vld [vmem:[%s1 + $0x508] sm:$0xff]
  %v212 = vld [vmem:[%s1 + $0x510] sm:$0xff]
  %v213 = vld [vmem:[%s1 + $0x518] sm:$0xff]
  %v214 = vld [vmem:[%s1 + $0x520] sm:$0xff]
  %v215 = vld [vmem:[%s1 + $0x528] sm:$0xff]
  %v216 = vld [vmem:[%s1 + $0x530] sm:$0xff]
  %v217 = vld [vmem:[%s1 + $0x538] sm:$0xff]
  %v218 = vld [vmem:[%s1 + $0x540] sm:$0xff]
  %v219 = vld [vmem:[%s1 + $0x548] sm:$0xff]
  %v220 = vld [vmem:[%s1 + $0x550] sm:$0xff]
  %v221 = vld [vmem:[%s1 + $0x558] sm:$0xff]
  %v222 = vld [vmem:[%s1 + $0x560] sm:$0xff]
  %v223 = vld [vmem:[%s1 + $0x568] sm:$0xff]
  %v224 = vld [vmem:[%s1 + $0x570] sm:$0xff]
  %v225 = vld [vmem:[%s1 + $0x578] sm:$0xff]
  %v226 = vld [vmem:[%s1 + $0x580] sm:$0xff]
  %v227 = vld [vmem:[%s1 + $0x588] sm:$0xff]
  %v228 = vld [vmem:[%s1 + $0x590] sm:$0xff]
  %v229 = vld [vmem:[%s1 + $0x598] sm:$0xff]
  %v230 = vld [vmem:[%s1 + $0x5a0] sm:$0xff]
  %v231 = vld [vmem:[%s1 + $0x5a8] sm:$0xff]
  %v232 = vld [vmem:[%s1 + $0x5b0] sm:$0xff]
  %v233 = vld [vmem:[%s1 + $0x5b8] sm:$0xff]
  %v234 = vld [vmem:[%s1 + $0x5c0] sm:$0xff]
  %v235 = vld [vmem:[%s1 + $0x5c8] sm:$0xff]
  %v236 = vld [vmem:[%s1 + $0x5d0] sm:$0xff]
  %v237 = vld [vmem:[%s1 + $0x5d8] sm:$0xff]
  %v238 = vld [vmem:[%s1 + $0x5e0] sm:$0xff]
  %v239 = vld [vmem:[%s1 + $0x5e8] sm:$0xff]
  %v240 = vld [vmem:[%s1 + $0x5f0] sm:$0xff]
  %v241 = vld [vmem:[%s1 + $0x5f8] sm:$0xff]
  %v242 = vld [vmem:[%s1 + $0x600] sm:$0xff]
  %v243 = vld [vmem:[%s1 + $0x608] sm:$0xff]
  %v244 = vld [vmem:[%s1 + $0x610] sm:$0xff]
  %v245 = vld [vmem:[%s1 + $0x618] sm:$0xff]
  %v246 = vld [vmem:[%s1 + $0x620] sm:$0xff]
  %v247 = vld [vmem:[%s1 + $0x628] sm:$0xff]
  %v248 = vld [vmem:[%s1 + $0x630] sm:$0xff]
  %v249 = vld [vmem:[%s1 + $0x638] sm:$0xff]
  %v250 = vld [vmem:[%s1 + $0x640] sm:$0xff]
  %v251 = vld [vmem:[%s1 + $0x648] sm:$0xff]
  %v252 = vld [vmem:[%s1 + $0x650] sm:$0xff]
  %v253 = vld [vmem:[%s1 + $0x658] sm:$0xff]
  %v254 = vld [vmem:[%s1 + $0x660] sm:$0xff]
  %v255 = vld [vmem:[%s1 + $0x668] sm:$0xff]
  %v256 = vld [vmem:[%s1 + $0x670] sm:$0xff]
  %v257 = vld [vmem:[%s1 + $0x678] sm:$0xff]
  %v258 = vld [vmem:[%s1 + $0x680] sm:$0xff]
  %v259 = vld [vmem:[%s1 + $0x688] sm:$0xff]
  %v260 = vld [vmem:[%s1 + $0x690] sm:$0xff]
  %v261 = vld [vmem:[%s1 + $0x698] sm:$0xff]
  %v262 = vld [vmem:[%s1 + $0x6a0] sm:$0xff]
  %v263 = vld [vmem:[%s1 + $0x6a8] sm:$0xff]
  %v264 = vld [vmem:[%s1 + $0x6b0] sm:$0xff]
  %v265 = vld [vmem:[%s1 + $0x6b8] sm:$0xff]
  %v266 = vld [vmem:[%s1 + $0x6c0] sm:$0xff]
  %v267 = vld [vmem:[%s1 + $0x6c8] sm:$0xff]
  %v268 = vld [vmem:[%s1 + $0x6d0] sm:$0xff]
  %v269 = vld [vmem:[%s1 + $0x6d8] sm:$0xff]
  %v270 = vld [vmem:[%s1 + $0x6e0] sm:$0xff]
  %v271 = vld [vmem:[%s1 + $0x6e8] sm:$0xff]
  %v272 = vld [vmem:[%s1 + $0x6f0] sm:$0xff]
  %v273 = vld [vmem:[%s1 + $0x6f8] sm:$0xff]
  %v274 = vld [vmem:[%s1 + $0x700] sm:$0xff]
  %v275 = vld [vmem:[%s1 + $0x708] sm:$0xff]
  %v276 = vld [vmem:[%s1 + $0x710] sm:$0xff]
  %v277 = vld [vmem:[%s1 + $0x718] sm:$0xff]
  %v278 = vld [vmem:[%s1 + $0x720] sm:$0xff]
  %v279 = vld [vmem:[%s1 + $0x728] sm:$0xff]
  %v280 = vld [vmem:[%s1 + $0x730] sm:$0xff]
  %v281 = vld [vmem:[%s1 + $0x738] sm:$0xff]
  %v282 = vld [vmem:[%s1 + $0x740] sm:$0xff]
  %v283 = vld [vmem:[%s1 + $0x748] sm:$0xff]
  %v284 = vld [vmem:[%s1 + $0x750] sm:$0xff]
  %v285 = vld [vmem:[%s1 + $0x758] sm:$0xff]
  %v286 = vld [vmem:[%s1 + $0x760] sm:$0xff]
  %v287 = vld [vmem:[%s1 + $0x768] sm:$0xff]
  %v288 = vld [vmem:[%s1 + $0x770] sm:$0xff]
  %v289 = vld [vmem:[%s1 + $0x778] sm:$0xff]
  %v290 = vld [vmem:[%s1 + $0x780] sm:$0xff]
  %v291 = vld [vmem:[%s1 + $0x788] sm:$0xff]
  %v292 = vld [vmem:[%s1 + $0x790] sm:$0xff]
  %v293 = vld [vmem:[%s1 + $0x798] sm:$0xff]
  %v294 = vld [vmem:[%s1 + $0x7a0] sm:$0xff]
  %v295 = vld [vmem:[%s1 + $0x7a8] sm:$0xff]
  %v296 = vld [vmem:[%s1 + $0x7b0] sm:$0xff]
  %v297 = vld [vmem:[%s1 + $0x7b8] sm:$0xff]
  %v298 = vld [vmem:[%s1 + $0x7c0] sm:$0xff]
  %v299 = vld [vmem:[%s1 + $0x7c8] sm:$0xff]
  %v300 = vld [vmem:[%s1 + $0x7d0] sm:$0xff]
  %v301 = vld [vmem:[%s1 + $0x7d8] sm:$0xff]
  %v302 = vld [vmem:[%s1 + $0x7e0] sm:$0xff]
  %v303 = vld [vmem:[%s1 + $0x7e8] sm:$0xff]
  %v304 = vld [vmem:[%s1 + $0x7f0] sm:$0xff]
  %v305 = vld [vmem:[%s1 + $0x7f8] sm:$0xff]
  %v306 = vld [vmem:[%s1 + $0x800] sm:$0xff]
  %v307 = vld [vmem:[%s1 + $0x808] sm:$0xff]
  %v308 = vld [vmem:[%s1 + $0x810] sm:$0xff]
  %v309 = vld [vmem:[%s1 + $0x818] sm:$0xff]
  %v310 = vld [vmem:[%s1 + $0x820] sm:$0xff]
  %v311 = vld [vmem:[%s1 + $0x828] sm:$0xff]
  %v312 = vld [vmem:[%s1 + $0x830] sm:$0xff]
  %v313 = vld [vmem:[%s1 + $0x838] sm:$0xff]
  %v314 = vld [vmem:[%s1 + $0x840] sm:$0xff]
  %v315 = vld [vmem:[%s1 + $0x848] sm:$0xff]
  %v316 = vld [vmem:[%s1 + $0x850] sm:$0xff]
  %v317 = vld [vmem:[%s1 + $0x858] sm:$0xff]
  %v318 = vld [vmem:[%s1 + $0x860] sm:$0xff]
  %v319 = vld [vmem:[%s1 + $0x868] sm:$0xff]
  %v320 = vld [vmem:[%s1 + $0x870] sm:$0xff]
  %v321 = vld [vmem:[%s1 + $0x878] sm:$0xff]
  %v322 = vld [vmem:[%s1 + $0x880] sm:$0xff]
  %v323 = vld [vmem:[%s1 + $0x888] sm:$0xff]
  %v324 = vld [vmem:[%s1 + $0x890] sm:$0xff]
  %v325 = vld [vmem:[%s1 + $0x898] sm:$0xff]
  %v326 = vld [vmem:[%s1 + $0x8a0] sm:$0xff]
  %v327 = vld [vmem:[%s1 + $0x8a8] sm:$0xff]
  %v328 = vld [vmem:[%s1 + $0x8b0] sm:$0xff]
  %v329 = vld [vmem:[%s1 + $0x8b8] sm:$0xff]
  %v330 = vld [vmem:[%s1 + $0x8c0] sm:$0xff]
  %v331 = vld [vmem:[%s1 + $0x8c8] sm:$0xff]
  %v332 = vld [vmem:[%s1 + $0x8d0] sm:$0xff]
  %v333 = vld [vmem:[%s1 + $0x8d8] sm:$0xff]
  %v334 = vld [vmem:[%s1 + $0x8e0] sm:$0xff]
  %v335 = vld [vmem:[%s1 + $0x8e8] sm:$0xff]
  %v336 = vld [vmem:[%s1 + $0x8f0] sm:$0xff]
  %v337 = vld [vmem:[%s1 + $0x8f8] sm:$0xff]
  %v338 = vld [vmem:[%s2] sm:$0x3]
  %v340 = vlaneseq
  %v341 = vshrl.u32 %v340, 7
  %v342 = vsub.s32 0, %v341
  %v343 = vrot.slane %v338, %v342
  %v344 = vlaneseq
  %v345 = vshrl.u32 %v344, 7
  %v346 = vsub.s32 1, %v345
  %v347 = vrot.slane %v338, %v346
  %v386 = vunpack.c.l.b16 %v14
  %v387 = vunpack.c.h.b16 %v14
  %v388 = vunpack.c.l.b16 %v15
  %v389 = vunpack.c.h.b16 %v15
  %v390 = vunpack.c.l.b16 %v16
  %v391 = vunpack.c.h.b16 %v16
  %v392 = vunpack.c.l.b16 %v17
  %v393 = vunpack.c.h.b16 %v17
  %v394 = vunpack.c.l.b16 %v18
  %v395 = vunpack.c.h.b16 %v18
  %v396 = vunpack.c.l.b16 %v19
  %v397 = vunpack.c.h.b16 %v19
  %v398 = vunpack.c.l.b16 %v20
  %v399 = vunpack.c.h.b16 %v20
  %v400 = vunpack.c.l.b16 %v21
  %v401 = vunpack.c.h.b16 %v21
  %v402 = vunpack.c.l.b16 %v22
  %v403 = vunpack.c.h.b16 %v22
  %v404 = vunpack.c.l.b16 %v23
  %v405 = vunpack.c.h.b16 %v23
  %v406 = vunpack.c.l.b16 %v24
  %v407 = vunpack.c.h.b16 %v24
  %v408 = vunpack.c.l.b16 %v25
  %v409 = vunpack.c.h.b16 %v25
  %v410 = vunpack.c.l.b16 %v26
  %v411 = vunpack.c.h.b16 %v26
  %v412 = vunpack.c.l.b16 %v27
  %v413 = vunpack.c.h.b16 %v27
  %v414 = vunpack.c.l.b16 %v28
  %v415 = vunpack.c.h.b16 %v28
  %v416 = vunpack.c.l.b16 %v29
  %v417 = vunpack.c.h.b16 %v29
  %v418 = vunpack.c.l.b16 %v30
  %v419 = vunpack.c.h.b16 %v30
  %v420 = vunpack.c.l.b16 %v31
  %v421 = vunpack.c.h.b16 %v31
  %v422 = vunpack.c.l.b16 %v32
  %v423 = vunpack.c.h.b16 %v32
  %v424 = vunpack.c.l.b16 %v33
  %v425 = vunpack.c.h.b16 %v33
  %v426 = vunpack.c.l.b16 %v34
  %v427 = vunpack.c.h.b16 %v34
  %v428 = vunpack.c.l.b16 %v35
  %v429 = vunpack.c.h.b16 %v35
  %v430 = vunpack.c.l.b16 %v36
  %v431 = vunpack.c.h.b16 %v36
  %v432 = vunpack.c.l.b16 %v37
  %v433 = vunpack.c.h.b16 %v37
  %v434 = vunpack.c.l.b16 %v38
  %v435 = vunpack.c.h.b16 %v38
  %v436 = vunpack.c.l.b16 %v39
  %v437 = vunpack.c.h.b16 %v39
  %v438 = vunpack.c.l.b16 %v40
  %v439 = vunpack.c.h.b16 %v40
  %v440 = vunpack.c.l.b16 %v41
  %v441 = vunpack.c.h.b16 %v41
  %v442 = vunpack.c.l.b16 %v42
  %v443 = vunpack.c.h.b16 %v42
  %v444 = vunpack.c.l.b16 %v43
  %v445 = vunpack.c.h.b16 %v43
  %v446 = vunpack.c.l.b16 %v44
  %v447 = vunpack.c.h.b16 %v44
  %v448 = vunpack.c.l.b16 %v45
  %v449 = vunpack.c.h.b16 %v45
  %v450 = vunpack.c.l.b16 %v46
  %v451 = vunpack.c.h.b16 %v46
  %v452 = vunpack.c.l.b16 %v47
  %v453 = vunpack.c.h.b16 %v47
  %v454 = vunpack.c.l.b16 %v48
  %v455 = vunpack.c.h.b16 %v48
  %v456 = vunpack.c.l.b16 %v49
  %v457 = vunpack.c.h.b16 %v49
  %v458 = vpack.c.b16 %v404, %v386
  %v459 = vpack.c.b16 %v405, %v387
  %v460 = vpack.c.b16 %v406, %v388
  %v461 = vpack.c.b16 %v407, %v389
  %v462 = vpack.c.b16 %v408, %v390
  %v463 = vpack.c.b16 %v409, %v391
  %v464 = vpack.c.b16 %v410, %v392
  %v465 = vpack.c.b16 %v411, %v393
  %v466 = vpack.c.b16 %v412, %v394
  %v467 = vpack.c.b16 %v413, %v395
  %v468 = vpack.c.b16 %v414, %v396
  %v469 = vpack.c.b16 %v415, %v397
  %v470 = vpack.c.b16 %v416, %v398
  %v471 = vpack.c.b16 %v417, %v399
  %v472 = vpack.c.b16 %v418, %v400
  %v473 = vpack.c.b16 %v419, %v401
  %v474 = vpack.c.b16 %v420, %v402
  %v475 = vpack.c.b16 %v421, %v403
  %v476 = vpack.c.b16 %v440, %v422
  %v477 = vpack.c.b16 %v441, %v423
  %v478 = vpack.c.b16 %v442, %v424
  %v479 = vpack.c.b16 %v443, %v425
  %v480 = vpack.c.b16 %v444, %v426
  %v481 = vpack.c.b16 %v445, %v427
  %v482 = vpack.c.b16 %v446, %v428
  %v483 = vpack.c.b16 %v447, %v429
  %v484 = vpack.c.b16 %v448, %v430
  %v485 = vpack.c.b16 %v449, %v431
  %v486 = vpack.c.b16 %v450, %v432
  %v487 = vpack.c.b16 %v451, %v433
  %v488 = vpack.c.b16 %v452, %v434
  %v489 = vpack.c.b16 %v453, %v435
  %v490 = vpack.c.b16 %v454, %v436
  %v491 = vpack.c.b16 %v455, %v437
  %v492 = vpack.c.b16 %v456, %v438
  %v493 = vpack.c.b16 %v457, %v439
  %v818 = vunpack.c.l.b16 %v50
  %v819 = vunpack.c.h.b16 %v50
  %v820 = vunpack.c.l.b16 %v51
  %v821 = vunpack.c.h.b16 %v51
  %v822 = vunpack.c.l.b16 %v52
  %v823 = vunpack.c.h.b16 %v52
  %v824 = vunpack.c.l.b16 %v53
  %v825 = vunpack.c.h.b16 %v53
  %v826 = vunpack.c.l.b16 %v54
  %v827 = vunpack.c.h.b16 %v54
  %v828 = vunpack.c.l.b16 %v55
  %v829 = vunpack.c.h.b16 %v55
  %v830 = vunpack.c.l.b16 %v56
  %v831 = vunpack.c.h.b16 %v56
  %v832 = vunpack.c.l.b16 %v57
  %v833 = vunpack.c.h.b16 %v57
  %v834 = vunpack.c.l.b16 %v58
  %v835 = vunpack.c.h.b16 %v58
  %v836 = vunpack.c.l.b16 %v59
  %v837 = vunpack.c.h.b16 %v59
  %v838 = vunpack.c.l.b16 %v60
  %v839 = vunpack.c.h.b16 %v60
  %v840 = vunpack.c.l.b16 %v61
  %v841 = vunpack.c.h.b16 %v61
  %v842 = vunpack.c.l.b16 %v62
  %v843 = vunpack.c.h.b16 %v62
  %v844 = vunpack.c.l.b16 %v63
  %v845 = vunpack.c.h.b16 %v63
  %v846 = vunpack.c.l.b16 %v64
  %v847 = vunpack.c.h.b16 %v64
  %v848 = vunpack.c.l.b16 %v65
  %v849 = vunpack.c.h.b16 %v65
  %v850 = vunpack.c.l.b16 %v66
  %v851 = vunpack.c.h.b16 %v66
  %v852 = vunpack.c.l.b16 %v67
  %v853 = vunpack.c.h.b16 %v67
  %v854 = vunpack.c.l.b16 %v68
  %v855 = vunpack.c.h.b16 %v68
  %v856 = vunpack.c.l.b16 %v69
  %v857 = vunpack.c.h.b16 %v69
  %v858 = vunpack.c.l.b16 %v70
  %v859 = vunpack.c.h.b16 %v70
  %v860 = vunpack.c.l.b16 %v71
  %v861 = vunpack.c.h.b16 %v71
  %v862 = vunpack.c.l.b16 %v72
  %v863 = vunpack.c.h.b16 %v72
  %v864 = vunpack.c.l.b16 %v73
  %v865 = vunpack.c.h.b16 %v73
  %v866 = vunpack.c.l.b16 %v74
  %v867 = vunpack.c.h.b16 %v74
  %v868 = vunpack.c.l.b16 %v75
  %v869 = vunpack.c.h.b16 %v75
  %v870 = vunpack.c.l.b16 %v76
  %v871 = vunpack.c.h.b16 %v76
  %v872 = vunpack.c.l.b16 %v77
  %v873 = vunpack.c.h.b16 %v77
  %v874 = vunpack.c.l.b16 %v78
  %v875 = vunpack.c.h.b16 %v78
  %v876 = vunpack.c.l.b16 %v79
  %v877 = vunpack.c.h.b16 %v79
  %v878 = vunpack.c.l.b16 %v80
  %v879 = vunpack.c.h.b16 %v80
  %v880 = vunpack.c.l.b16 %v81
  %v881 = vunpack.c.h.b16 %v81
  %v882 = vunpack.c.l.b16 %v82
  %v883 = vunpack.c.h.b16 %v82
  %v884 = vunpack.c.l.b16 %v83
  %v885 = vunpack.c.h.b16 %v83
  %v886 = vunpack.c.l.b16 %v84
  %v887 = vunpack.c.h.b16 %v84
  %v888 = vunpack.c.l.b16 %v85
  %v889 = vunpack.c.h.b16 %v85
  %v890 = vunpack.c.l.b16 %v86
  %v891 = vunpack.c.h.b16 %v86
  %v892 = vunpack.c.l.b16 %v87
  %v893 = vunpack.c.h.b16 %v87
  %v894 = vunpack.c.l.b16 %v88
  %v895 = vunpack.c.h.b16 %v88
  %v896 = vunpack.c.l.b16 %v89
  %v897 = vunpack.c.h.b16 %v89
  %v898 = vunpack.c.l.b16 %v90
  %v899 = vunpack.c.h.b16 %v90
  %v900 = vunpack.c.l.b16 %v91
  %v901 = vunpack.c.h.b16 %v91
  %v902 = vunpack.c.l.b16 %v92
  %v903 = vunpack.c.h.b16 %v92
  %v904 = vunpack.c.l.b16 %v93
  %v905 = vunpack.c.h.b16 %v93
  %v906 = vunpack.c.l.b16 %v94
  %v907 = vunpack.c.h.b16 %v94
  %v908 = vunpack.c.l.b16 %v95
  %v909 = vunpack.c.h.b16 %v95
  %v910 = vunpack.c.l.b16 %v96
  %v911 = vunpack.c.h.b16 %v96
  %v912 = vunpack.c.l.b16 %v97
  %v913 = vunpack.c.h.b16 %v97
  %v914 = vunpack.c.l.b16 %v98
  %v915 = vunpack.c.h.b16 %v98
  %v916 = vunpack.c.l.b16 %v99
  %v917 = vunpack.c.h.b16 %v99
  %v918 = vunpack.c.l.b16 %v100
  %v919 = vunpack.c.h.b16 %v100
  %v920 = vunpack.c.l.b16 %v101
  %v921 = vunpack.c.h.b16 %v101
  %v922 = vunpack.c.l.b16 %v102
  %v923 = vunpack.c.h.b16 %v102
  %v924 = vunpack.c.l.b16 %v103
  %v925 = vunpack.c.h.b16 %v103
  %v926 = vunpack.c.l.b16 %v104
  %v927 = vunpack.c.h.b16 %v104
  %v928 = vunpack.c.l.b16 %v105
  %v929 = vunpack.c.h.b16 %v105
  %v930 = vunpack.c.l.b16 %v106
  %v931 = vunpack.c.h.b16 %v106
  %v932 = vunpack.c.l.b16 %v107
  %v933 = vunpack.c.h.b16 %v107
  %v934 = vunpack.c.l.b16 %v108
  %v935 = vunpack.c.h.b16 %v108
  %v936 = vunpack.c.l.b16 %v109
  %v937 = vunpack.c.h.b16 %v109
  %v938 = vunpack.c.l.b16 %v110
  %v939 = vunpack.c.h.b16 %v110
  %v940 = vunpack.c.l.b16 %v111
  %v941 = vunpack.c.h.b16 %v111
  %v942 = vunpack.c.l.b16 %v112
  %v943 = vunpack.c.h.b16 %v112
  %v944 = vunpack.c.l.b16 %v113
  %v945 = vunpack.c.h.b16 %v113
  %v946 = vunpack.c.l.b16 %v114
  %v947 = vunpack.c.h.b16 %v114
  %v948 = vunpack.c.l.b16 %v115
  %v949 = vunpack.c.h.b16 %v115
  %v950 = vunpack.c.l.b16 %v116
  %v951 = vunpack.c.h.b16 %v116
  %v952 = vunpack.c.l.b16 %v117
  %v953 = vunpack.c.h.b16 %v117
  %v954 = vunpack.c.l.b16 %v118
  %v955 = vunpack.c.h.b16 %v118
  %v956 = vunpack.c.l.b16 %v119
  %v957 = vunpack.c.h.b16 %v119
  %v958 = vunpack.c.l.b16 %v120
  %v959 = vunpack.c.h.b16 %v120
  %v960 = vunpack.c.l.b16 %v121
  %v961 = vunpack.c.h.b16 %v121
  %v962 = vunpack.c.l.b16 %v122
  %v963 = vunpack.c.h.b16 %v122
  %v964 = vunpack.c.l.b16 %v123
  %v965 = vunpack.c.h.b16 %v123
  %v966 = vunpack.c.l.b16 %v124
  %v967 = vunpack.c.h.b16 %v124
  %v968 = vunpack.c.l.b16 %v125
  %v969 = vunpack.c.h.b16 %v125
  %v970 = vunpack.c.l.b16 %v126
  %v971 = vunpack.c.h.b16 %v126
  %v972 = vunpack.c.l.b16 %v127
  %v973 = vunpack.c.h.b16 %v127
  %v974 = vunpack.c.l.b16 %v128
  %v975 = vunpack.c.h.b16 %v128
  %v976 = vunpack.c.l.b16 %v129
  %v977 = vunpack.c.h.b16 %v129
  %v978 = vunpack.c.l.b16 %v130
  %v979 = vunpack.c.h.b16 %v130
  %v980 = vunpack.c.l.b16 %v131
  %v981 = vunpack.c.h.b16 %v131
  %v982 = vunpack.c.l.b16 %v132
  %v983 = vunpack.c.h.b16 %v132
  %v984 = vunpack.c.l.b16 %v133
  %v985 = vunpack.c.h.b16 %v133
  %v986 = vunpack.c.l.b16 %v134
  %v987 = vunpack.c.h.b16 %v134
  %v988 = vunpack.c.l.b16 %v135
  %v989 = vunpack.c.h.b16 %v135
  %v990 = vunpack.c.l.b16 %v136
  %v991 = vunpack.c.h.b16 %v136
  %v992 = vunpack.c.l.b16 %v137
  %v993 = vunpack.c.h.b16 %v137
  %v994 = vunpack.c.l.b16 %v138
  %v995 = vunpack.c.h.b16 %v138
  %v996 = vunpack.c.l.b16 %v139
  %v997 = vunpack.c.h.b16 %v139
  %v998 = vunpack.c.l.b16 %v140
  %v999 = vunpack.c.h.b16 %v140
  %v1000 = vunpack.c.l.b16 %v141
  %v1001 = vunpack.c.h.b16 %v141
  %v1002 = vunpack.c.l.b16 %v142
  %v1003 = vunpack.c.h.b16 %v142
  %v1004 = vunpack.c.l.b16 %v143
  %v1005 = vunpack.c.h.b16 %v143
  %v1006 = vunpack.c.l.b16 %v144
  %v1007 = vunpack.c.h.b16 %v144
  %v1008 = vunpack.c.l.b16 %v145
  %v1009 = vunpack.c.h.b16 %v145
  %v1010 = vunpack.c.l.b16 %v146
  %v1011 = vunpack.c.h.b16 %v146
  %v1012 = vunpack.c.l.b16 %v147
  %v1013 = vunpack.c.h.b16 %v147
  %v1014 = vunpack.c.l.b16 %v148
  %v1015 = vunpack.c.h.b16 %v148
  %v1016 = vunpack.c.l.b16 %v149
  %v1017 = vunpack.c.h.b16 %v149
  %v1018 = vunpack.c.l.b16 %v150
  %v1019 = vunpack.c.h.b16 %v150
  %v1020 = vunpack.c.l.b16 %v151
  %v1021 = vunpack.c.h.b16 %v151
  %v1022 = vunpack.c.l.b16 %v152
  %v1023 = vunpack.c.h.b16 %v152
  %v1024 = vunpack.c.l.b16 %v153
  %v1025 = vunpack.c.h.b16 %v153
  %v1026 = vunpack.c.l.b16 %v154
  %v1027 = vunpack.c.h.b16 %v154
  %v1028 = vunpack.c.l.b16 %v155
  %v1029 = vunpack.c.h.b16 %v155
  %v1030 = vunpack.c.l.b16 %v156
  %v1031 = vunpack.c.h.b16 %v156
  %v1032 = vunpack.c.l.b16 %v157
  %v1033 = vunpack.c.h.b16 %v157
  %v1034 = vunpack.c.l.b16 %v158
  %v1035 = vunpack.c.h.b16 %v158
  %v1036 = vunpack.c.l.b16 %v159
  %v1037 = vunpack.c.h.b16 %v159
  %v1038 = vunpack.c.l.b16 %v160
  %v1039 = vunpack.c.h.b16 %v160
  %v1040 = vunpack.c.l.b16 %v161
  %v1041 = vunpack.c.h.b16 %v161
  %v1042 = vunpack.c.l.b16 %v162
  %v1043 = vunpack.c.h.b16 %v162
  %v1044 = vunpack.c.l.b16 %v163
  %v1045 = vunpack.c.h.b16 %v163
  %v1046 = vunpack.c.l.b16 %v164
  %v1047 = vunpack.c.h.b16 %v164
  %v1048 = vunpack.c.l.b16 %v165
  %v1049 = vunpack.c.h.b16 %v165
  %v1050 = vunpack.c.l.b16 %v166
  %v1051 = vunpack.c.h.b16 %v166
  %v1052 = vunpack.c.l.b16 %v167
  %v1053 = vunpack.c.h.b16 %v167
  %v1054 = vunpack.c.l.b16 %v168
  %v1055 = vunpack.c.h.b16 %v168
  %v1056 = vunpack.c.l.b16 %v169
  %v1057 = vunpack.c.h.b16 %v169
  %v1058 = vunpack.c.l.b16 %v170
  %v1059 = vunpack.c.h.b16 %v170
  %v1060 = vunpack.c.l.b16 %v171
  %v1061 = vunpack.c.h.b16 %v171
  %v1062 = vunpack.c.l.b16 %v172
  %v1063 = vunpack.c.h.b16 %v172
  %v1064 = vunpack.c.l.b16 %v173
  %v1065 = vunpack.c.h.b16 %v173
  %v1066 = vunpack.c.l.b16 %v174
  %v1067 = vunpack.c.h.b16 %v174
  %v1068 = vunpack.c.l.b16 %v175
  %v1069 = vunpack.c.h.b16 %v175
  %v1070 = vunpack.c.l.b16 %v176
  %v1071 = vunpack.c.h.b16 %v176
  %v1072 = vunpack.c.l.b16 %v177
  %v1073 = vunpack.c.h.b16 %v177
  %v1074 = vunpack.c.l.b16 %v178
  %v1075 = vunpack.c.h.b16 %v178
  %v1076 = vunpack.c.l.b16 %v179
  %v1077 = vunpack.c.h.b16 %v179
  %v1078 = vunpack.c.l.b16 %v180
  %v1079 = vunpack.c.h.b16 %v180
  %v1080 = vunpack.c.l.b16 %v181
  %v1081 = vunpack.c.h.b16 %v181
  %v1082 = vunpack.c.l.b16 %v182
  %v1083 = vunpack.c.h.b16 %v182
  %v1084 = vunpack.c.l.b16 %v183
  %v1085 = vunpack.c.h.b16 %v183
  %v1086 = vunpack.c.l.b16 %v184
  %v1087 = vunpack.c.h.b16 %v184
  %v1088 = vunpack.c.l.b16 %v185
  %v1089 = vunpack.c.h.b16 %v185
  %v1090 = vunpack.c.l.b16 %v186
  %v1091 = vunpack.c.h.b16 %v186
  %v1092 = vunpack.c.l.b16 %v187
  %v1093 = vunpack.c.h.b16 %v187
  %v1094 = vunpack.c.l.b16 %v188
  %v1095 = vunpack.c.h.b16 %v188
  %v1096 = vunpack.c.l.b16 %v189
  %v1097 = vunpack.c.h.b16 %v189
  %v1098 = vunpack.c.l.b16 %v190
  %v1099 = vunpack.c.h.b16 %v190
  %v1100 = vunpack.c.l.b16 %v191
  %v1101 = vunpack.c.h.b16 %v191
  %v1102 = vunpack.c.l.b16 %v192
  %v1103 = vunpack.c.h.b16 %v192
  %v1104 = vunpack.c.l.b16 %v193
  %v1105 = vunpack.c.h.b16 %v193
  %v1106 = vunpack.c.l.b16 %v194
  %v1107 = vunpack.c.h.b16 %v194
  %v1108 = vunpack.c.l.b16 %v195
  %v1109 = vunpack.c.h.b16 %v195
  %v1110 = vunpack.c.l.b16 %v196
  %v1111 = vunpack.c.h.b16 %v196
  %v1112 = vunpack.c.l.b16 %v197
  %v1113 = vunpack.c.h.b16 %v197
  %v1114 = vunpack.c.l.b16 %v198
  %v1115 = vunpack.c.h.b16 %v198
  %v1116 = vunpack.c.l.b16 %v199
  %v1117 = vunpack.c.h.b16 %v199
  %v1118 = vunpack.c.l.b16 %v200
  %v1119 = vunpack.c.h.b16 %v200
  %v1120 = vunpack.c.l.b16 %v201
  %v1121 = vunpack.c.h.b16 %v201
  %v1122 = vunpack.c.l.b16 %v202
  %v1123 = vunpack.c.h.b16 %v202
  %v1124 = vunpack.c.l.b16 %v203
  %v1125 = vunpack.c.h.b16 %v203
  %v1126 = vunpack.c.l.b16 %v204
  %v1127 = vunpack.c.h.b16 %v204
  %v1128 = vunpack.c.l.b16 %v205
  %v1129 = vunpack.c.h.b16 %v205
  %v1130 = vunpack.c.l.b16 %v206
  %v1131 = vunpack.c.h.b16 %v206
  %v1132 = vunpack.c.l.b16 %v207
  %v1133 = vunpack.c.h.b16 %v207
  %v1134 = vunpack.c.l.b16 %v208
  %v1135 = vunpack.c.h.b16 %v208
  %v1136 = vunpack.c.l.b16 %v209
  %v1137 = vunpack.c.h.b16 %v209
  %v1138 = vunpack.c.l.b16 %v210
  %v1139 = vunpack.c.h.b16 %v210
  %v1140 = vunpack.c.l.b16 %v211
  %v1141 = vunpack.c.h.b16 %v211
  %v1142 = vunpack.c.l.b16 %v212
  %v1143 = vunpack.c.h.b16 %v212
  %v1144 = vunpack.c.l.b16 %v213
  %v1145 = vunpack.c.h.b16 %v213
  %v1146 = vunpack.c.l.b16 %v214
  %v1147 = vunpack.c.h.b16 %v214
  %v1148 = vunpack.c.l.b16 %v215
  %v1149 = vunpack.c.h.b16 %v215
  %v1150 = vunpack.c.l.b16 %v216
  %v1151 = vunpack.c.h.b16 %v216
  %v1152 = vunpack.c.l.b16 %v217
  %v1153 = vunpack.c.h.b16 %v217
  %v1154 = vunpack.c.l.b16 %v218
  %v1155 = vunpack.c.h.b16 %v218
  %v1156 = vunpack.c.l.b16 %v219
  %v1157 = vunpack.c.h.b16 %v219
  %v1158 = vunpack.c.l.b16 %v220
  %v1159 = vunpack.c.h.b16 %v220
  %v1160 = vunpack.c.l.b16 %v221
  %v1161 = vunpack.c.h.b16 %v221
  %v1162 = vunpack.c.l.b16 %v222
  %v1163 = vunpack.c.h.b16 %v222
  %v1164 = vunpack.c.l.b16 %v223
  %v1165 = vunpack.c.h.b16 %v223
  %v1166 = vunpack.c.l.b16 %v224
  %v1167 = vunpack.c.h.b16 %v224
  %v1168 = vunpack.c.l.b16 %v225
  %v1169 = vunpack.c.h.b16 %v225
  %v1170 = vunpack.c.l.b16 %v226
  %v1171 = vunpack.c.h.b16 %v226
  %v1172 = vunpack.c.l.b16 %v227
  %v1173 = vunpack.c.h.b16 %v227
  %v1174 = vunpack.c.l.b16 %v228
  %v1175 = vunpack.c.h.b16 %v228
  %v1176 = vunpack.c.l.b16 %v229
  %v1177 = vunpack.c.h.b16 %v229
  %v1178 = vunpack.c.l.b16 %v230
  %v1179 = vunpack.c.h.b16 %v230
  %v1180 = vunpack.c.l.b16 %v231
  %v1181 = vunpack.c.h.b16 %v231
  %v1182 = vunpack.c.l.b16 %v232
  %v1183 = vunpack.c.h.b16 %v232
  %v1184 = vunpack.c.l.b16 %v233
  %v1185 = vunpack.c.h.b16 %v233
  %v1186 = vunpack.c.l.b16 %v234
  %v1187 = vunpack.c.h.b16 %v234
  %v1188 = vunpack.c.l.b16 %v235
  %v1189 = vunpack.c.h.b16 %v235
  %v1190 = vunpack.c.l.b16 %v236
  %v1191 = vunpack.c.h.b16 %v236
  %v1192 = vunpack.c.l.b16 %v237
  %v1193 = vunpack.c.h.b16 %v237
  %v1194 = vunpack.c.l.b16 %v238
  %v1195 = vunpack.c.h.b16 %v238
  %v1196 = vunpack.c.l.b16 %v239
  %v1197 = vunpack.c.h.b16 %v239
  %v1198 = vunpack.c.l.b16 %v240
  %v1199 = vunpack.c.h.b16 %v240
  %v1200 = vunpack.c.l.b16 %v241
  %v1201 = vunpack.c.h.b16 %v241
  %v1202 = vunpack.c.l.b16 %v242
  %v1203 = vunpack.c.h.b16 %v242
  %v1204 = vunpack.c.l.b16 %v243
  %v1205 = vunpack.c.h.b16 %v243
  %v1206 = vunpack.c.l.b16 %v244
  %v1207 = vunpack.c.h.b16 %v244
  %v1208 = vunpack.c.l.b16 %v245
  %v1209 = vunpack.c.h.b16 %v245
  %v1210 = vunpack.c.l.b16 %v246
  %v1211 = vunpack.c.h.b16 %v246
  %v1212 = vunpack.c.l.b16 %v247
  %v1213 = vunpack.c.h.b16 %v247
  %v1214 = vunpack.c.l.b16 %v248
  %v1215 = vunpack.c.h.b16 %v248
  %v1216 = vunpack.c.l.b16 %v249
  %v1217 = vunpack.c.h.b16 %v249
  %v1218 = vunpack.c.l.b16 %v250
  %v1219 = vunpack.c.h.b16 %v250
  %v1220 = vunpack.c.l.b16 %v251
  %v1221 = vunpack.c.h.b16 %v251
  %v1222 = vunpack.c.l.b16 %v252
  %v1223 = vunpack.c.h.b16 %v252
  %v1224 = vunpack.c.l.b16 %v253
  %v1225 = vunpack.c.h.b16 %v253
  %v1226 = vunpack.c.l.b16 %v254
  %v1227 = vunpack.c.h.b16 %v254
  %v1228 = vunpack.c.l.b16 %v255
  %v1229 = vunpack.c.h.b16 %v255
  %v1230 = vunpack.c.l.b16 %v256
  %v1231 = vunpack.c.h.b16 %v256
  %v1232 = vunpack.c.l.b16 %v257
  %v1233 = vunpack.c.h.b16 %v257
  %v1234 = vunpack.c.l.b16 %v258
  %v1235 = vunpack.c.h.b16 %v258
  %v1236 = vunpack.c.l.b16 %v259
  %v1237 = vunpack.c.h.b16 %v259
  %v1238 = vunpack.c.l.b16 %v260
  %v1239 = vunpack.c.h.b16 %v260
  %v1240 = vunpack.c.l.b16 %v261
  %v1241 = vunpack.c.h.b16 %v261
  %v1242 = vunpack.c.l.b16 %v262
  %v1243 = vunpack.c.h.b16 %v262
  %v1244 = vunpack.c.l.b16 %v263
  %v1245 = vunpack.c.h.b16 %v263
  %v1246 = vunpack.c.l.b16 %v264
  %v1247 = vunpack.c.h.b16 %v264
  %v1248 = vunpack.c.l.b16 %v265
  %v1249 = vunpack.c.h.b16 %v265
  %v1250 = vunpack.c.l.b16 %v266
  %v1251 = vunpack.c.h.b16 %v266
  %v1252 = vunpack.c.l.b16 %v267
  %v1253 = vunpack.c.h.b16 %v267
  %v1254 = vunpack.c.l.b16 %v268
  %v1255 = vunpack.c.h.b16 %v268
  %v1256 = vunpack.c.l.b16 %v269
  %v1257 = vunpack.c.h.b16 %v269
  %v1258 = vunpack.c.l.b16 %v270
  %v1259 = vunpack.c.h.b16 %v270
  %v1260 = vunpack.c.l.b16 %v271
  %v1261 = vunpack.c.h.b16 %v271
  %v1262 = vunpack.c.l.b16 %v272
  %v1263 = vunpack.c.h.b16 %v272
  %v1264 = vunpack.c.l.b16 %v273
  %v1265 = vunpack.c.h.b16 %v273
  %v1266 = vunpack.c.l.b16 %v274
  %v1267 = vunpack.c.h.b16 %v274
  %v1268 = vunpack.c.l.b16 %v275
  %v1269 = vunpack.c.h.b16 %v275
  %v1270 = vunpack.c.l.b16 %v276
  %v1271 = vunpack.c.h.b16 %v276
  %v1272 = vunpack.c.l.b16 %v277
  %v1273 = vunpack.c.h.b16 %v277
  %v1274 = vunpack.c.l.b16 %v278
  %v1275 = vunpack.c.h.b16 %v278
  %v1276 = vunpack.c.l.b16 %v279
  %v1277 = vunpack.c.h.b16 %v279
  %v1278 = vunpack.c.l.b16 %v280
  %v1279 = vunpack.c.h.b16 %v280
  %v1280 = vunpack.c.l.b16 %v281
  %v1281 = vunpack.c.h.b16 %v281
  %v1282 = vunpack.c.l.b16 %v282
  %v1283 = vunpack.c.h.b16 %v282
  %v1284 = vunpack.c.l.b16 %v283
  %v1285 = vunpack.c.h.b16 %v283
  %v1286 = vunpack.c.l.b16 %v284
  %v1287 = vunpack.c.h.b16 %v284
  %v1288 = vunpack.c.l.b16 %v285
  %v1289 = vunpack.c.h.b16 %v285
  %v1290 = vunpack.c.l.b16 %v286
  %v1291 = vunpack.c.h.b16 %v286
  %v1292 = vunpack.c.l.b16 %v287
  %v1293 = vunpack.c.h.b16 %v287
  %v1294 = vunpack.c.l.b16 %v288
  %v1295 = vunpack.c.h.b16 %v288
  %v1296 = vunpack.c.l.b16 %v289
  %v1297 = vunpack.c.h.b16 %v289
  %v1298 = vunpack.c.l.b16 %v290
  %v1299 = vunpack.c.h.b16 %v290
  %v1300 = vunpack.c.l.b16 %v291
  %v1301 = vunpack.c.h.b16 %v291
  %v1302 = vunpack.c.l.b16 %v292
  %v1303 = vunpack.c.h.b16 %v292
  %v1304 = vunpack.c.l.b16 %v293
  %v1305 = vunpack.c.h.b16 %v293
  %v1306 = vunpack.c.l.b16 %v294
  %v1307 = vunpack.c.h.b16 %v294
  %v1308 = vunpack.c.l.b16 %v295
  %v1309 = vunpack.c.h.b16 %v295
  %v1310 = vunpack.c.l.b16 %v296
  %v1311 = vunpack.c.h.b16 %v296
  %v1312 = vunpack.c.l.b16 %v297
  %v1313 = vunpack.c.h.b16 %v297
  %v1314 = vunpack.c.l.b16 %v298
  %v1315 = vunpack.c.h.b16 %v298
  %v1316 = vunpack.c.l.b16 %v299
  %v1317 = vunpack.c.h.b16 %v299
  %v1318 = vunpack.c.l.b16 %v300
  %v1319 = vunpack.c.h.b16 %v300
  %v1320 = vunpack.c.l.b16 %v301
  %v1321 = vunpack.c.h.b16 %v301
  %v1322 = vunpack.c.l.b16 %v302
  %v1323 = vunpack.c.h.b16 %v302
  %v1324 = vunpack.c.l.b16 %v303
  %v1325 = vunpack.c.h.b16 %v303
  %v1326 = vunpack.c.l.b16 %v304
  %v1327 = vunpack.c.h.b16 %v304
  %v1328 = vunpack.c.l.b16 %v305
  %v1329 = vunpack.c.h.b16 %v305
  %v1330 = vunpack.c.l.b16 %v306
  %v1331 = vunpack.c.h.b16 %v306
  %v1332 = vunpack.c.l.b16 %v307
  %v1333 = vunpack.c.h.b16 %v307
  %v1334 = vunpack.c.l.b16 %v308
  %v1335 = vunpack.c.h.b16 %v308
  %v1336 = vunpack.c.l.b16 %v309
  %v1337 = vunpack.c.h.b16 %v309
  %v1338 = vunpack.c.l.b16 %v310
  %v1339 = vunpack.c.h.b16 %v310
  %v1340 = vunpack.c.l.b16 %v311
  %v1341 = vunpack.c.h.b16 %v311
  %v1342 = vunpack.c.l.b16 %v312
  %v1343 = vunpack.c.h.b16 %v312
  %v1344 = vunpack.c.l.b16 %v313
  %v1345 = vunpack.c.h.b16 %v313
  %v1346 = vunpack.c.l.b16 %v314
  %v1347 = vunpack.c.h.b16 %v314
  %v1348 = vunpack.c.l.b16 %v315
  %v1349 = vunpack.c.h.b16 %v315
  %v1350 = vunpack.c.l.b16 %v316
  %v1351 = vunpack.c.h.b16 %v316
  %v1352 = vunpack.c.l.b16 %v317
  %v1353 = vunpack.c.h.b16 %v317
  %v1354 = vunpack.c.l.b16 %v318
  %v1355 = vunpack.c.h.b16 %v318
  %v1356 = vunpack.c.l.b16 %v319
  %v1357 = vunpack.c.h.b16 %v319
  %v1358 = vunpack.c.l.b16 %v320
  %v1359 = vunpack.c.h.b16 %v320
  %v1360 = vunpack.c.l.b16 %v321
  %v1361 = vunpack.c.h.b16 %v321
  %v1362 = vunpack.c.l.b16 %v322
  %v1363 = vunpack.c.h.b16 %v322
  %v1364 = vunpack.c.l.b16 %v323
  %v1365 = vunpack.c.h.b16 %v323
  %v1366 = vunpack.c.l.b16 %v324
  %v1367 = vunpack.c.h.b16 %v324
  %v1368 = vunpack.c.l.b16 %v325
  %v1369 = vunpack.c.h.b16 %v325
  %v1370 = vunpack.c.l.b16 %v326
  %v1371 = vunpack.c.h.b16 %v326
  %v1372 = vunpack.c.l.b16 %v327
  %v1373 = vunpack.c.h.b16 %v327
  %v1374 = vunpack.c.l.b16 %v328
  %v1375 = vunpack.c.h.b16 %v328
  %v1376 = vunpack.c.l.b16 %v329
  %v1377 = vunpack.c.h.b16 %v329
  %v1378 = vunpack.c.l.b16 %v330
  %v1379 = vunpack.c.h.b16 %v330
  %v1380 = vunpack.c.l.b16 %v331
  %v1381 = vunpack.c.h.b16 %v331
  %v1382 = vunpack.c.l.b16 %v332
  %v1383 = vunpack.c.h.b16 %v332
  %v1384 = vunpack.c.l.b16 %v333
  %v1385 = vunpack.c.h.b16 %v333
  %v1386 = vunpack.c.l.b16 %v334
  %v1387 = vunpack.c.h.b16 %v334
  %v1388 = vunpack.c.l.b16 %v335
  %v1389 = vunpack.c.h.b16 %v335
  %v1390 = vunpack.c.l.b16 %v336
  %v1391 = vunpack.c.h.b16 %v336
  %v1392 = vunpack.c.l.b16 %v337
  %v1393 = vunpack.c.h.b16 %v337
  %v1394 = vpack.c.b16 %v820, %v818
  %v1395 = vpack.c.b16 %v821, %v819
  %v1396 = vpack.c.b16 %v824, %v822
  %v1397 = vpack.c.b16 %v825, %v823
  %v1398 = vpack.c.b16 %v828, %v826
  %v1399 = vpack.c.b16 %v829, %v827
  %v1400 = vpack.c.b16 %v832, %v830
  %v1401 = vpack.c.b16 %v833, %v831
  %v1402 = vpack.c.b16 %v836, %v834
  %v1403 = vpack.c.b16 %v837, %v835
  %v1404 = vpack.c.b16 %v840, %v838
  %v1405 = vpack.c.b16 %v841, %v839
  %v1406 = vpack.c.b16 %v844, %v842
  %v1407 = vpack.c.b16 %v845, %v843
  %v1408 = vpack.c.b16 %v848, %v846
  %v1409 = vpack.c.b16 %v849, %v847
  %v1410 = vpack.c.b16 %v852, %v850
  %v1411 = vpack.c.b16 %v853, %v851
  %v1412 = vpack.c.b16 %v856, %v854
  %v1413 = vpack.c.b16 %v857, %v855
  %v1414 = vpack.c.b16 %v860, %v858
  %v1415 = vpack.c.b16 %v861, %v859
  %v1416 = vpack.c.b16 %v864, %v862
  %v1417 = vpack.c.b16 %v865, %v863
  %v1418 = vpack.c.b16 %v868, %v866
  %v1419 = vpack.c.b16 %v869, %v867
  %v1420 = vpack.c.b16 %v872, %v870
  %v1421 = vpack.c.b16 %v873, %v871
  %v1422 = vpack.c.b16 %v876, %v874
  %v1423 = vpack.c.b16 %v877, %v875
  %v1424 = vpack.c.b16 %v880, %v878
  %v1425 = vpack.c.b16 %v881, %v879
  %v1426 = vpack.c.b16 %v884, %v882
  %v1427 = vpack.c.b16 %v885, %v883
  %v1428 = vpack.c.b16 %v888, %v886
  %v1429 = vpack.c.b16 %v889, %v887
  %v1430 = vpack.c.b16 %v892, %v890
  %v1431 = vpack.c.b16 %v893, %v891
  %v1432 = vpack.c.b16 %v896, %v894
  %v1433 = vpack.c.b16 %v897, %v895
  %v1434 = vpack.c.b16 %v900, %v898
  %v1435 = vpack.c.b16 %v901, %v899
  %v1436 = vpack.c.b16 %v904, %v902
  %v1437 = vpack.c.b16 %v905, %v903
  %v1438 = vpack.c.b16 %v908, %v906
  %v1439 = vpack.c.b16 %v909, %v907
  %v1440 = vpack.c.b16 %v912, %v910
  %v1441 = vpack.c.b16 %v913, %v911
  %v1442 = vpack.c.b16 %v916, %v914
  %v1443 = vpack.c.b16 %v917, %v915
  %v1444 = vpack.c.b16 %v920, %v918
  %v1445 = vpack.c.b16 %v921, %v919
  %v1446 = vpack.c.b16 %v924, %v922
  %v1447 = vpack.c.b16 %v925, %v923
  %v1448 = vpack.c.b16 %v928, %v926
  %v1449 = vpack.c.b16 %v929, %v927
  %v1450 = vpack.c.b16 %v932, %v930
  %v1451 = vpack.c.b16 %v933, %v931
  %v1452 = vpack.c.b16 %v936, %v934
  %v1453 = vpack.c.b16 %v937, %v935
  %v1454 = vpack.c.b16 %v940, %v938
  %v1455 = vpack.c.b16 %v941, %v939
  %v1456 = vpack.c.b16 %v944, %v942
  %v1457 = vpack.c.b16 %v945, %v943
  %v1458 = vpack.c.b16 %v948, %v946
  %v1459 = vpack.c.b16 %v949, %v947
  %v1460 = vpack.c.b16 %v952, %v950
  %v1461 = vpack.c.b16 %v953, %v951
  %v1462 = vpack.c.b16 %v956, %v954
  %v1463 = vpack.c.b16 %v957, %v955
  %v1464 = vpack.c.b16 %v960, %v958
  %v1465 = vpack.c.b16 %v961, %v959
  %v1466 = vpack.c.b16 %v964, %v962
  %v1467 = vpack.c.b16 %v965, %v963
  %v1468 = vpack.c.b16 %v968, %v966
  %v1469 = vpack.c.b16 %v969, %v967
  %v1470 = vpack.c.b16 %v972, %v970
  %v1471 = vpack.c.b16 %v973, %v971
  %v1472 = vpack.c.b16 %v976, %v974
  %v1473 = vpack.c.b16 %v977, %v975
  %v1474 = vpack.c.b16 %v980, %v978
  %v1475 = vpack.c.b16 %v981, %v979
  %v1476 = vpack.c.b16 %v984, %v982
  %v1477 = vpack.c.b16 %v985, %v983
  %v1478 = vpack.c.b16 %v988, %v986
  %v1479 = vpack.c.b16 %v989, %v987
  %v1480 = vpack.c.b16 %v992, %v990
  %v1481 = vpack.c.b16 %v993, %v991
  %v1482 = vpack.c.b16 %v996, %v994
  %v1483 = vpack.c.b16 %v997, %v995
  %v1484 = vpack.c.b16 %v1000, %v998
  %v1485 = vpack.c.b16 %v1001, %v999
  %v1486 = vpack.c.b16 %v1004, %v1002
  %v1487 = vpack.c.b16 %v1005, %v1003
  %v1488 = vpack.c.b16 %v1008, %v1006
  %v1489 = vpack.c.b16 %v1009, %v1007
  %v1490 = vpack.c.b16 %v1012, %v1010
  %v1491 = vpack.c.b16 %v1013, %v1011
  %v1492 = vpack.c.b16 %v1016, %v1014
  %v1493 = vpack.c.b16 %v1017, %v1015
  %v1494 = vpack.c.b16 %v1020, %v1018
  %v1495 = vpack.c.b16 %v1021, %v1019
  %v1496 = vpack.c.b16 %v1024, %v1022
  %v1497 = vpack.c.b16 %v1025, %v1023
  %v1498 = vpack.c.b16 %v1028, %v1026
  %v1499 = vpack.c.b16 %v1029, %v1027
  %v1500 = vpack.c.b16 %v1032, %v1030
  %v1501 = vpack.c.b16 %v1033, %v1031
  %v1502 = vpack.c.b16 %v1036, %v1034
  %v1503 = vpack.c.b16 %v1037, %v1035
  %v1504 = vpack.c.b16 %v1040, %v1038
  %v1505 = vpack.c.b16 %v1041, %v1039
  %v1506 = vpack.c.b16 %v1044, %v1042
  %v1507 = vpack.c.b16 %v1045, %v1043
  %v1508 = vpack.c.b16 %v1048, %v1046
  %v1509 = vpack.c.b16 %v1049, %v1047
  %v1510 = vpack.c.b16 %v1052, %v1050
  %v1511 = vpack.c.b16 %v1053, %v1051
  %v1512 = vpack.c.b16 %v1056, %v1054
  %v1513 = vpack.c.b16 %v1057, %v1055
  %v1514 = vpack.c.b16 %v1060, %v1058
  %v1515 = vpack.c.b16 %v1061, %v1059
  %v1516 = vpack.c.b16 %v1064, %v1062
  %v1517 = vpack.c.b16 %v1065, %v1063
  %v1518 = vpack.c.b16 %v1068, %v1066
  %v1519 = vpack.c.b16 %v1069, %v1067
  %v1520 = vpack.c.b16 %v1072, %v1070
  %v1521 = vpack.c.b16 %v1073, %v1071
  %v1522 = vpack.c.b16 %v1076, %v1074
  %v1523 = vpack.c.b16 %v1077, %v1075
  %v1524 = vpack.c.b16 %v1080, %v1078
  %v1525 = vpack.c.b16 %v1081, %v1079
  %v1526 = vpack.c.b16 %v1084, %v1082
  %v1527 = vpack.c.b16 %v1085, %v1083
  %v1528 = vpack.c.b16 %v1088, %v1086
  %v1529 = vpack.c.b16 %v1089, %v1087
  %v1530 = vpack.c.b16 %v1092, %v1090
  %v1531 = vpack.c.b16 %v1093, %v1091
  %v1532 = vpack.c.b16 %v1096, %v1094
  %v1533 = vpack.c.b16 %v1097, %v1095
  %v1534 = vpack.c.b16 %v1100, %v1098
  %v1535 = vpack.c.b16 %v1101, %v1099
  %v1536 = vpack.c.b16 %v1104, %v1102
  %v1537 = vpack.c.b16 %v1105, %v1103
  %v1538 = vpack.c.b16 %v1108, %v1106
  %v1539 = vpack.c.b16 %v1109, %v1107
  %v1540 = vpack.c.b16 %v1112, %v1110
  %v1541 = vpack.c.b16 %v1113, %v1111
  %v1542 = vpack.c.b16 %v1116, %v1114
  %v1543 = vpack.c.b16 %v1117, %v1115
  %v1544 = vpack.c.b16 %v1120, %v1118
  %v1545 = vpack.c.b16 %v1121, %v1119
  %v1546 = vpack.c.b16 %v1124, %v1122
  %v1547 = vpack.c.b16 %v1125, %v1123
  %v1548 = vpack.c.b16 %v1128, %v1126
  %v1549 = vpack.c.b16 %v1129, %v1127
  %v1550 = vpack.c.b16 %v1132, %v1130
  %v1551 = vpack.c.b16 %v1133, %v1131
  %v1552 = vpack.c.b16 %v1136, %v1134
  %v1553 = vpack.c.b16 %v1137, %v1135
  %v1554 = vpack.c.b16 %v1140, %v1138
  %v1555 = vpack.c.b16 %v1141, %v1139
  %v1556 = vpack.c.b16 %v1144, %v1142
  %v1557 = vpack.c.b16 %v1145, %v1143
  %v1558 = vpack.c.b16 %v1148, %v1146
  %v1559 = vpack.c.b16 %v1149, %v1147
  %v1560 = vpack.c.b16 %v1152, %v1150
  %v1561 = vpack.c.b16 %v1153, %v1151
  %v1562 = vpack.c.b16 %v1156, %v1154
  %v1563 = vpack.c.b16 %v1157, %v1155
  %v1564 = vpack.c.b16 %v1160, %v1158
  %v1565 = vpack.c.b16 %v1161, %v1159
  %v1566 = vpack.c.b16 %v1164, %v1162
  %v1567 = vpack.c.b16 %v1165, %v1163
  %v1568 = vpack.c.b16 %v1168, %v1166
  %v1569 = vpack.c.b16 %v1169, %v1167
  %v1570 = vpack.c.b16 %v1172, %v1170
  %v1571 = vpack.c.b16 %v1173, %v1171
  %v1572 = vpack.c.b16 %v1176, %v1174
  %v1573 = vpack.c.b16 %v1177, %v1175
  %v1574 = vpack.c.b16 %v1180, %v1178
  %v1575 = vpack.c.b16 %v1181, %v1179
  %v1576 = vpack.c.b16 %v1184, %v1182
  %v1577 = vpack.c.b16 %v1185, %v1183
  %v1578 = vpack.c.b16 %v1188, %v1186
  %v1579 = vpack.c.b16 %v1189, %v1187
  %v1580 = vpack.c.b16 %v1192, %v1190
  %v1581 = vpack.c.b16 %v1193, %v1191
  %v1582 = vpack.c.b16 %v1196, %v1194
  %v1583 = vpack.c.b16 %v1197, %v1195
  %v1584 = vpack.c.b16 %v1200, %v1198
  %v1585 = vpack.c.b16 %v1201, %v1199
  %v1586 = vpack.c.b16 %v1204, %v1202
  %v1587 = vpack.c.b16 %v1205, %v1203
  %v1588 = vpack.c.b16 %v1208, %v1206
  %v1589 = vpack.c.b16 %v1209, %v1207
  %v1590 = vpack.c.b16 %v1212, %v1210
  %v1591 = vpack.c.b16 %v1213, %v1211
  %v1592 = vpack.c.b16 %v1216, %v1214
  %v1593 = vpack.c.b16 %v1217, %v1215
  %v1594 = vpack.c.b16 %v1220, %v1218
  %v1595 = vpack.c.b16 %v1221, %v1219
  %v1596 = vpack.c.b16 %v1224, %v1222
  %v1597 = vpack.c.b16 %v1225, %v1223
  %v1598 = vpack.c.b16 %v1228, %v1226
  %v1599 = vpack.c.b16 %v1229, %v1227
  %v1600 = vpack.c.b16 %v1232, %v1230
  %v1601 = vpack.c.b16 %v1233, %v1231
  %v1602 = vpack.c.b16 %v1236, %v1234
  %v1603 = vpack.c.b16 %v1237, %v1235
  %v1604 = vpack.c.b16 %v1240, %v1238
  %v1605 = vpack.c.b16 %v1241, %v1239
  %v1606 = vpack.c.b16 %v1244, %v1242
  %v1607 = vpack.c.b16 %v1245, %v1243
  %v1608 = vpack.c.b16 %v1248, %v1246
  %v1609 = vpack.c.b16 %v1249, %v1247
  %v1610 = vpack.c.b16 %v1252, %v1250
  %v1611 = vpack.c.b16 %v1253, %v1251
  %v1612 = vpack.c.b16 %v1256, %v1254
  %v1613 = vpack.c.b16 %v1257, %v1255
  %v1614 = vpack.c.b16 %v1260, %v1258
  %v1615 = vpack.c.b16 %v1261, %v1259
  %v1616 = vpack.c.b16 %v1264, %v1262
  %v1617 = vpack.c.b16 %v1265, %v1263
  %v1618 = vpack.c.b16 %v1268, %v1266
  %v1619 = vpack.c.b16 %v1269, %v1267
  %v1620 = vpack.c.b16 %v1272, %v1270
  %v1621 = vpack.c.b16 %v1273, %v1271
  %v1622 = vpack.c.b16 %v1276, %v1274
  %v1623 = vpack.c.b16 %v1277, %v1275
  %v1624 = vpack.c.b16 %v1280, %v1278
  %v1625 = vpack.c.b16 %v1281, %v1279
  %v1626 = vpack.c.b16 %v1284, %v1282
  %v1627 = vpack.c.b16 %v1285, %v1283
  %v1628 = vpack.c.b16 %v1288, %v1286
  %v1629 = vpack.c.b16 %v1289, %v1287
  %v1630 = vpack.c.b16 %v1292, %v1290
  %v1631 = vpack.c.b16 %v1293, %v1291
  %v1632 = vpack.c.b16 %v1296, %v1294
  %v1633 = vpack.c.b16 %v1297, %v1295
  %v1634 = vpack.c.b16 %v1300, %v1298
  %v1635 = vpack.c.b16 %v1301, %v1299
  %v1636 = vpack.c.b16 %v1304, %v1302
  %v1637 = vpack.c.b16 %v1305, %v1303
  %v1638 = vpack.c.b16 %v1308, %v1306
  %v1639 = vpack.c.b16 %v1309, %v1307
  %v1640 = vpack.c.b16 %v1312, %v1310
  %v1641 = vpack.c.b16 %v1313, %v1311
  %v1642 = vpack.c.b16 %v1316, %v1314
  %v1643 = vpack.c.b16 %v1317, %v1315
  %v1644 = vpack.c.b16 %v1320, %v1318
  %v1645 = vpack.c.b16 %v1321, %v1319
  %v1646 = vpack.c.b16 %v1324, %v1322
  %v1647 = vpack.c.b16 %v1325, %v1323
  %v1648 = vpack.c.b16 %v1328, %v1326
  %v1649 = vpack.c.b16 %v1329, %v1327
  %v1650 = vpack.c.b16 %v1332, %v1330
  %v1651 = vpack.c.b16 %v1333, %v1331
  %v1652 = vpack.c.b16 %v1336, %v1334
  %v1653 = vpack.c.b16 %v1337, %v1335
  %v1654 = vpack.c.b16 %v1340, %v1338
  %v1655 = vpack.c.b16 %v1341, %v1339
  %v1656 = vpack.c.b16 %v1344, %v1342
  %v1657 = vpack.c.b16 %v1345, %v1343
  %v1658 = vpack.c.b16 %v1348, %v1346
  %v1659 = vpack.c.b16 %v1349, %v1347
  %v1660 = vpack.c.b16 %v1352, %v1350
  %v1661 = vpack.c.b16 %v1353, %v1351
  %v1662 = vpack.c.b16 %v1356, %v1354
  %v1663 = vpack.c.b16 %v1357, %v1355
  %v1664 = vpack.c.b16 %v1360, %v1358
  %v1665 = vpack.c.b16 %v1361, %v1359
  %v1666 = vpack.c.b16 %v1364, %v1362
  %v1667 = vpack.c.b16 %v1365, %v1363
  %v1668 = vpack.c.b16 %v1368, %v1366
  %v1669 = vpack.c.b16 %v1369, %v1367
  %v1670 = vpack.c.b16 %v1372, %v1370
  %v1671 = vpack.c.b16 %v1373, %v1371
  %v1672 = vpack.c.b16 %v1376, %v1374
  %v1673 = vpack.c.b16 %v1377, %v1375
  %v1674 = vpack.c.b16 %v1380, %v1378
  %v1675 = vpack.c.b16 %v1381, %v1379
  %v1676 = vpack.c.b16 %v1384, %v1382
  %v1677 = vpack.c.b16 %v1385, %v1383
  %v1678 = vpack.c.b16 %v1388, %v1386
  %v1679 = vpack.c.b16 %v1389, %v1387
  %v1680 = vpack.c.b16 %v1392, %v1390
  %v1681 = vpack.c.b16 %v1393, %v1391
  %1970 = vmatprep.subr.bf16.mxu0 %v1409
  %1971 = vmatpush1.bf16.msra.mxu0 %v1408
  %1972 = vmatprep.subr.bf16.mxu0 %v1407
  %1973 = vmatpush1.bf16.msra.mxu0 %v1406
  %1974 = vmatprep.subr.bf16.mxu0 %v1405
  %1975 = vmatpush1.bf16.msra.mxu0 %v1404
  %1976 = vmatprep.subr.bf16.mxu0 %v1403
  %1977 = vmatpush1.bf16.msra.mxu0 %v1402
  %1978 = vmatprep.subr.bf16.mxu0 %v1401
  %1979 = vmatpush1.bf16.msra.mxu0 %v1400
  %1980 = vmatprep.subr.bf16.mxu0 %v1399
  %1981 = vmatpush1.bf16.msra.mxu0 %v1398
  %1982 = vmatprep.subr.bf16.mxu0 %v1397
  %1983 = vmatpush1.bf16.msra.mxu0 %v1396
  %1984 = vmatprep.subr.bf16.mxu0 %v1395
  %1985 = vmatpush1.bf16.msra.mxu0 %v1394
  %1986 = vmatprep.subr.bf16.mxu0 %v1425
  %1987 = vmatpush2.bf16.msra.mxu0 %v1424
  %1988 = vmatprep.subr.bf16.mxu0 %v1423
  %1989 = vmatpush2.bf16.msra.mxu0 %v1422
  %1990 = vmatprep.subr.bf16.mxu0 %v1421
  %1991 = vmatpush2.bf16.msra.mxu0 %v1420
  %1992 = vmatprep.subr.bf16.mxu0 %v1419
  %1993 = vmatpush2.bf16.msra.mxu0 %v1418
  %1994 = vmatprep.subr.bf16.mxu0 %v1417
  %1995 = vmatpush2.bf16.msra.mxu0 %v1416
  %1996 = vmatprep.subr.bf16.mxu0 %v1415
  %1997 = vmatpush2.bf16.msra.mxu0 %v1414
  %1998 = vmatprep.subr.bf16.mxu0 %v1413
  %1999 = vmatpush2.bf16.msra.mxu0 %v1412
  %2000 = vmatprep.subr.bf16.mxu0 %v1411
  %2001 = vmatpush2.bf16.msra.mxu0 %v1410
  %2002 = vmatprep.mubr.bf16.mxu0 %v459
  %2003 = vmatmul.mubr.bf16.gmra.mxu0 %v458
  %v2004 = vpop.f32.mrf.mxu0
  %v2005 = vadd.f32 %v343, %v2004
  %v2006 = vpop.f32.mrf.mxu0
  %v2007 = vadd.f32 %v347, %v2006
  %v2008 = vpop.f32.mrf.mxu0
  %v2009 = vadd.f32 %v343, %v2008
  %v2010 = vpop.f32.mrf.mxu0
  %v2011 = vadd.f32 %v347, %v2010
  %2012 = vmatprep.mubr.bf16.mxu0 %v477
  %2013 = vmatmul.mubr.bf16.gmra.mxu0 %v476
  %v2014 = vpop.f32.mrf.mxu0
  %v2015 = vadd.f32 %v343, %v2014
  %v2016 = vpop.f32.mrf.mxu0
  %v2017 = vadd.f32 %v347, %v2016
  %v2018 = vpop.f32.mrf.mxu0
  %v2019 = vadd.f32 %v343, %v2018
  %v2020 = vpop.f32.mrf.mxu0
  %v2021 = vadd.f32 %v347, %v2020
  %2022 = vdwg.mxu0
  %2023 = vmatprep.subr.bf16.mxu0 %v1441
  %2024 = vmatpush1.bf16.msra.mxu0 %v1440
  %2025 = vmatprep.subr.bf16.mxu0 %v1439
  %2026 = vmatpush1.bf16.msra.mxu0 %v1438
  %2027 = vmatprep.subr.bf16.mxu0 %v1437
  %2028 = vmatpush1.bf16.msra.mxu0 %v1436
  %2029 = vmatprep.subr.bf16.mxu0 %v1435
  %2030 = vmatpush1.bf16.msra.mxu0 %v1434
  %2031 = vmatprep.subr.bf16.mxu0 %v1433
  %2032 = vmatpush1.bf16.msra.mxu0 %v1432
  %2033 = vmatprep.subr.bf16.mxu0 %v1431
  %2034 = vmatpush1.bf16.msra.mxu0 %v1430
  %2035 = vmatprep.subr.bf16.mxu0 %v1429
  %2036 = vmatpush1.bf16.msra.mxu0 %v1428
  %2037 = vmatprep.subr.bf16.mxu0 %v1427
  %2038 = vmatpush1.bf16.msra.mxu0 %v1426
  %2039 = vmatprep.subr.bf16.mxu0 %v1457
  %2040 = vmatpush2.bf16.msra.mxu0 %v1456
  %2041 = vmatprep.subr.bf16.mxu0 %v1455
  %2042 = vmatpush2.bf16.msra.mxu0 %v1454
  %2043 = vmatprep.subr.bf16.mxu0 %v1453
  %2044 = vmatpush2.bf16.msra.mxu0 %v1452
  %2045 = vmatprep.subr.bf16.mxu0 %v1451
  %2046 = vmatpush2.bf16.msra.mxu0 %v1450
  %2047 = vmatprep.subr.bf16.mxu0 %v1449
  %2048 = vmatpush2.bf16.msra.mxu0 %v1448
  %2049 = vmatprep.subr.bf16.mxu0 %v1447
  %2050 = vmatpush2.bf16.msra.mxu0 %v1446
  %2051 = vmatprep.subr.bf16.mxu0 %v1445
  %2052 = vmatpush2.bf16.msra.mxu0 %v1444
  %2053 = vmatprep.subr.bf16.mxu0 %v1443
  %2054 = vmatpush2.bf16.msra.mxu0 %v1442
  %2055 = vmatprep.mubr.bf16.mxu0 %v461
  %2056 = vmatmul.mubr.bf16.gmra.mxu0 %v460
  %v2057 = vpop.f32.mrf.mxu0
  %v2058 = vadd.f32 %v2005, %v2057
  %v2059 = vpop.f32.mrf.mxu0
  %v2060 = vadd.f32 %v2007, %v2059
  %v2061 = vpop.f32.mrf.mxu0
  %v2062 = vadd.f32 %v2009, %v2061
  %v2063 = vpop.f32.mrf.mxu0
  %v2064 = vadd.f32 %v2011, %v2063
  %2065 = vmatprep.mubr.bf16.mxu0 %v479
  %2066 = vmatmul.mubr.bf16.gmra.mxu0 %v478
  %v2067 = vpop.f32.mrf.mxu0
  %v2068 = vadd.f32 %v2015, %v2067
  %v2069 = vpop.f32.mrf.mxu0
  %v2070 = vadd.f32 %v2017, %v2069
  %v2071 = vpop.f32.mrf.mxu0
  %v2072 = vadd.f32 %v2019, %v2071
  %v2073 = vpop.f32.mrf.mxu0
  %v2074 = vadd.f32 %v2021, %v2073
  %2075 = vdwg.mxu0
  %2076 = vmatprep.subr.bf16.mxu0 %v1473
  %2077 = vmatpush1.bf16.msra.mxu0 %v1472
  %2078 = vmatprep.subr.bf16.mxu0 %v1471
  %2079 = vmatpush1.bf16.msra.mxu0 %v1470
  %2080 = vmatprep.subr.bf16.mxu0 %v1469
  %2081 = vmatpush1.bf16.msra.mxu0 %v1468
  %2082 = vmatprep.subr.bf16.mxu0 %v1467
  %2083 = vmatpush1.bf16.msra.mxu0 %v1466
  %2084 = vmatprep.subr.bf16.mxu0 %v1465
  %2085 = vmatpush1.bf16.msra.mxu0 %v1464
  %2086 = vmatprep.subr.bf16.mxu0 %v1463
  %2087 = vmatpush1.bf16.msra.mxu0 %v1462
  %2088 = vmatprep.subr.bf16.mxu0 %v1461
  %2089 = vmatpush1.bf16.msra.mxu0 %v1460
  %2090 = vmatprep.subr.bf16.mxu0 %v1459
  %2091 = vmatpush1.bf16.msra.mxu0 %v1458
  %2092 = vmatprep.subr.bf16.mxu0 %v1489
  %2093 = vmatpush2.bf16.msra.mxu0 %v1488
  %2094 = vmatprep.subr.bf16.mxu0 %v1487
  %2095 = vmatpush2.bf16.msra.mxu0 %v1486
  %2096 = vmatprep.subr.bf16.mxu0 %v1485
  %2097 = vmatpush2.bf16.msra.mxu0 %v1484
  %2098 = vmatprep.subr.bf16.mxu0 %v1483
  %2099 = vmatpush2.bf16.msra.mxu0 %v1482
  %2100 = vmatprep.subr.bf16.mxu0 %v1481
  %2101 = vmatpush2.bf16.msra.mxu0 %v1480
  %2102 = vmatprep.subr.bf16.mxu0 %v1479
  %2103 = vmatpush2.bf16.msra.mxu0 %v1478
  %2104 = vmatprep.subr.bf16.mxu0 %v1477
  %2105 = vmatpush2.bf16.msra.mxu0 %v1476
  %2106 = vmatprep.subr.bf16.mxu0 %v1475
  %2107 = vmatpush2.bf16.msra.mxu0 %v1474
  %2108 = vmatprep.mubr.bf16.mxu0 %v463
  %2109 = vmatmul.mubr.bf16.gmra.mxu0 %v462
  %v2110 = vpop.f32.mrf.mxu0
  %v2111 = vadd.f32 %v2058, %v2110
  %v2112 = vpop.f32.mrf.mxu0
  %v2113 = vadd.f32 %v2060, %v2112
  %v2114 = vpop.f32.mrf.mxu0
  %v2115 = vadd.f32 %v2062, %v2114
  %v2116 = vpop.f32.mrf.mxu0
  %v2117 = vadd.f32 %v2064, %v2116
  %2118 = vmatprep.mubr.bf16.mxu0 %v481
  %2119 = vmatmul.mubr.bf16.gmra.mxu0 %v480
  %v2120 = vpop.f32.mrf.mxu0
  %v2121 = vadd.f32 %v2068, %v2120
  %v2122 = vpop.f32.mrf.mxu0
  %v2123 = vadd.f32 %v2070, %v2122
  %v2124 = vpop.f32.mrf.mxu0
  %v2125 = vadd.f32 %v2072, %v2124
  %v2126 = vpop.f32.mrf.mxu0
  %v2127 = vadd.f32 %v2074, %v2126
  %2128 = vdwg.mxu0
  %2129 = vmatprep.subr.bf16.mxu0 %v1505
  %2130 = vmatpush1.bf16.msra.mxu0 %v1504
  %2131 = vmatprep.subr.bf16.mxu0 %v1503
  %2132 = vmatpush1.bf16.msra.mxu0 %v1502
  %2133 = vmatprep.subr.bf16.mxu0 %v1501
  %2134 = vmatpush1.bf16.msra.mxu0 %v1500
  %2135 = vmatprep.subr.bf16.mxu0 %v1499
  %2136 = vmatpush1.bf16.msra.mxu0 %v1498
  %2137 = vmatprep.subr.bf16.mxu0 %v1497
  %2138 = vmatpush1.bf16.msra.mxu0 %v1496
  %2139 = vmatprep.subr.bf16.mxu0 %v1495
  %2140 = vmatpush1.bf16.msra.mxu0 %v1494
  %2141 = vmatprep.subr.bf16.mxu0 %v1493
  %2142 = vmatpush1.bf16.msra.mxu0 %v1492
  %2143 = vmatprep.subr.bf16.mxu0 %v1491
  %2144 = vmatpush1.bf16.msra.mxu0 %v1490
  %2145 = vmatprep.subr.bf16.mxu0 %v1521
  %2146 = vmatpush2.bf16.msra.mxu0 %v1520
  %2147 = vmatprep.subr.bf16.mxu0 %v1519
  %2148 = vmatpush2.bf16.msra.mxu0 %v1518
  %2149 = vmatprep.subr.bf16.mxu0 %v1517
  %2150 = vmatpush2.bf16.msra.mxu0 %v1516
  %2151 = vmatprep.subr.bf16.mxu0 %v1515
  %2152 = vmatpush2.bf16.msra.mxu0 %v1514
  %2153 = vmatprep.subr.bf16.mxu0 %v1513
  %2154 = vmatpush2.bf16.msra.mxu0 %v1512
  %2155 = vmatprep.subr.bf16.mxu0 %v1511
  %2156 = vmatpush2.bf16.msra.mxu0 %v1510
  %2157 = vmatprep.subr.bf16.mxu0 %v1509
  %2158 = vmatpush2.bf16.msra.mxu0 %v1508
  %2159 = vmatprep.subr.bf16.mxu0 %v1507
  %2160 = vmatpush2.bf16.msra.mxu0 %v1506
  %2161 = vmatprep.mubr.bf16.mxu0 %v465
  %2162 = vmatmul.mubr.bf16.gmra.mxu0 %v464
  %v2163 = vpop.f32.mrf.mxu0
  %v2164 = vadd.f32 %v2111, %v2163
  %v2165 = vpop.f32.mrf.mxu0
  %v2166 = vadd.f32 %v2113, %v2165
  %v2167 = vpop.f32.mrf.mxu0
  %v2168 = vadd.f32 %v2115, %v2167
  %v2169 = vpop.f32.mrf.mxu0
  %v2170 = vadd.f32 %v2117, %v2169
  %2171 = vmatprep.mubr.bf16.mxu0 %v483
  %2172 = vmatmul.mubr.bf16.gmra.mxu0 %v482
  %v2173 = vpop.f32.mrf.mxu0
  %v2174 = vadd.f32 %v2121, %v2173
  %v2175 = vpop.f32.mrf.mxu0
  %v2176 = vadd.f32 %v2123, %v2175
  %v2177 = vpop.f32.mrf.mxu0
  %v2178 = vadd.f32 %v2125, %v2177
  %v2179 = vpop.f32.mrf.mxu0
  %v2180 = vadd.f32 %v2127, %v2179
  %2181 = vdwg.mxu0
  %2182 = vmatprep.subr.bf16.mxu0 %v1537
  %2183 = vmatpush1.bf16.msra.mxu0 %v1536
  %2184 = vmatprep.subr.bf16.mxu0 %v1535
  %2185 = vmatpush1.bf16.msra.mxu0 %v1534
  %2186 = vmatprep.subr.bf16.mxu0 %v1533
  %2187 = vmatpush1.bf16.msra.mxu0 %v1532
  %2188 = vmatprep.subr.bf16.mxu0 %v1531
  %2189 = vmatpush1.bf16.msra.mxu0 %v1530
  %2190 = vmatprep.subr.bf16.mxu0 %v1529
  %2191 = vmatpush1.bf16.msra.mxu0 %v1528
  %2192 = vmatprep.subr.bf16.mxu0 %v1527
  %2193 = vmatpush1.bf16.msra.mxu0 %v1526
  %2194 = vmatprep.subr.bf16.mxu0 %v1525
  %2195 = vmatpush1.bf16.msra.mxu0 %v1524
  %2196 = vmatprep.subr.bf16.mxu0 %v1523
  %2197 = vmatpush1.bf16.msra.mxu0 %v1522
  %2198 = vmatprep.subr.bf16.mxu0 %v1553
  %2199 = vmatpush2.bf16.msra.mxu0 %v1552
  %2200 = vmatprep.subr.bf16.mxu0 %v1551
  %2201 = vmatpush2.bf16.msra.mxu0 %v1550
  %2202 = vmatprep.subr.bf16.mxu0 %v1549
  %2203 = vmatpush2.bf16.msra.mxu0 %v1548
  %2204 = vmatprep.subr.bf16.mxu0 %v1547
  %2205 = vmatpush2.bf16.msra.mxu0 %v1546
  %2206 = vmatprep.subr.bf16.mxu0 %v1545
  %2207 = vmatpush2.bf16.msra.mxu0 %v1544
  %2208 = vmatprep.subr.bf16.mxu0 %v1543
  %2209 = vmatpush2.bf16.msra.mxu0 %v1542
  %2210 = vmatprep.subr.bf16.mxu0 %v1541
  %2211 = vmatpush2.bf16.msra.mxu0 %v1540
  %2212 = vmatprep.subr.bf16.mxu0 %v1539
  %2213 = vmatpush2.bf16.msra.mxu0 %v1538
  %2214 = vmatprep.mubr.bf16.mxu0 %v467
  %2215 = vmatmul.mubr.bf16.gmra.mxu0 %v466
  %v2216 = vpop.f32.mrf.mxu0
  %v2217 = vadd.f32 %v2164, %v2216
  %v2218 = vpop.f32.mrf.mxu0
  %v2219 = vadd.f32 %v2166, %v2218
  %v2220 = vpop.f32.mrf.mxu0
  %v2221 = vadd.f32 %v2168, %v2220
  %v2222 = vpop.f32.mrf.mxu0
  %v2223 = vadd.f32 %v2170, %v2222
  %2224 = vmatprep.mubr.bf16.mxu0 %v485
  %2225 = vmatmul.mubr.bf16.gmra.mxu0 %v484
  %v2226 = vpop.f32.mrf.mxu0
  %v2227 = vadd.f32 %v2174, %v2226
  %v2228 = vpop.f32.mrf.mxu0
  %v2229 = vadd.f32 %v2176, %v2228
  %v2230 = vpop.f32.mrf.mxu0
  %v2231 = vadd.f32 %v2178, %v2230
  %v2232 = vpop.f32.mrf.mxu0
  %v2233 = vadd.f32 %v2180, %v2232
  %2234 = vdwg.mxu0
  %2235 = vmatprep.subr.bf16.mxu0 %v1569
  %2236 = vmatpush1.bf16.msra.mxu0 %v1568
  %2237 = vmatprep.subr.bf16.mxu0 %v1567
  %2238 = vmatpush1.bf16.msra.mxu0 %v1566
  %2239 = vmatprep.subr.bf16.mxu0 %v1565
  %2240 = vmatpush1.bf16.msra.mxu0 %v1564
  %2241 = vmatprep.subr.bf16.mxu0 %v1563
  %2242 = vmatpush1.bf16.msra.mxu0 %v1562
  %2243 = vmatprep.subr.bf16.mxu0 %v1561
  %2244 = vmatpush1.bf16.msra.mxu0 %v1560
  %2245 = vmatprep.subr.bf16.mxu0 %v1559
  %2246 = vmatpush1.bf16.msra.mxu0 %v1558
  %2247 = vmatprep.subr.bf16.mxu0 %v1557
  %2248 = vmatpush1.bf16.msra.mxu0 %v1556
  %2249 = vmatprep.subr.bf16.mxu0 %v1555
  %2250 = vmatpush1.bf16.msra.mxu0 %v1554
  %2251 = vmatprep.subr.bf16.mxu0 %v1585
  %2252 = vmatpush2.bf16.msra.mxu0 %v1584
  %2253 = vmatprep.subr.bf16.mxu0 %v1583
  %2254 = vmatpush2.bf16.msra.mxu0 %v1582
  %2255 = vmatprep.subr.bf16.mxu0 %v1581
  %2256 = vmatpush2.bf16.msra.mxu0 %v1580
  %2257 = vmatprep.subr.bf16.mxu0 %v1579
  %2258 = vmatpush2.bf16.msra.mxu0 %v1578
  %2259 = vmatprep.subr.bf16.mxu0 %v1577
  %2260 = vmatpush2.bf16.msra.mxu0 %v1576
  %2261 = vmatprep.subr.bf16.mxu0 %v1575
  %2262 = vmatpush2.bf16.msra.mxu0 %v1574
  %2263 = vmatprep.subr.bf16.mxu0 %v1573
  %2264 = vmatpush2.bf16.msra.mxu0 %v1572
  %2265 = vmatprep.subr.bf16.mxu0 %v1571
  %2266 = vmatpush2.bf16.msra.mxu0 %v1570
  %2267 = vmatprep.mubr.bf16.mxu0 %v469
  %2268 = vmatmul.mubr.bf16.gmra.mxu0 %v468
  %v2269 = vpop.f32.mrf.mxu0
  %v2270 = vadd.f32 %v2217, %v2269
  %v2271 = vpop.f32.mrf.mxu0
  %v2272 = vadd.f32 %v2219, %v2271
  %v2273 = vpop.f32.mrf.mxu0
  %v2274 = vadd.f32 %v2221, %v2273
  %v2275 = vpop.f32.mrf.mxu0
  %v2276 = vadd.f32 %v2223, %v2275
  %2277 = vmatprep.mubr.bf16.mxu0 %v487
  %2278 = vmatmul.mubr.bf16.gmra.mxu0 %v486
  %v2279 = vpop.f32.mrf.mxu0
  %v2280 = vadd.f32 %v2227, %v2279
  %v2281 = vpop.f32.mrf.mxu0
  %v2282 = vadd.f32 %v2229, %v2281
  %v2283 = vpop.f32.mrf.mxu0
  %v2284 = vadd.f32 %v2231, %v2283
  %v2285 = vpop.f32.mrf.mxu0
  %v2286 = vadd.f32 %v2233, %v2285
  %2287 = vdwg.mxu0
  %2288 = vmatprep.subr.bf16.mxu0 %v1601
  %2289 = vmatpush1.bf16.msra.mxu0 %v1600
  %2290 = vmatprep.subr.bf16.mxu0 %v1599
  %2291 = vmatpush1.bf16.msra.mxu0 %v1598
  %2292 = vmatprep.subr.bf16.mxu0 %v1597
  %2293 = vmatpush1.bf16.msra.mxu0 %v1596
  %2294 = vmatprep.subr.bf16.mxu0 %v1595
  %2295 = vmatpush1.bf16.msra.mxu0 %v1594
  %2296 = vmatprep.subr.bf16.mxu0 %v1593
  %2297 = vmatpush1.bf16.msra.mxu0 %v1592
  %2298 = vmatprep.subr.bf16.mxu0 %v1591
  %2299 = vmatpush1.bf16.msra.mxu0 %v1590
  %2300 = vmatprep.subr.bf16.mxu0 %v1589
  %2301 = vmatpush1.bf16.msra.mxu0 %v1588
  %2302 = vmatprep.subr.bf16.mxu0 %v1587
  %2303 = vmatpush1.bf16.msra.mxu0 %v1586
  %2304 = vmatprep.subr.bf16.mxu0 %v1617
  %2305 = vmatpush2.bf16.msra.mxu0 %v1616
  %2306 = vmatprep.subr.bf16.mxu0 %v1615
  %2307 = vmatpush2.bf16.msra.mxu0 %v1614
  %2308 = vmatprep.subr.bf16.mxu0 %v1613
  %2309 = vmatpush2.bf16.msra.mxu0 %v1612
  %2310 = vmatprep.subr.bf16.mxu0 %v1611
  %2311 = vmatpush2.bf16.msra.mxu0 %v1610
  %2312 = vmatprep.subr.bf16.mxu0 %v1609
  %2313 = vmatpush2.bf16.msra.mxu0 %v1608
  %2314 = vmatprep.subr.bf16.mxu0 %v1607
  %2315 = vmatpush2.bf16.msra.mxu0 %v1606
  %2316 = vmatprep.subr.bf16.mxu0 %v1605
  %2317 = vmatpush2.bf16.msra.mxu0 %v1604
  %2318 = vmatprep.subr.bf16.mxu0 %v1603
  %2319 = vmatpush2.bf16.msra.mxu0 %v1602
  %2320 = vmatprep.mubr.bf16.mxu0 %v471
  %2321 = vmatmul.mubr.bf16.gmra.mxu0 %v470
  %v2322 = vpop.f32.mrf.mxu0
  %v2323 = vadd.f32 %v2270, %v2322
  %v2324 = vpop.f32.mrf.mxu0
  %v2325 = vadd.f32 %v2272, %v2324
  %v2326 = vpop.f32.mrf.mxu0
  %v2327 = vadd.f32 %v2274, %v2326
  %v2328 = vpop.f32.mrf.mxu0
  %v2329 = vadd.f32 %v2276, %v2328
  %2330 = vmatprep.mubr.bf16.mxu0 %v489
  %2331 = vmatmul.mubr.bf16.gmra.mxu0 %v488
  %v2332 = vpop.f32.mrf.mxu0
  %v2333 = vadd.f32 %v2280, %v2332
  %v2334 = vpop.f32.mrf.mxu0
  %v2335 = vadd.f32 %v2282, %v2334
  %v2336 = vpop.f32.mrf.mxu0
  %v2337 = vadd.f32 %v2284, %v2336
  %v2338 = vpop.f32.mrf.mxu0
  %v2339 = vadd.f32 %v2286, %v2338
  %2340 = vdwg.mxu0
  %2341 = vmatprep.subr.bf16.mxu0 %v1633
  %2342 = vmatpush1.bf16.msra.mxu0 %v1632
  %2343 = vmatprep.subr.bf16.mxu0 %v1631
  %2344 = vmatpush1.bf16.msra.mxu0 %v1630
  %2345 = vmatprep.subr.bf16.mxu0 %v1629
  %2346 = vmatpush1.bf16.msra.mxu0 %v1628
  %2347 = vmatprep.subr.bf16.mxu0 %v1627
  %2348 = vmatpush1.bf16.msra.mxu0 %v1626
  %2349 = vmatprep.subr.bf16.mxu0 %v1625
  %2350 = vmatpush1.bf16.msra.mxu0 %v1624
  %2351 = vmatprep.subr.bf16.mxu0 %v1623
  %2352 = vmatpush1.bf16.msra.mxu0 %v1622
  %2353 = vmatprep.subr.bf16.mxu0 %v1621
  %2354 = vmatpush1.bf16.msra.mxu0 %v1620
  %2355 = vmatprep.subr.bf16.mxu0 %v1619
  %2356 = vmatpush1.bf16.msra.mxu0 %v1618
  %2357 = vmatprep.subr.bf16.mxu0 %v1649
  %2358 = vmatpush2.bf16.msra.mxu0 %v1648
  %2359 = vmatprep.subr.bf16.mxu0 %v1647
  %2360 = vmatpush2.bf16.msra.mxu0 %v1646
  %2361 = vmatprep.subr.bf16.mxu0 %v1645
  %2362 = vmatpush2.bf16.msra.mxu0 %v1644
  %2363 = vmatprep.subr.bf16.mxu0 %v1643
  %2364 = vmatpush2.bf16.msra.mxu0 %v1642
  %2365 = vmatprep.subr.bf16.mxu0 %v1641
  %2366 = vmatpush2.bf16.msra.mxu0 %v1640
  %2367 = vmatprep.subr.bf16.mxu0 %v1639
  %2368 = vmatpush2.bf16.msra.mxu0 %v1638
  %2369 = vmatprep.subr.bf16.mxu0 %v1637
  %2370 = vmatpush2.bf16.msra.mxu0 %v1636
  %2371 = vmatprep.subr.bf16.mxu0 %v1635
  %2372 = vmatpush2.bf16.msra.mxu0 %v1634
  %2373 = vmatprep.mubr.bf16.mxu0 %v473
  %2374 = vmatmul.mubr.bf16.gmra.mxu0 %v472
  %v2375 = vpop.f32.mrf.mxu0
  %v2376 = vadd.f32 %v2323, %v2375
  %v2377 = vpop.f32.mrf.mxu0
  %v2378 = vadd.f32 %v2325, %v2377
  %v2379 = vpop.f32.mrf.mxu0
  %v2380 = vadd.f32 %v2327, %v2379
  %v2381 = vpop.f32.mrf.mxu0
  %v2382 = vadd.f32 %v2329, %v2381
  %2383 = vmatprep.mubr.bf16.mxu0 %v491
  %2384 = vmatmul.mubr.bf16.gmra.mxu0 %v490
  %v2385 = vpop.f32.mrf.mxu0
  %v2386 = vadd.f32 %v2333, %v2385
  %v2387 = vpop.f32.mrf.mxu0
  %v2388 = vadd.f32 %v2335, %v2387
  %v2389 = vpop.f32.mrf.mxu0
  %v2390 = vadd.f32 %v2337, %v2389
  %v2391 = vpop.f32.mrf.mxu0
  %v2392 = vadd.f32 %v2339, %v2391
  %2393 = vdwg.mxu0
  %2394 = vmatprep.subr.bf16.mxu0 %v1665
  %2395 = vmatpush1.bf16.msra.mxu0 %v1664
  %2396 = vmatprep.subr.bf16.mxu0 %v1663
  %2397 = vmatpush1.bf16.msra.mxu0 %v1662
  %2398 = vmatprep.subr.bf16.mxu0 %v1661
  %2399 = vmatpush1.bf16.msra.mxu0 %v1660
  %2400 = vmatprep.subr.bf16.mxu0 %v1659
  %2401 = vmatpush1.bf16.msra.mxu0 %v1658
  %2402 = vmatprep.subr.bf16.mxu0 %v1657
  %2403 = vmatpush1.bf16.msra.mxu0 %v1656
  %2404 = vmatprep.subr.bf16.mxu0 %v1655
  %2405 = vmatpush1.bf16.msra.mxu0 %v1654
  %2406 = vmatprep.subr.bf16.mxu0 %v1653
  %2407 = vmatpush1.bf16.msra.mxu0 %v1652
  %2408 = vmatprep.subr.bf16.mxu0 %v1651
  %2409 = vmatpush1.bf16.msra.mxu0 %v1650
  %2410 = vmatprep.subr.bf16.mxu0 %v1681
  %2411 = vmatpush2.bf16.msra.mxu0 %v1680
  %2412 = vmatprep.subr.bf16.mxu0 %v1679
  %2413 = vmatpush2.bf16.msra.mxu0 %v1678
  %2414 = vmatprep.subr.bf16.mxu0 %v1677
  %2415 = vmatpush2.bf16.msra.mxu0 %v1676
  %2416 = vmatprep.subr.bf16.mxu0 %v1675
  %2417 = vmatpush2.bf16.msra.mxu0 %v1674
  %2418 = vmatprep.subr.bf16.mxu0 %v1673
  %2419 = vmatpush2.bf16.msra.mxu0 %v1672
  %2420 = vmatprep.subr.bf16.mxu0 %v1671
  %2421 = vmatpush2.bf16.msra.mxu0 %v1670
  %2422 = vmatprep.subr.bf16.mxu0 %v1669
  %2423 = vmatpush2.bf16.msra.mxu0 %v1668
  %2424 = vmatprep.subr.bf16.mxu0 %v1667
  %2425 = vmatpush2.bf16.msra.mxu0 %v1666
  %2426 = vmatprep.mubr.bf16.mxu0 %v475
  %2427 = vmatmul.mubr.bf16.gmra.mxu0 %v474
  %v2428 = vpop.f32.mrf.mxu0
  %v2429 = vadd.f32 %v2376, %v2428
  %v2430 = vpop.f32.mrf.mxu0
  %v2431 = vadd.f32 %v2378, %v2430
  %v2432 = vpop.f32.mrf.mxu0
  %v2433 = vadd.f32 %v2380, %v2432
  %v2434 = vpop.f32.mrf.mxu0
  %v2435 = vadd.f32 %v2382, %v2434
  %2436 = vmatprep.mubr.bf16.mxu0 %v493
  %2437 = vmatmul.mubr.bf16.gmra.mxu0 %v492
  %v2438 = vpop.f32.mrf.mxu0
  %v2439 = vadd.f32 %v2386, %v2438
  %v2440 = vpop.f32.mrf.mxu0
  %v2441 = vadd.f32 %v2388, %v2440
  %v2442 = vpop.f32.mrf.mxu0
  %v2443 = vadd.f32 %v2390, %v2442
  %v2444 = vpop.f32.mrf.mxu0
  %v2445 = vadd.f32 %v2392, %v2444
  %2446 = vdwg.mxu0
  %v2447 = vmax.f32 %v2429, 0.0
  %v2448 = vmax.f32 %v2431, 0.0
  %v2449 = vmax.f32 %v2433, 0.0
  %v2450 = vmax.f32 %v2435, 0.0
  %v2451 = vmax.f32 %v2439, 0.0
  %v2452 = vmax.f32 %v2441, 0.0
  %v2453 = vmax.f32 %v2443, 0.0
  %v2454 = vmax.f32 %v2445, 0.0
  %v2455 = vpack.c.bf16 %v2449, %v2447
  %v2456 = vpack.c.bf16 %v2450, %v2448
  %v2457 = vpack.c.bf16 %v2453, %v2451
  %v2458 = vpack.c.bf16 %v2454, %v2452
  %v2463 = vunpack.c.l.b16 %v2455
  %v2464 = vunpack.c.l.b16 %v2456
  %v2465 = vunpack.c.h.b16 %v2455
  %v2466 = vunpack.c.h.b16 %v2456
  %v2467 = vunpack.c.l.b16 %v2457
  %v2468 = vunpack.c.l.b16 %v2458
  %v2469 = vunpack.c.h.b16 %v2457
  %v2470 = vunpack.c.h.b16 %v2458
  %v2471 = vpack.c.b16 %v2464, %v2463
  %v2472 = vpack.c.b16 %v2466, %v2465
  %v2473 = vpack.c.b16 %v2468, %v2467
  %v2474 = vpack.c.b16 %v2470, %v2469
  %2479 = vst [vmem:[%s3] sm:$0xff] %v2471
  %2480 = vst [vmem:[%s3 + $0x8] sm:$0xff] %v2472
  %2481 = vst [vmem:[%s3 + $0x10] sm:$0xff] %v2473
  %2482 = vst [vmem:[%s3 + $0x18] sm:$0xff] %v2474
  // Predicated region
  $region14: #{alexnet_features.14} parent=0 // pred_check
    _
  $region15: #{alexnet_features.14} parent=0 // pred_check_branch
    %2484 = sbr.rel (0) target = $region17
  $region16: #{alexnet_features.14} parent=0 // pred_region
    _
  $region17: #{alexnet_features.14} parent=0 // pred_fallthru
    _
  // Predicated region
  $region18: #{alexnet_features.14} parent=0 // pred_check
    _
  $region19: #{alexnet_features.14} parent=0 // pred_check_branch
    %2486 = sbr.rel (0) target = $region21
  $region20: #{alexnet_features.14} parent=0 // pred_region
    _
  $region21: #{alexnet_features.14} parent=0 // pred_fallthru
    _

// kernel: alexnet_features.13
$region0: #{alexnet_features.13}
  #allocation0 [shape = 'u32[]', space=smem, size = 0x4, offset = 0x4, fixed_abs, tag = 'smem constant byte address 0x4 - core index']
  #allocation1 [shape = 'u32[144,128]{1,0:T(1,128)}', space=vmem, size = 0x12000, scoped, tag = 'internal scratch']
  %s0 = inlined_call_operand.vmem [shape: bf16[32,3456], index: 0, kind: input, shape index: {}]
  %s1 = inlined_call_operand.vmem [shape: bf16[3456,256], index: 1, kind: input, shape index: {}]
  %s2 = inlined_call_operand.vmem [shape: f32[1,256], index: 2, kind: input, shape index: {}]
  %s3 = inlined_call_operand.vmem [shape: bf16[32,256], index: 3, kind: output, shape index: {}]
  %s4 = sld [smem:[#allocation0]]
  $region22: #{alexnet_features.13} parent=0
    _
  %s6 = ssub.s32 1, %s4
  %s7 = scalar_select 0, %s6, %s4
  // Predicated region
  $region2: #{alexnet_features.13} parent=0 // pred_check
    _
  $region3: #{alexnet_features.13} parent=0 // pred_check_branch
    %9 = sbr.rel (0) target = $region5
  $region4: #{alexnet_features.13} parent=0 // pred_region
    _
  $region5: #{alexnet_features.13} parent=0 // pred_fallthru
    _
  // Predicated region
  $region6: #{alexnet_features.13} parent=0 // pred_check
    _
  $region7: #{alexnet_features.13} parent=0 // pred_check_branch
    %11 = sbr.rel (0) target = $region9
  $region8: #{alexnet_features.13} parent=0 // pred_region
    _
  $region9: #{alexnet_features.13} parent=0 // pred_fallthru
    _
  // Predicated region
  $region10: #{alexnet_features.13} parent=0 // pred_check
    _
  $region11: #{alexnet_features.13} parent=0 // pred_check_branch
    %13 = sbr.rel (0) target = $region13
  $region12: #{alexnet_features.13} parent=0 // pred_region
    _
  $region13: #{alexnet_features.13} parent=0 // pred_fallthru
    _
  %v15 = vld [vmem:[%s0] sm:$0xff]
  %v16 = vld [vmem:[%s0 + $0x8] sm:$0xff]
  %v17 = vld [vmem:[%s0 + $0x10] sm:$0xff]
  %v18 = vld [vmem:[%s0 + $0x18] sm:$0xff]
  %v19 = vld [vmem:[%s0 + $0x20] sm:$0xff]
  %v20 = vld [vmem:[%s0 + $0x28] sm:$0xff]
  %v21 = vld [vmem:[%s0 + $0x30] sm:$0xff]
  %v22 = vld [vmem:[%s0 + $0x38] sm:$0xff]
  %v23 = vld [vmem:[%s0 + $0x40] sm:$0xff]
  %v24 = vld [vmem:[%s0 + $0x48] sm:$0xff]
  %v25 = vld [vmem:[%s0 + $0x50] sm:$0xff]
  %v26 = vld [vmem:[%s0 + $0x58] sm:$0xff]
  %v27 = vld [vmem:[%s0 + $0x60] sm:$0xff]
  %v28 = vld [vmem:[%s0 + $0x68] sm:$0xf]
  %v29 = vld [vmem:[%s0 + $0x6c] sm:$0xff]
  %v30 = vld [vmem:[%s0 + $0x74] sm:$0xff]
  %v31 = vld [vmem:[%s0 + $0x7c] sm:$0xff]
  %v32 = vld [vmem:[%s0 + $0x84] sm:$0xff]
  %v33 = vld [vmem:[%s0 + $0x8c] sm:$0xff]
  %v34 = vld [vmem:[%s0 + $0x94] sm:$0xff]
  %v35 = vld [vmem:[%s0 + $0x9c] sm:$0xff]
  %v36 = vld [vmem:[%s0 + $0xa4] sm:$0xff]
  %v37 = vld [vmem:[%s0 + $0xac] sm:$0xff]
  %v38 = vld [vmem:[%s0 + $0xb4] sm:$0xff]
  %v39 = vld [vmem:[%s0 + $0xbc] sm:$0xff]
  %v40 = vld [vmem:[%s0 + $0xc4] sm:$0xff]
  %v41 = vld [vmem:[%s0 + $0xcc] sm:$0xff]
  %v42 = vld [vmem:[%s0 + $0xd4] sm:$0xf]
  %v43 = vld [vmem:[%s0 + $0xd8] sm:$0xff]
  %v44 = vld [vmem:[%s0 + $0xe0] sm:$0xff]
  %v45 = vld [vmem:[%s0 + $0xe8] sm:$0xff]
  %v46 = vld [vmem:[%s0 + $0xf0] sm:$0xff]
  %v47 = vld [vmem:[%s0 + $0xf8] sm:$0xff]
  %v48 = vld [vmem:[%s0 + $0x100] sm:$0xff]
  %v49 = vld [vmem:[%s0 + $0x108] sm:$0xff]
  %v50 = vld [vmem:[%s0 + $0x110] sm:$0xff]
  %v51 = vld [vmem:[%s0 + $0x118] sm:$0xff]
  %v52 = vld [vmem:[%s0 + $0x120] sm:$0xff]
  %v53 = vld [vmem:[%s0 + $0x128] sm:$0xff]
  %v54 = vld [vmem:[%s0 + $0x130] sm:$0xff]
  %v55 = vld [vmem:[%s0 + $0x138] sm:$0xff]
  %v56 = vld [vmem:[%s0 + $0x140] sm:$0xf]
  %v57 = vld [vmem:[%s0 + $0x144] sm:$0xff]
  %v58 = vld [vmem:[%s0 + $0x14c] sm:$0xff]
  %v59 = vld [vmem:[%s0 + $0x154] sm:$0xff]
  %v60 = vld [vmem:[%s0 + $0x15c] sm:$0xff]
  %v61 = vld [vmem:[%s0 + $0x164] sm:$0xff]
  %v62 = vld [vmem:[%s0 + $0x16c] sm:$0xff]
  %v63 = vld [vmem:[%s0 + $0x174] sm:$0xff]
  %v64 = vld [vmem:[%s0 + $0x17c] sm:$0xff]
  %v65 = vld [vmem:[%s0 + $0x184] sm:$0xff]
  %v66 = vld [vmem:[%s0 + $0x18c] sm:$0xff]
  %v67 = vld [vmem:[%s0 + $0x194] sm:$0xff]
  %v68 = vld [vmem:[%s0 + $0x19c] sm:$0xff]
  %v69 = vld [vmem:[%s0 + $0x1a4] sm:$0xff]
  %v70 = vld [vmem:[%s0 + $0x1ac] sm:$0xf]
  %v71 = vld [vmem:[%s1] sm:$0xff]
  %v72 = vld [vmem:[%s1 + $0x8] sm:$0xff]
  %v73 = vld [vmem:[%s1 + $0x10] sm:$0xff]
  %v74 = vld [vmem:[%s1 + $0x18] sm:$0xff]
  %v75 = vld [vmem:[%s1 + $0x20] sm:$0xff]
  %v76 = vld [vmem:[%s1 + $0x28] sm:$0xff]
  %v77 = vld [vmem:[%s1 + $0x30] sm:$0xff]
  %v78 = vld [vmem:[%s1 + $0x38] sm:$0xff]
  %v79 = vld [vmem:[%s1 + $0x40] sm:$0xff]
  %v80 = vld [vmem:[%s1 + $0x48] sm:$0xff]
  %v81 = vld [vmem:[%s1 + $0x50] sm:$0xff]
  %v82 = vld [vmem:[%s1 + $0x58] sm:$0xff]
  %v83 = vld [vmem:[%s1 + $0x60] sm:$0xff]
  %v84 = vld [vmem:[%s1 + $0x68] sm:$0xff]
  %v85 = vld [vmem:[%s1 + $0x70] sm:$0xff]
  %v86 = vld [vmem:[%s1 + $0x78] sm:$0xff]
  %v87 = vld [vmem:[%s1 + $0x80] sm:$0xff]
  %v88 = vld [vmem:[%s1 + $0x88] sm:$0xff]
  %v89 = vld [vmem:[%s1 + $0x90] sm:$0xff]
  %v90 = vld [vmem:[%s1 + $0x98] sm:$0xff]
  %v91 = vld [vmem:[%s1 + $0xa0] sm:$0xff]
  %v92 = vld [vmem:[%s1 + $0xa8] sm:$0xff]
  %v93 = vld [vmem:[%s1 + $0xb0] sm:$0xff]
  %v94 = vld [vmem:[%s1 + $0xb8] sm:$0xff]
  %v95 = vld [vmem:[%s1 + $0xc0] sm:$0xff]
  %v96 = vld [vmem:[%s1 + $0xc8] sm:$0xff]
  %v97 = vld [vmem:[%s1 + $0xd0] sm:$0xff]
  %v98 = vld [vmem:[%s1 + $0xd8] sm:$0xff]
  %v99 = vld [vmem:[%s1 + $0xe0] sm:$0xff]
  %v100 = vld [vmem:[%s1 + $0xe8] sm:$0xff]
  %v101 = vld [vmem:[%s1 + $0xf0] sm:$0xff]
  %v102 = vld [vmem:[%s1 + $0xf8] sm:$0xff]
  %v103 = vld [vmem:[%s1 + $0x100] sm:$0xff]
  %v104 = vld [vmem:[%s1 + $0x108] sm:$0xff]
  %v105 = vld [vmem:[%s1 + $0x110] sm:$0xff]
  %v106 = vld [vmem:[%s1 + $0x118] sm:$0xff]
  %v107 = vld [vmem:[%s1 + $0x120] sm:$0xff]
  %v108 = vld [vmem:[%s1 + $0x128] sm:$0xff]
  %v109 = vld [vmem:[%s1 + $0x130] sm:$0xff]
  %v110 = vld [vmem:[%s1 + $0x138] sm:$0xff]
  %v111 = vld [vmem:[%s1 + $0x140] sm:$0xff]
  %v112 = vld [vmem:[%s1 + $0x148] sm:$0xff]
  %v113 = vld [vmem:[%s1 + $0x150] sm:$0xff]
  %v114 = vld [vmem:[%s1 + $0x158] sm:$0xff]
  %v115 = vld [vmem:[%s1 + $0x160] sm:$0xff]
  %v116 = vld [vmem:[%s1 + $0x168] sm:$0xff]
  %v117 = vld [vmem:[%s1 + $0x170] sm:$0xff]
  %v118 = vld [vmem:[%s1 + $0x178] sm:$0xff]
  %v119 = vld [vmem:[%s1 + $0x180] sm:$0xff]
  %v120 = vld [vmem:[%s1 + $0x188] sm:$0xff]
  %v121 = vld [vmem:[%s1 + $0x190] sm:$0xff]
  %v122 = vld [vmem:[%s1 + $0x198] sm:$0xff]
  %v123 = vld [vmem:[%s1 + $0x1a0] sm:$0xff]
  %v124 = vld [vmem:[%s1 + $0x1a8] sm:$0xff]
  %v125 = vld [vmem:[%s1 + $0x1b0] sm:$0xff]
  %v126 = vld [vmem:[%s1 + $0x1b8] sm:$0xff]
  %v127 = vld [vmem:[%s1 + $0x1c0] sm:$0xff]
  %v128 = vld [vmem:[%s1 + $0x1c8] sm:$0xff]
  %v129 = vld [vmem:[%s1 + $0x1d0] sm:$0xff]
  %v130 = vld [vmem:[%s1 + $0x1d8] sm:$0xff]
  %v131 = vld [vmem:[%s1 + $0x1e0] sm:$0xff]
  %v132 = vld [vmem:[%s1 + $0x1e8] sm:$0xff]
  %v133 = vld [vmem:[%s1 + $0x1f0] sm:$0xff]
  %v134 = vld [vmem:[%s1 + $0x1f8] sm:$0xff]
  %v135 = vld [vmem:[%s1 + $0x200] sm:$0xff]
  %v136 = vld [vmem:[%s1 + $0x208] sm:$0xff]
  %v137 = vld [vmem:[%s1 + $0x210] sm:$0xff]
  %v138 = vld [vmem:[%s1 + $0x218] sm:$0xff]
  %v139 = vld [vmem:[%s1 + $0x220] sm:$0xff]
  %v140 = vld [vmem:[%s1 + $0x228] sm:$0xff]
  %v141 = vld [vmem:[%s1 + $0x230] sm:$0xff]
  %v142 = vld [vmem:[%s1 + $0x238] sm:$0xff]
  %v143 = vld [vmem:[%s1 + $0x240] sm:$0xff]
  %v144 = vld [vmem:[%s1 + $0x248] sm:$0xff]
  %v145 = vld [vmem:[%s1 + $0x250] sm:$0xff]
  %v146 = vld [vmem:[%s1 + $0x258] sm:$0xff]
  %v147 = vld [vmem:[%s1 + $0x260] sm:$0xff]
  %v148 = vld [vmem:[%s1 + $0x268] sm:$0xff]
  %v149 = vld [vmem:[%s1 + $0x270] sm:$0xff]
  %v150 = vld [vmem:[%s1 + $0x278] sm:$0xff]
  %v151 = vld [vmem:[%s1 + $0x280] sm:$0xff]
  %v152 = vld [vmem:[%s1 + $0x288] sm:$0xff]
  %v153 = vld [vmem:[%s1 + $0x290] sm:$0xff]
  %v154 = vld [vmem:[%s1 + $0x298] sm:$0xff]
  %v155 = vld [vmem:[%s1 + $0x2a0] sm:$0xff]
  %v156 = vld [vmem:[%s1 + $0x2a8] sm:$0xff]
  %v157 = vld [vmem:[%s1 + $0x2b0] sm:$0xff]
  %v158 = vld [vmem:[%s1 + $0x2b8] sm:$0xff]
  %v159 = vld [vmem:[%s1 + $0x2c0] sm:$0xff]
  %v160 = vld [vmem:[%s1 + $0x2c8] sm:$0xff]
  %v161 = vld [vmem:[%s1 + $0x2d0] sm:$0xff]
  %v162 = vld [vmem:[%s1 + $0x2d8] sm:$0xff]
  %v163 = vld [vmem:[%s1 + $0x2e0] sm:$0xff]
  %v164 = vld [vmem:[%s1 + $0x2e8] sm:$0xff]
  %v165 = vld [vmem:[%s1 + $0x2f0] sm:$0xff]
  %v166 = vld [vmem:[%s1 + $0x2f8] sm:$0xff]
  %v167 = vld [vmem:[%s1 + $0x300] sm:$0xff]
  %v168 = vld [vmem:[%s1 + $0x308] sm:$0xff]
  %v169 = vld [vmem:[%s1 + $0x310] sm:$0xff]
  %v170 = vld [vmem:[%s1 + $0x318] sm:$0xff]
  %v171 = vld [vmem:[%s1 + $0x320] sm:$0xff]
  %v172 = vld [vmem:[%s1 + $0x328] sm:$0xff]
  %v173 = vld [vmem:[%s1 + $0x330] sm:$0xff]
  %v174 = vld [vmem:[%s1 + $0x338] sm:$0xff]
  %v175 = vld [vmem:[%s1 + $0x340] sm:$0xff]
  %v176 = vld [vmem:[%s1 + $0x348] sm:$0xff]
  %v177 = vld [vmem:[%s1 + $0x350] sm:$0xff]
  %v178 = vld [vmem:[%s1 + $0x358] sm:$0xff]
  %v179 = vld [vmem:[%s1 + $0x360] sm:$0xff]
  %v180 = vld [vmem:[%s1 + $0x368] sm:$0xff]
  %v181 = vld [vmem:[%s1 + $0x370] sm:$0xff]
  %v182 = vld [vmem:[%s1 + $0x378] sm:$0xff]
  %v183 = vld [vmem:[%s1 + $0x380] sm:$0xff]
  %v184 = vld [vmem:[%s1 + $0x388] sm:$0xff]
  %v185 = vld [vmem:[%s1 + $0x390] sm:$0xff]
  %v186 = vld [vmem:[%s1 + $0x398] sm:$0xff]
  %v187 = vld [vmem:[%s1 + $0x3a0] sm:$0xff]
  %v188 = vld [vmem:[%s1 + $0x3a8] sm:$0xff]
  %v189 = vld [vmem:[%s1 + $0x3b0] sm:$0xff]
  %v190 = vld [vmem:[%s1 + $0x3b8] sm:$0xff]
  %v191 = vld [vmem:[%s1 + $0x3c0] sm:$0xff]
  %v192 = vld [vmem:[%s1 + $0x3c8] sm:$0xff]
  %v193 = vld [vmem:[%s1 + $0x3d0] sm:$0xff]
  %v194 = vld [vmem:[%s1 + $0x3d8] sm:$0xff]
  %v195 = vld [vmem:[%s1 + $0x3e0] sm:$0xff]
  %v196 = vld [vmem:[%s1 + $0x3e8] sm:$0xff]
  %v197 = vld [vmem:[%s1 + $0x3f0] sm:$0xff]
  %v198 = vld [vmem:[%s1 + $0x3f8] sm:$0xff]
  %v199 = vld [vmem:[%s1 + $0x400] sm:$0xff]
  %v200 = vld [vmem:[%s1 + $0x408] sm:$0xff]
  %v201 = vld [vmem:[%s1 + $0x410] sm:$0xff]
  %v202 = vld [vmem:[%s1 + $0x418] sm:$0xff]
  %v203 = vld [vmem:[%s1 + $0x420] sm:$0xff]
  %v204 = vld [vmem:[%s1 + $0x428] sm:$0xff]
  %v205 = vld [vmem:[%s1 + $0x430] sm:$0xff]
  %v206 = vld [vmem:[%s1 + $0x438] sm:$0xff]
  %v207 = vld [vmem:[%s1 + $0x440] sm:$0xff]
  %v208 = vld [vmem:[%s1 + $0x448] sm:$0xff]
  %v209 = vld [vmem:[%s1 + $0x450] sm:$0xff]
  %v210 = vld [vmem:[%s1 + $0x458] sm:$0xff]
  %v211 = vld [vmem:[%s1 + $0x460] sm:$0xff]
  %v212 = vld [vmem:[%s1 + $0x468] sm:$0xff]
  %v213 = vld [vmem:[%s1 + $0x470] sm:$0xff]
  %v214 = vld [vmem:[%s1 + $0x478] sm:$0xff]
  %v215 = vld [vmem:[%s1 + $0x480] sm:$0xff]
  %v216 = vld [vmem:[%s1 + $0x488] sm:$0xff]
  %v217 = vld [vmem:[%s1 + $0x490] sm:$0xff]
  %v218 = vld [vmem:[%s1 + $0x498] sm:$0xff]
  %v219 = vld [vmem:[%s1 + $0x4a0] sm:$0xff]
  %v220 = vld [vmem:[%s1 + $0x4a8] sm:$0xff]
  %v221 = vld [vmem:[%s1 + $0x4b0] sm:$0xff]
  %v222 = vld [vmem:[%s1 + $0x4b8] sm:$0xff]
  %v223 = vld [vmem:[%s1 + $0x4c0] sm:$0xff]
  %v224 = vld [vmem:[%s1 + $0x4c8] sm:$0xff]
  %v225 = vld [vmem:[%s1 + $0x4d0] sm:$0xff]
  %v226 = vld [vmem:[%s1 + $0x4d8] sm:$0xff]
  %v227 = vld [vmem:[%s1 + $0x4e0] sm:$0xff]
  %v228 = vld [vmem:[%s1 + $0x4e8] sm:$0xff]
  %v229 = vld [vmem:[%s1 + $0x4f0] sm:$0xff]
  %v230 = vld [vmem:[%s1 + $0x4f8] sm:$0xff]
  %v231 = vld [vmem:[%s1 + $0x500] sm:$0xff]
  %v232 = vld [vmem:[%s1 + $0x508] sm:$0xff]
  %v233 = vld [vmem:[%s1 + $0x510] sm:$0xff]
  %v234 = vld [vmem:[%s1 + $0x518] sm:$0xff]
  %v235 = vld [vmem:[%s1 + $0x520] sm:$0xff]
  %v236 = vld [vmem:[%s1 + $0x528] sm:$0xff]
  %v237 = vld [vmem:[%s1 + $0x530] sm:$0xff]
  %v238 = vld [vmem:[%s1 + $0x538] sm:$0xff]
  %v239 = vld [vmem:[%s1 + $0x540] sm:$0xff]
  %v240 = vld [vmem:[%s1 + $0x548] sm:$0xff]
  %v241 = vld [vmem:[%s1 + $0x550] sm:$0xff]
  %v242 = vld [vmem:[%s1 + $0x558] sm:$0xff]
  %v243 = vld [vmem:[%s1 + $0x560] sm:$0xff]
  %v244 = vld [vmem:[%s1 + $0x568] sm:$0xff]
  %v245 = vld [vmem:[%s1 + $0x570] sm:$0xff]
  %v246 = vld [vmem:[%s1 + $0x578] sm:$0xff]
  %v247 = vld [vmem:[%s1 + $0x580] sm:$0xff]
  %v248 = vld [vmem:[%s1 + $0x588] sm:$0xff]
  %v249 = vld [vmem:[%s1 + $0x590] sm:$0xff]
  %v250 = vld [vmem:[%s1 + $0x598] sm:$0xff]
  %v251 = vld [vmem:[%s1 + $0x5a0] sm:$0xff]
  %v252 = vld [vmem:[%s1 + $0x5a8] sm:$0xff]
  %v253 = vld [vmem:[%s1 + $0x5b0] sm:$0xff]
  %v254 = vld [vmem:[%s1 + $0x5b8] sm:$0xff]
  %v255 = vld [vmem:[%s1 + $0x5c0] sm:$0xff]
  %v256 = vld [vmem:[%s1 + $0x5c8] sm:$0xff]
  %v257 = vld [vmem:[%s1 + $0x5d0] sm:$0xff]
  %v258 = vld [vmem:[%s1 + $0x5d8] sm:$0xff]
  %v259 = vld [vmem:[%s1 + $0x5e0] sm:$0xff]
  %v260 = vld [vmem:[%s1 + $0x5e8] sm:$0xff]
  %v261 = vld [vmem:[%s1 + $0x5f0] sm:$0xff]
  %v262 = vld [vmem:[%s1 + $0x5f8] sm:$0xff]
  %v263 = vld [vmem:[%s1 + $0x600] sm:$0xff]
  %v264 = vld [vmem:[%s1 + $0x608] sm:$0xff]
  %v265 = vld [vmem:[%s1 + $0x610] sm:$0xff]
  %v266 = vld [vmem:[%s1 + $0x618] sm:$0xff]
  %v267 = vld [vmem:[%s1 + $0x620] sm:$0xff]
  %v268 = vld [vmem:[%s1 + $0x628] sm:$0xff]
  %v269 = vld [vmem:[%s1 + $0x630] sm:$0xff]
  %v270 = vld [vmem:[%s1 + $0x638] sm:$0xff]
  %v271 = vld [vmem:[%s1 + $0x640] sm:$0xff]
  %v272 = vld [vmem:[%s1 + $0x648] sm:$0xff]
  %v273 = vld [vmem:[%s1 + $0x650] sm:$0xff]
  %v274 = vld [vmem:[%s1 + $0x658] sm:$0xff]
  %v275 = vld [vmem:[%s1 + $0x660] sm:$0xff]
  %v276 = vld [vmem:[%s1 + $0x668] sm:$0xff]
  %v277 = vld [vmem:[%s1 + $0x670] sm:$0xff]
  %v278 = vld [vmem:[%s1 + $0x678] sm:$0xff]
  %v279 = vld [vmem:[%s1 + $0x680] sm:$0xff]
  %v280 = vld [vmem:[%s1 + $0x688] sm:$0xff]
  %v281 = vld [vmem:[%s1 + $0x690] sm:$0xff]
  %v282 = vld [vmem:[%s1 + $0x698] sm:$0xff]
  %v283 = vld [vmem:[%s1 + $0x6a0] sm:$0xff]
  %v284 = vld [vmem:[%s1 + $0x6a8] sm:$0xff]
  %v285 = vld [vmem:[%s1 + $0x6b0] sm:$0xff]
  %v286 = vld [vmem:[%s1 + $0x6b8] sm:$0xff]
  %v287 = vld [vmem:[%s1 + $0x6c0] sm:$0xff]
  %v288 = vld [vmem:[%s1 + $0x6c8] sm:$0xff]
  %v289 = vld [vmem:[%s1 + $0x6d0] sm:$0xff]
  %v290 = vld [vmem:[%s1 + $0x6d8] sm:$0xff]
  %v291 = vld [vmem:[%s1 + $0x6e0] sm:$0xff]
  %v292 = vld [vmem:[%s1 + $0x6e8] sm:$0xff]
  %v293 = vld [vmem:[%s1 + $0x6f0] sm:$0xff]
  %v294 = vld [vmem:[%s1 + $0x6f8] sm:$0xff]
  %v295 = vld [vmem:[%s1 + $0x700] sm:$0xff]
  %v296 = vld [vmem:[%s1 + $0x708] sm:$0xff]
  %v297 = vld [vmem:[%s1 + $0x710] sm:$0xff]
  %v298 = vld [vmem:[%s1 + $0x718] sm:$0xff]
  %v299 = vld [vmem:[%s1 + $0x720] sm:$0xff]
  %v300 = vld [vmem:[%s1 + $0x728] sm:$0xff]
  %v301 = vld [vmem:[%s1 + $0x730] sm:$0xff]
  %v302 = vld [vmem:[%s1 + $0x738] sm:$0xff]
  %v303 = vld [vmem:[%s1 + $0x740] sm:$0xff]
  %v304 = vld [vmem:[%s1 + $0x748] sm:$0xff]
  %v305 = vld [vmem:[%s1 + $0x750] sm:$0xff]
  %v306 = vld [vmem:[%s1 + $0x758] sm:$0xff]
  %v307 = vld [vmem:[%s1 + $0x760] sm:$0xff]
  %v308 = vld [vmem:[%s1 + $0x768] sm:$0xff]
  %v309 = vld [vmem:[%s1 + $0x770] sm:$0xff]
  %v310 = vld [vmem:[%s1 + $0x778] sm:$0xff]
  %v311 = vld [vmem:[%s1 + $0x780] sm:$0xff]
  %v312 = vld [vmem:[%s1 + $0x788] sm:$0xff]
  %v313 = vld [vmem:[%s1 + $0x790] sm:$0xff]
  %v314 = vld [vmem:[%s1 + $0x798] sm:$0xff]
  %v315 = vld [vmem:[%s1 + $0x7a0] sm:$0xff]
  %v316 = vld [vmem:[%s1 + $0x7a8] sm:$0xff]
  %v317 = vld [vmem:[%s1 + $0x7b0] sm:$0xff]
  %v318 = vld [vmem:[%s1 + $0x7b8] sm:$0xff]
  %v319 = vld [vmem:[%s1 + $0x7c0] sm:$0xff]
  %v320 = vld [vmem:[%s1 + $0x7c8] sm:$0xff]
  %v321 = vld [vmem:[%s1 + $0x7d0] sm:$0xff]
  %v322 = vld [vmem:[%s1 + $0x7d8] sm:$0xff]
  %v323 = vld [vmem:[%s1 + $0x7e0] sm:$0xff]
  %v324 = vld [vmem:[%s1 + $0x7e8] sm:$0xff]
  %v325 = vld [vmem:[%s1 + $0x7f0] sm:$0xff]
  %v326 = vld [vmem:[%s1 + $0x7f8] sm:$0xff]
  %v327 = vld [vmem:[%s1 + $0x800] sm:$0xff]
  %v328 = vld [vmem:[%s1 + $0x808] sm:$0xff]
  %v329 = vld [vmem:[%s1 + $0x810] sm:$0xff]
  %v330 = vld [vmem:[%s1 + $0x818] sm:$0xff]
  %v331 = vld [vmem:[%s1 + $0x820] sm:$0xff]
  %v332 = vld [vmem:[%s1 + $0x828] sm:$0xff]
  %v333 = vld [vmem:[%s1 + $0x830] sm:$0xff]
  %v334 = vld [vmem:[%s1 + $0x838] sm:$0xff]
  %v335 = vld [vmem:[%s1 + $0x840] sm:$0xff]
  %v336 = vld [vmem:[%s1 + $0x848] sm:$0xff]
  %v337 = vld [vmem:[%s1 + $0x850] sm:$0xff]
  %v338 = vld [vmem:[%s1 + $0x858] sm:$0xff]
  %v339 = vld [vmem:[%s1 + $0x860] sm:$0xff]
  %v340 = vld [vmem:[%s1 + $0x868] sm:$0xff]
  %v341 = vld [vmem:[%s1 + $0x870] sm:$0xff]
  %v342 = vld [vmem:[%s1 + $0x878] sm:$0xff]
  %v343 = vld [vmem:[%s1 + $0x880] sm:$0xff]
  %v344 = vld [vmem:[%s1 + $0x888] sm:$0xff]
  %v345 = vld [vmem:[%s1 + $0x890] sm:$0xff]
  %v346 = vld [vmem:[%s1 + $0x898] sm:$0xff]
  %v347 = vld [vmem:[%s1 + $0x8a0] sm:$0xff]
  %v348 = vld [vmem:[%s1 + $0x8a8] sm:$0xff]
  %v349 = vld [vmem:[%s1 + $0x8b0] sm:$0xff]
  %v350 = vld [vmem:[%s1 + $0x8b8] sm:$0xff]
  %v351 = vld [vmem:[%s1 + $0x8c0] sm:$0xff]
  %v352 = vld [vmem:[%s1 + $0x8c8] sm:$0xff]
  %v353 = vld [vmem:[%s1 + $0x8d0] sm:$0xff]
  %v354 = vld [vmem:[%s1 + $0x8d8] sm:$0xff]
  %v355 = vld [vmem:[%s1 + $0x8e0] sm:$0xff]
  %v356 = vld [vmem:[%s1 + $0x8e8] sm:$0xff]
  %v357 = vld [vmem:[%s1 + $0x8f0] sm:$0xff]
  %v358 = vld [vmem:[%s1 + $0x8f8] sm:$0xff]
  %v359 = vld [vmem:[%s1 + $0x900] sm:$0xff]
  %v360 = vld [vmem:[%s1 + $0x908] sm:$0xff]
  %v361 = vld [vmem:[%s1 + $0x910] sm:$0xff]
  %v362 = vld [vmem:[%s1 + $0x918] sm:$0xff]
  %v363 = vld [vmem:[%s1 + $0x920] sm:$0xff]
  %v364 = vld [vmem:[%s1 + $0x928] sm:$0xff]
  %v365 = vld [vmem:[%s1 + $0x930] sm:$0xff]
  %v366 = vld [vmem:[%s1 + $0x938] sm:$0xff]
  %v367 = vld [vmem:[%s1 + $0x940] sm:$0xff]
  %v368 = vld [vmem:[%s1 + $0x948] sm:$0xff]
  %v369 = vld [vmem:[%s1 + $0x950] sm:$0xff]
  %v370 = vld [vmem:[%s1 + $0x958] sm:$0xff]
  %v371 = vld [vmem:[%s1 + $0x960] sm:$0xff]
  %v372 = vld [vmem:[%s1 + $0x968] sm:$0xff]
  %v373 = vld [vmem:[%s1 + $0x970] sm:$0xff]
  %v374 = vld [vmem:[%s1 + $0x978] sm:$0xff]
  %v375 = vld [vmem:[%s1 + $0x980] sm:$0xff]
  %v376 = vld [vmem:[%s1 + $0x988] sm:$0xff]
  %v377 = vld [vmem:[%s1 + $0x990] sm:$0xff]
  %v378 = vld [vmem:[%s1 + $0x998] sm:$0xff]
  %v379 = vld [vmem:[%s1 + $0x9a0] sm:$0xff]
  %v380 = vld [vmem:[%s1 + $0x9a8] sm:$0xff]
  %v381 = vld [vmem:[%s1 + $0x9b0] sm:$0xff]
  %v382 = vld [vmem:[%s1 + $0x9b8] sm:$0xff]
  %v383 = vld [vmem:[%s1 + $0x9c0] sm:$0xff]
  %v384 = vld [vmem:[%s1 + $0x9c8] sm:$0xff]
  %v385 = vld [vmem:[%s1 + $0x9d0] sm:$0xff]
  %v386 = vld [vmem:[%s1 + $0x9d8] sm:$0xff]
  %v387 = vld [vmem:[%s1 + $0x9e0] sm:$0xff]
  %v388 = vld [vmem:[%s1 + $0x9e8] sm:$0xff]
  %v389 = vld [vmem:[%s1 + $0x9f0] sm:$0xff]
  %v390 = vld [vmem:[%s1 + $0x9f8] sm:$0xff]
  %v391 = vld [vmem:[%s1 + $0xa00] sm:$0xff]
  %v392 = vld [vmem:[%s1 + $0xa08] sm:$0xff]
  %v393 = vld [vmem:[%s1 + $0xa10] sm:$0xff]
  %v394 = vld [vmem:[%s1 + $0xa18] sm:$0xff]
  %v395 = vld [vmem:[%s1 + $0xa20] sm:$0xff]
  %v396 = vld [vmem:[%s1 + $0xa28] sm:$0xff]
  %v397 = vld [vmem:[%s1 + $0xa30] sm:$0xff]
  %v398 = vld [vmem:[%s1 + $0xa38] sm:$0xff]
  %v399 = vld [vmem:[%s1 + $0xa40] sm:$0xff]
  %v400 = vld [vmem:[%s1 + $0xa48] sm:$0xff]
  %v401 = vld [vmem:[%s1 + $0xa50] sm:$0xff]
  %v402 = vld [vmem:[%s1 + $0xa58] sm:$0xff]
  %v403 = vld [vmem:[%s1 + $0xa60] sm:$0xff]
  %v404 = vld [vmem:[%s1 + $0xa68] sm:$0xff]
  %v405 = vld [vmem:[%s1 + $0xa70] sm:$0xff]
  %v406 = vld [vmem:[%s1 + $0xa78] sm:$0xff]
  %v407 = vld [vmem:[%s1 + $0xa80] sm:$0xff]
  %v408 = vld [vmem:[%s1 + $0xa88] sm:$0xff]
  %v409 = vld [vmem:[%s1 + $0xa90] sm:$0xff]
  %v410 = vld [vmem:[%s1 + $0xa98] sm:$0xff]
  %v411 = vld [vmem:[%s1 + $0xaa0] sm:$0xff]
  %v412 = vld [vmem:[%s1 + $0xaa8] sm:$0xff]
  %v413 = vld [vmem:[%s1 + $0xab0] sm:$0xff]
  %v414 = vld [vmem:[%s1 + $0xab8] sm:$0xff]
  %v415 = vld [vmem:[%s1 + $0xac0] sm:$0xff]
  %v416 = vld [vmem:[%s1 + $0xac8] sm:$0xff]
  %v417 = vld [vmem:[%s1 + $0xad0] sm:$0xff]
  %v418 = vld [vmem:[%s1 + $0xad8] sm:$0xff]
  %v419 = vld [vmem:[%s1 + $0xae0] sm:$0xff]
  %v420 = vld [vmem:[%s1 + $0xae8] sm:$0xff]
  %v421 = vld [vmem:[%s1 + $0xaf0] sm:$0xff]
  %v422 = vld [vmem:[%s1 + $0xaf8] sm:$0xff]
  %v423 = vld [vmem:[%s1 + $0xb00] sm:$0xff]
  %v424 = vld [vmem:[%s1 + $0xb08] sm:$0xff]
  %v425 = vld [vmem:[%s1 + $0xb10] sm:$0xff]
  %v426 = vld [vmem:[%s1 + $0xb18] sm:$0xff]
  %v427 = vld [vmem:[%s1 + $0xb20] sm:$0xff]
  %v428 = vld [vmem:[%s1 + $0xb28] sm:$0xff]
  %v429 = vld [vmem:[%s1 + $0xb30] sm:$0xff]
  %v430 = vld [vmem:[%s1 + $0xb38] sm:$0xff]
  %v431 = vld [vmem:[%s1 + $0xb40] sm:$0xff]
  %v432 = vld [vmem:[%s1 + $0xb48] sm:$0xff]
  %v433 = vld [vmem:[%s1 + $0xb50] sm:$0xff]
  %v434 = vld [vmem:[%s1 + $0xb58] sm:$0xff]
  %v435 = vld [vmem:[%s1 + $0xb60] sm:$0xff]
  %v436 = vld [vmem:[%s1 + $0xb68] sm:$0xff]
  %v437 = vld [vmem:[%s1 + $0xb70] sm:$0xff]
  %v438 = vld [vmem:[%s1 + $0xb78] sm:$0xff]
  %v439 = vld [vmem:[%s1 + $0xb80] sm:$0xff]
  %v440 = vld [vmem:[%s1 + $0xb88] sm:$0xff]
  %v441 = vld [vmem:[%s1 + $0xb90] sm:$0xff]
  %v442 = vld [vmem:[%s1 + $0xb98] sm:$0xff]
  %v443 = vld [vmem:[%s1 + $0xba0] sm:$0xff]
  %v444 = vld [vmem:[%s1 + $0xba8] sm:$0xff]
  %v445 = vld [vmem:[%s1 + $0xbb0] sm:$0xff]
  %v446 = vld [vmem:[%s1 + $0xbb8] sm:$0xff]
  %v447 = vld [vmem:[%s1 + $0xbc0] sm:$0xff]
  %v448 = vld [vmem:[%s1 + $0xbc8] sm:$0xff]
  %v449 = vld [vmem:[%s1 + $0xbd0] sm:$0xff]
  %v450 = vld [vmem:[%s1 + $0xbd8] sm:$0xff]
  %v451 = vld [vmem:[%s1 + $0xbe0] sm:$0xff]
  %v452 = vld [vmem:[%s1 + $0xbe8] sm:$0xff]
  %v453 = vld [vmem:[%s1 + $0xbf0] sm:$0xff]
  %v454 = vld [vmem:[%s1 + $0xbf8] sm:$0xff]
  %v455 = vld [vmem:[%s1 + $0xc00] sm:$0xff]
  %v456 = vld [vmem:[%s1 + $0xc08] sm:$0xff]
  %v457 = vld [vmem:[%s1 + $0xc10] sm:$0xff]
  %v458 = vld [vmem:[%s1 + $0xc18] sm:$0xff]
  %v459 = vld [vmem:[%s1 + $0xc20] sm:$0xff]
  %v460 = vld [vmem:[%s1 + $0xc28] sm:$0xff]
  %v461 = vld [vmem:[%s1 + $0xc30] sm:$0xff]
  %v462 = vld [vmem:[%s1 + $0xc38] sm:$0xff]
  %v463 = vld [vmem:[%s1 + $0xc40] sm:$0xff]
  %v464 = vld [vmem:[%s1 + $0xc48] sm:$0xff]
  %v465 = vld [vmem:[%s1 + $0xc50] sm:$0xff]
  %v466 = vld [vmem:[%s1 + $0xc58] sm:$0xff]
  %v467 = vld [vmem:[%s1 + $0xc60] sm:$0xff]
  %v468 = vld [vmem:[%s1 + $0xc68] sm:$0xff]
  %v469 = vld [vmem:[%s1 + $0xc70] sm:$0xff]
  %v470 = vld [vmem:[%s1 + $0xc78] sm:$0xff]
  %v471 = vld [vmem:[%s1 + $0xc80] sm:$0xff]
  %v472 = vld [vmem:[%s1 + $0xc88] sm:$0xff]
  %v473 = vld [vmem:[%s1 + $0xc90] sm:$0xff]
  %v474 = vld [vmem:[%s1 + $0xc98] sm:$0xff]
  %v475 = vld [vmem:[%s1 + $0xca0] sm:$0xff]
  %v476 = vld [vmem:[%s1 + $0xca8] sm:$0xff]
  %v477 = vld [vmem:[%s1 + $0xcb0] sm:$0xff]
  %v478 = vld [vmem:[%s1 + $0xcb8] sm:$0xff]
  %v479 = vld [vmem:[%s1 + $0xcc0] sm:$0xff]
  %v480 = vld [vmem:[%s1 + $0xcc8] sm:$0xff]
  %v481 = vld [vmem:[%s1 + $0xcd0] sm:$0xff]
  %v482 = vld [vmem:[%s1 + $0xcd8] sm:$0xff]
  %v483 = vld [vmem:[%s1 + $0xce0] sm:$0xff]
  %v484 = vld [vmem:[%s1 + $0xce8] sm:$0xff]
  %v485 = vld [vmem:[%s1 + $0xcf0] sm:$0xff]
  %v486 = vld [vmem:[%s1 + $0xcf8] sm:$0xff]
  %v487 = vld [vmem:[%s1 + $0xd00] sm:$0xff]
  %v488 = vld [vmem:[%s1 + $0xd08] sm:$0xff]
  %v489 = vld [vmem:[%s1 + $0xd10] sm:$0xff]
  %v490 = vld [vmem:[%s1 + $0xd18] sm:$0xff]
  %v491 = vld [vmem:[%s1 + $0xd20] sm:$0xff]
  %v492 = vld [vmem:[%s1 + $0xd28] sm:$0xff]
  %v493 = vld [vmem:[%s1 + $0xd30] sm:$0xff]
  %v494 = vld [vmem:[%s1 + $0xd38] sm:$0xff]
  %v495 = vld [vmem:[%s1 + $0xd40] sm:$0xff]
  %v496 = vld [vmem:[%s1 + $0xd48] sm:$0xff]
  %v497 = vld [vmem:[%s1 + $0xd50] sm:$0xff]
  %v498 = vld [vmem:[%s1 + $0xd58] sm:$0xff]
  %v499 = vld [vmem:[%s1 + $0xd60] sm:$0xff]
  %v500 = vld [vmem:[%s1 + $0xd68] sm:$0xff]
  %v501 = vld [vmem:[%s1 + $0xd70] sm:$0xff]
  %v502 = vld [vmem:[%s1 + $0xd78] sm:$0xff]
  %v503 = vld [vmem:[%s2] sm:$0x3]
  %v505 = vlaneseq
  %v506 = vshrl.u32 %v505, 7
  %v507 = vsub.s32 0, %v506
  %v508 = vrot.slane %v503, %v507
  %v509 = vlaneseq
  %v510 = vshrl.u32 %v509, 7
  %v511 = vsub.s32 1, %v510
  %v512 = vrot.slane %v503, %v511
  %v571 = vunpack.c.l.b16 %v15
  %v572 = vunpack.c.h.b16 %v15
  %v573 = vunpack.c.l.b16 %v16
  %v574 = vunpack.c.h.b16 %v16
  %v575 = vunpack.c.l.b16 %v17
  %v576 = vunpack.c.h.b16 %v17
  %v577 = vunpack.c.l.b16 %v18
  %v578 = vunpack.c.h.b16 %v18
  %v579 = vunpack.c.l.b16 %v19
  %v580 = vunpack.c.h.b16 %v19
  %v581 = vunpack.c.l.b16 %v20
  %v582 = vunpack.c.h.b16 %v20
  %v583 = vunpack.c.l.b16 %v21
  %v584 = vunpack.c.h.b16 %v21
  %v585 = vunpack.c.l.b16 %v22
  %v586 = vunpack.c.h.b16 %v22
  %v587 = vunpack.c.l.b16 %v23
  %v588 = vunpack.c.h.b16 %v23
  %v589 = vunpack.c.l.b16 %v24
  %v590 = vunpack.c.h.b16 %v24
  %v591 = vunpack.c.l.b16 %v25
  %v592 = vunpack.c.h.b16 %v25
  %v593 = vunpack.c.l.b16 %v26
  %v594 = vunpack.c.h.b16 %v26
  %v595 = vunpack.c.l.b16 %v27
  %v596 = vunpack.c.h.b16 %v27
  %v597 = vunpack.c.l.b16 %v28
  %v598 = vunpack.c.l.b16 %v29
  %v599 = vunpack.c.h.b16 %v29
  %v600 = vunpack.c.l.b16 %v30
  %v601 = vunpack.c.h.b16 %v30
  %v602 = vunpack.c.l.b16 %v31
  %v603 = vunpack.c.h.b16 %v31
  %v604 = vunpack.c.l.b16 %v32
  %v605 = vunpack.c.h.b16 %v32
  %v606 = vunpack.c.l.b16 %v33
  %v607 = vunpack.c.h.b16 %v33
  %v608 = vunpack.c.l.b16 %v34
  %v609 = vunpack.c.h.b16 %v34
  %v610 = vunpack.c.l.b16 %v35
  %v611 = vunpack.c.h.b16 %v35
  %v612 = vunpack.c.l.b16 %v36
  %v613 = vunpack.c.h.b16 %v36
  %v614 = vunpack.c.l.b16 %v37
  %v615 = vunpack.c.h.b16 %v37
  %v616 = vunpack.c.l.b16 %v38
  %v617 = vunpack.c.h.b16 %v38
  %v618 = vunpack.c.l.b16 %v39
  %v619 = vunpack.c.h.b16 %v39
  %v620 = vunpack.c.l.b16 %v40
  %v621 = vunpack.c.h.b16 %v40
  %v622 = vunpack.c.l.b16 %v41
  %v623 = vunpack.c.h.b16 %v41
  %v624 = vunpack.c.l.b16 %v42
  %v625 = vunpack.c.l.b16 %v43
  %v626 = vunpack.c.h.b16 %v43
  %v627 = vunpack.c.l.b16 %v44
  %v628 = vunpack.c.h.b16 %v44
  %v629 = vunpack.c.l.b16 %v45
  %v630 = vunpack.c.h.b16 %v45
  %v631 = vunpack.c.l.b16 %v46
  %v632 = vunpack.c.h.b16 %v46
  %v633 = vunpack.c.l.b16 %v47
  %v634 = vunpack.c.h.b16 %v47
  %v635 = vunpack.c.l.b16 %v48
  %v636 = vunpack.c.h.b16 %v48
  %v637 = vunpack.c.l.b16 %v49
  %v638 = vunpack.c.h.b16 %v49
  %v639 = vunpack.c.l.b16 %v50
  %v640 = vunpack.c.h.b16 %v50
  %v641 = vunpack.c.l.b16 %v51
  %v642 = vunpack.c.h.b16 %v51
  %v643 = vunpack.c.l.b16 %v52
  %v644 = vunpack.c.h.b16 %v52
  %v645 = vunpack.c.l.b16 %v53
  %v646 = vunpack.c.h.b16 %v53
  %v647 = vunpack.c.l.b16 %v54
  %v648 = vunpack.c.h.b16 %v54
  %v649 = vunpack.c.l.b16 %v55
  %v650 = vunpack.c.h.b16 %v55
  %v651 = vunpack.c.l.b16 %v56
  %v652 = vunpack.c.l.b16 %v57
  %v653 = vunpack.c.h.b16 %v57
  %v654 = vunpack.c.l.b16 %v58
  %v655 = vunpack.c.h.b16 %v58
  %v656 = vunpack.c.l.b16 %v59
  %v657 = vunpack.c.h.b16 %v59
  %v658 = vunpack.c.l.b16 %v60
  %v659 = vunpack.c.h.b16 %v60
  %v660 = vunpack.c.l.b16 %v61
  %v661 = vunpack.c.h.b16 %v61
  %v662 = vunpack.c.l.b16 %v62
  %v663 = vunpack.c.h.b16 %v62
  %v664 = vunpack.c.l.b16 %v63
  %v665 = vunpack.c.h.b16 %v63
  %v666 = vunpack.c.l.b16 %v64
  %v667 = vunpack.c.h.b16 %v64
  %v668 = vunpack.c.l.b16 %v65
  %v669 = vunpack.c.h.b16 %v65
  %v670 = vunpack.c.l.b16 %v66
  %v671 = vunpack.c.h.b16 %v66
  %v672 = vunpack.c.l.b16 %v67
  %v673 = vunpack.c.h.b16 %v67
  %v674 = vunpack.c.l.b16 %v68
  %v675 = vunpack.c.h.b16 %v68
  %v676 = vunpack.c.l.b16 %v69
  %v677 = vunpack.c.h.b16 %v69
  %v678 = vunpack.c.l.b16 %v70
  %v679 = vpack.c.b16 %v598, %v571
  %v680 = vpack.c.b16 %v599, %v572
  %v681 = vpack.c.b16 %v600, %v573
  %v682 = vpack.c.b16 %v601, %v574
  %v683 = vpack.c.b16 %v602, %v575
  %v684 = vpack.c.b16 %v603, %v576
  %v685 = vpack.c.b16 %v604, %v577
  %v686 = vpack.c.b16 %v605, %v578
  %v687 = vpack.c.b16 %v606, %v579
  %v688 = vpack.c.b16 %v607, %v580
  %v689 = vpack.c.b16 %v608, %v581
  %v690 = vpack.c.b16 %v609, %v582
  %v691 = vpack.c.b16 %v610, %v583
  %v692 = vpack.c.b16 %v611, %v584
  %v693 = vpack.c.b16 %v612, %v585
  %v694 = vpack.c.b16 %v613, %v586
  %v695 = vpack.c.b16 %v614, %v587
  %v696 = vpack.c.b16 %v615, %v588
  %v697 = vpack.c.b16 %v616, %v589
  %v698 = vpack.c.b16 %v617, %v590
  %v699 = vpack.c.b16 %v618, %v591
  %v700 = vpack.c.b16 %v619, %v592
  %v701 = vpack.c.b16 %v620, %v593
  %v702 = vpack.c.b16 %v621, %v594
  %v703 = vpack.c.b16 %v622, %v595
  %v704 = vpack.c.b16 %v623, %v596
  %v705 = vpack.c.b16 %v624, %v597
  %v706 = vpack.c.b16 %v652, %v625
  %v707 = vpack.c.b16 %v653, %v626
  %v708 = vpack.c.b16 %v654, %v627
  %v709 = vpack.c.b16 %v655, %v628
  %v710 = vpack.c.b16 %v656, %v629
  %v711 = vpack.c.b16 %v657, %v630
  %v712 = vpack.c.b16 %v658, %v631
  %v713 = vpack.c.b16 %v659, %v632
  %v714 = vpack.c.b16 %v660, %v633
  %v715 = vpack.c.b16 %v661, %v634
  %v716 = vpack.c.b16 %v662, %v635
  %v717 = vpack.c.b16 %v663, %v636
  %v718 = vpack.c.b16 %v664, %v637
  %v719 = vpack.c.b16 %v665, %v638
  %v720 = vpack.c.b16 %v666, %v639
  %v721 = vpack.c.b16 %v667, %v640
  %v722 = vpack.c.b16 %v668, %v641
  %v723 = vpack.c.b16 %v669, %v642
  %v724 = vpack.c.b16 %v670, %v643
  %v725 = vpack.c.b16 %v671, %v644
  %v726 = vpack.c.b16 %v672, %v645
  %v727 = vpack.c.b16 %v673, %v646
  %v728 = vpack.c.b16 %v674, %v647
  %v729 = vpack.c.b16 %v675, %v648
  %v730 = vpack.c.b16 %v676, %v649
  %v731 = vpack.c.b16 %v677, %v650
  %v732 = vpack.c.b16 %v678, %v651
  %v1219 = vunpack.c.l.b16 %v71
  %v1220 = vunpack.c.h.b16 %v71
  %v1221 = vunpack.c.l.b16 %v72
  %v1222 = vunpack.c.h.b16 %v72
  %v1223 = vunpack.c.l.b16 %v73
  %v1224 = vunpack.c.h.b16 %v73
  %v1225 = vunpack.c.l.b16 %v74
  %v1226 = vunpack.c.h.b16 %v74
  %v1227 = vunpack.c.l.b16 %v75
  %v1228 = vunpack.c.h.b16 %v75
  %v1229 = vunpack.c.l.b16 %v76
  %v1230 = vunpack.c.h.b16 %v76
  %v1231 = vunpack.c.l.b16 %v77
  %v1232 = vunpack.c.h.b16 %v77
  %v1233 = vunpack.c.l.b16 %v78
  %v1234 = vunpack.c.h.b16 %v78
  %v1235 = vunpack.c.l.b16 %v79
  %v1236 = vunpack.c.h.b16 %v79
  %v1237 = vunpack.c.l.b16 %v80
  %v1238 = vunpack.c.h.b16 %v80
  %v1239 = vunpack.c.l.b16 %v81
  %v1240 = vunpack.c.h.b16 %v81
  %v1241 = vunpack.c.l.b16 %v82
  %v1242 = vunpack.c.h.b16 %v82
  %v1243 = vunpack.c.l.b16 %v83
  %v1244 = vunpack.c.h.b16 %v83
  %v1245 = vunpack.c.l.b16 %v84
  %v1246 = vunpack.c.h.b16 %v84
  %v1247 = vunpack.c.l.b16 %v85
  %v1248 = vunpack.c.h.b16 %v85
  %v1249 = vunpack.c.l.b16 %v86
  %v1250 = vunpack.c.h.b16 %v86
  %v1251 = vunpack.c.l.b16 %v87
  %v1252 = vunpack.c.h.b16 %v87
  %v1253 = vunpack.c.l.b16 %v88
  %v1254 = vunpack.c.h.b16 %v88
  %v1255 = vunpack.c.l.b16 %v89
  %v1256 = vunpack.c.h.b16 %v89
  %v1257 = vunpack.c.l.b16 %v90
  %v1258 = vunpack.c.h.b16 %v90
  %v1259 = vunpack.c.l.b16 %v91
  %v1260 = vunpack.c.h.b16 %v91
  %v1261 = vunpack.c.l.b16 %v92
  %v1262 = vunpack.c.h.b16 %v92
  %v1263 = vunpack.c.l.b16 %v93
  %v1264 = vunpack.c.h.b16 %v93
  %v1265 = vunpack.c.l.b16 %v94
  %v1266 = vunpack.c.h.b16 %v94
  %v1267 = vunpack.c.l.b16 %v95
  %v1268 = vunpack.c.h.b16 %v95
  %v1269 = vunpack.c.l.b16 %v96
  %v1270 = vunpack.c.h.b16 %v96
  %v1271 = vunpack.c.l.b16 %v97
  %v1272 = vunpack.c.h.b16 %v97
  %v1273 = vunpack.c.l.b16 %v98
  %v1274 = vunpack.c.h.b16 %v98
  %v1275 = vunpack.c.l.b16 %v99
  %v1276 = vunpack.c.h.b16 %v99
  %v1277 = vunpack.c.l.b16 %v100
  %v1278 = vunpack.c.h.b16 %v100
  %v1279 = vunpack.c.l.b16 %v101
  %v1280 = vunpack.c.h.b16 %v101
  %v1281 = vunpack.c.l.b16 %v102
  %v1282 = vunpack.c.h.b16 %v102
  %v1283 = vunpack.c.l.b16 %v103
  %v1284 = vunpack.c.h.b16 %v103
  %v1285 = vunpack.c.l.b16 %v104
  %v1286 = vunpack.c.h.b16 %v104
  %v1287 = vunpack.c.l.b16 %v105
  %v1288 = vunpack.c.h.b16 %v105
  %v1289 = vunpack.c.l.b16 %v106
  %v1290 = vunpack.c.h.b16 %v106
  %v1291 = vunpack.c.l.b16 %v107
  %v1292 = vunpack.c.h.b16 %v107
  %v1293 = vunpack.c.l.b16 %v108
  %v1294 = vunpack.c.h.b16 %v108
  %v1295 = vunpack.c.l.b16 %v109
  %v1296 = vunpack.c.h.b16 %v109
  %v1297 = vunpack.c.l.b16 %v110
  %v1298 = vunpack.c.h.b16 %v110
  %v1299 = vunpack.c.l.b16 %v111
  %v1300 = vunpack.c.h.b16 %v111
  %v1301 = vunpack.c.l.b16 %v112
  %v1302 = vunpack.c.h.b16 %v112
  %v1303 = vunpack.c.l.b16 %v113
  %v1304 = vunpack.c.h.b16 %v113
  %v1305 = vunpack.c.l.b16 %v114
  %v1306 = vunpack.c.h.b16 %v114
  %v1307 = vunpack.c.l.b16 %v115
  %v1308 = vunpack.c.h.b16 %v115
  %v1309 = vunpack.c.l.b16 %v116
  %v1310 = vunpack.c.h.b16 %v116
  %v1311 = vunpack.c.l.b16 %v117
  %v1312 = vunpack.c.h.b16 %v117
  %v1313 = vunpack.c.l.b16 %v118
  %v1314 = vunpack.c.h.b16 %v118
  %v1315 = vunpack.c.l.b16 %v119
  %v1316 = vunpack.c.h.b16 %v119
  %v1317 = vunpack.c.l.b16 %v120
  %v1318 = vunpack.c.h.b16 %v120
  %v1319 = vunpack.c.l.b16 %v121
  %v1320 = vunpack.c.h.b16 %v121
  %v1321 = vunpack.c.l.b16 %v122
  %v1322 = vunpack.c.h.b16 %v122
  %v1323 = vunpack.c.l.b16 %v123
  %v1324 = vunpack.c.h.b16 %v123
  %v1325 = vunpack.c.l.b16 %v124
  %v1326 = vunpack.c.h.b16 %v124
  %v1327 = vunpack.c.l.b16 %v125
  %v1328 = vunpack.c.h.b16 %v125
  %v1329 = vunpack.c.l.b16 %v126
  %v1330 = vunpack.c.h.b16 %v126
  %v1331 = vunpack.c.l.b16 %v127
  %v1332 = vunpack.c.h.b16 %v127
  %v1333 = vunpack.c.l.b16 %v128
  %v1334 = vunpack.c.h.b16 %v128
  %v1335 = vunpack.c.l.b16 %v129
  %v1336 = vunpack.c.h.b16 %v129
  %v1337 = vunpack.c.l.b16 %v130
  %v1338 = vunpack.c.h.b16 %v130
  %v1339 = vunpack.c.l.b16 %v131
  %v1340 = vunpack.c.h.b16 %v131
  %v1341 = vunpack.c.l.b16 %v132
  %v1342 = vunpack.c.h.b16 %v132
  %v1343 = vunpack.c.l.b16 %v133
  %v1344 = vunpack.c.h.b16 %v133
  %v1345 = vunpack.c.l.b16 %v134
  %v1346 = vunpack.c.h.b16 %v134
  %v1347 = vunpack.c.l.b16 %v135
  %v1348 = vunpack.c.h.b16 %v135
  %v1349 = vunpack.c.l.b16 %v136
  %v1350 = vunpack.c.h.b16 %v136
  %v1351 = vunpack.c.l.b16 %v137
  %v1352 = vunpack.c.h.b16 %v137
  %v1353 = vunpack.c.l.b16 %v138
  %v1354 = vunpack.c.h.b16 %v138
  %v1355 = vunpack.c.l.b16 %v139
  %v1356 = vunpack.c.h.b16 %v139
  %v1357 = vunpack.c.l.b16 %v140
  %v1358 = vunpack.c.h.b16 %v140
  %v1359 = vunpack.c.l.b16 %v141
  %v1360 = vunpack.c.h.b16 %v141
  %v1361 = vunpack.c.l.b16 %v142
  %v1362 = vunpack.c.h.b16 %v142
  %v1363 = vunpack.c.l.b16 %v143
  %v1364 = vunpack.c.h.b16 %v143
  %v1365 = vunpack.c.l.b16 %v144
  %v1366 = vunpack.c.h.b16 %v144
  %v1367 = vunpack.c.l.b16 %v145
  %v1368 = vunpack.c.h.b16 %v145
  %v1369 = vunpack.c.l.b16 %v146
  %v1370 = vunpack.c.h.b16 %v146
  %v1371 = vunpack.c.l.b16 %v147
  %v1372 = vunpack.c.h.b16 %v147
  %v1373 = vunpack.c.l.b16 %v148
  %v1374 = vunpack.c.h.b16 %v148
  %v1375 = vunpack.c.l.b16 %v149
  %v1376 = vunpack.c.h.b16 %v149
  %v1377 = vunpack.c.l.b16 %v150
  %v1378 = vunpack.c.h.b16 %v150
  %v1379 = vunpack.c.l.b16 %v151
  %v1380 = vunpack.c.h.b16 %v151
  %v1381 = vunpack.c.l.b16 %v152
  %v1382 = vunpack.c.h.b16 %v152
  %v1383 = vunpack.c.l.b16 %v153
  %v1384 = vunpack.c.h.b16 %v153
  %v1385 = vunpack.c.l.b16 %v154
  %v1386 = vunpack.c.h.b16 %v154
  %v1387 = vunpack.c.l.b16 %v155
  %v1388 = vunpack.c.h.b16 %v155
  %v1389 = vunpack.c.l.b16 %v156
  %v1390 = vunpack.c.h.b16 %v156
  %v1391 = vunpack.c.l.b16 %v157
  %v1392 = vunpack.c.h.b16 %v157
  %v1393 = vunpack.c.l.b16 %v158
  %v1394 = vunpack.c.h.b16 %v158
  %v1395 = vunpack.c.l.b16 %v159
  %v1396 = vunpack.c.h.b16 %v159
  %v1397 = vunpack.c.l.b16 %v160
  %v1398 = vunpack.c.h.b16 %v160
  %v1399 = vunpack.c.l.b16 %v161
  %v1400 = vunpack.c.h.b16 %v161
  %v1401 = vunpack.c.l.b16 %v162
  %v1402 = vunpack.c.h.b16 %v162
  %v1403 = vunpack.c.l.b16 %v163
  %v1404 = vunpack.c.h.b16 %v163
  %v1405 = vunpack.c.l.b16 %v164
  %v1406 = vunpack.c.h.b16 %v164
  %v1407 = vunpack.c.l.b16 %v165
  %v1408 = vunpack.c.h.b16 %v165
  %v1409 = vunpack.c.l.b16 %v166
  %v1410 = vunpack.c.h.b16 %v166
  %v1411 = vunpack.c.l.b16 %v167
  %v1412 = vunpack.c.h.b16 %v167
  %v1413 = vunpack.c.l.b16 %v168
  %v1414 = vunpack.c.h.b16 %v168
  %v1415 = vunpack.c.l.b16 %v169
  %v1416 = vunpack.c.h.b16 %v169
  %v1417 = vunpack.c.l.b16 %v170
  %v1418 = vunpack.c.h.b16 %v170
  %v1419 = vunpack.c.l.b16 %v171
  %v1420 = vunpack.c.h.b16 %v171
  %v1421 = vunpack.c.l.b16 %v172
  %v1422 = vunpack.c.h.b16 %v172
  %v1423 = vunpack.c.l.b16 %v173
  %v1424 = vunpack.c.h.b16 %v173
  %v1425 = vunpack.c.l.b16 %v174
  %v1426 = vunpack.c.h.b16 %v174
  %v1427 = vunpack.c.l.b16 %v175
  %v1428 = vunpack.c.h.b16 %v175
  %v1429 = vunpack.c.l.b16 %v176
  %v1430 = vunpack.c.h.b16 %v176
  %v1431 = vunpack.c.l.b16 %v177
  %v1432 = vunpack.c.h.b16 %v177
  %v1433 = vunpack.c.l.b16 %v178
  %v1434 = vunpack.c.h.b16 %v178
  %v1435 = vunpack.c.l.b16 %v179
  %v1436 = vunpack.c.h.b16 %v179
  %v1437 = vunpack.c.l.b16 %v180
  %v1438 = vunpack.c.h.b16 %v180
  %v1439 = vunpack.c.l.b16 %v181
  %v1440 = vunpack.c.h.b16 %v181
  %v1441 = vunpack.c.l.b16 %v182
  %v1442 = vunpack.c.h.b16 %v182
  %v1443 = vunpack.c.l.b16 %v183
  %v1444 = vunpack.c.h.b16 %v183
  %v1445 = vunpack.c.l.b16 %v184
  %v1446 = vunpack.c.h.b16 %v184
  %v1447 = vunpack.c.l.b16 %v185
  %v1448 = vunpack.c.h.b16 %v185
  %v1449 = vunpack.c.l.b16 %v186
  %v1450 = vunpack.c.h.b16 %v186
  %v1451 = vunpack.c.l.b16 %v187
  %v1452 = vunpack.c.h.b16 %v187
  %v1453 = vunpack.c.l.b16 %v188
  %v1454 = vunpack.c.h.b16 %v188
  %v1455 = vunpack.c.l.b16 %v189
  %v1456 = vunpack.c.h.b16 %v189
  %v1457 = vunpack.c.l.b16 %v190
  %v1458 = vunpack.c.h.b16 %v190
  %v1459 = vunpack.c.l.b16 %v191
  %v1460 = vunpack.c.h.b16 %v191
  %v1461 = vunpack.c.l.b16 %v192
  %v1462 = vunpack.c.h.b16 %v192
  %v1463 = vunpack.c.l.b16 %v193
  %v1464 = vunpack.c.h.b16 %v193
  %v1465 = vunpack.c.l.b16 %v194
  %v1466 = vunpack.c.h.b16 %v194
  %v1467 = vunpack.c.l.b16 %v195
  %v1468 = vunpack.c.h.b16 %v195
  %v1469 = vunpack.c.l.b16 %v196
  %v1470 = vunpack.c.h.b16 %v196
  %v1471 = vunpack.c.l.b16 %v197
  %v1472 = vunpack.c.h.b16 %v197
  %v1473 = vunpack.c.l.b16 %v198
  %v1474 = vunpack.c.h.b16 %v198
  %v1475 = vunpack.c.l.b16 %v199
  %v1476 = vunpack.c.h.b16 %v199
  %v1477 = vunpack.c.l.b16 %v200
  %v1478 = vunpack.c.h.b16 %v200
  %v1479 = vunpack.c.l.b16 %v201
  %v1480 = vunpack.c.h.b16 %v201
  %v1481 = vunpack.c.l.b16 %v202
  %v1482 = vunpack.c.h.b16 %v202
  %v1483 = vunpack.c.l.b16 %v203
  %v1484 = vunpack.c.h.b16 %v203
  %v1485 = vunpack.c.l.b16 %v204
  %v1486 = vunpack.c.h.b16 %v204
  %v1487 = vunpack.c.l.b16 %v205
  %v1488 = vunpack.c.h.b16 %v205
  %v1489 = vunpack.c.l.b16 %v206
  %v1490 = vunpack.c.h.b16 %v206
  %v1491 = vunpack.c.l.b16 %v207
  %v1492 = vunpack.c.h.b16 %v207
  %v1493 = vunpack.c.l.b16 %v208
  %v1494 = vunpack.c.h.b16 %v208
  %v1495 = vunpack.c.l.b16 %v209
  %v1496 = vunpack.c.h.b16 %v209
  %v1497 = vunpack.c.l.b16 %v210
  %v1498 = vunpack.c.h.b16 %v210
  %v1499 = vunpack.c.l.b16 %v211
  %v1500 = vunpack.c.h.b16 %v211
  %v1501 = vunpack.c.l.b16 %v212
  %v1502 = vunpack.c.h.b16 %v212
  %v1503 = vunpack.c.l.b16 %v213
  %v1504 = vunpack.c.h.b16 %v213
  %v1505 = vunpack.c.l.b16 %v214
  %v1506 = vunpack.c.h.b16 %v214
  %v1507 = vunpack.c.l.b16 %v215
  %v1508 = vunpack.c.h.b16 %v215
  %v1509 = vunpack.c.l.b16 %v216
  %v1510 = vunpack.c.h.b16 %v216
  %v1511 = vunpack.c.l.b16 %v217
  %v1512 = vunpack.c.h.b16 %v217
  %v1513 = vunpack.c.l.b16 %v218
  %v1514 = vunpack.c.h.b16 %v218
  %v1515 = vunpack.c.l.b16 %v219
  %v1516 = vunpack.c.h.b16 %v219
  %v1517 = vunpack.c.l.b16 %v220
  %v1518 = vunpack.c.h.b16 %v220
  %v1519 = vunpack.c.l.b16 %v221
  %v1520 = vunpack.c.h.b16 %v221
  %v1521 = vunpack.c.l.b16 %v222
  %v1522 = vunpack.c.h.b16 %v222
  %v1523 = vunpack.c.l.b16 %v223
  %v1524 = vunpack.c.h.b16 %v223
  %v1525 = vunpack.c.l.b16 %v224
  %v1526 = vunpack.c.h.b16 %v224
  %v1527 = vunpack.c.l.b16 %v225
  %v1528 = vunpack.c.h.b16 %v225
  %v1529 = vunpack.c.l.b16 %v226
  %v1530 = vunpack.c.h.b16 %v226
  %v1531 = vunpack.c.l.b16 %v227
  %v1532 = vunpack.c.h.b16 %v227
  %v1533 = vunpack.c.l.b16 %v228
  %v1534 = vunpack.c.h.b16 %v228
  %v1535 = vunpack.c.l.b16 %v229
  %v1536 = vunpack.c.h.b16 %v229
  %v1537 = vunpack.c.l.b16 %v230
  %v1538 = vunpack.c.h.b16 %v230
  %v1539 = vunpack.c.l.b16 %v231
  %v1540 = vunpack.c.h.b16 %v231
  %v1541 = vunpack.c.l.b16 %v232
  %v1542 = vunpack.c.h.b16 %v232
  %v1543 = vunpack.c.l.b16 %v233
  %v1544 = vunpack.c.h.b16 %v233
  %v1545 = vunpack.c.l.b16 %v234
  %v1546 = vunpack.c.h.b16 %v234
  %v1547 = vunpack.c.l.b16 %v235
  %v1548 = vunpack.c.h.b16 %v235
  %v1549 = vunpack.c.l.b16 %v236
  %v1550 = vunpack.c.h.b16 %v236
  %v1551 = vunpack.c.l.b16 %v237
  %v1552 = vunpack.c.h.b16 %v237
  %v1553 = vunpack.c.l.b16 %v238
  %v1554 = vunpack.c.h.b16 %v238
  %v1555 = vunpack.c.l.b16 %v239
  %v1556 = vunpack.c.h.b16 %v239
  %v1557 = vunpack.c.l.b16 %v240
  %v1558 = vunpack.c.h.b16 %v240
  %v1559 = vunpack.c.l.b16 %v241
  %v1560 = vunpack.c.h.b16 %v241
  %v1561 = vunpack.c.l.b16 %v242
  %v1562 = vunpack.c.h.b16 %v242
  %v1563 = vunpack.c.l.b16 %v243
  %v1564 = vunpack.c.h.b16 %v243
  %v1565 = vunpack.c.l.b16 %v244
  %v1566 = vunpack.c.h.b16 %v244
  %v1567 = vunpack.c.l.b16 %v245
  %v1568 = vunpack.c.h.b16 %v245
  %v1569 = vunpack.c.l.b16 %v246
  %v1570 = vunpack.c.h.b16 %v246
  %v1571 = vunpack.c.l.b16 %v247
  %v1572 = vunpack.c.h.b16 %v247
  %v1573 = vunpack.c.l.b16 %v248
  %v1574 = vunpack.c.h.b16 %v248
  %v1575 = vunpack.c.l.b16 %v249
  %v1576 = vunpack.c.h.b16 %v249
  %v1577 = vunpack.c.l.b16 %v250
  %v1578 = vunpack.c.h.b16 %v250
  %v1579 = vunpack.c.l.b16 %v251
  %v1580 = vunpack.c.h.b16 %v251
  %v1581 = vunpack.c.l.b16 %v252
  %v1582 = vunpack.c.h.b16 %v252
  %v1583 = vunpack.c.l.b16 %v253
  %v1584 = vunpack.c.h.b16 %v253
  %v1585 = vunpack.c.l.b16 %v254
  %v1586 = vunpack.c.h.b16 %v254
  %v1587 = vunpack.c.l.b16 %v255
  %v1588 = vunpack.c.h.b16 %v255
  %v1589 = vunpack.c.l.b16 %v256
  %v1590 = vunpack.c.h.b16 %v256
  %v1591 = vunpack.c.l.b16 %v257
  %v1592 = vunpack.c.h.b16 %v257
  %v1593 = vunpack.c.l.b16 %v258
  %v1594 = vunpack.c.h.b16 %v258
  %v1595 = vunpack.c.l.b16 %v259
  %v1596 = vunpack.c.h.b16 %v259
  %v1597 = vunpack.c.l.b16 %v260
  %v1598 = vunpack.c.h.b16 %v260
  %v1599 = vunpack.c.l.b16 %v261
  %v1600 = vunpack.c.h.b16 %v261
  %v1601 = vunpack.c.l.b16 %v262
  %v1602 = vunpack.c.h.b16 %v262
  %v1603 = vunpack.c.l.b16 %v263
  %v1604 = vunpack.c.h.b16 %v263
  %v1605 = vunpack.c.l.b16 %v264
  %v1606 = vunpack.c.h.b16 %v264
  %v1607 = vunpack.c.l.b16 %v265
  %v1608 = vunpack.c.h.b16 %v265
  %v1609 = vunpack.c.l.b16 %v266
  %v1610 = vunpack.c.h.b16 %v266
  %v1611 = vunpack.c.l.b16 %v267
  %v1612 = vunpack.c.h.b16 %v267
  %v1613 = vunpack.c.l.b16 %v268
  %v1614 = vunpack.c.h.b16 %v268
  %v1615 = vunpack.c.l.b16 %v269
  %v1616 = vunpack.c.h.b16 %v269
  %v1617 = vunpack.c.l.b16 %v270
  %v1618 = vunpack.c.h.b16 %v270
  %v1619 = vunpack.c.l.b16 %v271
  %v1620 = vunpack.c.h.b16 %v271
  %v1621 = vunpack.c.l.b16 %v272
  %v1622 = vunpack.c.h.b16 %v272
  %v1623 = vunpack.c.l.b16 %v273
  %v1624 = vunpack.c.h.b16 %v273
  %v1625 = vunpack.c.l.b16 %v274
  %v1626 = vunpack.c.h.b16 %v274
  %v1627 = vunpack.c.l.b16 %v275
  %v1628 = vunpack.c.h.b16 %v275
  %v1629 = vunpack.c.l.b16 %v276
  %v1630 = vunpack.c.h.b16 %v276
  %v1631 = vunpack.c.l.b16 %v277
  %v1632 = vunpack.c.h.b16 %v277
  %v1633 = vunpack.c.l.b16 %v278
  %v1634 = vunpack.c.h.b16 %v278
  %v1635 = vunpack.c.l.b16 %v279
  %v1636 = vunpack.c.h.b16 %v279
  %v1637 = vunpack.c.l.b16 %v280
  %v1638 = vunpack.c.h.b16 %v280
  %v1639 = vunpack.c.l.b16 %v281
  %v1640 = vunpack.c.h.b16 %v281
  %v1641 = vunpack.c.l.b16 %v282
  %v1642 = vunpack.c.h.b16 %v282
  %v1643 = vunpack.c.l.b16 %v283
  %v1644 = vunpack.c.h.b16 %v283
  %v1645 = vunpack.c.l.b16 %v284
  %v1646 = vunpack.c.h.b16 %v284
  %v1647 = vunpack.c.l.b16 %v285
  %v1648 = vunpack.c.h.b16 %v285
  %v1649 = vunpack.c.l.b16 %v286
  %v1650 = vunpack.c.h.b16 %v286
  %v1651 = vunpack.c.l.b16 %v287
  %v1652 = vunpack.c.h.b16 %v287
  %v1653 = vunpack.c.l.b16 %v288
  %v1654 = vunpack.c.h.b16 %v288
  %v1655 = vunpack.c.l.b16 %v289
  %v1656 = vunpack.c.h.b16 %v289
  %v1657 = vunpack.c.l.b16 %v290
  %v1658 = vunpack.c.h.b16 %v290
  %v1659 = vunpack.c.l.b16 %v291
  %v1660 = vunpack.c.h.b16 %v291
  %v1661 = vunpack.c.l.b16 %v292
  %v1662 = vunpack.c.h.b16 %v292
  %v1663 = vunpack.c.l.b16 %v293
  %v1664 = vunpack.c.h.b16 %v293
  %v1665 = vunpack.c.l.b16 %v294
  %v1666 = vunpack.c.h.b16 %v294
  %v1667 = vunpack.c.l.b16 %v295
  %v1668 = vunpack.c.h.b16 %v295
  %v1669 = vunpack.c.l.b16 %v296
  %v1670 = vunpack.c.h.b16 %v296
  %v1671 = vunpack.c.l.b16 %v297
  %v1672 = vunpack.c.h.b16 %v297
  %v1673 = vunpack.c.l.b16 %v298
  %v1674 = vunpack.c.h.b16 %v298
  %v1675 = vunpack.c.l.b16 %v299
  %v1676 = vunpack.c.h.b16 %v299
  %v1677 = vunpack.c.l.b16 %v300
  %v1678 = vunpack.c.h.b16 %v300
  %v1679 = vunpack.c.l.b16 %v301
  %v1680 = vunpack.c.h.b16 %v301
  %v1681 = vunpack.c.l.b16 %v302
  %v1682 = vunpack.c.h.b16 %v302
  %v1683 = vunpack.c.l.b16 %v303
  %v1684 = vunpack.c.h.b16 %v303
  %v1685 = vunpack.c.l.b16 %v304
  %v1686 = vunpack.c.h.b16 %v304
  %v1687 = vunpack.c.l.b16 %v305
  %v1688 = vunpack.c.h.b16 %v305
  %v1689 = vunpack.c.l.b16 %v306
  %v1690 = vunpack.c.h.b16 %v306
  %v1691 = vunpack.c.l.b16 %v307
  %v1692 = vunpack.c.h.b16 %v307
  %v1693 = vunpack.c.l.b16 %v308
  %v1694 = vunpack.c.h.b16 %v308
  %v1695 = vunpack.c.l.b16 %v309
  %v1696 = vunpack.c.h.b16 %v309
  %v1697 = vunpack.c.l.b16 %v310
  %v1698 = vunpack.c.h.b16 %v310
  %v1699 = vunpack.c.l.b16 %v311
  %v1700 = vunpack.c.h.b16 %v311
  %v1701 = vunpack.c.l.b16 %v312
  %v1702 = vunpack.c.h.b16 %v312
  %v1703 = vunpack.c.l.b16 %v313
  %v1704 = vunpack.c.h.b16 %v313
  %v1705 = vunpack.c.l.b16 %v314
  %v1706 = vunpack.c.h.b16 %v314
  %v1707 = vunpack.c.l.b16 %v315
  %v1708 = vunpack.c.h.b16 %v315
  %v1709 = vunpack.c.l.b16 %v316
  %v1710 = vunpack.c.h.b16 %v316
  %v1711 = vunpack.c.l.b16 %v317
  %v1712 = vunpack.c.h.b16 %v317
  %v1713 = vunpack.c.l.b16 %v318
  %v1714 = vunpack.c.h.b16 %v318
  %v1715 = vunpack.c.l.b16 %v319
  %v1716 = vunpack.c.h.b16 %v319
  %v1717 = vunpack.c.l.b16 %v320
  %v1718 = vunpack.c.h.b16 %v320
  %v1719 = vunpack.c.l.b16 %v321
  %v1720 = vunpack.c.h.b16 %v321
  %v1721 = vunpack.c.l.b16 %v322
  %v1722 = vunpack.c.h.b16 %v322
  %v1723 = vunpack.c.l.b16 %v323
  %v1724 = vunpack.c.h.b16 %v323
  %v1725 = vunpack.c.l.b16 %v324
  %v1726 = vunpack.c.h.b16 %v324
  %v1727 = vunpack.c.l.b16 %v325
  %v1728 = vunpack.c.h.b16 %v325
  %v1729 = vunpack.c.l.b16 %v326
  %v1730 = vunpack.c.h.b16 %v326
  %v1731 = vunpack.c.l.b16 %v327
  %v1732 = vunpack.c.h.b16 %v327
  %v1733 = vunpack.c.l.b16 %v328
  %v1734 = vunpack.c.h.b16 %v328
  %v1735 = vunpack.c.l.b16 %v329
  %v1736 = vunpack.c.h.b16 %v329
  %v1737 = vunpack.c.l.b16 %v330
  %v1738 = vunpack.c.h.b16 %v330
  %v1739 = vunpack.c.l.b16 %v331
  %v1740 = vunpack.c.h.b16 %v331
  %v1741 = vunpack.c.l.b16 %v332
  %v1742 = vunpack.c.h.b16 %v332
  %v1743 = vunpack.c.l.b16 %v333
  %v1744 = vunpack.c.h.b16 %v333
  %v1745 = vunpack.c.l.b16 %v334
  %v1746 = vunpack.c.h.b16 %v334
  %v1747 = vunpack.c.l.b16 %v335
  %v1748 = vunpack.c.h.b16 %v335
  %v1749 = vunpack.c.l.b16 %v336
  %v1750 = vunpack.c.h.b16 %v336
  %v1751 = vunpack.c.l.b16 %v337
  %v1752 = vunpack.c.h.b16 %v337
  %v1753 = vunpack.c.l.b16 %v338
  %v1754 = vunpack.c.h.b16 %v338
  %v1755 = vunpack.c.l.b16 %v339
  %v1756 = vunpack.c.h.b16 %v339
  %v1757 = vunpack.c.l.b16 %v340
  %v1758 = vunpack.c.h.b16 %v340
  %v1759 = vunpack.c.l.b16 %v341
  %v1760 = vunpack.c.h.b16 %v341
  %v1761 = vunpack.c.l.b16 %v342
  %v1762 = vunpack.c.h.b16 %v342
  %v1763 = vunpack.c.l.b16 %v343
  %v1764 = vunpack.c.h.b16 %v343
  %v1765 = vunpack.c.l.b16 %v344
  %v1766 = vunpack.c.h.b16 %v344
  %v1767 = vunpack.c.l.b16 %v345
  %v1768 = vunpack.c.h.b16 %v345
  %v1769 = vunpack.c.l.b16 %v346
  %v1770 = vunpack.c.h.b16 %v346
  %v1771 = vunpack.c.l.b16 %v347
  %v1772 = vunpack.c.h.b16 %v347
  %v1773 = vunpack.c.l.b16 %v348
  %v1774 = vunpack.c.h.b16 %v348
  %v1775 = vunpack.c.l.b16 %v349
  %v1776 = vunpack.c.h.b16 %v349
  %v1777 = vunpack.c.l.b16 %v350
  %v1778 = vunpack.c.h.b16 %v350
  %v1779 = vunpack.c.l.b16 %v351
  %v1780 = vunpack.c.h.b16 %v351
  %v1781 = vunpack.c.l.b16 %v352
  %v1782 = vunpack.c.h.b16 %v352
  %v1783 = vunpack.c.l.b16 %v353
  %v1784 = vunpack.c.h.b16 %v353
  %v1785 = vunpack.c.l.b16 %v354
  %v1786 = vunpack.c.h.b16 %v354
  %v1787 = vunpack.c.l.b16 %v355
  %v1788 = vunpack.c.h.b16 %v355
  %v1789 = vunpack.c.l.b16 %v356
  %v1790 = vunpack.c.h.b16 %v356
  %v1791 = vunpack.c.l.b16 %v357
  %v1792 = vunpack.c.h.b16 %v357
  %v1793 = vunpack.c.l.b16 %v358
  %v1794 = vunpack.c.h.b16 %v358
  %v1795 = vunpack.c.l.b16 %v359
  %v1796 = vunpack.c.h.b16 %v359
  %v1797 = vunpack.c.l.b16 %v360
  %v1798 = vunpack.c.h.b16 %v360
  %v1799 = vunpack.c.l.b16 %v361
  %v1800 = vunpack.c.h.b16 %v361
  %v1801 = vunpack.c.l.b16 %v362
  %v1802 = vunpack.c.h.b16 %v362
  %v1803 = vunpack.c.l.b16 %v363
  %v1804 = vunpack.c.h.b16 %v363
  %v1805 = vunpack.c.l.b16 %v364
  %v1806 = vunpack.c.h.b16 %v364
  %v1807 = vunpack.c.l.b16 %v365
  %v1808 = vunpack.c.h.b16 %v365
  %v1809 = vunpack.c.l.b16 %v366
  %v1810 = vunpack.c.h.b16 %v366
  %v1811 = vunpack.c.l.b16 %v367
  %v1812 = vunpack.c.h.b16 %v367
  %v1813 = vunpack.c.l.b16 %v368
  %v1814 = vunpack.c.h.b16 %v368
  %v1815 = vunpack.c.l.b16 %v369
  %v1816 = vunpack.c.h.b16 %v369
  %v1817 = vunpack.c.l.b16 %v370
  %v1818 = vunpack.c.h.b16 %v370
  %v1819 = vunpack.c.l.b16 %v371
  %v1820 = vunpack.c.h.b16 %v371
  %v1821 = vunpack.c.l.b16 %v372
  %v1822 = vunpack.c.h.b16 %v372
  %v1823 = vunpack.c.l.b16 %v373
  %v1824 = vunpack.c.h.b16 %v373
  %v1825 = vunpack.c.l.b16 %v374
  %v1826 = vunpack.c.h.b16 %v374
  %v1827 = vunpack.c.l.b16 %v375
  %v1828 = vunpack.c.h.b16 %v375
  %v1829 = vunpack.c.l.b16 %v376
  %v1830 = vunpack.c.h.b16 %v376
  %v1831 = vunpack.c.l.b16 %v377
  %v1832 = vunpack.c.h.b16 %v377
  %v1833 = vunpack.c.l.b16 %v378
  %v1834 = vunpack.c.h.b16 %v378
  %v1835 = vunpack.c.l.b16 %v379
  %v1836 = vunpack.c.h.b16 %v379
  %v1837 = vunpack.c.l.b16 %v380
  %v1838 = vunpack.c.h.b16 %v380
  %v1839 = vunpack.c.l.b16 %v381
  %v1840 = vunpack.c.h.b16 %v381
  %v1841 = vunpack.c.l.b16 %v382
  %v1842 = vunpack.c.h.b16 %v382
  %v1843 = vunpack.c.l.b16 %v383
  %v1844 = vunpack.c.h.b16 %v383
  %v1845 = vunpack.c.l.b16 %v384
  %v1846 = vunpack.c.h.b16 %v384
  %v1847 = vunpack.c.l.b16 %v385
  %v1848 = vunpack.c.h.b16 %v385
  %v1849 = vunpack.c.l.b16 %v386
  %v1850 = vunpack.c.h.b16 %v386
  %v1851 = vunpack.c.l.b16 %v387
  %v1852 = vunpack.c.h.b16 %v387
  %v1853 = vunpack.c.l.b16 %v388
  %v1854 = vunpack.c.h.b16 %v388
  %v1855 = vunpack.c.l.b16 %v389
  %v1856 = vunpack.c.h.b16 %v389
  %v1857 = vunpack.c.l.b16 %v390
  %v1858 = vunpack.c.h.b16 %v390
  %v1859 = vunpack.c.l.b16 %v391
  %v1860 = vunpack.c.h.b16 %v391
  %v1861 = vunpack.c.l.b16 %v392
  %v1862 = vunpack.c.h.b16 %v392
  %v1863 = vunpack.c.l.b16 %v393
  %v1864 = vunpack.c.h.b16 %v393
  %v1865 = vunpack.c.l.b16 %v394
  %v1866 = vunpack.c.h.b16 %v394
  %v1867 = vunpack.c.l.b16 %v395
  %v1868 = vunpack.c.h.b16 %v395
  %v1869 = vunpack.c.l.b16 %v396
  %v1870 = vunpack.c.h.b16 %v396
  %v1871 = vunpack.c.l.b16 %v397
  %v1872 = vunpack.c.h.b16 %v397
  %v1873 = vunpack.c.l.b16 %v398
  %v1874 = vunpack.c.h.b16 %v398
  %v1875 = vunpack.c.l.b16 %v399
  %v1876 = vunpack.c.h.b16 %v399
  %v1877 = vunpack.c.l.b16 %v400
  %v1878 = vunpack.c.h.b16 %v400
  %v1879 = vunpack.c.l.b16 %v401
  %v1880 = vunpack.c.h.b16 %v401
  %v1881 = vunpack.c.l.b16 %v402
  %v1882 = vunpack.c.h.b16 %v402
  %v1883 = vunpack.c.l.b16 %v403
  %v1884 = vunpack.c.h.b16 %v403
  %v1885 = vunpack.c.l.b16 %v404
  %v1886 = vunpack.c.h.b16 %v404
  %v1887 = vunpack.c.l.b16 %v405
  %v1888 = vunpack.c.h.b16 %v405
  %v1889 = vunpack.c.l.b16 %v406
  %v1890 = vunpack.c.h.b16 %v406
  %v1891 = vunpack.c.l.b16 %v407
  %v1892 = vunpack.c.h.b16 %v407
  %v1893 = vunpack.c.l.b16 %v408
  %v1894 = vunpack.c.h.b16 %v408
  %v1895 = vunpack.c.l.b16 %v409
  %v1896 = vunpack.c.h.b16 %v409
  %v1897 = vunpack.c.l.b16 %v410
  %v1898 = vunpack.c.h.b16 %v410
  %v1899 = vunpack.c.l.b16 %v411
  %v1900 = vunpack.c.h.b16 %v411
  %v1901 = vunpack.c.l.b16 %v412
  %v1902 = vunpack.c.h.b16 %v412
  %v1903 = vunpack.c.l.b16 %v413
  %v1904 = vunpack.c.h.b16 %v413
  %v1905 = vunpack.c.l.b16 %v414
  %v1906 = vunpack.c.h.b16 %v414
  %v1907 = vunpack.c.l.b16 %v415
  %v1908 = vunpack.c.h.b16 %v415
  %v1909 = vunpack.c.l.b16 %v416
  %v1910 = vunpack.c.h.b16 %v416
  %v1911 = vunpack.c.l.b16 %v417
  %v1912 = vunpack.c.h.b16 %v417
  %v1913 = vunpack.c.l.b16 %v418
  %v1914 = vunpack.c.h.b16 %v418
  %v1915 = vunpack.c.l.b16 %v419
  %v1916 = vunpack.c.h.b16 %v419
  %v1917 = vunpack.c.l.b16 %v420
  %v1918 = vunpack.c.h.b16 %v420
  %v1919 = vunpack.c.l.b16 %v421
  %v1920 = vunpack.c.h.b16 %v421
  %v1921 = vunpack.c.l.b16 %v422
  %v1922 = vunpack.c.h.b16 %v422
  %v1923 = vunpack.c.l.b16 %v423
  %v1924 = vunpack.c.h.b16 %v423
  %v1925 = vunpack.c.l.b16 %v424
  %v1926 = vunpack.c.h.b16 %v424
  %v1927 = vunpack.c.l.b16 %v425
  %v1928 = vunpack.c.h.b16 %v425
  %v1929 = vunpack.c.l.b16 %v426
  %v1930 = vunpack.c.h.b16 %v426
  %v1931 = vunpack.c.l.b16 %v427
  %v1932 = vunpack.c.h.b16 %v427
  %v1933 = vunpack.c.l.b16 %v428
  %v1934 = vunpack.c.h.b16 %v428
  %v1935 = vunpack.c.l.b16 %v429
  %v1936 = vunpack.c.h.b16 %v429
  %v1937 = vunpack.c.l.b16 %v430
  %v1938 = vunpack.c.h.b16 %v430
  %v1939 = vunpack.c.l.b16 %v431
  %v1940 = vunpack.c.h.b16 %v431
  %v1941 = vunpack.c.l.b16 %v432
  %v1942 = vunpack.c.h.b16 %v432
  %v1943 = vunpack.c.l.b16 %v433
  %v1944 = vunpack.c.h.b16 %v433
  %v1945 = vunpack.c.l.b16 %v434
  %v1946 = vunpack.c.h.b16 %v434
  %v1947 = vunpack.c.l.b16 %v435
  %v1948 = vunpack.c.h.b16 %v435
  %v1949 = vunpack.c.l.b16 %v436
  %v1950 = vunpack.c.h.b16 %v436
  %v1951 = vunpack.c.l.b16 %v437
  %v1952 = vunpack.c.h.b16 %v437
  %v1953 = vunpack.c.l.b16 %v438
  %v1954 = vunpack.c.h.b16 %v438
  %v1955 = vunpack.c.l.b16 %v439
  %v1956 = vunpack.c.h.b16 %v439
  %v1957 = vunpack.c.l.b16 %v440
  %v1958 = vunpack.c.h.b16 %v440
  %v1959 = vunpack.c.l.b16 %v441
  %v1960 = vunpack.c.h.b16 %v441
  %v1961 = vunpack.c.l.b16 %v442
  %v1962 = vunpack.c.h.b16 %v442
  %v1963 = vunpack.c.l.b16 %v443
  %v1964 = vunpack.c.h.b16 %v443
  %v1965 = vunpack.c.l.b16 %v444
  %v1966 = vunpack.c.h.b16 %v444
  %v1967 = vunpack.c.l.b16 %v445
  %v1968 = vunpack.c.h.b16 %v445
  %v1969 = vunpack.c.l.b16 %v446
  %v1970 = vunpack.c.h.b16 %v446
  %v1971 = vunpack.c.l.b16 %v447
  %v1972 = vunpack.c.h.b16 %v447
  %v1973 = vunpack.c.l.b16 %v448
  %v1974 = vunpack.c.h.b16 %v448
  %v1975 = vunpack.c.l.b16 %v449
  %v1976 = vunpack.c.h.b16 %v449
  %v1977 = vunpack.c.l.b16 %v450
  %v1978 = vunpack.c.h.b16 %v450
  %v1979 = vunpack.c.l.b16 %v451
  %v1980 = vunpack.c.h.b16 %v451
  %v1981 = vunpack.c.l.b16 %v452
  %v1982 = vunpack.c.h.b16 %v452
  %v1983 = vunpack.c.l.b16 %v453
  %v1984 = vunpack.c.h.b16 %v453
  %v1985 = vunpack.c.l.b16 %v454
  %v1986 = vunpack.c.h.b16 %v454
  %v1987 = vunpack.c.l.b16 %v455
  %v1988 = vunpack.c.h.b16 %v455
  %v1989 = vunpack.c.l.b16 %v456
  %v1990 = vunpack.c.h.b16 %v456
  %v1991 = vunpack.c.l.b16 %v457
  %v1992 = vunpack.c.h.b16 %v457
  %v1993 = vunpack.c.l.b16 %v458
  %v1994 = vunpack.c.h.b16 %v458
  %v1995 = vunpack.c.l.b16 %v459
  %v1996 = vunpack.c.h.b16 %v459
  %v1997 = vunpack.c.l.b16 %v460
  %v1998 = vunpack.c.h.b16 %v460
  %v1999 = vunpack.c.l.b16 %v461
  %v2000 = vunpack.c.h.b16 %v461
  %v2001 = vunpack.c.l.b16 %v462
  %v2002 = vunpack.c.h.b16 %v462
  %v2003 = vunpack.c.l.b16 %v463
  %v2004 = vunpack.c.h.b16 %v463
  %v2005 = vunpack.c.l.b16 %v464
  %v2006 = vunpack.c.h.b16 %v464
  %v2007 = vunpack.c.l.b16 %v465
  %v2008 = vunpack.c.h.b16 %v465
  %v2009 = vunpack.c.l.b16 %v466
  %v2010 = vunpack.c.h.b16 %v466
  %v2011 = vunpack.c.l.b16 %v467
  %v2012 = vunpack.c.h.b16 %v467
  %v2013 = vunpack.c.l.b16 %v468
  %v2014 = vunpack.c.h.b16 %v468
  %v2015 = vunpack.c.l.b16 %v469
  %v2016 = vunpack.c.h.b16 %v469
  %v2017 = vunpack.c.l.b16 %v470
  %v2018 = vunpack.c.h.b16 %v470
  %v2019 = vunpack.c.l.b16 %v471
  %v2020 = vunpack.c.h.b16 %v471
  %v2021 = vunpack.c.l.b16 %v472
  %v2022 = vunpack.c.h.b16 %v472
  %v2023 = vunpack.c.l.b16 %v473
  %v2024 = vunpack.c.h.b16 %v473
  %v2025 = vunpack.c.l.b16 %v474
  %v2026 = vunpack.c.h.b16 %v474
  %v2027 = vunpack.c.l.b16 %v475
  %v2028 = vunpack.c.h.b16 %v475
  %v2029 = vunpack.c.l.b16 %v476
  %v2030 = vunpack.c.h.b16 %v476
  %v2031 = vunpack.c.l.b16 %v477
  %v2032 = vunpack.c.h.b16 %v477
  %v2033 = vunpack.c.l.b16 %v478
  %v2034 = vunpack.c.h.b16 %v478
  %v2035 = vunpack.c.l.b16 %v479
  %v2036 = vunpack.c.h.b16 %v479
  %v2037 = vunpack.c.l.b16 %v480
  %v2038 = vunpack.c.h.b16 %v480
  %v2039 = vunpack.c.l.b16 %v481
  %v2040 = vunpack.c.h.b16 %v481
  %v2041 = vunpack.c.l.b16 %v482
  %v2042 = vunpack.c.h.b16 %v482
  %v2043 = vunpack.c.l.b16 %v483
  %v2044 = vunpack.c.h.b16 %v483
  %v2045 = vunpack.c.l.b16 %v484
  %v2046 = vunpack.c.h.b16 %v484
  %v2047 = vunpack.c.l.b16 %v485
  %v2048 = vunpack.c.h.b16 %v485
  %v2049 = vunpack.c.l.b16 %v486
  %v2050 = vunpack.c.h.b16 %v486
  %v2051 = vunpack.c.l.b16 %v487
  %v2052 = vunpack.c.h.b16 %v487
  %v2053 = vunpack.c.l.b16 %v488
  %v2054 = vunpack.c.h.b16 %v488
  %v2055 = vunpack.c.l.b16 %v489
  %v2056 = vunpack.c.h.b16 %v489
  %v2057 = vunpack.c.l.b16 %v490
  %v2058 = vunpack.c.h.b16 %v490
  %v2059 = vunpack.c.l.b16 %v491
  %v2060 = vunpack.c.h.b16 %v491
  %v2061 = vunpack.c.l.b16 %v492
  %v2062 = vunpack.c.h.b16 %v492
  %v2063 = vunpack.c.l.b16 %v493
  %v2064 = vunpack.c.h.b16 %v493
  %v2065 = vunpack.c.l.b16 %v494
  %v2066 = vunpack.c.h.b16 %v494
  %v2067 = vunpack.c.l.b16 %v495
  %v2068 = vunpack.c.h.b16 %v495
  %v2069 = vunpack.c.l.b16 %v496
  %v2070 = vunpack.c.h.b16 %v496
  %v2071 = vunpack.c.l.b16 %v497
  %v2072 = vunpack.c.h.b16 %v497
  %v2073 = vunpack.c.l.b16 %v498
  %v2074 = vunpack.c.h.b16 %v498
  %v2075 = vunpack.c.l.b16 %v499
  %v2076 = vunpack.c.h.b16 %v499
  %v2077 = vunpack.c.l.b16 %v500
  %v2078 = vunpack.c.h.b16 %v500
  %v2079 = vunpack.c.l.b16 %v501
  %v2080 = vunpack.c.h.b16 %v501
  %v2081 = vunpack.c.l.b16 %v502
  %v2082 = vunpack.c.h.b16 %v502
  %v2083 = vpack.c.b16 %v1221, %v1219
  %v2084 = vpack.c.b16 %v1222, %v1220
  %v2085 = vpack.c.b16 %v1225, %v1223
  %v2086 = vpack.c.b16 %v1226, %v1224
  %v2087 = vpack.c.b16 %v1229, %v1227
  %v2088 = vpack.c.b16 %v1230, %v1228
  %v2089 = vpack.c.b16 %v1233, %v1231
  %v2090 = vpack.c.b16 %v1234, %v1232
  %v2091 = vpack.c.b16 %v1237, %v1235
  %v2092 = vpack.c.b16 %v1238, %v1236
  %v2093 = vpack.c.b16 %v1241, %v1239
  %v2094 = vpack.c.b16 %v1242, %v1240
  %v2095 = vpack.c.b16 %v1245, %v1243
  %v2096 = vpack.c.b16 %v1246, %v1244
  %v2097 = vpack.c.b16 %v1249, %v1247
  %v2098 = vpack.c.b16 %v1250, %v1248
  %v2099 = vpack.c.b16 %v1253, %v1251
  %v2100 = vpack.c.b16 %v1254, %v1252
  %v2101 = vpack.c.b16 %v1257, %v1255
  %v2102 = vpack.c.b16 %v1258, %v1256
  %v2103 = vpack.c.b16 %v1261, %v1259
  %v2104 = vpack.c.b16 %v1262, %v1260
  %v2105 = vpack.c.b16 %v1265, %v1263
  %v2106 = vpack.c.b16 %v1266, %v1264
  %v2107 = vpack.c.b16 %v1269, %v1267
  %v2108 = vpack.c.b16 %v1270, %v1268
  %v2109 = vpack.c.b16 %v1273, %v1271
  %v2110 = vpack.c.b16 %v1274, %v1272
  %v2111 = vpack.c.b16 %v1277, %v1275
  %v2112 = vpack.c.b16 %v1278, %v1276
  %v2113 = vpack.c.b16 %v1281, %v1279
  %v2114 = vpack.c.b16 %v1282, %v1280
  %v2115 = vpack.c.b16 %v1285, %v1283
  %v2116 = vpack.c.b16 %v1286, %v1284
  %v2117 = vpack.c.b16 %v1289, %v1287
  %v2118 = vpack.c.b16 %v1290, %v1288
  %v2119 = vpack.c.b16 %v1293, %v1291
  %v2120 = vpack.c.b16 %v1294, %v1292
  %v2121 = vpack.c.b16 %v1297, %v1295
  %v2122 = vpack.c.b16 %v1298, %v1296
  %v2123 = vpack.c.b16 %v1301, %v1299
  %v2124 = vpack.c.b16 %v1302, %v1300
  %v2125 = vpack.c.b16 %v1305, %v1303
  %v2126 = vpack.c.b16 %v1306, %v1304
  %v2127 = vpack.c.b16 %v1309, %v1307
  %v2128 = vpack.c.b16 %v1310, %v1308
  %v2129 = vpack.c.b16 %v1313, %v1311
  %v2130 = vpack.c.b16 %v1314, %v1312
  %v2131 = vpack.c.b16 %v1317, %v1315
  %v2132 = vpack.c.b16 %v1318, %v1316
  %v2133 = vpack.c.b16 %v1321, %v1319
  %v2134 = vpack.c.b16 %v1322, %v1320
  %v2135 = vpack.c.b16 %v1325, %v1323
  %v2136 = vpack.c.b16 %v1326, %v1324
  %v2137 = vpack.c.b16 %v1329, %v1327
  %v2138 = vpack.c.b16 %v1330, %v1328
  %v2139 = vpack.c.b16 %v1333, %v1331
  %v2140 = vpack.c.b16 %v1334, %v1332
  %v2141 = vpack.c.b16 %v1337, %v1335
  %v2142 = vpack.c.b16 %v1338, %v1336
  %v2143 = vpack.c.b16 %v1341, %v1339
  %v2144 = vpack.c.b16 %v1342, %v1340
  %v2145 = vpack.c.b16 %v1345, %v1343
  %v2146 = vpack.c.b16 %v1346, %v1344
  %v2147 = vpack.c.b16 %v1349, %v1347
  %v2148 = vpack.c.b16 %v1350, %v1348
  %v2149 = vpack.c.b16 %v1353, %v1351
  %v2150 = vpack.c.b16 %v1354, %v1352
  %v2151 = vpack.c.b16 %v1357, %v1355
  %v2152 = vpack.c.b16 %v1358, %v1356
  %v2153 = vpack.c.b16 %v1361, %v1359
  %v2154 = vpack.c.b16 %v1362, %v1360
  %v2155 = vpack.c.b16 %v1365, %v1363
  %v2156 = vpack.c.b16 %v1366, %v1364
  %v2157 = vpack.c.b16 %v1369, %v1367
  %v2158 = vpack.c.b16 %v1370, %v1368
  %v2159 = vpack.c.b16 %v1373, %v1371
  %v2160 = vpack.c.b16 %v1374, %v1372
  %v2161 = vpack.c.b16 %v1377, %v1375
  %v2162 = vpack.c.b16 %v1378, %v1376
  %v2163 = vpack.c.b16 %v1381, %v1379
  %v2164 = vpack.c.b16 %v1382, %v1380
  %v2165 = vpack.c.b16 %v1385, %v1383
  %v2166 = vpack.c.b16 %v1386, %v1384
  %v2167 = vpack.c.b16 %v1389, %v1387
  %v2168 = vpack.c.b16 %v1390, %v1388
  %v2169 = vpack.c.b16 %v1393, %v1391
  %v2170 = vpack.c.b16 %v1394, %v1392
  %v2171 = vpack.c.b16 %v1397, %v1395
  %v2172 = vpack.c.b16 %v1398, %v1396
  %v2173 = vpack.c.b16 %v1401, %v1399
  %v2174 = vpack.c.b16 %v1402, %v1400
  %v2175 = vpack.c.b16 %v1405, %v1403
  %v2176 = vpack.c.b16 %v1406, %v1404
  %v2177 = vpack.c.b16 %v1409, %v1407
  %v2178 = vpack.c.b16 %v1410, %v1408
  %v2179 = vpack.c.b16 %v1413, %v1411
  %v2180 = vpack.c.b16 %v1414, %v1412
  %v2181 = vpack.c.b16 %v1417, %v1415
  %v2182 = vpack.c.b16 %v1418, %v1416
  %v2183 = vpack.c.b16 %v1421, %v1419
  %v2184 = vpack.c.b16 %v1422, %v1420
  %v2185 = vpack.c.b16 %v1425, %v1423
  %v2186 = vpack.c.b16 %v1426, %v1424
  %v2187 = vpack.c.b16 %v1429, %v1427
  %v2188 = vpack.c.b16 %v1430, %v1428
  %v2189 = vpack.c.b16 %v1433, %v1431
  %v2190 = vpack.c.b16 %v1434, %v1432
  %v2191 = vpack.c.b16 %v1437, %v1435
  %v2192 = vpack.c.b16 %v1438, %v1436
  %v2193 = vpack.c.b16 %v1441, %v1439
  %v2194 = vpack.c.b16 %v1442, %v1440
  %v2195 = vpack.c.b16 %v1445, %v1443
  %v2196 = vpack.c.b16 %v1446, %v1444
  %v2197 = vpack.c.b16 %v1449, %v1447
  %v2198 = vpack.c.b16 %v1450, %v1448
  %v2199 = vpack.c.b16 %v1453, %v1451
  %v2200 = vpack.c.b16 %v1454, %v1452
  %v2201 = vpack.c.b16 %v1457, %v1455
  %v2202 = vpack.c.b16 %v1458, %v1456
  %v2203 = vpack.c.b16 %v1461, %v1459
  %v2204 = vpack.c.b16 %v1462, %v1460
  %v2205 = vpack.c.b16 %v1465, %v1463
  %v2206 = vpack.c.b16 %v1466, %v1464
  %v2207 = vpack.c.b16 %v1469, %v1467
  %v2208 = vpack.c.b16 %v1470, %v1468
  %v2209 = vpack.c.b16 %v1473, %v1471
  %v2210 = vpack.c.b16 %v1474, %v1472
  %v2211 = vpack.c.b16 %v1477, %v1475
  %v2212 = vpack.c.b16 %v1478, %v1476
  %v2213 = vpack.c.b16 %v1481, %v1479
  %v2214 = vpack.c.b16 %v1482, %v1480
  %v2215 = vpack.c.b16 %v1485, %v1483
  %v2216 = vpack.c.b16 %v1486, %v1484
  %v2217 = vpack.c.b16 %v1489, %v1487
  %v2218 = vpack.c.b16 %v1490, %v1488
  %v2219 = vpack.c.b16 %v1493, %v1491
  %v2220 = vpack.c.b16 %v1494, %v1492
  %v2221 = vpack.c.b16 %v1497, %v1495
  %v2222 = vpack.c.b16 %v1498, %v1496
  %v2223 = vpack.c.b16 %v1501, %v1499
  %v2224 = vpack.c.b16 %v1502, %v1500
  %v2225 = vpack.c.b16 %v1505, %v1503
  %v2226 = vpack.c.b16 %v1506, %v1504
  %v2227 = vpack.c.b16 %v1509, %v1507
  %v2228 = vpack.c.b16 %v1510, %v1508
  %v2229 = vpack.c.b16 %v1513, %v1511
  %v2230 = vpack.c.b16 %v1514, %v1512
  %v2231 = vpack.c.b16 %v1517, %v1515
  %v2232 = vpack.c.b16 %v1518, %v1516
  %v2233 = vpack.c.b16 %v1521, %v1519
  %v2234 = vpack.c.b16 %v1522, %v1520
  %v2235 = vpack.c.b16 %v1525, %v1523
  %v2236 = vpack.c.b16 %v1526, %v1524
  %v2237 = vpack.c.b16 %v1529, %v1527
  %v2238 = vpack.c.b16 %v1530, %v1528
  %v2239 = vpack.c.b16 %v1533, %v1531
  %v2240 = vpack.c.b16 %v1534, %v1532
  %v2241 = vpack.c.b16 %v1537, %v1535
  %v2242 = vpack.c.b16 %v1538, %v1536
  %v2243 = vpack.c.b16 %v1541, %v1539
  %v2244 = vpack.c.b16 %v1542, %v1540
  %v2245 = vpack.c.b16 %v1545, %v1543
  %v2246 = vpack.c.b16 %v1546, %v1544
  %v2247 = vpack.c.b16 %v1549, %v1547
  %v2248 = vpack.c.b16 %v1550, %v1548
  %v2249 = vpack.c.b16 %v1553, %v1551
  %v2250 = vpack.c.b16 %v1554, %v1552
  %v2251 = vpack.c.b16 %v1557, %v1555
  %v2252 = vpack.c.b16 %v1558, %v1556
  %v2253 = vpack.c.b16 %v1561, %v1559
  %v2254 = vpack.c.b16 %v1562, %v1560
  %v2255 = vpack.c.b16 %v1565, %v1563
  %v2256 = vpack.c.b16 %v1566, %v1564
  %v2257 = vpack.c.b16 %v1569, %v1567
  %v2258 = vpack.c.b16 %v1570, %v1568
  %v2259 = vpack.c.b16 %v1573, %v1571
  %v2260 = vpack.c.b16 %v1574, %v1572
  %v2261 = vpack.c.b16 %v1577, %v1575
  %v2262 = vpack.c.b16 %v1578, %v1576
  %v2263 = vpack.c.b16 %v1581, %v1579
  %v2264 = vpack.c.b16 %v1582, %v1580
  %v2265 = vpack.c.b16 %v1585, %v1583
  %v2266 = vpack.c.b16 %v1586, %v1584
  %v2267 = vpack.c.b16 %v1589, %v1587
  %v2268 = vpack.c.b16 %v1590, %v1588
  %v2269 = vpack.c.b16 %v1593, %v1591
  %v2270 = vpack.c.b16 %v1594, %v1592
  %v2271 = vpack.c.b16 %v1597, %v1595
  %v2272 = vpack.c.b16 %v1598, %v1596
  %v2273 = vpack.c.b16 %v1601, %v1599
  %v2274 = vpack.c.b16 %v1602, %v1600
  %v2275 = vpack.c.b16 %v1605, %v1603
  %v2276 = vpack.c.b16 %v1606, %v1604
  %v2277 = vpack.c.b16 %v1609, %v1607
  %v2278 = vpack.c.b16 %v1610, %v1608
  %v2279 = vpack.c.b16 %v1613, %v1611
  %v2280 = vpack.c.b16 %v1614, %v1612
  %v2281 = vpack.c.b16 %v1617, %v1615
  %v2282 = vpack.c.b16 %v1618, %v1616
  %v2283 = vpack.c.b16 %v1621, %v1619
  %v2284 = vpack.c.b16 %v1622, %v1620
  %v2285 = vpack.c.b16 %v1625, %v1623
  %v2286 = vpack.c.b16 %v1626, %v1624
  %v2287 = vpack.c.b16 %v1629, %v1627
  %v2288 = vpack.c.b16 %v1630, %v1628
  %v2289 = vpack.c.b16 %v1633, %v1631
  %v2290 = vpack.c.b16 %v1634, %v1632
  %v2291 = vpack.c.b16 %v1637, %v1635
  %v2292 = vpack.c.b16 %v1638, %v1636
  %v2293 = vpack.c.b16 %v1641, %v1639
  %v2294 = vpack.c.b16 %v1642, %v1640
  %v2295 = vpack.c.b16 %v1645, %v1643
  %v2296 = vpack.c.b16 %v1646, %v1644
  %v2297 = vpack.c.b16 %v1649, %v1647
  %v2298 = vpack.c.b16 %v1650, %v1648
  %v2299 = vpack.c.b16 %v1653, %v1651
  %v2300 = vpack.c.b16 %v1654, %v1652
  %v2301 = vpack.c.b16 %v1657, %v1655
  %v2302 = vpack.c.b16 %v1658, %v1656
  %v2303 = vpack.c.b16 %v1661, %v1659
  %v2304 = vpack.c.b16 %v1662, %v1660
  %v2305 = vpack.c.b16 %v1665, %v1663
  %v2306 = vpack.c.b16 %v1666, %v1664
  %v2307 = vpack.c.b16 %v1669, %v1667
  %v2308 = vpack.c.b16 %v1670, %v1668
  %v2309 = vpack.c.b16 %v1673, %v1671
  %v2310 = vpack.c.b16 %v1674, %v1672
  %v2311 = vpack.c.b16 %v1677, %v1675
  %v2312 = vpack.c.b16 %v1678, %v1676
  %v2313 = vpack.c.b16 %v1681, %v1679
  %v2314 = vpack.c.b16 %v1682, %v1680
  %v2315 = vpack.c.b16 %v1685, %v1683
  %v2316 = vpack.c.b16 %v1686, %v1684
  %v2317 = vpack.c.b16 %v1689, %v1687
  %v2318 = vpack.c.b16 %v1690, %v1688
  %v2319 = vpack.c.b16 %v1693, %v1691
  %v2320 = vpack.c.b16 %v1694, %v1692
  %v2321 = vpack.c.b16 %v1697, %v1695
  %v2322 = vpack.c.b16 %v1698, %v1696
  %v2323 = vpack.c.b16 %v1701, %v1699
  %v2324 = vpack.c.b16 %v1702, %v1700
  %v2325 = vpack.c.b16 %v1705, %v1703
  %v2326 = vpack.c.b16 %v1706, %v1704
  %v2327 = vpack.c.b16 %v1709, %v1707
  %v2328 = vpack.c.b16 %v1710, %v1708
  %v2329 = vpack.c.b16 %v1713, %v1711
  %v2330 = vpack.c.b16 %v1714, %v1712
  %v2331 = vpack.c.b16 %v1717, %v1715
  %v2332 = vpack.c.b16 %v1718, %v1716
  %v2333 = vpack.c.b16 %v1721, %v1719
  %v2334 = vpack.c.b16 %v1722, %v1720
  %v2335 = vpack.c.b16 %v1725, %v1723
  %v2336 = vpack.c.b16 %v1726, %v1724
  %v2337 = vpack.c.b16 %v1729, %v1727
  %v2338 = vpack.c.b16 %v1730, %v1728
  %v2339 = vpack.c.b16 %v1733, %v1731
  %v2340 = vpack.c.b16 %v1734, %v1732
  %v2341 = vpack.c.b16 %v1737, %v1735
  %v2342 = vpack.c.b16 %v1738, %v1736
  %v2343 = vpack.c.b16 %v1741, %v1739
  %v2344 = vpack.c.b16 %v1742, %v1740
  %v2345 = vpack.c.b16 %v1745, %v1743
  %v2346 = vpack.c.b16 %v1746, %v1744
  %v2347 = vpack.c.b16 %v1749, %v1747
  %v2348 = vpack.c.b16 %v1750, %v1748
  %v2349 = vpack.c.b16 %v1753, %v1751
  %v2350 = vpack.c.b16 %v1754, %v1752
  %v2351 = vpack.c.b16 %v1757, %v1755
  %v2352 = vpack.c.b16 %v1758, %v1756
  %v2353 = vpack.c.b16 %v1761, %v1759
  %v2354 = vpack.c.b16 %v1762, %v1760
  %v2355 = vpack.c.b16 %v1765, %v1763
  %v2356 = vpack.c.b16 %v1766, %v1764
  %v2357 = vpack.c.b16 %v1769, %v1767
  %v2358 = vpack.c.b16 %v1770, %v1768
  %v2359 = vpack.c.b16 %v1773, %v1771
  %v2360 = vpack.c.b16 %v1774, %v1772
  %v2361 = vpack.c.b16 %v1777, %v1775
  %v2362 = vpack.c.b16 %v1778, %v1776
  %v2363 = vpack.c.b16 %v1781, %v1779
  %v2364 = vpack.c.b16 %v1782, %v1780
  %v2365 = vpack.c.b16 %v1785, %v1783
  %v2366 = vpack.c.b16 %v1786, %v1784
  %v2367 = vpack.c.b16 %v1789, %v1787
  %v2368 = vpack.c.b16 %v1790, %v1788
  %v2369 = vpack.c.b16 %v1793, %v1791
  %v2370 = vpack.c.b16 %v1794, %v1792
  %v2371 = vpack.c.b16 %v1797, %v1795
  %v2372 = vpack.c.b16 %v1798, %v1796
  %v2373 = vpack.c.b16 %v1801, %v1799
  %v2374 = vpack.c.b16 %v1802, %v1800
  %v2375 = vpack.c.b16 %v1805, %v1803
  %v2376 = vpack.c.b16 %v1806, %v1804
  %v2377 = vpack.c.b16 %v1809, %v1807
  %v2378 = vpack.c.b16 %v1810, %v1808
  %v2379 = vpack.c.b16 %v1813, %v1811
  %v2380 = vpack.c.b16 %v1814, %v1812
  %v2381 = vpack.c.b16 %v1817, %v1815
  %v2382 = vpack.c.b16 %v1818, %v1816
  %v2383 = vpack.c.b16 %v1821, %v1819
  %v2384 = vpack.c.b16 %v1822, %v1820
  %v2385 = vpack.c.b16 %v1825, %v1823
  %v2386 = vpack.c.b16 %v1826, %v1824
  %v2387 = vpack.c.b16 %v1829, %v1827
  %v2388 = vpack.c.b16 %v1830, %v1828
  %v2389 = vpack.c.b16 %v1833, %v1831
  %v2390 = vpack.c.b16 %v1834, %v1832
  %v2391 = vpack.c.b16 %v1837, %v1835
  %v2392 = vpack.c.b16 %v1838, %v1836
  %v2393 = vpack.c.b16 %v1841, %v1839
  %v2394 = vpack.c.b16 %v1842, %v1840
  %v2395 = vpack.c.b16 %v1845, %v1843
  %v2396 = vpack.c.b16 %v1846, %v1844
  %v2397 = vpack.c.b16 %v1849, %v1847
  %v2398 = vpack.c.b16 %v1850, %v1848
  %v2399 = vpack.c.b16 %v1853, %v1851
  %v2400 = vpack.c.b16 %v1854, %v1852
  %v2401 = vpack.c.b16 %v1857, %v1855
  %v2402 = vpack.c.b16 %v1858, %v1856
  %v2403 = vpack.c.b16 %v1861, %v1859
  %v2404 = vpack.c.b16 %v1862, %v1860
  %v2405 = vpack.c.b16 %v1865, %v1863
  %v2406 = vpack.c.b16 %v1866, %v1864
  %v2407 = vpack.c.b16 %v1869, %v1867
  %v2408 = vpack.c.b16 %v1870, %v1868
  %v2409 = vpack.c.b16 %v1873, %v1871
  %v2410 = vpack.c.b16 %v1874, %v1872
  %v2411 = vpack.c.b16 %v1877, %v1875
  %v2412 = vpack.c.b16 %v1878, %v1876
  %v2413 = vpack.c.b16 %v1881, %v1879
  %v2414 = vpack.c.b16 %v1882, %v1880
  %v2415 = vpack.c.b16 %v1885, %v1883
  %v2416 = vpack.c.b16 %v1886, %v1884
  %v2417 = vpack.c.b16 %v1889, %v1887
  %v2418 = vpack.c.b16 %v1890, %v1888
  %v2419 = vpack.c.b16 %v1893, %v1891
  %v2420 = vpack.c.b16 %v1894, %v1892
  %v2421 = vpack.c.b16 %v1897, %v1895
  %v2422 = vpack.c.b16 %v1898, %v1896
  %v2423 = vpack.c.b16 %v1901, %v1899
  %v2424 = vpack.c.b16 %v1902, %v1900
  %v2425 = vpack.c.b16 %v1905, %v1903
  %v2426 = vpack.c.b16 %v1906, %v1904
  %v2427 = vpack.c.b16 %v1909, %v1907
  %v2428 = vpack.c.b16 %v1910, %v1908
  %v2429 = vpack.c.b16 %v1913, %v1911
  %v2430 = vpack.c.b16 %v1914, %v1912
  %v2431 = vpack.c.b16 %v1917, %v1915
  %v2432 = vpack.c.b16 %v1918, %v1916
  %v2433 = vpack.c.b16 %v1921, %v1919
  %v2434 = vpack.c.b16 %v1922, %v1920
  %v2435 = vpack.c.b16 %v1925, %v1923
  %v2436 = vpack.c.b16 %v1926, %v1924
  %v2437 = vpack.c.b16 %v1929, %v1927
  %v2438 = vpack.c.b16 %v1930, %v1928
  %v2439 = vpack.c.b16 %v1933, %v1931
  %v2440 = vpack.c.b16 %v1934, %v1932
  %v2441 = vpack.c.b16 %v1937, %v1935
  %v2442 = vpack.c.b16 %v1938, %v1936
  %v2443 = vpack.c.b16 %v1941, %v1939
  %v2444 = vpack.c.b16 %v1942, %v1940
  %v2445 = vpack.c.b16 %v1945, %v1943
  %v2446 = vpack.c.b16 %v1946, %v1944
  %v2447 = vpack.c.b16 %v1949, %v1947
  %v2448 = vpack.c.b16 %v1950, %v1948
  %v2449 = vpack.c.b16 %v1953, %v1951
  %v2450 = vpack.c.b16 %v1954, %v1952
  %v2451 = vpack.c.b16 %v1957, %v1955
  %v2452 = vpack.c.b16 %v1958, %v1956
  %v2453 = vpack.c.b16 %v1961, %v1959
  %v2454 = vpack.c.b16 %v1962, %v1960
  %v2455 = vpack.c.b16 %v1965, %v1963
  %v2456 = vpack.c.b16 %v1966, %v1964
  %v2457 = vpack.c.b16 %v1969, %v1967
  %v2458 = vpack.c.b16 %v1970, %v1968
  %v2459 = vpack.c.b16 %v1973, %v1971
  %v2460 = vpack.c.b16 %v1974, %v1972
  %v2461 = vpack.c.b16 %v1977, %v1975
  %v2462 = vpack.c.b16 %v1978, %v1976
  %v2463 = vpack.c.b16 %v1981, %v1979
  %v2464 = vpack.c.b16 %v1982, %v1980
  %v2465 = vpack.c.b16 %v1985, %v1983
  %v2466 = vpack.c.b16 %v1986, %v1984
  %v2467 = vpack.c.b16 %v1989, %v1987
  %v2468 = vpack.c.b16 %v1990, %v1988
  %v2469 = vpack.c.b16 %v1993, %v1991
  %v2470 = vpack.c.b16 %v1994, %v1992
  %v2471 = vpack.c.b16 %v1997, %v1995
  %v2472 = vpack.c.b16 %v1998, %v1996
  %v2473 = vpack.c.b16 %v2001, %v1999
  %v2474 = vpack.c.b16 %v2002, %v2000
  %v2475 = vpack.c.b16 %v2005, %v2003
  %v2476 = vpack.c.b16 %v2006, %v2004
  %v2477 = vpack.c.b16 %v2009, %v2007
  %v2478 = vpack.c.b16 %v2010, %v2008
  %v2479 = vpack.c.b16 %v2013, %v2011
  %v2480 = vpack.c.b16 %v2014, %v2012
  %v2481 = vpack.c.b16 %v2017, %v2015
  %v2482 = vpack.c.b16 %v2018, %v2016
  %v2483 = vpack.c.b16 %v2021, %v2019
  %v2484 = vpack.c.b16 %v2022, %v2020
  %v2485 = vpack.c.b16 %v2025, %v2023
  %v2486 = vpack.c.b16 %v2026, %v2024
  %v2487 = vpack.c.b16 %v2029, %v2027
  %v2488 = vpack.c.b16 %v2030, %v2028
  %v2489 = vpack.c.b16 %v2033, %v2031
  %v2490 = vpack.c.b16 %v2034, %v2032
  %v2491 = vpack.c.b16 %v2037, %v2035
  %v2492 = vpack.c.b16 %v2038, %v2036
  %v2493 = vpack.c.b16 %v2041, %v2039
  %v2494 = vpack.c.b16 %v2042, %v2040
  %v2495 = vpack.c.b16 %v2045, %v2043
  %v2496 = vpack.c.b16 %v2046, %v2044
  %v2497 = vpack.c.b16 %v2049, %v2047
  %v2498 = vpack.c.b16 %v2050, %v2048
  %v2499 = vpack.c.b16 %v2053, %v2051
  %v2500 = vpack.c.b16 %v2054, %v2052
  %v2501 = vpack.c.b16 %v2057, %v2055
  %v2502 = vpack.c.b16 %v2058, %v2056
  %v2503 = vpack.c.b16 %v2061, %v2059
  %v2504 = vpack.c.b16 %v2062, %v2060
  %v2505 = vpack.c.b16 %v2065, %v2063
  %v2506 = vpack.c.b16 %v2066, %v2064
  %v2507 = vpack.c.b16 %v2069, %v2067
  %v2508 = vpack.c.b16 %v2070, %v2068
  %v2509 = vpack.c.b16 %v2073, %v2071
  %v2510 = vpack.c.b16 %v2074, %v2072
  %v2511 = vpack.c.b16 %v2077, %v2075
  %v2512 = vpack.c.b16 %v2078, %v2076
  %v2513 = vpack.c.b16 %v2081, %v2079
  %v2514 = vpack.c.b16 %v2082, %v2080
  %2947 = vmatprep.subr.bf16.mxu0 %v2098
  %2948 = vmatpush1.bf16.msra.mxu0 %v2097
  %2949 = vmatprep.subr.bf16.mxu0 %v2096
  %2950 = vmatpush1.bf16.msra.mxu0 %v2095
  %2951 = vmatprep.subr.bf16.mxu0 %v2094
  %2952 = vmatpush1.bf16.msra.mxu0 %v2093
  %2953 = vmatprep.subr.bf16.mxu0 %v2092
  %2954 = vmatpush1.bf16.msra.mxu0 %v2091
  %2955 = vmatprep.subr.bf16.mxu0 %v2090
  %2956 = vmatpush1.bf16.msra.mxu0 %v2089
  %2957 = vmatprep.subr.bf16.mxu0 %v2088
  %2958 = vmatpush1.bf16.msra.mxu0 %v2087
  %2959 = vmatprep.subr.bf16.mxu0 %v2086
  %2960 = vmatpush1.bf16.msra.mxu0 %v2085
  %2961 = vmatprep.subr.bf16.mxu0 %v2084
  %2962 = vmatpush1.bf16.msra.mxu0 %v2083
  %2963 = vmatprep.subr.bf16.mxu0 %v2114
  %2964 = vmatpush2.bf16.msra.mxu0 %v2113
  %2965 = vmatprep.subr.bf16.mxu0 %v2112
  %2966 = vmatpush2.bf16.msra.mxu0 %v2111
  %2967 = vmatprep.subr.bf16.mxu0 %v2110
  %2968 = vmatpush2.bf16.msra.mxu0 %v2109
  %2969 = vmatprep.subr.bf16.mxu0 %v2108
  %2970 = vmatpush2.bf16.msra.mxu0 %v2107
  %2971 = vmatprep.subr.bf16.mxu0 %v2106
  %2972 = vmatpush2.bf16.msra.mxu0 %v2105
  %2973 = vmatprep.subr.bf16.mxu0 %v2104
  %2974 = vmatpush2.bf16.msra.mxu0 %v2103
  %2975 = vmatprep.subr.bf16.mxu0 %v2102
  %2976 = vmatpush2.bf16.msra.mxu0 %v2101
  %2977 = vmatprep.subr.bf16.mxu0 %v2100
  %2978 = vmatpush2.bf16.msra.mxu0 %v2099
  %2979 = vmatprep.mubr.bf16.mxu0 %v680
  %2980 = vmatmul.mubr.bf16.gmra.mxu0 %v679
  %v2981 = vpop.f32.mrf.mxu0
  %v2982 = vadd.f32 %v508, %v2981
  %v2983 = vpop.f32.mrf.mxu0
  %v2984 = vadd.f32 %v512, %v2983
  %v2985 = vpop.f32.mrf.mxu0
  %v2986 = vadd.f32 %v508, %v2985
  %v2987 = vpop.f32.mrf.mxu0
  %v2988 = vadd.f32 %v512, %v2987
  %2989 = vmatprep.mubr.bf16.mxu0 %v707
  %2990 = vmatmul.mubr.bf16.gmra.mxu0 %v706
  %v2991 = vpop.f32.mrf.mxu0
  %v2992 = vadd.f32 %v508, %v2991
  %v2993 = vpop.f32.mrf.mxu0
  %v2994 = vadd.f32 %v512, %v2993
  %v2995 = vpop.f32.mrf.mxu0
  %v2996 = vadd.f32 %v508, %v2995
  %v2997 = vpop.f32.mrf.mxu0
  %v2998 = vadd.f32 %v512, %v2997
  %2999 = vdwg.mxu0
  %3000 = vmatprep.subr.bf16.mxu0 %v2130
  %3001 = vmatpush1.bf16.msra.mxu0 %v2129
  %3002 = vmatprep.subr.bf16.mxu0 %v2128
  %3003 = vmatpush1.bf16.msra.mxu0 %v2127
  %3004 = vmatprep.subr.bf16.mxu0 %v2126
  %3005 = vmatpush1.bf16.msra.mxu0 %v2125
  %3006 = vmatprep.subr.bf16.mxu0 %v2124
  %3007 = vmatpush1.bf16.msra.mxu0 %v2123
  %3008 = vmatprep.subr.bf16.mxu0 %v2122
  %3009 = vmatpush1.bf16.msra.mxu0 %v2121
  %3010 = vmatprep.subr.bf16.mxu0 %v2120
  %3011 = vmatpush1.bf16.msra.mxu0 %v2119
  %3012 = vmatprep.subr.bf16.mxu0 %v2118
  %3013 = vmatpush1.bf16.msra.mxu0 %v2117
  %3014 = vmatprep.subr.bf16.mxu0 %v2116
  %3015 = vmatpush1.bf16.msra.mxu0 %v2115
  %3016 = vmatprep.subr.bf16.mxu0 %v2146
  %3017 = vmatpush2.bf16.msra.mxu0 %v2145
  %3018 = vmatprep.subr.bf16.mxu0 %v2144
  %3019 = vmatpush2.bf16.msra.mxu0 %v2143
  %3020 = vmatprep.subr.bf16.mxu0 %v2142
  %3021 = vmatpush2.bf16.msra.mxu0 %v2141
  %3022 = vmatprep.subr.bf16.mxu0 %v2140
  %3023 = vmatpush2.bf16.msra.mxu0 %v2139
  %3024 = vmatprep.subr.bf16.mxu0 %v2138
  %3025 = vmatpush2.bf16.msra.mxu0 %v2137
  %3026 = vmatprep.subr.bf16.mxu0 %v2136
  %3027 = vmatpush2.bf16.msra.mxu0 %v2135
  %3028 = vmatprep.subr.bf16.mxu0 %v2134
  %3029 = vmatpush2.bf16.msra.mxu0 %v2133
  %3030 = vmatprep.subr.bf16.mxu0 %v2132
  %3031 = vmatpush2.bf16.msra.mxu0 %v2131
  %3032 = vmatprep.mubr.bf16.mxu0 %v682
  %3033 = vmatmul.mubr.bf16.gmra.mxu0 %v681
  %v3034 = vpop.f32.mrf.mxu0
  %v3035 = vadd.f32 %v2982, %v3034
  %v3036 = vpop.f32.mrf.mxu0
  %v3037 = vadd.f32 %v2984, %v3036
  %v3038 = vpop.f32.mrf.mxu0
  %v3039 = vadd.f32 %v2986, %v3038
  %v3040 = vpop.f32.mrf.mxu0
  %v3041 = vadd.f32 %v2988, %v3040
  %3042 = vmatprep.mubr.bf16.mxu0 %v709
  %3043 = vmatmul.mubr.bf16.gmra.mxu0 %v708
  %v3044 = vpop.f32.mrf.mxu0
  %v3045 = vadd.f32 %v2992, %v3044
  %v3046 = vpop.f32.mrf.mxu0
  %v3047 = vadd.f32 %v2994, %v3046
  %v3048 = vpop.f32.mrf.mxu0
  %v3049 = vadd.f32 %v2996, %v3048
  %v3050 = vpop.f32.mrf.mxu0
  %v3051 = vadd.f32 %v2998, %v3050
  %3052 = vdwg.mxu0
  %3053 = vmatprep.subr.bf16.mxu0 %v2162
  %3054 = vmatpush1.bf16.msra.mxu0 %v2161
  %3055 = vmatprep.subr.bf16.mxu0 %v2160
  %3056 = vmatpush1.bf16.msra.mxu0 %v2159
  %3057 = vmatprep.subr.bf16.mxu0 %v2158
  %3058 = vmatpush1.bf16.msra.mxu0 %v2157
  %3059 = vmatprep.subr.bf16.mxu0 %v2156
  %3060 = vmatpush1.bf16.msra.mxu0 %v2155
  %3061 = vmatprep.subr.bf16.mxu0 %v2154
  %3062 = vmatpush1.bf16.msra.mxu0 %v2153
  %3063 = vmatprep.subr.bf16.mxu0 %v2152
  %3064 = vmatpush1.bf16.msra.mxu0 %v2151
  %3065 = vmatprep.subr.bf16.mxu0 %v2150
  %3066 = vmatpush1.bf16.msra.mxu0 %v2149
  %3067 = vmatprep.subr.bf16.mxu0 %v2148
  %3068 = vmatpush1.bf16.msra.mxu0 %v2147
  %3069 = vmatprep.subr.bf16.mxu0 %v2178
  %3070 = vmatpush2.bf16.msra.mxu0 %v2177
  %3071 = vmatprep.subr.bf16.mxu0 %v2176
  %3072 = vmatpush2.bf16.msra.mxu0 %v2175
  %3073 = vmatprep.subr.bf16.mxu0 %v2174
  %3074 = vmatpush2.bf16.msra.mxu0 %v2173
  %3075 = vmatprep.subr.bf16.mxu0 %v2172
  %3076 = vmatpush2.bf16.msra.mxu0 %v2171
  %3077 = vmatprep.subr.bf16.mxu0 %v2170
  %3078 = vmatpush2.bf16.msra.mxu0 %v2169
  %3079 = vmatprep.subr.bf16.mxu0 %v2168
  %3080 = vmatpush2.bf16.msra.mxu0 %v2167
  %3081 = vmatprep.subr.bf16.mxu0 %v2166
  %3082 = vmatpush2.bf16.msra.mxu0 %v2165
  %3083 = vmatprep.subr.bf16.mxu0 %v2164
  %3084 = vmatpush2.bf16.msra.mxu0 %v2163
  %3085 = vmatprep.mubr.bf16.mxu0 %v684
  %3086 = vmatmul.mubr.bf16.gmra.mxu0 %v683
  %v3087 = vpop.f32.mrf.mxu0
  %v3088 = vadd.f32 %v3035, %v3087
  %v3089 = vpop.f32.mrf.mxu0
  %v3090 = vadd.f32 %v3037, %v3089
  %v3091 = vpop.f32.mrf.mxu0
  %v3092 = vadd.f32 %v3039, %v3091
  %v3093 = vpop.f32.mrf.mxu0
  %v3094 = vadd.f32 %v3041, %v3093
  %3095 = vmatprep.mubr.bf16.mxu0 %v711
  %3096 = vmatmul.mubr.bf16.gmra.mxu0 %v710
  %v3097 = vpop.f32.mrf.mxu0
  %v3098 = vadd.f32 %v3045, %v3097
  %v3099 = vpop.f32.mrf.mxu0
  %v3100 = vadd.f32 %v3047, %v3099
  %v3101 = vpop.f32.mrf.mxu0
  %v3102 = vadd.f32 %v3049, %v3101
  %v3103 = vpop.f32.mrf.mxu0
  %v3104 = vadd.f32 %v3051, %v3103
  %3105 = vdwg.mxu0
  %3106 = vmatprep.subr.bf16.mxu0 %v2194
  %3107 = vmatpush1.bf16.msra.mxu0 %v2193
  %3108 = vmatprep.subr.bf16.mxu0 %v2192
  %3109 = vmatpush1.bf16.msra.mxu0 %v2191
  %3110 = vmatprep.subr.bf16.mxu0 %v2190
  %3111 = vmatpush1.bf16.msra.mxu0 %v2189
  %3112 = vmatprep.subr.bf16.mxu0 %v2188
  %3113 = vmatpush1.bf16.msra.mxu0 %v2187
  %3114 = vmatprep.subr.bf16.mxu0 %v2186
  %3115 = vmatpush1.bf16.msra.mxu0 %v2185
  %3116 = vmatprep.subr.bf16.mxu0 %v2184
  %3117 = vmatpush1.bf16.msra.mxu0 %v2183
  %3118 = vmatprep.subr.bf16.mxu0 %v2182
  %3119 = vmatpush1.bf16.msra.mxu0 %v2181
  %3120 = vmatprep.subr.bf16.mxu0 %v2180
  %3121 = vmatpush1.bf16.msra.mxu0 %v2179
  %3122 = vmatprep.subr.bf16.mxu0 %v2210
  %3123 = vmatpush2.bf16.msra.mxu0 %v2209
  %3124 = vmatprep.subr.bf16.mxu0 %v2208
  %3125 = vmatpush2.bf16.msra.mxu0 %v2207
  %3126 = vmatprep.subr.bf16.mxu0 %v2206
  %3127 = vmatpush2.bf16.msra.mxu0 %v2205
  %3128 = vmatprep.subr.bf16.mxu0 %v2204
  %3129 = vmatpush2.bf16.msra.mxu0 %v2203
  %3130 = vmatprep.subr.bf16.mxu0 %v2202
  %3131 = vmatpush2.bf16.msra.mxu0 %v2201
  %3132 = vmatprep.subr.bf16.mxu0 %v2200
  %3133 = vmatpush2.bf16.msra.mxu0 %v2199
  %3134 = vmatprep.subr.bf16.mxu0 %v2198
  %3135 = vmatpush2.bf16.msra.mxu0 %v2197
  %3136 = vmatprep.subr.bf16.mxu0 %v2196
  %3137 = vmatpush2.bf16.msra.mxu0 %v2195
  %3138 = vmatprep.mubr.bf16.mxu0 %v686
  %3139 = vmatmul.mubr.bf16.gmra.mxu0 %v685
  %v3140 = vpop.f32.mrf.mxu0
  %v3141 = vadd.f32 %v3088, %v3140
  %v3142 = vpop.f32.mrf.mxu0
  %v3143 = vadd.f32 %v3090, %v3142
  %v3144 = vpop.f32.mrf.mxu0
  %v3145 = vadd.f32 %v3092, %v3144
  %v3146 = vpop.f32.mrf.mxu0
  %v3147 = vadd.f32 %v3094, %v3146
  %3148 = vmatprep.mubr.bf16.mxu0 %v713
  %3149 = vmatmul.mubr.bf16.gmra.mxu0 %v712
  %v3150 = vpop.f32.mrf.mxu0
  %v3151 = vadd.f32 %v3098, %v3150
  %v3152 = vpop.f32.mrf.mxu0
  %v3153 = vadd.f32 %v3100, %v3152
  %v3154 = vpop.f32.mrf.mxu0
  %v3155 = vadd.f32 %v3102, %v3154
  %v3156 = vpop.f32.mrf.mxu0
  %v3157 = vadd.f32 %v3104, %v3156
  %3158 = vdwg.mxu0
  %3159 = vmatprep.subr.bf16.mxu0 %v2226
  %3160 = vmatpush1.bf16.msra.mxu0 %v2225
  %3161 = vmatprep.subr.bf16.mxu0 %v2224
  %3162 = vmatpush1.bf16.msra.mxu0 %v2223
  %3163 = vmatprep.subr.bf16.mxu0 %v2222
  %3164 = vmatpush1.bf16.msra.mxu0 %v2221
  %3165 = vmatprep.subr.bf16.mxu0 %v2220
  %3166 = vmatpush1.bf16.msra.mxu0 %v2219
  %3167 = vmatprep.subr.bf16.mxu0 %v2218
  %3168 = vmatpush1.bf16.msra.mxu0 %v2217
  %3169 = vmatprep.subr.bf16.mxu0 %v2216
  %3170 = vmatpush1.bf16.msra.mxu0 %v2215
  %3171 = vmatprep.subr.bf16.mxu0 %v2214
  %3172 = vmatpush1.bf16.msra.mxu0 %v2213
  %3173 = vmatprep.subr.bf16.mxu0 %v2212
  %3174 = vmatpush1.bf16.msra.mxu0 %v2211
  %3175 = vmatprep.subr.bf16.mxu0 %v2242
  %3176 = vmatpush2.bf16.msra.mxu0 %v2241
  %3177 = vmatprep.subr.bf16.mxu0 %v2240
  %3178 = vmatpush2.bf16.msra.mxu0 %v2239
  %3179 = vmatprep.subr.bf16.mxu0 %v2238
  %3180 = vmatpush2.bf16.msra.mxu0 %v2237
  %3181 = vmatprep.subr.bf16.mxu0 %v2236
  %3182 = vmatpush2.bf16.msra.mxu0 %v2235
  %3183 = vmatprep.subr.bf16.mxu0 %v2234
  %3184 = vmatpush2.bf16.msra.mxu0 %v2233
  %3185 = vmatprep.subr.bf16.mxu0 %v2232
  %3186 = vmatpush2.bf16.msra.mxu0 %v2231
  %3187 = vmatprep.subr.bf16.mxu0 %v2230
  %3188 = vmatpush2.bf16.msra.mxu0 %v2229
  %3189 = vmatprep.subr.bf16.mxu0 %v2228
  %3190 = vmatpush2.bf16.msra.mxu0 %v2227
  %3191 = vmatprep.mubr.bf16.mxu0 %v688
  %3192 = vmatmul.mubr.bf16.gmra.mxu0 %v687
  %v3193 = vpop.f32.mrf.mxu0
  %v3194 = vadd.f32 %v3141, %v3193
  %v3195 = vpop.f32.mrf.mxu0
  %v3196 = vadd.f32 %v3143, %v3195
  %v3197 = vpop.f32.mrf.mxu0
  %v3198 = vadd.f32 %v3145, %v3197
  %v3199 = vpop.f32.mrf.mxu0
  %v3200 = vadd.f32 %v3147, %v3199
  %3201 = vmatprep.mubr.bf16.mxu0 %v715
  %3202 = vmatmul.mubr.bf16.gmra.mxu0 %v714
  %v3203 = vpop.f32.mrf.mxu0
  %v3204 = vadd.f32 %v3151, %v3203
  %v3205 = vpop.f32.mrf.mxu0
  %v3206 = vadd.f32 %v3153, %v3205
  %v3207 = vpop.f32.mrf.mxu0
  %v3208 = vadd.f32 %v3155, %v3207
  %v3209 = vpop.f32.mrf.mxu0
  %v3210 = vadd.f32 %v3157, %v3209
  %3211 = vdwg.mxu0
  %3212 = vmatprep.subr.bf16.mxu0 %v2258
  %3213 = vmatpush1.bf16.msra.mxu0 %v2257
  %3214 = vmatprep.subr.bf16.mxu0 %v2256
  %3215 = vmatpush1.bf16.msra.mxu0 %v2255
  %3216 = vmatprep.subr.bf16.mxu0 %v2254
  %3217 = vmatpush1.bf16.msra.mxu0 %v2253
  %3218 = vmatprep.subr.bf16.mxu0 %v2252
  %3219 = vmatpush1.bf16.msra.mxu0 %v2251
  %3220 = vmatprep.subr.bf16.mxu0 %v2250
  %3221 = vmatpush1.bf16.msra.mxu0 %v2249
  %3222 = vmatprep.subr.bf16.mxu0 %v2248
  %3223 = vmatpush1.bf16.msra.mxu0 %v2247
  %3224 = vmatprep.subr.bf16.mxu0 %v2246
  %3225 = vmatpush1.bf16.msra.mxu0 %v2245
  %3226 = vmatprep.subr.bf16.mxu0 %v2244
  %3227 = vmatpush1.bf16.msra.mxu0 %v2243
  %3228 = vmatprep.subr.bf16.mxu0 %v2274
  %3229 = vmatpush2.bf16.msra.mxu0 %v2273
  %3230 = vmatprep.subr.bf16.mxu0 %v2272
  %3231 = vmatpush2.bf16.msra.mxu0 %v2271
  %3232 = vmatprep.subr.bf16.mxu0 %v2270
  %3233 = vmatpush2.bf16.msra.mxu0 %v2269
  %3234 = vmatprep.subr.bf16.mxu0 %v2268
  %3235 = vmatpush2.bf16.msra.mxu0 %v2267
  %3236 = vmatprep.subr.bf16.mxu0 %v2266
  %3237 = vmatpush2.bf16.msra.mxu0 %v2265
  %3238 = vmatprep.subr.bf16.mxu0 %v2264
  %3239 = vmatpush2.bf16.msra.mxu0 %v2263
  %3240 = vmatprep.subr.bf16.mxu0 %v2262
  %3241 = vmatpush2.bf16.msra.mxu0 %v2261
  %3242 = vmatprep.subr.bf16.mxu0 %v2260
  %3243 = vmatpush2.bf16.msra.mxu0 %v2259
  %3244 = vmatprep.mubr.bf16.mxu0 %v690
  %3245 = vmatmul.mubr.bf16.gmra.mxu0 %v689
  %v3246 = vpop.f32.mrf.mxu0
  %v3247 = vadd.f32 %v3194, %v3246
  %v3248 = vpop.f32.mrf.mxu0
  %v3249 = vadd.f32 %v3196, %v3248
  %v3250 = vpop.f32.mrf.mxu0
  %v3251 = vadd.f32 %v3198, %v3250
  %v3252 = vpop.f32.mrf.mxu0
  %v3253 = vadd.f32 %v3200, %v3252
  %3254 = vmatprep.mubr.bf16.mxu0 %v717
  %3255 = vmatmul.mubr.bf16.gmra.mxu0 %v716
  %v3256 = vpop.f32.mrf.mxu0
  %v3257 = vadd.f32 %v3204, %v3256
  %v3258 = vpop.f32.mrf.mxu0
  %v3259 = vadd.f32 %v3206, %v3258
  %v3260 = vpop.f32.mrf.mxu0
  %v3261 = vadd.f32 %v3208, %v3260
  %v3262 = vpop.f32.mrf.mxu0
  %v3263 = vadd.f32 %v3210, %v3262
  %3264 = vdwg.mxu0
  %3265 = vmatprep.subr.bf16.mxu0 %v2290
  %3266 = vmatpush1.bf16.msra.mxu0 %v2289
  %3267 = vmatprep.subr.bf16.mxu0 %v2288
  %3268 = vmatpush1.bf16.msra.mxu0 %v2287
  %3269 = vmatprep.subr.bf16.mxu0 %v2286
  %3270 = vmatpush1.bf16.msra.mxu0 %v2285
  %3271 = vmatprep.subr.bf16.mxu0 %v2284
  %3272 = vmatpush1.bf16.msra.mxu0 %v2283
  %3273 = vmatprep.subr.bf16.mxu0 %v2282
  %3274 = vmatpush1.bf16.msra.mxu0 %v2281
  %3275 = vmatprep.subr.bf16.mxu0 %v2280
  %3276 = vmatpush1.bf16.msra.mxu0 %v2279
  %3277 = vmatprep.subr.bf16.mxu0 %v2278
  %3278 = vmatpush1.bf16.msra.mxu0 %v2277
  %3279 = vmatprep.subr.bf16.mxu0 %v2276
  %3280 = vmatpush1.bf16.msra.mxu0 %v2275
  %3281 = vmatprep.subr.bf16.mxu0 %v2306
  %3282 = vmatpush2.bf16.msra.mxu0 %v2305
  %3283 = vmatprep.subr.bf16.mxu0 %v2304
  %3284 = vmatpush2.bf16.msra.mxu0 %v2303
  %3285 = vmatprep.subr.bf16.mxu0 %v2302
  %3286 = vmatpush2.bf16.msra.mxu0 %v2301
  %3287 = vmatprep.subr.bf16.mxu0 %v2300
  %3288 = vmatpush2.bf16.msra.mxu0 %v2299
  %3289 = vmatprep.subr.bf16.mxu0 %v2298
  %3290 = vmatpush2.bf16.msra.mxu0 %v2297
  %3291 = vmatprep.subr.bf16.mxu0 %v2296
  %3292 = vmatpush2.bf16.msra.mxu0 %v2295
  %3293 = vmatprep.subr.bf16.mxu0 %v2294
  %3294 = vmatpush2.bf16.msra.mxu0 %v2293
  %3295 = vmatprep.subr.bf16.mxu0 %v2292
  %3296 = vmatpush2.bf16.msra.mxu0 %v2291
  %3297 = vmatprep.mubr.bf16.mxu0 %v692
  %3298 = vmatmul.mubr.bf16.gmra.mxu0 %v691
  %v3299 = vpop.f32.mrf.mxu0
  %v3300 = vadd.f32 %v3247, %v3299
  %v3301 = vpop.f32.mrf.mxu0
  %v3302 = vadd.f32 %v3249, %v3301
  %v3303 = vpop.f32.mrf.mxu0
  %v3304 = vadd.f32 %v3251, %v3303
  %v3305 = vpop.f32.mrf.mxu0
  %v3306 = vadd.f32 %v3253, %v3305
  %3307 = vmatprep.mubr.bf16.mxu0 %v719
  %3308 = vmatmul.mubr.bf16.gmra.mxu0 %v718
  %v3309 = vpop.f32.mrf.mxu0
  %v3310 = vadd.f32 %v3257, %v3309
  %v3311 = vpop.f32.mrf.mxu0
  %v3312 = vadd.f32 %v3259, %v3311
  %v3313 = vpop.f32.mrf.mxu0
  %v3314 = vadd.f32 %v3261, %v3313
  %v3315 = vpop.f32.mrf.mxu0
  %v3316 = vadd.f32 %v3263, %v3315
  %3317 = vdwg.mxu0
  %3318 = vmatprep.subr.bf16.mxu0 %v2322
  %3319 = vmatpush1.bf16.msra.mxu0 %v2321
  %3320 = vmatprep.subr.bf16.mxu0 %v2320
  %3321 = vmatpush1.bf16.msra.mxu0 %v2319
  %3322 = vmatprep.subr.bf16.mxu0 %v2318
  %3323 = vmatpush1.bf16.msra.mxu0 %v2317
  %3324 = vmatprep.subr.bf16.mxu0 %v2316
  %3325 = vmatpush1.bf16.msra.mxu0 %v2315
  %3326 = vmatprep.subr.bf16.mxu0 %v2314
  %3327 = vmatpush1.bf16.msra.mxu0 %v2313
  %3328 = vmatprep.subr.bf16.mxu0 %v2312
  %3329 = vmatpush1.bf16.msra.mxu0 %v2311
  %3330 = vmatprep.subr.bf16.mxu0 %v2310
  %3331 = vmatpush1.bf16.msra.mxu0 %v2309
  %3332 = vmatprep.subr.bf16.mxu0 %v2308
  %3333 = vmatpush1.bf16.msra.mxu0 %v2307
  %3334 = vmatprep.subr.bf16.mxu0 %v2338
  %3335 = vmatpush2.bf16.msra.mxu0 %v2337
  %3336 = vmatprep.subr.bf16.mxu0 %v2336
  %3337 = vmatpush2.bf16.msra.mxu0 %v2335
  %3338 = vmatprep.subr.bf16.mxu0 %v2334
  %3339 = vmatpush2.bf16.msra.mxu0 %v2333
  %3340 = vmatprep.subr.bf16.mxu0 %v2332
  %3341 = vmatpush2.bf16.msra.mxu0 %v2331
  %3342 = vmatprep.subr.bf16.mxu0 %v2330
  %3343 = vmatpush2.bf16.msra.mxu0 %v2329
  %3344 = vmatprep.subr.bf16.mxu0 %v2328
  %3345 = vmatpush2.bf16.msra.mxu0 %v2327
  %3346 = vmatprep.subr.bf16.mxu0 %v2326
  %3347 = vmatpush2.bf16.msra.mxu0 %v2325
  %3348 = vmatprep.subr.bf16.mxu0 %v2324
  %3349 = vmatpush2.bf16.msra.mxu0 %v2323
  %3350 = vmatprep.mubr.bf16.mxu0 %v694
  %3351 = vmatmul.mubr.bf16.gmra.mxu0 %v693
  %v3352 = vpop.f32.mrf.mxu0
  %v3353 = vadd.f32 %v3300, %v3352
  %v3354 = vpop.f32.mrf.mxu0
  %v3355 = vadd.f32 %v3302, %v3354
  %v3356 = vpop.f32.mrf.mxu0
  %v3357 = vadd.f32 %v3304, %v3356
  %v3358 = vpop.f32.mrf.mxu0
  %v3359 = vadd.f32 %v3306, %v3358
  %3360 = vmatprep.mubr.bf16.mxu0 %v721
  %3361 = vmatmul.mubr.bf16.gmra.mxu0 %v720
  %v3362 = vpop.f32.mrf.mxu0
  %v3363 = vadd.f32 %v3310, %v3362
  %v3364 = vpop.f32.mrf.mxu0
  %v3365 = vadd.f32 %v3312, %v3364
  %v3366 = vpop.f32.mrf.mxu0
  %v3367 = vadd.f32 %v3314, %v3366
  %v3368 = vpop.f32.mrf.mxu0
  %v3369 = vadd.f32 %v3316, %v3368
  %3370 = vdwg.mxu0
  %3371 = vmatprep.subr.bf16.mxu0 %v2354
  %3372 = vmatpush1.bf16.msra.mxu0 %v2353
  %3373 = vmatprep.subr.bf16.mxu0 %v2352
  %3374 = vmatpush1.bf16.msra.mxu0 %v2351
  %3375 = vmatprep.subr.bf16.mxu0 %v2350
  %3376 = vmatpush1.bf16.msra.mxu0 %v2349
  %3377 = vmatprep.subr.bf16.mxu0 %v2348
  %3378 = vmatpush1.bf16.msra.mxu0 %v2347
  %3379 = vmatprep.subr.bf16.mxu0 %v2346
  %3380 = vmatpush1.bf16.msra.mxu0 %v2345
  %3381 = vmatprep.subr.bf16.mxu0 %v2344
  %3382 = vmatpush1.bf16.msra.mxu0 %v2343
  %3383 = vmatprep.subr.bf16.mxu0 %v2342
  %3384 = vmatpush1.bf16.msra.mxu0 %v2341
  %3385 = vmatprep.subr.bf16.mxu0 %v2340
  %3386 = vmatpush1.bf16.msra.mxu0 %v2339
  %3387 = vmatprep.subr.bf16.mxu0 %v2370
  %3388 = vmatpush2.bf16.msra.mxu0 %v2369
  %3389 = vmatprep.subr.bf16.mxu0 %v2368
  %3390 = vmatpush2.bf16.msra.mxu0 %v2367
  %3391 = vmatprep.subr.bf16.mxu0 %v2366
  %3392 = vmatpush2.bf16.msra.mxu0 %v2365
  %3393 = vmatprep.subr.bf16.mxu0 %v2364
  %3394 = vmatpush2.bf16.msra.mxu0 %v2363
  %3395 = vmatprep.subr.bf16.mxu0 %v2362
  %3396 = vmatpush2.bf16.msra.mxu0 %v2361
  %3397 = vmatprep.subr.bf16.mxu0 %v2360
  %3398 = vmatpush2.bf16.msra.mxu0 %v2359
  %3399 = vmatprep.subr.bf16.mxu0 %v2358
  %3400 = vmatpush2.bf16.msra.mxu0 %v2357
  %3401 = vmatprep.subr.bf16.mxu0 %v2356
  %3402 = vmatpush2.bf16.msra.mxu0 %v2355
  %3403 = vmatprep.mubr.bf16.mxu0 %v696
  %3404 = vmatmul.mubr.bf16.gmra.mxu0 %v695
  %v3405 = vpop.f32.mrf.mxu0
  %v3406 = vadd.f32 %v3353, %v3405
  %v3407 = vpop.f32.mrf.mxu0
  %v3408 = vadd.f32 %v3355, %v3407
  %v3409 = vpop.f32.mrf.mxu0
  %v3410 = vadd.f32 %v3357, %v3409
  %v3411 = vpop.f32.mrf.mxu0
  %v3412 = vadd.f32 %v3359, %v3411
  %3413 = vmatprep.mubr.bf16.mxu0 %v723
  %3414 = vmatmul.mubr.bf16.gmra.mxu0 %v722
  %v3415 = vpop.f32.mrf.mxu0
  %v3416 = vadd.f32 %v3363, %v3415
  %v3417 = vpop.f32.mrf.mxu0
  %v3418 = vadd.f32 %v3365, %v3417
  %v3419 = vpop.f32.mrf.mxu0
  %v3420 = vadd.f32 %v3367, %v3419
  %v3421 = vpop.f32.mrf.mxu0
  %v3422 = vadd.f32 %v3369, %v3421
  %3423 = vdwg.mxu0
  %3424 = vmatprep.subr.bf16.mxu0 %v2386
  %3425 = vmatpush1.bf16.msra.mxu0 %v2385
  %3426 = vmatprep.subr.bf16.mxu0 %v2384
  %3427 = vmatpush1.bf16.msra.mxu0 %v2383
  %3428 = vmatprep.subr.bf16.mxu0 %v2382
  %3429 = vmatpush1.bf16.msra.mxu0 %v2381
  %3430 = vmatprep.subr.bf16.mxu0 %v2380
  %3431 = vmatpush1.bf16.msra.mxu0 %v2379
  %3432 = vmatprep.subr.bf16.mxu0 %v2378
  %3433 = vmatpush1.bf16.msra.mxu0 %v2377
  %3434 = vmatprep.subr.bf16.mxu0 %v2376
  %3435 = vmatpush1.bf16.msra.mxu0 %v2375
  %3436 = vmatprep.subr.bf16.mxu0 %v2374
  %3437 = vmatpush1.bf16.msra.mxu0 %v2373
  %3438 = vmatprep.subr.bf16.mxu0 %v2372
  %3439 = vmatpush1.bf16.msra.mxu0 %v2371
  %3440 = vmatprep.subr.bf16.mxu0 %v2402
  %3441 = vmatpush2.bf16.msra.mxu0 %v2401
  %3442 = vmatprep.subr.bf16.mxu0 %v2400
  %3443 = vmatpush2.bf16.msra.mxu0 %v2399
  %3444 = vmatprep.subr.bf16.mxu0 %v2398
  %3445 = vmatpush2.bf16.msra.mxu0 %v2397
  %3446 = vmatprep.subr.bf16.mxu0 %v2396
  %3447 = vmatpush2.bf16.msra.mxu0 %v2395
  %3448 = vmatprep.subr.bf16.mxu0 %v2394
  %3449 = vmatpush2.bf16.msra.mxu0 %v2393
  %3450 = vmatprep.subr.bf16.mxu0 %v2392
  %3451 = vmatpush2.bf16.msra.mxu0 %v2391
  %3452 = vmatprep.subr.bf16.mxu0 %v2390
  %3453 = vmatpush2.bf16.msra.mxu0 %v2389
  %3454 = vmatprep.subr.bf16.mxu0 %v2388
  %3455 = vmatpush2.bf16.msra.mxu0 %v2387
  %3456 = vmatprep.mubr.bf16.mxu0 %v698
  %3457 = vmatmul.mubr.bf16.gmra.mxu0 %v697
  %v3458 = vpop.f32.mrf.mxu0
  %v3459 = vadd.f32 %v3406, %v3458
  %v3460 = vpop.f32.mrf.mxu0
  %v3461 = vadd.f32 %v3408, %v3460
  %v3462 = vpop.f32.mrf.mxu0
  %v3463 = vadd.f32 %v3410, %v3462
  %v3464 = vpop.f32.mrf.mxu0
  %v3465 = vadd.f32 %v3412, %v3464
  %3466 = vmatprep.mubr.bf16.mxu0 %v725
  %3467 = vmatmul.mubr.bf16.gmra.mxu0 %v724
  %v3468 = vpop.f32.mrf.mxu0
  %v3469 = vadd.f32 %v3416, %v3468
  %v3470 = vpop.f32.mrf.mxu0
  %v3471 = vadd.f32 %v3418, %v3470
  %v3472 = vpop.f32.mrf.mxu0
  %v3473 = vadd.f32 %v3420, %v3472
  %v3474 = vpop.f32.mrf.mxu0
  %v3475 = vadd.f32 %v3422, %v3474
  %3476 = vdwg.mxu0
  %3477 = vmatprep.subr.bf16.mxu0 %v2418
  %3478 = vmatpush1.bf16.msra.mxu0 %v2417
  %3479 = vmatprep.subr.bf16.mxu0 %v2416
  %3480 = vmatpush1.bf16.msra.mxu0 %v2415
  %3481 = vmatprep.subr.bf16.mxu0 %v2414
  %3482 = vmatpush1.bf16.msra.mxu0 %v2413
  %3483 = vmatprep.subr.bf16.mxu0 %v2412
  %3484 = vmatpush1.bf16.msra.mxu0 %v2411
  %3485 = vmatprep.subr.bf16.mxu0 %v2410
  %3486 = vmatpush1.bf16.msra.mxu0 %v2409
  %3487 = vmatprep.subr.bf16.mxu0 %v2408
  %3488 = vmatpush1.bf16.msra.mxu0 %v2407
  %3489 = vmatprep.subr.bf16.mxu0 %v2406
  %3490 = vmatpush1.bf16.msra.mxu0 %v2405
  %3491 = vmatprep.subr.bf16.mxu0 %v2404
  %3492 = vmatpush1.bf16.msra.mxu0 %v2403
  %3493 = vmatprep.subr.bf16.mxu0 %v2434
  %3494 = vmatpush2.bf16.msra.mxu0 %v2433
  %3495 = vmatprep.subr.bf16.mxu0 %v2432
  %3496 = vmatpush2.bf16.msra.mxu0 %v2431
  %3497 = vmatprep.subr.bf16.mxu0 %v2430
  %3498 = vmatpush2.bf16.msra.mxu0 %v2429
  %3499 = vmatprep.subr.bf16.mxu0 %v2428
  %3500 = vmatpush2.bf16.msra.mxu0 %v2427
  %3501 = vmatprep.subr.bf16.mxu0 %v2426
  %3502 = vmatpush2.bf16.msra.mxu0 %v2425
  %3503 = vmatprep.subr.bf16.mxu0 %v2424
  %3504 = vmatpush2.bf16.msra.mxu0 %v2423
  %3505 = vmatprep.subr.bf16.mxu0 %v2422
  %3506 = vmatpush2.bf16.msra.mxu0 %v2421
  %3507 = vmatprep.subr.bf16.mxu0 %v2420
  %3508 = vmatpush2.bf16.msra.mxu0 %v2419
  %3509 = vmatprep.mubr.bf16.mxu0 %v700
  %3510 = vmatmul.mubr.bf16.gmra.mxu0 %v699
  %v3511 = vpop.f32.mrf.mxu0
  %v3512 = vadd.f32 %v3459, %v3511
  %v3513 = vpop.f32.mrf.mxu0
  %v3514 = vadd.f32 %v3461, %v3513
  %v3515 = vpop.f32.mrf.mxu0
  %v3516 = vadd.f32 %v3463, %v3515
  %v3517 = vpop.f32.mrf.mxu0
  %v3518 = vadd.f32 %v3465, %v3517
  %3519 = vmatprep.mubr.bf16.mxu0 %v727
  %3520 = vmatmul.mubr.bf16.gmra.mxu0 %v726
  %v3521 = vpop.f32.mrf.mxu0
  %v3522 = vadd.f32 %v3469, %v3521
  %v3523 = vpop.f32.mrf.mxu0
  %v3524 = vadd.f32 %v3471, %v3523
  %v3525 = vpop.f32.mrf.mxu0
  %v3526 = vadd.f32 %v3473, %v3525
  %v3527 = vpop.f32.mrf.mxu0
  %v3528 = vadd.f32 %v3475, %v3527
  %3529 = vdwg.mxu0
  %3530 = vmatprep.subr.bf16.mxu0 %v2450
  %3531 = vmatpush1.bf16.msra.mxu0 %v2449
  %3532 = vmatprep.subr.bf16.mxu0 %v2448
  %3533 = vmatpush1.bf16.msra.mxu0 %v2447
  %3534 = vmatprep.subr.bf16.mxu0 %v2446
  %3535 = vmatpush1.bf16.msra.mxu0 %v2445
  %3536 = vmatprep.subr.bf16.mxu0 %v2444
  %3537 = vmatpush1.bf16.msra.mxu0 %v2443
  %3538 = vmatprep.subr.bf16.mxu0 %v2442
  %3539 = vmatpush1.bf16.msra.mxu0 %v2441
  %3540 = vmatprep.subr.bf16.mxu0 %v2440
  %3541 = vmatpush1.bf16.msra.mxu0 %v2439
  %3542 = vmatprep.subr.bf16.mxu0 %v2438
  %3543 = vmatpush1.bf16.msra.mxu0 %v2437
  %3544 = vmatprep.subr.bf16.mxu0 %v2436
  %3545 = vmatpush1.bf16.msra.mxu0 %v2435
  %3546 = vmatprep.subr.bf16.mxu0 %v2466
  %3547 = vmatpush2.bf16.msra.mxu0 %v2465
  %3548 = vmatprep.subr.bf16.mxu0 %v2464
  %3549 = vmatpush2.bf16.msra.mxu0 %v2463
  %3550 = vmatprep.subr.bf16.mxu0 %v2462
  %3551 = vmatpush2.bf16.msra.mxu0 %v2461
  %3552 = vmatprep.subr.bf16.mxu0 %v2460
  %3553 = vmatpush2.bf16.msra.mxu0 %v2459
  %3554 = vmatprep.subr.bf16.mxu0 %v2458
  %3555 = vmatpush2.bf16.msra.mxu0 %v2457
  %3556 = vmatprep.subr.bf16.mxu0 %v2456
  %3557 = vmatpush2.bf16.msra.mxu0 %v2455
  %3558 = vmatprep.subr.bf16.mxu0 %v2454
  %3559 = vmatpush2.bf16.msra.mxu0 %v2453
  %3560 = vmatprep.subr.bf16.mxu0 %v2452
  %3561 = vmatpush2.bf16.msra.mxu0 %v2451
  %3562 = vmatprep.mubr.bf16.mxu0 %v702
  %3563 = vmatmul.mubr.bf16.gmra.mxu0 %v701
  %v3564 = vpop.f32.mrf.mxu0
  %v3565 = vadd.f32 %v3512, %v3564
  %v3566 = vpop.f32.mrf.mxu0
  %v3567 = vadd.f32 %v3514, %v3566
  %v3568 = vpop.f32.mrf.mxu0
  %v3569 = vadd.f32 %v3516, %v3568
  %v3570 = vpop.f32.mrf.mxu0
  %v3571 = vadd.f32 %v3518, %v3570
  %3572 = vmatprep.mubr.bf16.mxu0 %v729
  %3573 = vmatmul.mubr.bf16.gmra.mxu0 %v728
  %v3574 = vpop.f32.mrf.mxu0
  %v3575 = vadd.f32 %v3522, %v3574
  %v3576 = vpop.f32.mrf.mxu0
  %v3577 = vadd.f32 %v3524, %v3576
  %v3578 = vpop.f32.mrf.mxu0
  %v3579 = vadd.f32 %v3526, %v3578
  %v3580 = vpop.f32.mrf.mxu0
  %v3581 = vadd.f32 %v3528, %v3580
  %3582 = vdwg.mxu0
  %3583 = vmatprep.subr.bf16.mxu0 %v2482
  %3584 = vmatpush1.bf16.msra.mxu0 %v2481
  %3585 = vmatprep.subr.bf16.mxu0 %v2480
  %3586 = vmatpush1.bf16.msra.mxu0 %v2479
  %3587 = vmatprep.subr.bf16.mxu0 %v2478
  %3588 = vmatpush1.bf16.msra.mxu0 %v2477
  %3589 = vmatprep.subr.bf16.mxu0 %v2476
  %3590 = vmatpush1.bf16.msra.mxu0 %v2475
  %3591 = vmatprep.subr.bf16.mxu0 %v2474
  %3592 = vmatpush1.bf16.msra.mxu0 %v2473
  %3593 = vmatprep.subr.bf16.mxu0 %v2472
  %3594 = vmatpush1.bf16.msra.mxu0 %v2471
  %3595 = vmatprep.subr.bf16.mxu0 %v2470
  %3596 = vmatpush1.bf16.msra.mxu0 %v2469
  %3597 = vmatprep.subr.bf16.mxu0 %v2468
  %3598 = vmatpush1.bf16.msra.mxu0 %v2467
  %3599 = vmatprep.subr.bf16.mxu0 %v2498
  %3600 = vmatpush2.bf16.msra.mxu0 %v2497
  %3601 = vmatprep.subr.bf16.mxu0 %v2496
  %3602 = vmatpush2.bf16.msra.mxu0 %v2495
  %3603 = vmatprep.subr.bf16.mxu0 %v2494
  %3604 = vmatpush2.bf16.msra.mxu0 %v2493
  %3605 = vmatprep.subr.bf16.mxu0 %v2492
  %3606 = vmatpush2.bf16.msra.mxu0 %v2491
  %3607 = vmatprep.subr.bf16.mxu0 %v2490
  %3608 = vmatpush2.bf16.msra.mxu0 %v2489
  %3609 = vmatprep.subr.bf16.mxu0 %v2488
  %3610 = vmatpush2.bf16.msra.mxu0 %v2487
  %3611 = vmatprep.subr.bf16.mxu0 %v2486
  %3612 = vmatpush2.bf16.msra.mxu0 %v2485
  %3613 = vmatprep.subr.bf16.mxu0 %v2484
  %3614 = vmatpush2.bf16.msra.mxu0 %v2483
  %3615 = vmatprep.mubr.bf16.mxu0 %v704
  %3616 = vmatmul.mubr.bf16.gmra.mxu0 %v703
  %v3617 = vpop.f32.mrf.mxu0
  %v3618 = vadd.f32 %v3565, %v3617
  %v3619 = vpop.f32.mrf.mxu0
  %v3620 = vadd.f32 %v3567, %v3619
  %v3621 = vpop.f32.mrf.mxu0
  %v3622 = vadd.f32 %v3569, %v3621
  %v3623 = vpop.f32.mrf.mxu0
  %v3624 = vadd.f32 %v3571, %v3623
  %3625 = vmatprep.mubr.bf16.mxu0 %v731
  %3626 = vmatmul.mubr.bf16.gmra.mxu0 %v730
  %v3627 = vpop.f32.mrf.mxu0
  %v3628 = vadd.f32 %v3575, %v3627
  %v3629 = vpop.f32.mrf.mxu0
  %v3630 = vadd.f32 %v3577, %v3629
  %v3631 = vpop.f32.mrf.mxu0
  %v3632 = vadd.f32 %v3579, %v3631
  %v3633 = vpop.f32.mrf.mxu0
  %v3634 = vadd.f32 %v3581, %v3633
  %3635 = vdwg.mxu0
  %3636 = vmatprep.subr.bf16.mxu0 %v2514
  %3637 = vmatpush1.bf16.msra.mxu0 %v2513
  %3638 = vmatprep.subr.bf16.mxu0 %v2512
  %3639 = vmatpush1.bf16.msra.mxu0 %v2511
  %3640 = vmatprep.subr.bf16.mxu0 %v2510
  %3641 = vmatpush1.bf16.msra.mxu0 %v2509
  %3642 = vmatprep.subr.bf16.mxu0 %v2508
  %3643 = vmatpush1.bf16.msra.mxu0 %v2507
  %3644 = vmatprep.subr.bf16.mxu0 %v2506
  %3645 = vmatpush1.bf16.msra.mxu0 %v2505
  %3646 = vmatprep.subr.bf16.mxu0 %v2504
  %3647 = vmatpush1.bf16.msra.mxu0 %v2503
  %3648 = vmatprep.subr.bf16.mxu0 %v2502
  %3649 = vmatpush1.bf16.msra.mxu0 %v2501
  %3650 = vmatprep.subr.bf16.mxu0 %v2500
  %3651 = vmatpush1.bf16.msra.mxu0 %v2499
  %3652 = vmatprep.subr.bf16.mxu0 0
  %3653 = vmatpush2.bf16.msra.mxu0 0
  %3654 = vmatprep.subr.bf16.mxu0 0
  %3655 = vmatpush2.bf16.msra.mxu0 0
  %3656 = vmatprep.subr.bf16.mxu0 0
  %3657 = vmatpush2.bf16.msra.mxu0 0
  %3658 = vmatprep.subr.bf16.mxu0 0
  %3659 = vmatpush2.bf16.msra.mxu0 0
  %3660 = vmatprep.subr.bf16.mxu0 0
  %3661 = vmatpush2.bf16.msra.mxu0 0
  %3662 = vmatprep.subr.bf16.mxu0 0
  %3663 = vmatpush2.bf16.msra.mxu0 0
  %3664 = vmatprep.subr.bf16.mxu0 0
  %3665 = vmatpush2.bf16.msra.mxu0 0
  %3666 = vmatprep.subr.bf16.mxu0 0
  %3667 = vmatpush2.bf16.msra.mxu0 0
  %3668 = vmatprep.mubr.bf16.mxu0 0
  %3669 = vmatmul.mubr.bf16.gmra.mxu0 %v705
  %v3670 = vpop.f32.mrf.mxu0
  %v3671 = vadd.f32 %v3618, %v3670
  %v3672 = vpop.f32.mrf.mxu0
  %v3673 = vadd.f32 %v3620, %v3672
  %v3674 = vpop.f32.mrf.mxu0
  %v3675 = vadd.f32 %v3622, %v3674
  %v3676 = vpop.f32.mrf.mxu0
  %v3677 = vadd.f32 %v3624, %v3676
  %3678 = vmatprep.mubr.bf16.mxu0 0
  %3679 = vmatmul.mubr.bf16.gmra.mxu0 %v732
  %v3680 = vpop.f32.mrf.mxu0
  %v3681 = vadd.f32 %v3628, %v3680
  %v3682 = vpop.f32.mrf.mxu0
  %v3683 = vadd.f32 %v3630, %v3682
  %v3684 = vpop.f32.mrf.mxu0
  %v3685 = vadd.f32 %v3632, %v3684
  %v3686 = vpop.f32.mrf.mxu0
  %v3687 = vadd.f32 %v3634, %v3686
  %3688 = vdwg.mxu0
  %v3689 = vmax.f32 %v3671, 0.0
  %v3690 = vmax.f32 %v3673, 0.0
  %v3691 = vmax.f32 %v3675, 0.0
  %v3692 = vmax.f32 %v3677, 0.0
  %v3693 = vmax.f32 %v3681, 0.0
  %v3694 = vmax.f32 %v3683, 0.0
  %v3695 = vmax.f32 %v3685, 0.0
  %v3696 = vmax.f32 %v3687, 0.0
  %v3697 = vpack.c.bf16 %v3691, %v3689
  %v3698 = vpack.c.bf16 %v3692, %v3690
  %v3699 = vpack.c.bf16 %v3695, %v3693
  %v3700 = vpack.c.bf16 %v3696, %v3694
  %v3705 = vunpack.c.l.b16 %v3697
  %v3706 = vunpack.c.l.b16 %v3698
  %v3707 = vunpack.c.h.b16 %v3697
  %v3708 = vunpack.c.h.b16 %v3698
  %v3709 = vunpack.c.l.b16 %v3699
  %v3710 = vunpack.c.l.b16 %v3700
  %v3711 = vunpack.c.h.b16 %v3699
  %v3712 = vunpack.c.h.b16 %v3700
  %v3713 = vpack.c.b16 %v3706, %v3705
  %v3714 = vpack.c.b16 %v3708, %v3707
  %v3715 = vpack.c.b16 %v3710, %v3709
  %v3716 = vpack.c.b16 %v3712, %v3711
  %3721 = vst [vmem:[%s3] sm:$0xff] %v3713
  %3722 = vst [vmem:[%s3 + $0x8] sm:$0xff] %v3714
  %3723 = vst [vmem:[%s3 + $0x10] sm:$0xff] %v3715
  %3724 = vst [vmem:[%s3 + $0x18] sm:$0xff] %v3716
  // Predicated region
  $region14: #{alexnet_features.13} parent=0 // pred_check
    _
  $region15: #{alexnet_features.13} parent=0 // pred_check_branch
    %3726 = sbr.rel (0) target = $region17
  $region16: #{alexnet_features.13} parent=0 // pred_region
    _
  $region17: #{alexnet_features.13} parent=0 // pred_fallthru
    _
  // Predicated region
  $region18: #{alexnet_features.13} parent=0 // pred_check
    _
  $region19: #{alexnet_features.13} parent=0 // pred_check_branch
    %3728 = sbr.rel (0) target = $region21
  $region20: #{alexnet_features.13} parent=0 // pred_region
    _
  $region21: #{alexnet_features.13} parent=0 // pred_fallthru
    _

</llo_original>
